<compile_context>
chip_gen: v7x
topology: tpu7x:2x2x1
jax: 0.10.0
libtpu: 0.0.40
codegen_flags: <defaults>
</compile_context>

<pallas_src>
import math

import jax
import jax.numpy as jnp
from jax.experimental import pallas as pl
from jax.experimental.pallas import tpu as pltpu


# ----------------------------------------------------------------------------
# Fourier positional features (standard deepmind-perceiver reference impl).
# ----------------------------------------------------------------------------
def fourier_features(shape, bands):
    dims = len(shape)
    grids = jnp.meshgrid(*(jnp.linspace(-1.0, 1.0, n) for n in shape), indexing="ij")
    pos = jnp.stack(grids)                                     # (dims, *shape)
    pos = jnp.broadcast_to(pos[None], (bands,) + pos.shape)    # (bands, dims, *shape)
    freqs = jnp.logspace(0.0, math.log(shape[0] / 2), num=bands, base=math.e)
    freqs = freqs.reshape((bands,) + (1,) * (dims + 1))
    result = (freqs * math.pi * pos).reshape((dims * bands,) + tuple(shape))
    return jnp.concatenate([jnp.sin(result), jnp.cos(result)], axis=0).astype(jnp.float32)


# ----------------------------------------------------------------------------
# In-kernel helpers (f32 VPU/EUP math)
# ----------------------------------------------------------------------------
def _erf(x):
    # TODO(synk): lax.erf lowering availability varies across Mosaic versions;
    # Abramowitz & Stegun 7.1.26 matches exact erf to ~1.5e-7, preserving the
    # erf-form F.gelu semantics within f32 noise.
    a1, a2, a3, a4, a5 = 0.254829592, -0.284496736, 1.421413741, -1.453152027, 1.061405429
    p = 0.3275911
    sign = jnp.where(x >= 0.0, 1.0, -1.0)
    ax = jnp.abs(x)
    t = 1.0 / (1.0 + p * ax)
    poly = ((((a5 * t + a4) * t + a3) * t + a2) * t + a1) * t
    return sign * (1.0 - poly * jnp.exp(-ax * ax))


def _gelu_exact(x):
    return x * 0.5 * (1.0 + _erf(x * (1.0 / math.sqrt(2.0))))


_NW = 7    # per attention sub-block: [Wq*scale, Wk, Wv, Wout, W1, W2, W3] (all (in,out))
_NV = 16   # [g_x, b_x, g_1, b_1, bq*scale, bk, bv, bias_k, bias_v,
           #  out_b, b1, g_2, b_2, b2, b3, <pad>]
_EPS = 1e-5


def _round_up(x, m):
    return ((x + m - 1) // m) * m


# ----------------------------------------------------------------------------
# Fused kernel: one grid step == one PerceiverBlock application.
#   grid = (batch_chunks [parallel], layer_steps [arbitrary])
#   step 0 : embed image rows, init latents (per batch chunk)
#   last   : also run the logits head
# ----------------------------------------------------------------------------
def _make_fused_kernel(*, bc, N, latents, D, heads, A):
    BF = jnp.bfloat16

    def kernel(x_ref, ew_ref, eb_ref, lat_ref, w_ref, v_ref,
               hw1_ref, hb1_ref, hw2_ref, hb2_ref, o_ref, x_scr, z_scr):
        step = pl.program_id(1)
        last = pl.num_programs(1) - 1

        # ---- step 0 (per batch chunk): embedding (Conv1d 1x1) + latent init
        @pl.when(step == 0)
        def _init():
            xe = jnp.dot(x_ref[...], ew_ref[...],
                         preferred_element_type=jnp.float32) + eb_ref[...]
            x_scr[...] = xe                                    # (bc*N, D) f32
            for b in range(bc):                                # tiny static loop
                z_scr[pl.ds(b * latents, latents), :] = lat_ref[...]

        x2 = x_scr[...]                                        # (bc*N, D)       f32
        z2 = z_scr[...]                                        # (bc*latents, D) f32
        v_all = v_ref[0, :, :]                                 # (A*_NV, D)      f32

        def layer_norm(t, g, b):
            mu = jnp.mean(t, axis=-1, keepdims=True)
            var = jnp.mean(jnp.square(t - mu), axis=-1, keepdims=True)
            return (t - mu) * jax.lax.rsqrt(var + _EPS) * g + b

        def attn_block(xsrc2, zin2, Lk, Lq, a, nheads):
            """PerceiverAttentionBlock on flattened (bc*L, D) activations."""
            dh = D // nheads

            def wm(i):
                return w_ref[0, a * _NW + i, :, :]             # (D, D) bf16

            def vec(i):
                j = a * _NV + i
                return v_all[j:j + 1, :]                       # (1, D) f32

            xl = layer_norm(xsrc2, vec(0), vec(1))             # layer_norm_x
            zl = layer_norm(zin2, vec(2), vec(3))              # layer_norm_1

            # fused full-width projections (bf16 operands, f32 accumulation)
            q2 = jnp.dot(zl.astype(BF), wm(0), preferred_element_type=jnp.float32) + vec(4)
            k2 = jnp.dot(xl.astype(BF), wm(1), preferred_element_type=jnp.float32) + vec(5)
            v2 = jnp.dot(xl.astype(BF), wm(2), preferred_element_type=jnp.float32) + vec(6)

            q = q2.reshape(bc, Lq, D)
            k = k2.reshape(bc, Lk, D)
            v = v2.reshape(bc, Lk, D)
            bias_k = vec(7)
            bias_v = vec(8)

            # TODO(synk): heads stay a short static loop of batched 3-D einsums
            # (documented Mosaic pattern); a single 'bqhd,bkhd->bhqk' einsum
            # would also batch heads but is riskier to lower.
            outs = []
            for h in range(nheads):
                lo, hi = h * dh, (h + 1) * dh
                qh, kh, vh = q[:, :, lo:hi], k[:, :, lo:hi], v[:, :, lo:hi]
                bkh, bvh = bias_k[:, lo:hi], bias_v[:, lo:hi]

                s = jnp.einsum("bqd,bkd->bqk", qh.astype(BF), kh.astype(BF),
                               preferred_element_type=jnp.float32)       # (bc,Lq,Lk)
                # score against the appended bias_k "extra key" (add_bias_kv=True)
                s_b = jnp.sum(qh * bkh, axis=-1, keepdims=True)          # (bc,Lq,1)
                mx = jnp.maximum(jnp.max(s, axis=-1, keepdims=True), s_b)
                p = jnp.exp(s - mx)
                p_b = jnp.exp(s_b - mx)
                den = jnp.sum(p, axis=-1, keepdims=True) + p_b
                oh = jnp.einsum("bqk,bkd->bqd", p.astype(BF), vh.astype(BF),
                                preferred_element_type=jnp.float32)
                outs.append((oh + p_b * bvh) / den)                      # (bc,Lq,dh)

            attn = outs[0] if nheads == 1 else jnp.concatenate(outs, axis=-1)
            attn2 = attn.reshape(bc * Lq, D)

            ao = jnp.dot(attn2.astype(BF), wm(3),
                         preferred_element_type=jnp.float32) + vec(9)    # out_proj
            t = jnp.dot(ao.astype(BF), wm(4),
                        preferred_element_type=jnp.float32) + vec(10)    # linear1
            t = layer_norm(t, vec(11), vec(12))                          # layer_norm_2
            t = jnp.dot(t.astype(BF), wm(5),
                        preferred_element_type=jnp.float32) + vec(13)    # linear2
            t = _gelu_exact(t)                                           # F.gelu (erf)
            t = jnp.dot(t.astype(BF), wm(6),
                        preferred_element_type=jnp.float32) + vec(14)    # linear3
            return t + zin2                                              # residual

        # PerceiverBlock: cross-attention (heads=1) then latent self-attentions.
        # TODO(synk): for production image sizes add flash-style KV tiling over
        # N so the x_seq block stays inside v7x's 64 MiB VMEM.
        z2 = attn_block(x2, z2, N, latents, 0, 1)
        for a in range(1, A):
            z2 = attn_block(z2, z2, latents, latents, a, heads)
        z_scr[...] = z2

        # ---- final step: logits head (mean over latents commutes with linear1)
        @pl.when(step == last)
        def _head():
            means = [jnp.mean(z2[b * latents:(b + 1) * latents, :],
                              axis=0, keepdims=True) for b in range(bc)]
            m = means[0] if bc == 1 else jnp.concatenate(means, axis=0)   # (bc, D)
            h1 = jnp.dot(m.astype(BF), hw1_ref[...],
                         preferred_element_type=jnp.float32) + hb1_ref[...]
            logits = jnp.dot(h1.astype(BF), hw2_ref[...],
                             preferred_element_type=jnp.float32) + hb2_ref[...]
            mx = jnp.max(logits, axis=-1, keepdims=True)
            sh = logits - mx
            lse = jnp.log(jnp.sum(jnp.exp(sh), axis=-1, keepdims=True))
            o_ref[...] = sh - lse                                         # log_softmax

    return kernel


def perceiver_logits_forward(x_flat, p, *, B, N, latents, D, heads,
                             latent_blocks, layers, f_pad, batch_block):
    bc = batch_block
    assert B % bc == 0
    n_chunks = B // bc
    n_steps = 1 + max(layers - 1, 0)      # block1 once, block2 (weight-shared) repeats
    A = 1 + latent_blocks
    Cin = x_flat.shape[1]

    kernel = _make_fused_kernel(bc=bc, N=N, latents=latents, D=D, heads=heads, A=A)

    def sel(l):                            # block1 weights at step 0, block2 after
        return jnp.minimum(l, 1)

    return pl.pallas_call(
        kernel,
        out_shape=jax.ShapeDtypeStruct((B, f_pad), jnp.float32),
        grid_spec=pltpu.PrefetchScalarGridSpec(
            num_scalar_prefetch=0,
            grid=(n_chunks, n_steps),
            in_specs=[
                pl.BlockSpec((bc * N, Cin), lambda bi, l: (bi, 0)),            # image rows (bf16)
                pl.BlockSpec((Cin, D), lambda bi, l: (0, 0)),                  # embed W (bf16)
                pl.BlockSpec((1, D), lambda bi, l: (0, 0)),                    # embed b
                pl.BlockSpec((latents, D), lambda bi, l: (0, 0)),              # init latents
                pl.BlockSpec((1, A * _NW, D, D), lambda bi, l: (sel(l), 0, 0, 0)),  # block W (bf16)
                pl.BlockSpec((1, A * _NV, D), lambda bi, l: (sel(l), 0, 0)),        # block vecs (f32)
                pl.BlockSpec((D, D), lambda bi, l: (0, 0)),                    # head W1 (bf16)
                pl.BlockSpec((1, D), lambda bi, l: (0, 0)),                    # head b1
                pl.BlockSpec((D, f_pad), lambda bi, l: (0, 0)),                # head W2 padded (bf16)
                pl.BlockSpec((1, f_pad), lambda bi, l: (0, 0)),                # head b2 padded
            ],
            out_specs=pl.BlockSpec((bc, f_pad), lambda bi, l: (bi, 0)),
            scratch_shapes=[pltpu.VMEM((bc * N, D), jnp.float32),              # embedded x_seq
                            pltpu.VMEM((bc * latents, D), jnp.float32)]),      # latent state z
        compiler_params=pltpu.CompilerParams(
            dimension_semantics=("parallel", "arbitrary")),
    )(x_flat, p["embed_w"], p["embed_b"], p["init_latent"], p["W"], p["V"],
      p["head_w1"], p["head_b1"], p["head_w2"], p["head_b2"])


# ----------------------------------------------------------------------------
# Parameter construction (PyTorch-layout) + host-side packing into kernel slabs
# ----------------------------------------------------------------------------
def init_attention_block_params(key, D):
    ks = jax.random.split(key, 11)
    s = 0.08
    rn = lambda k, shp: jax.random.normal(k, shp, jnp.float32) * s
    return dict(
        in_proj_w=rn(ks[0], (3 * D, D)), in_proj_b=rn(ks[1], (3 * D,)),
        bias_k=rn(ks[2], (D,)), bias_v=rn(ks[3], (D,)),
        out_w=rn(ks[4], (D, D)), out_b=jnp.zeros((D,), jnp.float32),
        w1=rn(ks[5], (D, D)), b1=rn(ks[6], (D,)),
        w2=rn(ks[7], (D, D)), b2=rn(ks[8], (D,)),
        w3=rn(ks[9], (D, D)), b3=rn(ks[10], (D,)),
        ln_x_g=jnp.ones((D,), jnp.float32), ln_x_b=jnp.zeros((D,), jnp.float32),
        ln_1_g=jnp.ones((D,), jnp.float32), ln_1_b=jnp.zeros((D,), jnp.float32),
        ln_2_g=jnp.ones((D,), jnp.float32), ln_2_b=jnp.zeros((D,), jnp.float32),
    )


def init_params(key, cfg):
    D = cfg["d_model"]
    Fc = 2 * len(cfg["input_shape"]) * cfg["fourier_bands"]
    Cin = cfg["input_channels"] + Fc
    keys = jax.random.split(key, 7)

    def init_block(k):
        kc, *kl = jax.random.split(k, 1 + cfg["latent_blocks"])
        return {"cross": init_attention_block_params(kc, D),
                "latent": [init_attention_block_params(kk, D) for kk in kl]}

    return {
        "embed_w": jax.random.normal(keys[0], (D, Cin), jnp.float32) * 0.1,   # Conv1d (out,in)
        "embed_b": jax.random.normal(keys[1], (D,), jnp.float32) * 0.1,
        "init_latent": jax.random.uniform(keys[2], (cfg["latents"], D), jnp.float32),
        "block1": init_block(keys[3]),
        "block2": init_block(keys[4]),
        "head_w1": jax.random.normal(keys[5], (D, D), jnp.float32) * 0.1,
        "head_b1": jnp.zeros((D,), jnp.float32),
        "head_w2": jax.random.normal(keys[6], (cfg["output_features"], D), jnp.float32) * 0.1,
        "head_b2": jnp.zeros((cfg["output_features"],), jnp.float32),
    }


def _pack_attention_block(p, D, nheads):
    """Lane-dense (in, out) slabs; 1/sqrt(dh) query scale folded into Wq / bq."""
    dh = D // nheads
    scale = 1.0 / math.sqrt(dh)
    Wq, Wk, Wv = p["in_proj_w"][:D], p["in_proj_w"][D:2 * D], p["in_proj_w"][2 * D:]
    bq, bk, bv = p["in_proj_b"][:D], p["in_proj_b"][D:2 * D], p["in_proj_b"][2 * D:]
    W = jnp.stack([Wq.T * scale, Wk.T, Wv.T, p["out_w"].T,
                   p["w1"].T, p["w2"].T, p["w3"].T], axis=0)                  # (7, D, D)
    V = jnp.stack([p["ln_x_g"], p["ln_x_b"], p["ln_1_g"], p["ln_1_b"],
                   bq * scale, bk, bv, p["bias_k"], p["bias_v"],
                   p["out_b"], p["b1"], p["ln_2_g"], p["ln_2_b"],
                   p["b2"], p["b3"], jnp.zeros((D,), jnp.float32)], axis=0)   # (16, D)
    return W, V


def pack_params(params, cfg):
    D, heads = cfg["d_model"], cfg["heads"]
    F_out = cfg["output_features"]
    f_pad = max(128, _round_up(F_out, 128))

    def pack_block(bp):
        subs = [_pack_attention_block(bp["cross"], D, 1)]
        subs += [_pack_attention_block(lp, D, heads) for lp in bp["latent"]]
        W = jnp.concatenate([w for w, _ in subs], axis=0)   # (A*_NW, D, D)
        V = jnp.concatenate([v for _, v in subs], axis=0)   # (A*_NV, D)
        return W, V

    W1, V1 = pack_block(params["block1"])
    W2, V2 = pack_block(params["block2"])

    return {
        "embed_w": params["embed_w"].T.astype(jnp.bfloat16),            # (Cin, D)
        "embed_b": params["embed_b"].reshape(1, D),
        "init_latent": params["init_latent"],
        "W": jnp.stack([W1, W2], axis=0).astype(jnp.bfloat16),          # (2, A*7, D, D)
        "V": jnp.stack([V1, V2], axis=0),                               # (2, A*16, D) f32
        "head_w1": params["head_w1"].T.astype(jnp.bfloat16),            # (D, D)
        "head_b1": params["head_b1"].reshape(1, D),
        "head_w2": jnp.pad(params["head_w2"].T,
                           ((0, 0), (0, f_pad - F_out))).astype(jnp.bfloat16),
        "head_b2": jnp.pad(params["head_b2"].reshape(1, F_out),
                           ((0, 0), (0, f_pad - F_out)),
                           constant_values=-1e30),                      # kill padded lanes
    }


# ----------------------------------------------------------------------------
# Full forward pass (wrapper does only layout plumbing; all compute in Pallas)
# ----------------------------------------------------------------------------
def make_forward(cfg, batch_block=None):
    D = cfg["d_model"]
    heads = cfg["heads"]
    H, W = cfg["input_shape"]
    N = H * W
    latents = cfg["latents"]
    F_out = cfg["output_features"]
    f_pad = max(128, _round_up(F_out, 128))
    ff = fourier_features((H, W), cfg["fourier_bands"])      # constant (Fc, H, W)

    def forward(packed, x_img):
        B = x_img.shape[0]
        bc = batch_block or B     # whole batch per block; set B//2 on v7x to feed both TCs
        pos = jnp.broadcast_to(ff[None], (B,) + ff.shape)
        xc = jnp.concatenate([x_img, pos], axis=1)                     # (B, C+Fc, H, W)
        Cin = xc.shape[1]
        x_cl = jnp.transpose(xc.reshape(B, Cin, N), (0, 2, 1))         # (B, N, Cin)
        x_flat = x_cl.reshape(B * N, Cin).astype(jnp.bfloat16)         # batch-major rows

        out_pad = perceiver_logits_forward(
            x_flat, packed, B=B, N=N, latents=latents, D=D, heads=heads,
            latent_blocks=cfg["latent_blocks"], layers=cfg["layers"],
            f_pad=f_pad, batch_block=bc)
        return out_pad[:, :F_out]                                      # drop lane padding

    return forward


if __name__ == "__main__":
    cfg = dict(input_channels=4, input_shape=(8, 8), output_features=10,
               fourier_bands=4, latents=16, d_model=32, heads=4,
               latent_blocks=2, dropout=0.1, layers=2)

    key = jax.random.PRNGKey(0)
    pkey, xkey = jax.random.split(key)
    params = init_params(pkey, cfg)
    packed = pack_params(params, cfg)
    x = jax.random.normal(xkey, (2, cfg["input_channels"]) + cfg["input_shape"], jnp.float32)

    fwd = jax.jit(make_forward(cfg))
    out = fwd(packed, x)
    jax.block_until_ready(out)

    assert out.shape == (2, cfg["output_features"])
    assert bool(jnp.all(jnp.isfinite(out)))
    # log_softmax rows must exponentiate-sum to 1
    assert bool(jnp.allclose(jnp.sum(jnp.exp(out), axis=-1), 1.0, atol=1e-4))
    print("KERNEL_OK")
</pallas_src>

<mosaic_0001>
module attributes {stable_mosaic.version = 11 : i64} {
  func.func @kernel(%arg0: i32, %arg1: i32, %arg2: memref<128x20xbf16, #tpu.memory_space<vmem>>, %arg3: memref<20x32xbf16, #tpu.memory_space<vmem>>, %arg4: memref<1x32xf32, #tpu.memory_space<vmem>>, %arg5: memref<16x32xf32, #tpu.memory_space<vmem>>, %arg6: memref<1x21x32x32xbf16, #tpu.memory_space<vmem>>, %arg7: memref<1x48x32xf32, #tpu.memory_space<vmem>>, %arg8: memref<32x32xbf16, #tpu.memory_space<vmem>>, %arg9: memref<1x32xf32, #tpu.memory_space<vmem>>, %arg10: memref<32x128xbf16, #tpu.memory_space<vmem>>, %arg11: memref<1x128xf32, #tpu.memory_space<vmem>>, %arg12: memref<2x128xf32, #tpu.memory_space<vmem>>, %arg13: memref<128x32xf32, #tpu.memory_space<vmem>>, %arg14: memref<32x32xf32, #tpu.memory_space<vmem>>) attributes {dimension_semantics = [#tpu.dimension_semantics<parallel>, #tpu.dimension_semantics<arbitrary>], iteration_bounds = array<i64: 1, 2>, scalar_prefetch = 0 : i64, scratch_operands = 2 : i64, tpu.core_type = #tpu.core_type<tc>, window_params = [{transform_indices = @transform_0, window_bounds = array<i64: 128, 20>}, {pipeline_mode = #tpu.pipeline_mode<synchronous>, transform_indices = @transform_1, window_bounds = array<i64: 20, 32>}, {pipeline_mode = #tpu.pipeline_mode<synchronous>, transform_indices = @transform_2, window_bounds = array<i64: 1, 32>}, {pipeline_mode = #tpu.pipeline_mode<synchronous>, transform_indices = @transform_3, window_bounds = array<i64: 16, 32>}, {transform_indices = @transform_4, window_bounds = array<i64: 1, 21, 32, 32>}, {transform_indices = @transform_5, window_bounds = array<i64: 1, 48, 32>}, {pipeline_mode = #tpu.pipeline_mode<synchronous>, transform_indices = @transform_6, window_bounds = array<i64: 32, 32>}, {pipeline_mode = #tpu.pipeline_mode<synchronous>, transform_indices = @transform_7, window_bounds = array<i64: 1, 32>}, {pipeline_mode = #tpu.pipeline_mode<synchronous>, transform_indices = @transform_8, window_bounds = array<i64: 32, 128>}, {pipeline_mode = #tpu.pipeline_mode<synchronous>, transform_indices = @transform_9, window_bounds = array<i64: 1, 128>}, {transform_indices = @transform_10, window_bounds = array<i64: 2, 128>}]} {
    %c0_i32 = arith.constant 0 : i32
    %0 = arith.cmpi eq, %arg1, %c0_i32 : i32
    %1 = arith.extui %0 : i1 to i32
    %c0_i32_0 = arith.constant 0 : i32
    %2 = arith.cmpi ne, %1, %c0_i32_0 : i32
    scf.if %2 {
      %c0_232 = arith.constant 0 : index
      %c0_233 = arith.constant 0 : index
      %821 = vector.load %arg2[%c0_232, %c0_233] : memref<128x20xbf16, #tpu.memory_space<vmem>>, vector<128x20xbf16>
      %c0_234 = arith.constant 0 : index
      %c0_235 = arith.constant 0 : index
      %822 = vector.load %arg3[%c0_234, %c0_235] : memref<20x32xbf16, #tpu.memory_space<vmem>>, vector<20x32xbf16>
      %cst_236 = arith.constant dense<0.000000e+00> : vector<128x32xf32>
      %823 = tpu.matmul %821, %822, %cst_236 {dimension_numbers = #tpu.dot_dimension_numbers<[1], [0], [0], [1], [0, 0, 1, 1], [], []>} : vector<128x20xbf16>, vector<20x32xbf16>, vector<128x32xf32> -> vector<128x32xf32>
      %c0_237 = arith.constant 0 : index
      %c0_238 = arith.constant 0 : index
      %824 = vector.load %arg4[%c0_237, %c0_238] : memref<1x32xf32, #tpu.memory_space<vmem>>, vector<1x32xf32>
      %825 = vector.broadcast %824 : vector<1x32xf32> to vector<128x32xf32>
      %826 = arith.addf %823, %825 : vector<128x32xf32>
      %c0_239 = arith.constant 0 : index
      %c0_240 = arith.constant 0 : index
      %827 = vector.load %arg13[%c0_239, %c0_240] : memref<128x32xf32, #tpu.memory_space<vmem>>, vector<128x32xf32>
      tpu.vector_store %arg13[%c0_239, %c0_240], %826 {strides = array<i32>} : memref<128x32xf32, #tpu.memory_space<vmem>>, vector<128x32xf32>,
      %c0_241 = arith.constant 0 : index
      %c0_242 = arith.constant 0 : index
      %828 = vector.load %arg5[%c0_241, %c0_242] : memref<16x32xf32, #tpu.memory_space<vmem>>, vector<16x32xf32>
      %c0_243 = arith.constant 0 : index
      %c0_244 = arith.constant 0 : index
      %829 = vector.load %arg14[%c0_243, %c0_244] : memref<32x32xf32, #tpu.memory_space<vmem>>, vector<16x32xf32>
      tpu.vector_store %arg14[%c0_243, %c0_244], %828 {strides = array<i32>} : memref<32x32xf32, #tpu.memory_space<vmem>>, vector<16x32xf32>,
      %c0_245 = arith.constant 0 : index
      %c0_246 = arith.constant 0 : index
      %830 = vector.load %arg5[%c0_245, %c0_246] : memref<16x32xf32, #tpu.memory_space<vmem>>, vector<16x32xf32>
      %c16_247 = arith.constant 16 : index
      %c0_248 = arith.constant 0 : index
      %831 = vector.load %arg14[%c16_247, %c0_248] : memref<32x32xf32, #tpu.memory_space<vmem>>, vector<16x32xf32>
      tpu.vector_store %arg14[%c16_247, %c0_248], %830 {strides = array<i32>} : memref<32x32xf32, #tpu.memory_space<vmem>>, vector<16x32xf32>,
    } else {
    }
    %c0 = arith.constant 0 : index
    %c0_1 = arith.constant 0 : index
    %3 = vector.load %arg13[%c0, %c0_1] : memref<128x32xf32, #tpu.memory_space<vmem>>, vector<128x32xf32>
    %c0_2 = arith.constant 0 : index
    %c0_3 = arith.constant 0 : index
    %4 = vector.load %arg14[%c0_2, %c0_3] : memref<32x32xf32, #tpu.memory_space<vmem>>, vector<32x32xf32>
    %c0_4 = arith.constant 0 : index
    %c0_5 = arith.constant 0 : index
    %c0_6 = arith.constant 0 : index
    %5 = vector.load %arg7[%c0_4, %c0_5, %c0_6] : memref<1x48x32xf32, #tpu.memory_space<vmem>>, vector<1x48x32xf32>
    %6 = vector.shape_cast %5 : vector<1x48x32xf32> to vector<48x32xf32>
    %7 = vector.extract_strided_slice %6 {offsets = [0, 0], sizes = [1, 32], strides = [1, 1]} : vector<48x32xf32> to vector<1x32xf32>
    %8 = vector.extract_strided_slice %6 {offsets = [1, 0], sizes = [1, 32], strides = [1, 1]} : vector<48x32xf32> to vector<1x32xf32>
    %cst = arith.constant dense<0.000000e+00> : vector<128xf32>
    %9 = vector.multi_reduction <add>, %3, %cst [1] : vector<128x32xf32> to vector<128xf32>
    %10 = vector.shape_cast %9 : vector<128xf32> to vector<128x1xf32>
    %cst_7 = arith.constant 3.200000e+01 : f32
    %11 = vector.broadcast %cst_7 : f32 to vector<128x1xf32>
    %12 = arith.divf %10, %11 : vector<128x1xf32>
    %13 = vector.broadcast %12 : vector<128x1xf32> to vector<128x32xf32>
    %14 = arith.subf %3, %13 : vector<128x32xf32>
    %15 = arith.mulf %14, %14 : vector<128x32xf32>
    %cst_8 = arith.constant dense<0.000000e+00> : vector<128xf32>
    %16 = vector.multi_reduction <add>, %15, %cst_8 [1] : vector<128x32xf32> to vector<128xf32>
    %17 = vector.shape_cast %16 : vector<128xf32> to vector<128x1xf32>
    %cst_9 = arith.constant 3.200000e+01 : f32
    %18 = vector.broadcast %cst_9 : f32 to vector<128x1xf32>
    %19 = arith.divf %17, %18 : vector<128x1xf32>
    %20 = vector.broadcast %12 : vector<128x1xf32> to vector<128x32xf32>
    %21 = arith.subf %3, %20 : vector<128x32xf32>
    %cst_10 = arith.constant 9.99999974E-6 : f32
    %22 = vector.broadcast %cst_10 : f32 to vector<128x1xf32>
    %23 = arith.addf %19, %22 : vector<128x1xf32>
    %24 = math.rsqrt %23 : vector<128x1xf32>
    %25 = vector.broadcast %24 : vector<128x1xf32> to vector<128x32xf32>
    %26 = arith.mulf %21, %25 : vector<128x32xf32>
    %27 = vector.broadcast %7 : vector<1x32xf32> to vector<128x32xf32>
    %28 = arith.mulf %26, %27 : vector<128x32xf32>
    %29 = vector.broadcast %8 : vector<1x32xf32> to vector<128x32xf32>
    %30 = arith.addf %28, %29 : vector<128x32xf32>
    %31 = vector.extract_strided_slice %6 {offsets = [2, 0], sizes = [1, 32], strides = [1, 1]} : vector<48x32xf32> to vector<1x32xf32>
    %32 = vector.extract_strided_slice %6 {offsets = [3, 0], sizes = [1, 32], strides = [1, 1]} : vector<48x32xf32> to vector<1x32xf32>
    %cst_11 = arith.constant dense<0.000000e+00> : vector<32xf32>
    %33 = vector.multi_reduction <add>, %4, %cst_11 [1] : vector<32x32xf32> to vector<32xf32>
    %34 = vector.shape_cast %33 : vector<32xf32> to vector<32x1xf32>
    %cst_12 = arith.constant 3.200000e+01 : f32
    %35 = vector.broadcast %cst_12 : f32 to vector<32x1xf32>
    %36 = arith.divf %34, %35 : vector<32x1xf32>
    %37 = vector.broadcast %36 : vector<32x1xf32> to vector<32x32xf32>
    %38 = arith.subf %4, %37 : vector<32x32xf32>
    %39 = arith.mulf %38, %38 : vector<32x32xf32>
    %cst_13 = arith.constant dense<0.000000e+00> : vector<32xf32>
    %40 = vector.multi_reduction <add>, %39, %cst_13 [1] : vector<32x32xf32> to vector<32xf32>
    %41 = vector.shape_cast %40 : vector<32xf32> to vector<32x1xf32>
    %cst_14 = arith.constant 3.200000e+01 : f32
    %42 = vector.broadcast %cst_14 : f32 to vector<32x1xf32>
    %43 = arith.divf %41, %42 : vector<32x1xf32>
    %44 = vector.broadcast %36 : vector<32x1xf32> to vector<32x32xf32>
    %45 = arith.subf %4, %44 : vector<32x32xf32>
    %cst_15 = arith.constant 9.99999974E-6 : f32
    %46 = vector.broadcast %cst_15 : f32 to vector<32x1xf32>
    %47 = arith.addf %43, %46 : vector<32x1xf32>
    %48 = math.rsqrt %47 : vector<32x1xf32>
    %49 = vector.broadcast %48 : vector<32x1xf32> to vector<32x32xf32>
    %50 = arith.mulf %45, %49 : vector<32x32xf32>
    %51 = vector.broadcast %31 : vector<1x32xf32> to vector<32x32xf32>
    %52 = arith.mulf %50, %51 : vector<32x32xf32>
    %53 = vector.broadcast %32 : vector<1x32xf32> to vector<32x32xf32>
    %54 = arith.addf %52, %53 : vector<32x32xf32>
    %55 = arith.truncf %54 : vector<32x32xf32> to vector<32x32xbf16>
    %c0_16 = arith.constant 0 : index
    %c0_17 = arith.constant 0 : index
    %c0_18 = arith.constant 0 : index
    %c0_19 = arith.constant 0 : index
    %56 = vector.load %arg6[%c0_16, %c0_17, %c0_18, %c0_19] : memref<1x21x32x32xbf16, #tpu.memory_space<vmem>>, vector<1x1x32x32xbf16>
    %57 = vector.shape_cast %56 : vector<1x1x32x32xbf16> to vector<32x32xbf16>
    %cst_20 = arith.constant dense<0.000000e+00> : vector<32x32xf32>
    %58 = tpu.matmul %55, %57, %cst_20 {dimension_numbers = #tpu.dot_dimension_numbers<[1], [0], [0], [1], [0, 0, 1, 1], [], []>} : vector<32x32xbf16>, vector<32x32xbf16>, vector<32x32xf32> -> vector<32x32xf32>
    %59 = vector.extract_strided_slice %6 {offsets = [4, 0], sizes = [1, 32], strides = [1, 1]} : vector<48x32xf32> to vector<1x32xf32>
    %60 = vector.broadcast %59 : vector<1x32xf32> to vector<32x32xf32>
    %61 = arith.addf %58, %60 : vector<32x32xf32>
    %62 = arith.truncf %30 : vector<128x32xf32> to vector<128x32xbf16>
    %c0_21 = arith.constant 0 : index
    %c1 = arith.constant 1 : index
    %c0_22 = arith.constant 0 : index
    %c0_23 = arith.constant 0 : index
    %63 = vector.load %arg6[%c0_21, %c1, %c0_22, %c0_23] : memref<1x21x32x32xbf16, #tpu.memory_space<vmem>>, vector<1x1x32x32xbf16>
    %64 = vector.shape_cast %63 : vector<1x1x32x32xbf16> to vector<32x32xbf16>
    %cst_24 = arith.constant dense<0.000000e+00> : vector<128x32xf32>
    %65 = tpu.matmul %62, %64, %cst_24 {dimension_numbers = #tpu.dot_dimension_numbers<[1], [0], [0], [1], [0, 0, 1, 1], [], []>} : vector<128x32xbf16>, vector<32x32xbf16>, vector<128x32xf32> -> vector<128x32xf32>
    %66 = vector.extract_strided_slice %6 {offsets = [5, 0], sizes = [1, 32], strides = [1, 1]} : vector<48x32xf32> to vector<1x32xf32>
    %67 = vector.broadcast %66 : vector<1x32xf32> to vector<128x32xf32>
    %68 = arith.addf %65, %67 : vector<128x32xf32>
    %69 = arith.truncf %30 : vector<128x32xf32> to vector<128x32xbf16>
    %c0_25 = arith.constant 0 : index
    %c2 = arith.constant 2 : index
    %c0_26 = arith.constant 0 : index
    %c0_27 = arith.constant 0 : index
    %70 = vector.load %arg6[%c0_25, %c2, %c0_26, %c0_27] : memref<1x21x32x32xbf16, #tpu.memory_space<vmem>>, vector<1x1x32x32xbf16>
    %71 = vector.shape_cast %70 : vector<1x1x32x32xbf16> to vector<32x32xbf16>
    %cst_28 = arith.constant dense<0.000000e+00> : vector<128x32xf32>
    %72 = tpu.matmul %69, %71, %cst_28 {dimension_numbers = #tpu.dot_dimension_numbers<[1], [0], [0], [1], [0, 0, 1, 1], [], []>} : vector<128x32xbf16>, vector<32x32xbf16>, vector<128x32xf32> -> vector<128x32xf32>
    %73 = vector.extract_strided_slice %6 {offsets = [6, 0], sizes = [1, 32], strides = [1, 1]} : vector<48x32xf32> to vector<1x32xf32>
    %74 = vector.broadcast %73 : vector<1x32xf32> to vector<128x32xf32>
    %75 = arith.addf %72, %74 : vector<128x32xf32>
    %76 = vector.shape_cast %61 : vector<32x32xf32> to vector<2x16x32xf32>
    %77 = vector.shape_cast %68 : vector<128x32xf32> to vector<2x64x32xf32>
    %78 = vector.shape_cast %75 : vector<128x32xf32> to vector<2x64x32xf32>
    %79 = vector.extract_strided_slice %6 {offsets = [7, 0], sizes = [1, 32], strides = [1, 1]} : vector<48x32xf32> to vector<1x32xf32>
    %80 = vector.extract_strided_slice %6 {offsets = [8, 0], sizes = [1, 32], strides = [1, 1]} : vector<48x32xf32> to vector<1x32xf32>
    %81 = arith.truncf %76 : vector<2x16x32xf32> to vector<2x16x32xbf16>
    %82 = arith.truncf %77 : vector<2x64x32xf32> to vector<2x64x32xbf16>
    "tpu.trace_start"() <{level = 10 : i32, message = "bqd,bkd->bqk"}> : () -> ()
    %cst_29 = arith.constant dense<0.000000e+00> : vector<2x16x64xf32>
    %83 = tpu.matmul %81, %82, %cst_29 {dimension_numbers = #tpu.dot_dimension_numbers<[2], [2], [1], [1], [0, 0, 0, 1, 1, 1], [0], [0]>} : vector<2x16x32xbf16>, vector<2x64x32xbf16>, vector<2x16x64xf32> -> vector<2x16x64xf32>
    "tpu.trace_stop"() : () -> ()
    %84 = vector.shape_cast %79 : vector<1x32xf32> to vector<1x1x32xf32>
    %85 = vector.broadcast %84 : vector<1x1x32xf32> to vector<2x16x32xf32>
    %86 = arith.mulf %76, %85 : vector<2x16x32xf32>
    %cst_30 = arith.constant dense<0.000000e+00> : vector<2x16xf32>
    %87 = vector.multi_reduction <add>, %86, %cst_30 [2] : vector<2x16x32xf32> to vector<2x16xf32>
    %88 = vector.shape_cast %87 : vector<2x16xf32> to vector<2x16x1xf32>
    %cst_31 = arith.constant dense<0xFF800000> : vector<2x16xf32>
    %89 = vector.multi_reduction <maximumf>, %83, %cst_31 [2] : vector<2x16x64xf32> to vector<2x16xf32>
    %90 = vector.shape_cast %89 : vector<2x16xf32> to vector<2x16x1xf32>
    %91 = arith.maximumf %90, %88 : vector<2x16x1xf32>
    %92 = vector.broadcast %91 : vector<2x16x1xf32> to vector<2x16x64xf32>
    %93 = arith.subf %83, %92 : vector<2x16x64xf32>
    %94 = math.exp %93 : vector<2x16x64xf32>
    %95 = arith.subf %88, %91 : vector<2x16x1xf32>
    %96 = math.exp %95 : vector<2x16x1xf32>
    %cst_32 = arith.constant dense<0.000000e+00> : vector<2x16xf32>
    %97 = vector.multi_reduction <add>, %94, %cst_32 [2] : vector<2x16x64xf32> to vector<2x16xf32>
    %98 = vector.shape_cast %97 : vector<2x16xf32> to vector<2x16x1xf32>
    %99 = arith.addf %98, %96 : vector<2x16x1xf32>
    %100 = arith.truncf %94 : vector<2x16x64xf32> to vector<2x16x64xbf16>
    %101 = arith.truncf %78 : vector<2x64x32xf32> to vector<2x64x32xbf16>
    "tpu.trace_start"() <{level = 10 : i32, message = "bqk,bkd->bqd"}> : () -> ()
    %cst_33 = arith.constant dense<0.000000e+00> : vector<2x16x32xf32>
    %102 = tpu.matmul %100, %101, %cst_33 {dimension_numbers = #tpu.dot_dimension_numbers<[2], [1], [1], [2], [0, 0, 0, 1, 1, 2], [0], [0]>} : vector<2x16x64xbf16>, vector<2x64x32xbf16>, vector<2x16x32xf32> -> vector<2x16x32xf32>
    "tpu.trace_stop"() : () -> ()
    %103 = vector.shape_cast %80 : vector<1x32xf32> to vector<1x1x32xf32>
    %104 = vector.broadcast %96 : vector<2x16x1xf32> to vector<2x16x32xf32>
    %105 = vector.broadcast %103 : vector<1x1x32xf32> to vector<2x16x32xf32>
    %106 = arith.mulf %104, %105 : vector<2x16x32xf32>
    %107 = arith.addf %102, %106 : vector<2x16x32xf32>
    %108 = vector.broadcast %99 : vector<2x16x1xf32> to vector<2x16x32xf32>
    %109 = arith.divf %107, %108 : vector<2x16x32xf32>
    %110 = vector.shape_cast %109 : vector<2x16x32xf32> to vector<32x32xf32>
    %111 = arith.truncf %110 : vector<32x32xf32> to vector<32x32xbf16>
    %c0_34 = arith.constant 0 : index
    %c3 = arith.constant 3 : index
    %c0_35 = arith.constant 0 : index
    %c0_36 = arith.constant 0 : index
    %112 = vector.load %arg6[%c0_34, %c3, %c0_35, %c0_36] : memref<1x21x32x32xbf16, #tpu.memory_space<vmem>>, vector<1x1x32x32xbf16>
    %113 = vector.shape_cast %112 : vector<1x1x32x32xbf16> to vector<32x32xbf16>
    %cst_37 = arith.constant dense<0.000000e+00> : vector<32x32xf32>
    %114 = tpu.matmul %111, %113, %cst_37 {dimension_numbers = #tpu.dot_dimension_numbers<[1], [0], [0], [1], [0, 0, 1, 1], [], []>} : vector<32x32xbf16>, vector<32x32xbf16>, vector<32x32xf32> -> vector<32x32xf32>
    %115 = vector.extract_strided_slice %6 {offsets = [9, 0], sizes = [1, 32], strides = [1, 1]} : vector<48x32xf32> to vector<1x32xf32>
    %116 = vector.broadcast %115 : vector<1x32xf32> to vector<32x32xf32>
    %117 = arith.addf %114, %116 : vector<32x32xf32>
    %118 = arith.truncf %117 : vector<32x32xf32> to vector<32x32xbf16>
    %c0_38 = arith.constant 0 : index
    %c4 = arith.constant 4 : index
    %c0_39 = arith.constant 0 : index
    %c0_40 = arith.constant 0 : index
    %119 = vector.load %arg6[%c0_38, %c4, %c0_39, %c0_40] : memref<1x21x32x32xbf16, #tpu.memory_space<vmem>>, vector<1x1x32x32xbf16>
    %120 = vector.shape_cast %119 : vector<1x1x32x32xbf16> to vector<32x32xbf16>
    %cst_41 = arith.constant dense<0.000000e+00> : vector<32x32xf32>
    %121 = tpu.matmul %118, %120, %cst_41 {dimension_numbers = #tpu.dot_dimension_numbers<[1], [0], [0], [1], [0, 0, 1, 1], [], []>} : vector<32x32xbf16>, vector<32x32xbf16>, vector<32x32xf32> -> vector<32x32xf32>
    %122 = vector.extract_strided_slice %6 {offsets = [10, 0], sizes = [1, 32], strides = [1, 1]} : vector<48x32xf32> to vector<1x32xf32>
    %123 = vector.broadcast %122 : vector<1x32xf32> to vector<32x32xf32>
    %124 = arith.addf %121, %123 : vector<32x32xf32>
    %125 = vector.extract_strided_slice %6 {offsets = [11, 0], sizes = [1, 32], strides = [1, 1]} : vector<48x32xf32> to vector<1x32xf32>
    %126 = vector.extract_strided_slice %6 {offsets = [12, 0], sizes = [1, 32], strides = [1, 1]} : vector<48x32xf32> to vector<1x32xf32>
    %cst_42 = arith.constant dense<0.000000e+00> : vector<32xf32>
    %127 = vector.multi_reduction <add>, %124, %cst_42 [1] : vector<32x32xf32> to vector<32xf32>
    %128 = vector.shape_cast %127 : vector<32xf32> to vector<32x1xf32>
    %cst_43 = arith.constant 3.200000e+01 : f32
    %129 = vector.broadcast %cst_43 : f32 to vector<32x1xf32>
    %130 = arith.divf %128, %129 : vector<32x1xf32>
    %131 = vector.broadcast %130 : vector<32x1xf32> to vector<32x32xf32>
    %132 = arith.subf %124, %131 : vector<32x32xf32>
    %133 = arith.mulf %132, %132 : vector<32x32xf32>
    %cst_44 = arith.constant dense<0.000000e+00> : vector<32xf32>
    %134 = vector.multi_reduction <add>, %133, %cst_44 [1] : vector<32x32xf32> to vector<32xf32>
    %135 = vector.shape_cast %134 : vector<32xf32> to vector<32x1xf32>
    %cst_45 = arith.constant 3.200000e+01 : f32
    %136 = vector.broadcast %cst_45 : f32 to vector<32x1xf32>
    %137 = arith.divf %135, %136 : vector<32x1xf32>
    %138 = vector.broadcast %130 : vector<32x1xf32> to vector<32x32xf32>
    %139 = arith.subf %124, %138 : vector<32x32xf32>
    %cst_46 = arith.constant 9.99999974E-6 : f32
    %140 = vector.broadcast %cst_46 : f32 to vector<32x1xf32>
    %141 = arith.addf %137, %140 : vector<32x1xf32>
    %142 = math.rsqrt %141 : vector<32x1xf32>
    %143 = vector.broadcast %142 : vector<32x1xf32> to vector<32x32xf32>
    %144 = arith.mulf %139, %143 : vector<32x32xf32>
    %145 = vector.broadcast %125 : vector<1x32xf32> to vector<32x32xf32>
    %146 = arith.mulf %144, %145 : vector<32x32xf32>
    %147 = vector.broadcast %126 : vector<1x32xf32> to vector<32x32xf32>
    %148 = arith.addf %146, %147 : vector<32x32xf32>
    %149 = arith.truncf %148 : vector<32x32xf32> to vector<32x32xbf16>
    %c0_47 = arith.constant 0 : index
    %c5 = arith.constant 5 : index
    %c0_48 = arith.constant 0 : index
    %c0_49 = arith.constant 0 : index
    %150 = vector.load %arg6[%c0_47, %c5, %c0_48, %c0_49] : memref<1x21x32x32xbf16, #tpu.memory_space<vmem>>, vector<1x1x32x32xbf16>
    %151 = vector.shape_cast %150 : vector<1x1x32x32xbf16> to vector<32x32xbf16>
    %cst_50 = arith.constant dense<0.000000e+00> : vector<32x32xf32>
    %152 = tpu.matmul %149, %151, %cst_50 {dimension_numbers = #tpu.dot_dimension_numbers<[1], [0], [0], [1], [0, 0, 1, 1], [], []>} : vector<32x32xbf16>, vector<32x32xbf16>, vector<32x32xf32> -> vector<32x32xf32>
    %153 = vector.extract_strided_slice %6 {offsets = [13, 0], sizes = [1, 32], strides = [1, 1]} : vector<48x32xf32> to vector<1x32xf32>
    %154 = vector.broadcast %153 : vector<1x32xf32> to vector<32x32xf32>
    %155 = arith.addf %152, %154 : vector<32x32xf32>
    %cst_51 = arith.constant 5.000000e-01 : f32
    %156 = vector.broadcast %cst_51 : f32 to vector<32x32xf32>
    %157 = arith.mulf %155, %156 : vector<32x32xf32>
    %cst_52 = arith.constant 0.707106769 : f32
    %158 = vector.broadcast %cst_52 : f32 to vector<32x32xf32>
    %159 = arith.mulf %155, %158 : vector<32x32xf32>
    %cst_53 = arith.constant 0.000000e+00 : f32
    %160 = vector.broadcast %cst_53 : f32 to vector<32x32xf32>
    %161 = arith.cmpf oge, %159, %160 : vector<32x32xf32>
    %cst_54 = arith.constant 1.000000e+00 : f32
    %cst_55 = arith.constant -1.000000e+00 : f32
    %162 = vector.broadcast %cst_54 : f32 to vector<32x32xf32>
    %163 = vector.broadcast %cst_55 : f32 to vector<32x32xf32>
    %164 = arith.select %161, %162, %163 : vector<32x32xi1>, vector<32x32xf32>
    %165 = math.absf %159 : vector<32x32xf32>
    %cst_56 = arith.constant 0.327591091 : f32
    %166 = vector.broadcast %cst_56 : f32 to vector<32x32xf32>
    %167 = arith.mulf %166, %165 : vector<32x32xf32>
    %cst_57 = arith.constant 1.000000e+00 : f32
    %168 = vector.broadcast %cst_57 : f32 to vector<32x32xf32>
    %169 = arith.addf %168, %167 : vector<32x32xf32>
    %cst_58 = arith.constant 1.000000e+00 : f32
    %170 = vector.broadcast %cst_58 : f32 to vector<32x32xf32>
    %171 = arith.divf %170, %169 : vector<32x32xf32>
    %cst_59 = arith.constant 1.06140542 : f32
    %172 = vector.broadcast %cst_59 : f32 to vector<32x32xf32>
    %173 = arith.mulf %172, %171 : vector<32x32xf32>
    %cst_60 = arith.constant -1.45315206 : f32
    %174 = vector.broadcast %cst_60 : f32 to vector<32x32xf32>
    %175 = arith.addf %173, %174 : vector<32x32xf32>
    %176 = arith.mulf %175, %171 : vector<32x32xf32>
    %cst_61 = arith.constant 1.42141378 : f32
    %177 = vector.broadcast %cst_61 : f32 to vector<32x32xf32>
    %178 = arith.addf %176, %177 : vector<32x32xf32>
    %179 = arith.mulf %178, %171 : vector<32x32xf32>
    %cst_62 = arith.constant -0.284496725 : f32
    %180 = vector.broadcast %cst_62 : f32 to vector<32x32xf32>
    %181 = arith.addf %179, %180 : vector<32x32xf32>
    %182 = arith.mulf %181, %171 : vector<32x32xf32>
    %cst_63 = arith.constant 0.254829586 : f32
    %183 = vector.broadcast %cst_63 : f32 to vector<32x32xf32>
    %184 = arith.addf %182, %183 : vector<32x32xf32>
    %185 = arith.mulf %184, %171 : vector<32x32xf32>
    %cst_64 = arith.constant 0.000000e+00 : f32
    %186 = vector.broadcast %cst_64 : f32 to vector<32x32xf32>
    %187 = arith.subf %186, %165 : vector<32x32xf32>
    %188 = arith.mulf %187, %165 : vector<32x32xf32>
    %189 = math.exp %188 : vector<32x32xf32>
    %190 = arith.mulf %185, %189 : vector<32x32xf32>
    %cst_65 = arith.constant 1.000000e+00 : f32
    %191 = vector.broadcast %cst_65 : f32 to vector<32x32xf32>
    %192 = arith.subf %191, %190 : vector<32x32xf32>
    %193 = arith.mulf %164, %192 : vector<32x32xf32>
    %cst_66 = arith.constant 1.000000e+00 : f32
    %194 = vector.broadcast %cst_66 : f32 to vector<32x32xf32>
    %195 = arith.addf %194, %193 : vector<32x32xf32>
    %196 = arith.mulf %157, %195 : vector<32x32xf32>
    %197 = arith.truncf %196 : vector<32x32xf32> to vector<32x32xbf16>
    %c0_67 = arith.constant 0 : index
    %c6 = arith.constant 6 : index
    %c0_68 = arith.constant 0 : index
    %c0_69 = arith.constant 0 : index
    %198 = vector.load %arg6[%c0_67, %c6, %c0_68, %c0_69] : memref<1x21x32x32xbf16, #tpu.memory_space<vmem>>, vector<1x1x32x32xbf16>
    %199 = vector.shape_cast %198 : vector<1x1x32x32xbf16> to vector<32x32xbf16>
    %cst_70 = arith.constant dense<0.000000e+00> : vector<32x32xf32>
    %200 = tpu.matmul %197, %199, %cst_70 {dimension_numbers = #tpu.dot_dimension_numbers<[1], [0], [0], [1], [0, 0, 1, 1], [], []>} : vector<32x32xbf16>, vector<32x32xbf16>, vector<32x32xf32> -> vector<32x32xf32>
    %201 = vector.extract_strided_slice %6 {offsets = [14, 0], sizes = [1, 32], strides = [1, 1]} : vector<48x32xf32> to vector<1x32xf32>
    %202 = vector.broadcast %201 : vector<1x32xf32> to vector<32x32xf32>
    %203 = arith.addf %200, %202 : vector<32x32xf32>
    %204 = arith.addf %203, %4 : vector<32x32xf32>
    %205 = vector.extract_strided_slice %6 {offsets = [16, 0], sizes = [1, 32], strides = [1, 1]} : vector<48x32xf32> to vector<1x32xf32>
    %206 = vector.extract_strided_slice %6 {offsets = [17, 0], sizes = [1, 32], strides = [1, 1]} : vector<48x32xf32> to vector<1x32xf32>
    %cst_71 = arith.constant dense<0.000000e+00> : vector<32xf32>
    %207 = vector.multi_reduction <add>, %204, %cst_71 [1] : vector<32x32xf32> to vector<32xf32>
    %208 = vector.shape_cast %207 : vector<32xf32> to vector<32x1xf32>
    %cst_72 = arith.constant 3.200000e+01 : f32
    %209 = vector.broadcast %cst_72 : f32 to vector<32x1xf32>
    %210 = arith.divf %208, %209 : vector<32x1xf32>
    %211 = vector.broadcast %210 : vector<32x1xf32> to vector<32x32xf32>
    %212 = arith.subf %204, %211 : vector<32x32xf32>
    %213 = arith.mulf %212, %212 : vector<32x32xf32>
    %cst_73 = arith.constant dense<0.000000e+00> : vector<32xf32>
    %214 = vector.multi_reduction <add>, %213, %cst_73 [1] : vector<32x32xf32> to vector<32xf32>
    %215 = vector.shape_cast %214 : vector<32xf32> to vector<32x1xf32>
    %cst_74 = arith.constant 3.200000e+01 : f32
    %216 = vector.broadcast %cst_74 : f32 to vector<32x1xf32>
    %217 = arith.divf %215, %216 : vector<32x1xf32>
    %218 = vector.broadcast %210 : vector<32x1xf32> to vector<32x32xf32>
    %219 = arith.subf %204, %218 : vector<32x32xf32>
    %cst_75 = arith.constant 9.99999974E-6 : f32
    %220 = vector.broadcast %cst_75 : f32 to vector<32x1xf32>
    %221 = arith.addf %217, %220 : vector<32x1xf32>
    %222 = math.rsqrt %221 : vector<32x1xf32>
    %223 = vector.broadcast %222 : vector<32x1xf32> to vector<32x32xf32>
    %224 = arith.mulf %219, %223 : vector<32x32xf32>
    %225 = vector.broadcast %205 : vector<1x32xf32> to vector<32x32xf32>
    %226 = arith.mulf %224, %225 : vector<32x32xf32>
    %227 = vector.broadcast %206 : vector<1x32xf32> to vector<32x32xf32>
    %228 = arith.addf %226, %227 : vector<32x32xf32>
    %229 = vector.extract_strided_slice %6 {offsets = [18, 0], sizes = [1, 32], strides = [1, 1]} : vector<48x32xf32> to vector<1x32xf32>
    %230 = vector.extract_strided_slice %6 {offsets = [19, 0], sizes = [1, 32], strides = [1, 1]} : vector<48x32xf32> to vector<1x32xf32>
    %cst_76 = arith.constant dense<0.000000e+00> : vector<32xf32>
    %231 = vector.multi_reduction <add>, %204, %cst_76 [1] : vector<32x32xf32> to vector<32xf32>
    %232 = vector.shape_cast %231 : vector<32xf32> to vector<32x1xf32>
    %cst_77 = arith.constant 3.200000e+01 : f32
    %233 = vector.broadcast %cst_77 : f32 to vector<32x1xf32>
    %234 = arith.divf %232, %233 : vector<32x1xf32>
    %235 = vector.broadcast %234 : vector<32x1xf32> to vector<32x32xf32>
    %236 = arith.subf %204, %235 : vector<32x32xf32>
    %237 = arith.mulf %236, %236 : vector<32x32xf32>
    %cst_78 = arith.constant dense<0.000000e+00> : vector<32xf32>
    %238 = vector.multi_reduction <add>, %237, %cst_78 [1] : vector<32x32xf32> to vector<32xf32>
    %239 = vector.shape_cast %238 : vector<32xf32> to vector<32x1xf32>
    %cst_79 = arith.constant 3.200000e+01 : f32
    %240 = vector.broadcast %cst_79 : f32 to vector<32x1xf32>
    %241 = arith.divf %239, %240 : vector<32x1xf32>
    %242 = vector.broadcast %234 : vector<32x1xf32> to vector<32x32xf32>
    %243 = arith.subf %204, %242 : vector<32x32xf32>
    %cst_80 = arith.constant 9.99999974E-6 : f32
    %244 = vector.broadcast %cst_80 : f32 to vector<32x1xf32>
    %245 = arith.addf %241, %244 : vector<32x1xf32>
    %246 = math.rsqrt %245 : vector<32x1xf32>
    %247 = vector.broadcast %246 : vector<32x1xf32> to vector<32x32xf32>
    %248 = arith.mulf %243, %247 : vector<32x32xf32>
    %249 = vector.broadcast %229 : vector<1x32xf32> to vector<32x32xf32>
    %250 = arith.mulf %248, %249 : vector<32x32xf32>
    %251 = vector.broadcast %230 : vector<1x32xf32> to vector<32x32xf32>
    %252 = arith.addf %250, %251 : vector<32x32xf32>
    %253 = arith.truncf %252 : vector<32x32xf32> to vector<32x32xbf16>
    %c0_81 = arith.constant 0 : index
    %c7 = arith.constant 7 : index
    %c0_82 = arith.constant 0 : index
    %c0_83 = arith.constant 0 : index
    %254 = vector.load %arg6[%c0_81, %c7, %c0_82, %c0_83] : memref<1x21x32x32xbf16, #tpu.memory_space<vmem>>, vector<1x1x32x32xbf16>
    %255 = vector.shape_cast %254 : vector<1x1x32x32xbf16> to vector<32x32xbf16>
    %cst_84 = arith.constant dense<0.000000e+00> : vector<32x32xf32>
    %256 = tpu.matmul %253, %255, %cst_84 {dimension_numbers = #tpu.dot_dimension_numbers<[1], [0], [0], [1], [0, 0, 1, 1], [], []>} : vector<32x32xbf16>, vector<32x32xbf16>, vector<32x32xf32> -> vector<32x32xf32>
    %257 = vector.extract_strided_slice %6 {offsets = [20, 0], sizes = [1, 32], strides = [1, 1]} : vector<48x32xf32> to vector<1x32xf32>
    %258 = vector.broadcast %257 : vector<1x32xf32> to vector<32x32xf32>
    %259 = arith.addf %256, %258 : vector<32x32xf32>
    %260 = arith.truncf %228 : vector<32x32xf32> to vector<32x32xbf16>
    %c0_85 = arith.constant 0 : index
    %c8 = arith.constant 8 : index
    %c0_86 = arith.constant 0 : index
    %c0_87 = arith.constant 0 : index
    %261 = vector.load %arg6[%c0_85, %c8, %c0_86, %c0_87] : memref<1x21x32x32xbf16, #tpu.memory_space<vmem>>, vector<1x1x32x32xbf16>
    %262 = vector.shape_cast %261 : vector<1x1x32x32xbf16> to vector<32x32xbf16>
    %cst_88 = arith.constant dense<0.000000e+00> : vector<32x32xf32>
    %263 = tpu.matmul %260, %262, %cst_88 {dimension_numbers = #tpu.dot_dimension_numbers<[1], [0], [0], [1], [0, 0, 1, 1], [], []>} : vector<32x32xbf16>, vector<32x32xbf16>, vector<32x32xf32> -> vector<32x32xf32>
    %264 = vector.extract_strided_slice %6 {offsets = [21, 0], sizes = [1, 32], strides = [1, 1]} : vector<48x32xf32> to vector<1x32xf32>
    %265 = vector.broadcast %264 : vector<1x32xf32> to vector<32x32xf32>
    %266 = arith.addf %263, %265 : vector<32x32xf32>
    %267 = arith.truncf %228 : vector<32x32xf32> to vector<32x32xbf16>
    %c0_89 = arith.constant 0 : index
    %c9 = arith.constant 9 : index
    %c0_90 = arith.constant 0 : index
    %c0_91 = arith.constant 0 : index
    %268 = vector.load %arg6[%c0_89, %c9, %c0_90, %c0_91] : memref<1x21x32x32xbf16, #tpu.memory_space<vmem>>, vector<1x1x32x32xbf16>
    %269 = vector.shape_cast %268 : vector<1x1x32x32xbf16> to vector<32x32xbf16>
    %cst_92 = arith.constant dense<0.000000e+00> : vector<32x32xf32>
    %270 = tpu.matmul %267, %269, %cst_92 {dimension_numbers = #tpu.dot_dimension_numbers<[1], [0], [0], [1], [0, 0, 1, 1], [], []>} : vector<32x32xbf16>, vector<32x32xbf16>, vector<32x32xf32> -> vector<32x32xf32>
    %271 = vector.extract_strided_slice %6 {offsets = [22, 0], sizes = [1, 32], strides = [1, 1]} : vector<48x32xf32> to vector<1x32xf32>
    %272 = vector.broadcast %271 : vector<1x32xf32> to vector<32x32xf32>
    %273 = arith.addf %270, %272 : vector<32x32xf32>
    %274 = vector.shape_cast %259 : vector<32x32xf32> to vector<2x16x32xf32>
    %275 = vector.shape_cast %266 : vector<32x32xf32> to vector<2x16x32xf32>
    %276 = vector.shape_cast %273 : vector<32x32xf32> to vector<2x16x32xf32>
    %277 = vector.extract_strided_slice %6 {offsets = [23, 0], sizes = [1, 32], strides = [1, 1]} : vector<48x32xf32> to vector<1x32xf32>
    %278 = vector.extract_strided_slice %6 {offsets = [24, 0], sizes = [1, 32], strides = [1, 1]} : vector<48x32xf32> to vector<1x32xf32>
    %279 = vector.extract_strided_slice %274 {offsets = [0, 0, 0], sizes = [2, 16, 8], strides = [1, 1, 1]} : vector<2x16x32xf32> to vector<2x16x8xf32>
    %280 = vector.extract_strided_slice %275 {offsets = [0, 0, 0], sizes = [2, 16, 8], strides = [1, 1, 1]} : vector<2x16x32xf32> to vector<2x16x8xf32>
    %281 = vector.extract_strided_slice %276 {offsets = [0, 0, 0], sizes = [2, 16, 8], strides = [1, 1, 1]} : vector<2x16x32xf32> to vector<2x16x8xf32>
    %282 = vector.extract_strided_slice %277 {offsets = [0, 0], sizes = [1, 8], strides = [1, 1]} : vector<1x32xf32> to vector<1x8xf32>
    %283 = vector.extract_strided_slice %278 {offsets = [0, 0], sizes = [1, 8], strides = [1, 1]} : vector<1x32xf32> to vector<1x8xf32>
    %284 = arith.truncf %279 : vector<2x16x8xf32> to vector<2x16x8xbf16>
    %285 = arith.truncf %280 : vector<2x16x8xf32> to vector<2x16x8xbf16>
    "tpu.trace_start"() <{level = 10 : i32, message = "bqd,bkd->bqk"}> : () -> ()
    %cst_93 = arith.constant dense<0.000000e+00> : vector<2x16x16xf32>
    %286 = tpu.matmul %284, %285, %cst_93 {dimension_numbers = #tpu.dot_dimension_numbers<[2], [2], [1], [1], [0, 0, 0, 1, 1, 1], [0], [0]>} : vector<2x16x8xbf16>, vector<2x16x8xbf16>, vector<2x16x16xf32> -> vector<2x16x16xf32>
    "tpu.trace_stop"() : () -> ()
    %287 = vector.shape_cast %282 : vector<1x8xf32> to vector<1x1x8xf32>
    %288 = vector.broadcast %287 : vector<1x1x8xf32> to vector<2x16x8xf32>
    %289 = arith.mulf %279, %288 : vector<2x16x8xf32>
    %cst_94 = arith.constant dense<0.000000e+00> : vector<2x16xf32>
    %290 = vector.multi_reduction <add>, %289, %cst_94 [2] : vector<2x16x8xf32> to vector<2x16xf32>
    %291 = vector.shape_cast %290 : vector<2x16xf32> to vector<2x16x1xf32>
    %cst_95 = arith.constant dense<0xFF800000> : vector<2x16xf32>
    %292 = vector.multi_reduction <maximumf>, %286, %cst_95 [2] : vector<2x16x16xf32> to vector<2x16xf32>
    %293 = vector.shape_cast %292 : vector<2x16xf32> to vector<2x16x1xf32>
    %294 = arith.maximumf %293, %291 : vector<2x16x1xf32>
    %295 = vector.broadcast %294 : vector<2x16x1xf32> to vector<2x16x16xf32>
    %296 = arith.subf %286, %295 : vector<2x16x16xf32>
    %297 = math.exp %296 : vector<2x16x16xf32>
    %298 = arith.subf %291, %294 : vector<2x16x1xf32>
    %299 = math.exp %298 : vector<2x16x1xf32>
    %cst_96 = arith.constant dense<0.000000e+00> : vector<2x16xf32>
    %300 = vector.multi_reduction <add>, %297, %cst_96 [2] : vector<2x16x16xf32> to vector<2x16xf32>
    %301 = vector.shape_cast %300 : vector<2x16xf32> to vector<2x16x1xf32>
    %302 = arith.addf %301, %299 : vector<2x16x1xf32>
    %303 = arith.truncf %297 : vector<2x16x16xf32> to vector<2x16x16xbf16>
    %304 = arith.truncf %281 : vector<2x16x8xf32> to vector<2x16x8xbf16>
    "tpu.trace_start"() <{level = 10 : i32, message = "bqk,bkd->bqd"}> : () -> ()
    %cst_97 = arith.constant dense<0.000000e+00> : vector<2x16x8xf32>
    %305 = tpu.matmul %303, %304, %cst_97 {dimension_numbers = #tpu.dot_dimension_numbers<[2], [1], [1], [2], [0, 0, 0, 1, 1, 2], [0], [0]>} : vector<2x16x16xbf16>, vector<2x16x8xbf16>, vector<2x16x8xf32> -> vector<2x16x8xf32>
    "tpu.trace_stop"() : () -> ()
    %306 = vector.shape_cast %283 : vector<1x8xf32> to vector<1x1x8xf32>
    %307 = vector.broadcast %299 : vector<2x16x1xf32> to vector<2x16x8xf32>
    %308 = vector.broadcast %306 : vector<1x1x8xf32> to vector<2x16x8xf32>
    %309 = arith.mulf %307, %308 : vector<2x16x8xf32>
    %310 = arith.addf %305, %309 : vector<2x16x8xf32>
    %311 = vector.broadcast %302 : vector<2x16x1xf32> to vector<2x16x8xf32>
    %312 = arith.divf %310, %311 : vector<2x16x8xf32>
    %313 = vector.extract_strided_slice %274 {offsets = [0, 0, 8], sizes = [2, 16, 8], strides = [1, 1, 1]} : vector<2x16x32xf32> to vector<2x16x8xf32>
    %314 = vector.extract_strided_slice %275 {offsets = [0, 0, 8], sizes = [2, 16, 8], strides = [1, 1, 1]} : vector<2x16x32xf32> to vector<2x16x8xf32>
    %315 = vector.extract_strided_slice %276 {offsets = [0, 0, 8], sizes = [2, 16, 8], strides = [1, 1, 1]} : vector<2x16x32xf32> to vector<2x16x8xf32>
    %316 = vector.extract_strided_slice %277 {offsets = [0, 8], sizes = [1, 8], strides = [1, 1]} : vector<1x32xf32> to vector<1x8xf32>
    %317 = vector.extract_strided_slice %278 {offsets = [0, 8], sizes = [1, 8], strides = [1, 1]} : vector<1x32xf32> to vector<1x8xf32>
    %318 = arith.truncf %313 : vector<2x16x8xf32> to vector<2x16x8xbf16>
    %319 = arith.truncf %314 : vector<2x16x8xf32> to vector<2x16x8xbf16>
    "tpu.trace_start"() <{level = 10 : i32, message = "bqd,bkd->bqk"}> : () -> ()
    %cst_98 = arith.constant dense<0.000000e+00> : vector<2x16x16xf32>
    %320 = tpu.matmul %318, %319, %cst_98 {dimension_numbers = #tpu.dot_dimension_numbers<[2], [2], [1], [1], [0, 0, 0, 1, 1, 1], [0], [0]>} : vector<2x16x8xbf16>, vector<2x16x8xbf16>, vector<2x16x16xf32> -> vector<2x16x16xf32>
    "tpu.trace_stop"() : () -> ()
    %321 = vector.shape_cast %316 : vector<1x8xf32> to vector<1x1x8xf32>
    %322 = vector.broadcast %321 : vector<1x1x8xf32> to vector<2x16x8xf32>
    %323 = arith.mulf %313, %322 : vector<2x16x8xf32>
    %cst_99 = arith.constant dense<0.000000e+00> : vector<2x16xf32>
    %324 = vector.multi_reduction <add>, %323, %cst_99 [2] : vector<2x16x8xf32> to vector<2x16xf32>
    %325 = vector.shape_cast %324 : vector<2x16xf32> to vector<2x16x1xf32>
    %cst_100 = arith.constant dense<0xFF800000> : vector<2x16xf32>
    %326 = vector.multi_reduction <maximumf>, %320, %cst_100 [2] : vector<2x16x16xf32> to vector<2x16xf32>
    %327 = vector.shape_cast %326 : vector<2x16xf32> to vector<2x16x1xf32>
    %328 = arith.maximumf %327, %325 : vector<2x16x1xf32>
    %329 = vector.broadcast %328 : vector<2x16x1xf32> to vector<2x16x16xf32>
    %330 = arith.subf %320, %329 : vector<2x16x16xf32>
    %331 = math.exp %330 : vector<2x16x16xf32>
    %332 = arith.subf %325, %328 : vector<2x16x1xf32>
    %333 = math.exp %332 : vector<2x16x1xf32>
    %cst_101 = arith.constant dense<0.000000e+00> : vector<2x16xf32>
    %334 = vector.multi_reduction <add>, %331, %cst_101 [2] : vector<2x16x16xf32> to vector<2x16xf32>
    %335 = vector.shape_cast %334 : vector<2x16xf32> to vector<2x16x1xf32>
    %336 = arith.addf %335, %333 : vector<2x16x1xf32>
    %337 = arith.truncf %331 : vector<2x16x16xf32> to vector<2x16x16xbf16>
    %338 = arith.truncf %315 : vector<2x16x8xf32> to vector<2x16x8xbf16>
    "tpu.trace_start"() <{level = 10 : i32, message = "bqk,bkd->bqd"}> : () -> ()
    %cst_102 = arith.constant dense<0.000000e+00> : vector<2x16x8xf32>
    %339 = tpu.matmul %337, %338, %cst_102 {dimension_numbers = #tpu.dot_dimension_numbers<[2], [1], [1], [2], [0, 0, 0, 1, 1, 2], [0], [0]>} : vector<2x16x16xbf16>, vector<2x16x8xbf16>, vector<2x16x8xf32> -> vector<2x16x8xf32>
    "tpu.trace_stop"() : () -> ()
    %340 = vector.shape_cast %317 : vector<1x8xf32> to vector<1x1x8xf32>
    %341 = vector.broadcast %333 : vector<2x16x1xf32> to vector<2x16x8xf32>
    %342 = vector.broadcast %340 : vector<1x1x8xf32> to vector<2x16x8xf32>
    %343 = arith.mulf %341, %342 : vector<2x16x8xf32>
    %344 = arith.addf %339, %343 : vector<2x16x8xf32>
    %345 = vector.broadcast %336 : vector<2x16x1xf32> to vector<2x16x8xf32>
    %346 = arith.divf %344, %345 : vector<2x16x8xf32>
    %347 = vector.extract_strided_slice %274 {offsets = [0, 0, 16], sizes = [2, 16, 8], strides = [1, 1, 1]} : vector<2x16x32xf32> to vector<2x16x8xf32>
    %348 = vector.extract_strided_slice %275 {offsets = [0, 0, 16], sizes = [2, 16, 8], strides = [1, 1, 1]} : vector<2x16x32xf32> to vector<2x16x8xf32>
    %349 = vector.extract_strided_slice %276 {offsets = [0, 0, 16], sizes = [2, 16, 8], strides = [1, 1, 1]} : vector<2x16x32xf32> to vector<2x16x8xf32>
    %350 = vector.extract_strided_slice %277 {offsets = [0, 16], sizes = [1, 8], strides = [1, 1]} : vector<1x32xf32> to vector<1x8xf32>
    %351 = vector.extract_strided_slice %278 {offsets = [0, 16], sizes = [1, 8], strides = [1, 1]} : vector<1x32xf32> to vector<1x8xf32>
    %352 = arith.truncf %347 : vector<2x16x8xf32> to vector<2x16x8xbf16>
    %353 = arith.truncf %348 : vector<2x16x8xf32> to vector<2x16x8xbf16>
    "tpu.trace_start"() <{level = 10 : i32, message = "bqd,bkd->bqk"}> : () -> ()
    %cst_103 = arith.constant dense<0.000000e+00> : vector<2x16x16xf32>
    %354 = tpu.matmul %352, %353, %cst_103 {dimension_numbers = #tpu.dot_dimension_numbers<[2], [2], [1], [1], [0, 0, 0, 1, 1, 1], [0], [0]>} : vector<2x16x8xbf16>, vector<2x16x8xbf16>, vector<2x16x16xf32> -> vector<2x16x16xf32>
    "tpu.trace_stop"() : () -> ()
    %355 = vector.shape_cast %350 : vector<1x8xf32> to vector<1x1x8xf32>
    %356 = vector.broadcast %355 : vector<1x1x8xf32> to vector<2x16x8xf32>
    %357 = arith.mulf %347, %356 : vector<2x16x8xf32>
    %cst_104 = arith.constant dense<0.000000e+00> : vector<2x16xf32>
    %358 = vector.multi_reduction <add>, %357, %cst_104 [2] : vector<2x16x8xf32> to vector<2x16xf32>
    %359 = vector.shape_cast %358 : vector<2x16xf32> to vector<2x16x1xf32>
    %cst_105 = arith.constant dense<0xFF800000> : vector<2x16xf32>
    %360 = vector.multi_reduction <maximumf>, %354, %cst_105 [2] : vector<2x16x16xf32> to vector<2x16xf32>
    %361 = vector.shape_cast %360 : vector<2x16xf32> to vector<2x16x1xf32>
    %362 = arith.maximumf %361, %359 : vector<2x16x1xf32>
    %363 = vector.broadcast %362 : vector<2x16x1xf32> to vector<2x16x16xf32>
    %364 = arith.subf %354, %363 : vector<2x16x16xf32>
    %365 = math.exp %364 : vector<2x16x16xf32>
    %366 = arith.subf %359, %362 : vector<2x16x1xf32>
    %367 = math.exp %366 : vector<2x16x1xf32>
    %cst_106 = arith.constant dense<0.000000e+00> : vector<2x16xf32>
    %368 = vector.multi_reduction <add>, %365, %cst_106 [2] : vector<2x16x16xf32> to vector<2x16xf32>
    %369 = vector.shape_cast %368 : vector<2x16xf32> to vector<2x16x1xf32>
    %370 = arith.addf %369, %367 : vector<2x16x1xf32>
    %371 = arith.truncf %365 : vector<2x16x16xf32> to vector<2x16x16xbf16>
    %372 = arith.truncf %349 : vector<2x16x8xf32> to vector<2x16x8xbf16>
    "tpu.trace_start"() <{level = 10 : i32, message = "bqk,bkd->bqd"}> : () -> ()
    %cst_107 = arith.constant dense<0.000000e+00> : vector<2x16x8xf32>
    %373 = tpu.matmul %371, %372, %cst_107 {dimension_numbers = #tpu.dot_dimension_numbers<[2], [1], [1], [2], [0, 0, 0, 1, 1, 2], [0], [0]>} : vector<2x16x16xbf16>, vector<2x16x8xbf16>, vector<2x16x8xf32> -> vector<2x16x8xf32>
    "tpu.trace_stop"() : () -> ()
    %374 = vector.shape_cast %351 : vector<1x8xf32> to vector<1x1x8xf32>
    %375 = vector.broadcast %367 : vector<2x16x1xf32> to vector<2x16x8xf32>
    %376 = vector.broadcast %374 : vector<1x1x8xf32> to vector<2x16x8xf32>
    %377 = arith.mulf %375, %376 : vector<2x16x8xf32>
    %378 = arith.addf %373, %377 : vector<2x16x8xf32>
    %379 = vector.broadcast %370 : vector<2x16x1xf32> to vector<2x16x8xf32>
    %380 = arith.divf %378, %379 : vector<2x16x8xf32>
    %381 = vector.extract_strided_slice %274 {offsets = [0, 0, 24], sizes = [2, 16, 8], strides = [1, 1, 1]} : vector<2x16x32xf32> to vector<2x16x8xf32>
    %382 = vector.extract_strided_slice %275 {offsets = [0, 0, 24], sizes = [2, 16, 8], strides = [1, 1, 1]} : vector<2x16x32xf32> to vector<2x16x8xf32>
    %383 = vector.extract_strided_slice %276 {offsets = [0, 0, 24], sizes = [2, 16, 8], strides = [1, 1, 1]} : vector<2x16x32xf32> to vector<2x16x8xf32>
    %384 = vector.extract_strided_slice %277 {offsets = [0, 24], sizes = [1, 8], strides = [1, 1]} : vector<1x32xf32> to vector<1x8xf32>
    %385 = vector.extract_strided_slice %278 {offsets = [0, 24], sizes = [1, 8], strides = [1, 1]} : vector<1x32xf32> to vector<1x8xf32>
    %386 = arith.truncf %381 : vector<2x16x8xf32> to vector<2x16x8xbf16>
    %387 = arith.truncf %382 : vector<2x16x8xf32> to vector<2x16x8xbf16>
    "tpu.trace_start"() <{level = 10 : i32, message = "bqd,bkd->bqk"}> : () -> ()
    %cst_108 = arith.constant dense<0.000000e+00> : vector<2x16x16xf32>
    %388 = tpu.matmul %386, %387, %cst_108 {dimension_numbers = #tpu.dot_dimension_numbers<[2], [2], [1], [1], [0, 0, 0, 1, 1, 1], [0], [0]>} : vector<2x16x8xbf16>, vector<2x16x8xbf16>, vector<2x16x16xf32> -> vector<2x16x16xf32>
    "tpu.trace_stop"() : () -> ()
    %389 = vector.shape_cast %384 : vector<1x8xf32> to vector<1x1x8xf32>
    %390 = vector.broadcast %389 : vector<1x1x8xf32> to vector<2x16x8xf32>
    %391 = arith.mulf %381, %390 : vector<2x16x8xf32>
    %cst_109 = arith.constant dense<0.000000e+00> : vector<2x16xf32>
    %392 = vector.multi_reduction <add>, %391, %cst_109 [2] : vector<2x16x8xf32> to vector<2x16xf32>
    %393 = vector.shape_cast %392 : vector<2x16xf32> to vector<2x16x1xf32>
    %cst_110 = arith.constant dense<0xFF800000> : vector<2x16xf32>
    %394 = vector.multi_reduction <maximumf>, %388, %cst_110 [2] : vector<2x16x16xf32> to vector<2x16xf32>
    %395 = vector.shape_cast %394 : vector<2x16xf32> to vector<2x16x1xf32>
    %396 = arith.maximumf %395, %393 : vector<2x16x1xf32>
    %397 = vector.broadcast %396 : vector<2x16x1xf32> to vector<2x16x16xf32>
    %398 = arith.subf %388, %397 : vector<2x16x16xf32>
    %399 = math.exp %398 : vector<2x16x16xf32>
    %400 = arith.subf %393, %396 : vector<2x16x1xf32>
    %401 = math.exp %400 : vector<2x16x1xf32>
    %cst_111 = arith.constant dense<0.000000e+00> : vector<2x16xf32>
    %402 = vector.multi_reduction <add>, %399, %cst_111 [2] : vector<2x16x16xf32> to vector<2x16xf32>
    %403 = vector.shape_cast %402 : vector<2x16xf32> to vector<2x16x1xf32>
    %404 = arith.addf %403, %401 : vector<2x16x1xf32>
    %405 = arith.truncf %399 : vector<2x16x16xf32> to vector<2x16x16xbf16>
    %406 = arith.truncf %383 : vector<2x16x8xf32> to vector<2x16x8xbf16>
    "tpu.trace_start"() <{level = 10 : i32, message = "bqk,bkd->bqd"}> : () -> ()
    %cst_112 = arith.constant dense<0.000000e+00> : vector<2x16x8xf32>
    %407 = tpu.matmul %405, %406, %cst_112 {dimension_numbers = #tpu.dot_dimension_numbers<[2], [1], [1], [2], [0, 0, 0, 1, 1, 2], [0], [0]>} : vector<2x16x16xbf16>, vector<2x16x8xbf16>, vector<2x16x8xf32> -> vector<2x16x8xf32>
    "tpu.trace_stop"() : () -> ()
    %408 = vector.shape_cast %385 : vector<1x8xf32> to vector<1x1x8xf32>
    %409 = vector.broadcast %401 : vector<2x16x1xf32> to vector<2x16x8xf32>
    %410 = vector.broadcast %408 : vector<1x1x8xf32> to vector<2x16x8xf32>
    %411 = arith.mulf %409, %410 : vector<2x16x8xf32>
    %412 = arith.addf %407, %411 : vector<2x16x8xf32>
    %413 = vector.broadcast %404 : vector<2x16x1xf32> to vector<2x16x8xf32>
    %414 = arith.divf %412, %413 : vector<2x16x8xf32>
    %415 = tpu.concatenate %312, %346, %380, %414 in 2 : vector<2x16x8xf32>, vector<2x16x8xf32>, vector<2x16x8xf32>, vector<2x16x8xf32> -> vector<2x16x32xf32>
    %416 = vector.shape_cast %415 : vector<2x16x32xf32> to vector<32x32xf32>
    %417 = arith.truncf %416 : vector<32x32xf32> to vector<32x32xbf16>
    %c0_113 = arith.constant 0 : index
    %c10 = arith.constant 10 : index
    %c0_114 = arith.constant 0 : index
    %c0_115 = arith.constant 0 : index
    %418 = vector.load %arg6[%c0_113, %c10, %c0_114, %c0_115] : memref<1x21x32x32xbf16, #tpu.memory_space<vmem>>, vector<1x1x32x32xbf16>
    %419 = vector.shape_cast %418 : vector<1x1x32x32xbf16> to vector<32x32xbf16>
    %cst_116 = arith.constant dense<0.000000e+00> : vector<32x32xf32>
    %420 = tpu.matmul %417, %419, %cst_116 {dimension_numbers = #tpu.dot_dimension_numbers<[1], [0], [0], [1], [0, 0, 1, 1], [], []>} : vector<32x32xbf16>, vector<32x32xbf16>, vector<32x32xf32> -> vector<32x32xf32>
    %421 = vector.extract_strided_slice %6 {offsets = [25, 0], sizes = [1, 32], strides = [1, 1]} : vector<48x32xf32> to vector<1x32xf32>
    %422 = vector.broadcast %421 : vector<1x32xf32> to vector<32x32xf32>
    %423 = arith.addf %420, %422 : vector<32x32xf32>
    %424 = arith.truncf %423 : vector<32x32xf32> to vector<32x32xbf16>
    %c0_117 = arith.constant 0 : index
    %c11 = arith.constant 11 : index
    %c0_118 = arith.constant 0 : index
    %c0_119 = arith.constant 0 : index
    %425 = vector.load %arg6[%c0_117, %c11, %c0_118, %c0_119] : memref<1x21x32x32xbf16, #tpu.memory_space<vmem>>, vector<1x1x32x32xbf16>
    %426 = vector.shape_cast %425 : vector<1x1x32x32xbf16> to vector<32x32xbf16>
    %cst_120 = arith.constant dense<0.000000e+00> : vector<32x32xf32>
    %427 = tpu.matmul %424, %426, %cst_120 {dimension_numbers = #tpu.dot_dimension_numbers<[1], [0], [0], [1], [0, 0, 1, 1], [], []>} : vector<32x32xbf16>, vector<32x32xbf16>, vector<32x32xf32> -> vector<32x32xf32>
    %428 = vector.extract_strided_slice %6 {offsets = [26, 0], sizes = [1, 32], strides = [1, 1]} : vector<48x32xf32> to vector<1x32xf32>
    %429 = vector.broadcast %428 : vector<1x32xf32> to vector<32x32xf32>
    %430 = arith.addf %427, %429 : vector<32x32xf32>
    %431 = vector.extract_strided_slice %6 {offsets = [27, 0], sizes = [1, 32], strides = [1, 1]} : vector<48x32xf32> to vector<1x32xf32>
    %432 = vector.extract_strided_slice %6 {offsets = [28, 0], sizes = [1, 32], strides = [1, 1]} : vector<48x32xf32> to vector<1x32xf32>
    %cst_121 = arith.constant dense<0.000000e+00> : vector<32xf32>
    %433 = vector.multi_reduction <add>, %430, %cst_121 [1] : vector<32x32xf32> to vector<32xf32>
    %434 = vector.shape_cast %433 : vector<32xf32> to vector<32x1xf32>
    %cst_122 = arith.constant 3.200000e+01 : f32
    %435 = vector.broadcast %cst_122 : f32 to vector<32x1xf32>
    %436 = arith.divf %434, %435 : vector<32x1xf32>
    %437 = vector.broadcast %436 : vector<32x1xf32> to vector<32x32xf32>
    %438 = arith.subf %430, %437 : vector<32x32xf32>
    %439 = arith.mulf %438, %438 : vector<32x32xf32>
    %cst_123 = arith.constant dense<0.000000e+00> : vector<32xf32>
    %440 = vector.multi_reduction <add>, %439, %cst_123 [1] : vector<32x32xf32> to vector<32xf32>
    %441 = vector.shape_cast %440 : vector<32xf32> to vector<32x1xf32>
    %cst_124 = arith.constant 3.200000e+01 : f32
    %442 = vector.broadcast %cst_124 : f32 to vector<32x1xf32>
    %443 = arith.divf %441, %442 : vector<32x1xf32>
    %444 = vector.broadcast %436 : vector<32x1xf32> to vector<32x32xf32>
    %445 = arith.subf %430, %444 : vector<32x32xf32>
    %cst_125 = arith.constant 9.99999974E-6 : f32
    %446 = vector.broadcast %cst_125 : f32 to vector<32x1xf32>
    %447 = arith.addf %443, %446 : vector<32x1xf32>
    %448 = math.rsqrt %447 : vector<32x1xf32>
    %449 = vector.broadcast %448 : vector<32x1xf32> to vector<32x32xf32>
    %450 = arith.mulf %445, %449 : vector<32x32xf32>
    %451 = vector.broadcast %431 : vector<1x32xf32> to vector<32x32xf32>
    %452 = arith.mulf %450, %451 : vector<32x32xf32>
    %453 = vector.broadcast %432 : vector<1x32xf32> to vector<32x32xf32>
    %454 = arith.addf %452, %453 : vector<32x32xf32>
    %455 = arith.truncf %454 : vector<32x32xf32> to vector<32x32xbf16>
    %c0_126 = arith.constant 0 : index
    %c12 = arith.constant 12 : index
    %c0_127 = arith.constant 0 : index
    %c0_128 = arith.constant 0 : index
    %456 = vector.load %arg6[%c0_126, %c12, %c0_127, %c0_128] : memref<1x21x32x32xbf16, #tpu.memory_space<vmem>>, vector<1x1x32x32xbf16>
    %457 = vector.shape_cast %456 : vector<1x1x32x32xbf16> to vector<32x32xbf16>
    %cst_129 = arith.constant dense<0.000000e+00> : vector<32x32xf32>
    %458 = tpu.matmul %455, %457, %cst_129 {dimension_numbers = #tpu.dot_dimension_numbers<[1], [0], [0], [1], [0, 0, 1, 1], [], []>} : vector<32x32xbf16>, vector<32x32xbf16>, vector<32x32xf32> -> vector<32x32xf32>
    %459 = vector.extract_strided_slice %6 {offsets = [29, 0], sizes = [1, 32], strides = [1, 1]} : vector<48x32xf32> to vector<1x32xf32>
    %460 = vector.broadcast %459 : vector<1x32xf32> to vector<32x32xf32>
    %461 = arith.addf %458, %460 : vector<32x32xf32>
    %cst_130 = arith.constant 5.000000e-01 : f32
    %462 = vector.broadcast %cst_130 : f32 to vector<32x32xf32>
    %463 = arith.mulf %461, %462 : vector<32x32xf32>
    %cst_131 = arith.constant 0.707106769 : f32
    %464 = vector.broadcast %cst_131 : f32 to vector<32x32xf32>
    %465 = arith.mulf %461, %464 : vector<32x32xf32>
    %cst_132 = arith.constant 0.000000e+00 : f32
    %466 = vector.broadcast %cst_132 : f32 to vector<32x32xf32>
    %467 = arith.cmpf oge, %465, %466 : vector<32x32xf32>
    %cst_133 = arith.constant 1.000000e+00 : f32
    %cst_134 = arith.constant -1.000000e+00 : f32
    %468 = vector.broadcast %cst_133 : f32 to vector<32x32xf32>
    %469 = vector.broadcast %cst_134 : f32 to vector<32x32xf32>
    %470 = arith.select %467, %468, %469 : vector<32x32xi1>, vector<32x32xf32>
    %471 = math.absf %465 : vector<32x32xf32>
    %cst_135 = arith.constant 0.327591091 : f32
    %472 = vector.broadcast %cst_135 : f32 to vector<32x32xf32>
    %473 = arith.mulf %472, %471 : vector<32x32xf32>
    %cst_136 = arith.constant 1.000000e+00 : f32
    %474 = vector.broadcast %cst_136 : f32 to vector<32x32xf32>
    %475 = arith.addf %474, %473 : vector<32x32xf32>
    %cst_137 = arith.constant 1.000000e+00 : f32
    %476 = vector.broadcast %cst_137 : f32 to vector<32x32xf32>
    %477 = arith.divf %476, %475 : vector<32x32xf32>
    %cst_138 = arith.constant 1.06140542 : f32
    %478 = vector.broadcast %cst_138 : f32 to vector<32x32xf32>
    %479 = arith.mulf %478, %477 : vector<32x32xf32>
    %cst_139 = arith.constant -1.45315206 : f32
    %480 = vector.broadcast %cst_139 : f32 to vector<32x32xf32>
    %481 = arith.addf %479, %480 : vector<32x32xf32>
    %482 = arith.mulf %481, %477 : vector<32x32xf32>
    %cst_140 = arith.constant 1.42141378 : f32
    %483 = vector.broadcast %cst_140 : f32 to vector<32x32xf32>
    %484 = arith.addf %482, %483 : vector<32x32xf32>
    %485 = arith.mulf %484, %477 : vector<32x32xf32>
    %cst_141 = arith.constant -0.284496725 : f32
    %486 = vector.broadcast %cst_141 : f32 to vector<32x32xf32>
    %487 = arith.addf %485, %486 : vector<32x32xf32>
    %488 = arith.mulf %487, %477 : vector<32x32xf32>
    %cst_142 = arith.constant 0.254829586 : f32
    %489 = vector.broadcast %cst_142 : f32 to vector<32x32xf32>
    %490 = arith.addf %488, %489 : vector<32x32xf32>
    %491 = arith.mulf %490, %477 : vector<32x32xf32>
    %cst_143 = arith.constant 0.000000e+00 : f32
    %492 = vector.broadcast %cst_143 : f32 to vector<32x32xf32>
    %493 = arith.subf %492, %471 : vector<32x32xf32>
    %494 = arith.mulf %493, %471 : vector<32x32xf32>
    %495 = math.exp %494 : vector<32x32xf32>
    %496 = arith.mulf %491, %495 : vector<32x32xf32>
    %cst_144 = arith.constant 1.000000e+00 : f32
    %497 = vector.broadcast %cst_144 : f32 to vector<32x32xf32>
    %498 = arith.subf %497, %496 : vector<32x32xf32>
    %499 = arith.mulf %470, %498 : vector<32x32xf32>
    %cst_145 = arith.constant 1.000000e+00 : f32
    %500 = vector.broadcast %cst_145 : f32 to vector<32x32xf32>
    %501 = arith.addf %500, %499 : vector<32x32xf32>
    %502 = arith.mulf %463, %501 : vector<32x32xf32>
    %503 = arith.truncf %502 : vector<32x32xf32> to vector<32x32xbf16>
    %c0_146 = arith.constant 0 : index
    %c13 = arith.constant 13 : index
    %c0_147 = arith.constant 0 : index
    %c0_148 = arith.constant 0 : index
    %504 = vector.load %arg6[%c0_146, %c13, %c0_147, %c0_148] : memref<1x21x32x32xbf16, #tpu.memory_space<vmem>>, vector<1x1x32x32xbf16>
    %505 = vector.shape_cast %504 : vector<1x1x32x32xbf16> to vector<32x32xbf16>
    %cst_149 = arith.constant dense<0.000000e+00> : vector<32x32xf32>
    %506 = tpu.matmul %503, %505, %cst_149 {dimension_numbers = #tpu.dot_dimension_numbers<[1], [0], [0], [1], [0, 0, 1, 1], [], []>} : vector<32x32xbf16>, vector<32x32xbf16>, vector<32x32xf32> -> vector<32x32xf32>
    %507 = vector.extract_strided_slice %6 {offsets = [30, 0], sizes = [1, 32], strides = [1, 1]} : vector<48x32xf32> to vector<1x32xf32>
    %508 = vector.broadcast %507 : vector<1x32xf32> to vector<32x32xf32>
    %509 = arith.addf %506, %508 : vector<32x32xf32>
    %510 = arith.addf %509, %204 : vector<32x32xf32>
    %511 = vector.extract_strided_slice %6 {offsets = [32, 0], sizes = [1, 32], strides = [1, 1]} : vector<48x32xf32> to vector<1x32xf32>
    %512 = vector.extract_strided_slice %6 {offsets = [33, 0], sizes = [1, 32], strides = [1, 1]} : vector<48x32xf32> to vector<1x32xf32>
    %cst_150 = arith.constant dense<0.000000e+00> : vector<32xf32>
    %513 = vector.multi_reduction <add>, %510, %cst_150 [1] : vector<32x32xf32> to vector<32xf32>
    %514 = vector.shape_cast %513 : vector<32xf32> to vector<32x1xf32>
    %cst_151 = arith.constant 3.200000e+01 : f32
    %515 = vector.broadcast %cst_151 : f32 to vector<32x1xf32>
    %516 = arith.divf %514, %515 : vector<32x1xf32>
    %517 = vector.broadcast %516 : vector<32x1xf32> to vector<32x32xf32>
    %518 = arith.subf %510, %517 : vector<32x32xf32>
    %519 = arith.mulf %518, %518 : vector<32x32xf32>
    %cst_152 = arith.constant dense<0.000000e+00> : vector<32xf32>
    %520 = vector.multi_reduction <add>, %519, %cst_152 [1] : vector<32x32xf32> to vector<32xf32>
    %521 = vector.shape_cast %520 : vector<32xf32> to vector<32x1xf32>
    %cst_153 = arith.constant 3.200000e+01 : f32
    %522 = vector.broadcast %cst_153 : f32 to vector<32x1xf32>
    %523 = arith.divf %521, %522 : vector<32x1xf32>
    %524 = vector.broadcast %516 : vector<32x1xf32> to vector<32x32xf32>
    %525 = arith.subf %510, %524 : vector<32x32xf32>
    %cst_154 = arith.constant 9.99999974E-6 : f32
    %526 = vector.broadcast %cst_154 : f32 to vector<32x1xf32>
    %527 = arith.addf %523, %526 : vector<32x1xf32>
    %528 = math.rsqrt %527 : vector<32x1xf32>
    %529 = vector.broadcast %528 : vector<32x1xf32> to vector<32x32xf32>
    %530 = arith.mulf %525, %529 : vector<32x32xf32>
    %531 = vector.broadcast %511 : vector<1x32xf32> to vector<32x32xf32>
    %532 = arith.mulf %530, %531 : vector<32x32xf32>
    %533 = vector.broadcast %512 : vector<1x32xf32> to vector<32x32xf32>
    %534 = arith.addf %532, %533 : vector<32x32xf32>
    %535 = vector.extract_strided_slice %6 {offsets = [34, 0], sizes = [1, 32], strides = [1, 1]} : vector<48x32xf32> to vector<1x32xf32>
    %536 = vector.extract_strided_slice %6 {offsets = [35, 0], sizes = [1, 32], strides = [1, 1]} : vector<48x32xf32> to vector<1x32xf32>
    %cst_155 = arith.constant dense<0.000000e+00> : vector<32xf32>
    %537 = vector.multi_reduction <add>, %510, %cst_155 [1] : vector<32x32xf32> to vector<32xf32>
    %538 = vector.shape_cast %537 : vector<32xf32> to vector<32x1xf32>
    %cst_156 = arith.constant 3.200000e+01 : f32
    %539 = vector.broadcast %cst_156 : f32 to vector<32x1xf32>
    %540 = arith.divf %538, %539 : vector<32x1xf32>
    %541 = vector.broadcast %540 : vector<32x1xf32> to vector<32x32xf32>
    %542 = arith.subf %510, %541 : vector<32x32xf32>
    %543 = arith.mulf %542, %542 : vector<32x32xf32>
    %cst_157 = arith.constant dense<0.000000e+00> : vector<32xf32>
    %544 = vector.multi_reduction <add>, %543, %cst_157 [1] : vector<32x32xf32> to vector<32xf32>
    %545 = vector.shape_cast %544 : vector<32xf32> to vector<32x1xf32>
    %cst_158 = arith.constant 3.200000e+01 : f32
    %546 = vector.broadcast %cst_158 : f32 to vector<32x1xf32>
    %547 = arith.divf %545, %546 : vector<32x1xf32>
    %548 = vector.broadcast %540 : vector<32x1xf32> to vector<32x32xf32>
    %549 = arith.subf %510, %548 : vector<32x32xf32>
    %cst_159 = arith.constant 9.99999974E-6 : f32
    %550 = vector.broadcast %cst_159 : f32 to vector<32x1xf32>
    %551 = arith.addf %547, %550 : vector<32x1xf32>
    %552 = math.rsqrt %551 : vector<32x1xf32>
    %553 = vector.broadcast %552 : vector<32x1xf32> to vector<32x32xf32>
    %554 = arith.mulf %549, %553 : vector<32x32xf32>
    %555 = vector.broadcast %535 : vector<1x32xf32> to vector<32x32xf32>
    %556 = arith.mulf %554, %555 : vector<32x32xf32>
    %557 = vector.broadcast %536 : vector<1x32xf32> to vector<32x32xf32>
    %558 = arith.addf %556, %557 : vector<32x32xf32>
    %559 = arith.truncf %558 : vector<32x32xf32> to vector<32x32xbf16>
    %c0_160 = arith.constant 0 : index
    %c14 = arith.constant 14 : index
    %c0_161 = arith.constant 0 : index
    %c0_162 = arith.constant 0 : index
    %560 = vector.load %arg6[%c0_160, %c14, %c0_161, %c0_162] : memref<1x21x32x32xbf16, #tpu.memory_space<vmem>>, vector<1x1x32x32xbf16>
    %561 = vector.shape_cast %560 : vector<1x1x32x32xbf16> to vector<32x32xbf16>
    %cst_163 = arith.constant dense<0.000000e+00> : vector<32x32xf32>
    %562 = tpu.matmul %559, %561, %cst_163 {dimension_numbers = #tpu.dot_dimension_numbers<[1], [0], [0], [1], [0, 0, 1, 1], [], []>} : vector<32x32xbf16>, vector<32x32xbf16>, vector<32x32xf32> -> vector<32x32xf32>
    %563 = vector.extract_strided_slice %6 {offsets = [36, 0], sizes = [1, 32], strides = [1, 1]} : vector<48x32xf32> to vector<1x32xf32>
    %564 = vector.broadcast %563 : vector<1x32xf32> to vector<32x32xf32>
    %565 = arith.addf %562, %564 : vector<32x32xf32>
    %566 = arith.truncf %534 : vector<32x32xf32> to vector<32x32xbf16>
    %c0_164 = arith.constant 0 : index
    %c15 = arith.constant 15 : index
    %c0_165 = arith.constant 0 : index
    %c0_166 = arith.constant 0 : index
    %567 = vector.load %arg6[%c0_164, %c15, %c0_165, %c0_166] : memref<1x21x32x32xbf16, #tpu.memory_space<vmem>>, vector<1x1x32x32xbf16>
    %568 = vector.shape_cast %567 : vector<1x1x32x32xbf16> to vector<32x32xbf16>
    %cst_167 = arith.constant dense<0.000000e+00> : vector<32x32xf32>
    %569 = tpu.matmul %566, %568, %cst_167 {dimension_numbers = #tpu.dot_dimension_numbers<[1], [0], [0], [1], [0, 0, 1, 1], [], []>} : vector<32x32xbf16>, vector<32x32xbf16>, vector<32x32xf32> -> vector<32x32xf32>
    %570 = vector.extract_strided_slice %6 {offsets = [37, 0], sizes = [1, 32], strides = [1, 1]} : vector<48x32xf32> to vector<1x32xf32>
    %571 = vector.broadcast %570 : vector<1x32xf32> to vector<32x32xf32>
    %572 = arith.addf %569, %571 : vector<32x32xf32>
    %573 = arith.truncf %534 : vector<32x32xf32> to vector<32x32xbf16>
    %c0_168 = arith.constant 0 : index
    %c16 = arith.constant 16 : index
    %c0_169 = arith.constant 0 : index
    %c0_170 = arith.constant 0 : index
    %574 = vector.load %arg6[%c0_168, %c16, %c0_169, %c0_170] : memref<1x21x32x32xbf16, #tpu.memory_space<vmem>>, vector<1x1x32x32xbf16>
    %575 = vector.shape_cast %574 : vector<1x1x32x32xbf16> to vector<32x32xbf16>
    %cst_171 = arith.constant dense<0.000000e+00> : vector<32x32xf32>
    %576 = tpu.matmul %573, %575, %cst_171 {dimension_numbers = #tpu.dot_dimension_numbers<[1], [0], [0], [1], [0, 0, 1, 1], [], []>} : vector<32x32xbf16>, vector<32x32xbf16>, vector<32x32xf32> -> vector<32x32xf32>
    %577 = vector.extract_strided_slice %6 {offsets = [38, 0], sizes = [1, 32], strides = [1, 1]} : vector<48x32xf32> to vector<1x32xf32>
    %578 = vector.broadcast %577 : vector<1x32xf32> to vector<32x32xf32>
    %579 = arith.addf %576, %578 : vector<32x32xf32>
    %580 = vector.shape_cast %565 : vector<32x32xf32> to vector<2x16x32xf32>
    %581 = vector.shape_cast %572 : vector<32x32xf32> to vector<2x16x32xf32>
    %582 = vector.shape_cast %579 : vector<32x32xf32> to vector<2x16x32xf32>
    %583 = vector.extract_strided_slice %6 {offsets = [39, 0], sizes = [1, 32], strides = [1, 1]} : vector<48x32xf32> to vector<1x32xf32>
    %584 = vector.extract_strided_slice %6 {offsets = [40, 0], sizes = [1, 32], strides = [1, 1]} : vector<48x32xf32> to vector<1x32xf32>
    %585 = vector.extract_strided_slice %580 {offsets = [0, 0, 0], sizes = [2, 16, 8], strides = [1, 1, 1]} : vector<2x16x32xf32> to vector<2x16x8xf32>
    %586 = vector.extract_strided_slice %581 {offsets = [0, 0, 0], sizes = [2, 16, 8], strides = [1, 1, 1]} : vector<2x16x32xf32> to vector<2x16x8xf32>
    %587 = vector.extract_strided_slice %582 {offsets = [0, 0, 0], sizes = [2, 16, 8], strides = [1, 1, 1]} : vector<2x16x32xf32> to vector<2x16x8xf32>
    %588 = vector.extract_strided_slice %583 {offsets = [0, 0], sizes = [1, 8], strides = [1, 1]} : vector<1x32xf32> to vector<1x8xf32>
    %589 = vector.extract_strided_slice %584 {offsets = [0, 0], sizes = [1, 8], strides = [1, 1]} : vector<1x32xf32> to vector<1x8xf32>
    %590 = arith.truncf %585 : vector<2x16x8xf32> to vector<2x16x8xbf16>
    %591 = arith.truncf %586 : vector<2x16x8xf32> to vector<2x16x8xbf16>
    "tpu.trace_start"() <{level = 10 : i32, message = "bqd,bkd->bqk"}> : () -> ()
    %cst_172 = arith.constant dense<0.000000e+00> : vector<2x16x16xf32>
    %592 = tpu.matmul %590, %591, %cst_172 {dimension_numbers = #tpu.dot_dimension_numbers<[2], [2], [1], [1], [0, 0, 0, 1, 1, 1], [0], [0]>} : vector<2x16x8xbf16>, vector<2x16x8xbf16>, vector<2x16x16xf32> -> vector<2x16x16xf32>
    "tpu.trace_stop"() : () -> ()
    %593 = vector.shape_cast %588 : vector<1x8xf32> to vector<1x1x8xf32>
    %594 = vector.broadcast %593 : vector<1x1x8xf32> to vector<2x16x8xf32>
    %595 = arith.mulf %585, %594 : vector<2x16x8xf32>
    %cst_173 = arith.constant dense<0.000000e+00> : vector<2x16xf32>
    %596 = vector.multi_reduction <add>, %595, %cst_173 [2] : vector<2x16x8xf32> to vector<2x16xf32>
    %597 = vector.shape_cast %596 : vector<2x16xf32> to vector<2x16x1xf32>
    %cst_174 = arith.constant dense<0xFF800000> : vector<2x16xf32>
    %598 = vector.multi_reduction <maximumf>, %592, %cst_174 [2] : vector<2x16x16xf32> to vector<2x16xf32>
    %599 = vector.shape_cast %598 : vector<2x16xf32> to vector<2x16x1xf32>
    %600 = arith.maximumf %599, %597 : vector<2x16x1xf32>
    %601 = vector.broadcast %600 : vector<2x16x1xf32> to vector<2x16x16xf32>
    %602 = arith.subf %592, %601 : vector<2x16x16xf32>
    %603 = math.exp %602 : vector<2x16x16xf32>
    %604 = arith.subf %597, %600 : vector<2x16x1xf32>
    %605 = math.exp %604 : vector<2x16x1xf32>
    %cst_175 = arith.constant dense<0.000000e+00> : vector<2x16xf32>
    %606 = vector.multi_reduction <add>, %603, %cst_175 [2] : vector<2x16x16xf32> to vector<2x16xf32>
    %607 = vector.shape_cast %606 : vector<2x16xf32> to vector<2x16x1xf32>
    %608 = arith.addf %607, %605 : vector<2x16x1xf32>
    %609 = arith.truncf %603 : vector<2x16x16xf32> to vector<2x16x16xbf16>
    %610 = arith.truncf %587 : vector<2x16x8xf32> to vector<2x16x8xbf16>
    "tpu.trace_start"() <{level = 10 : i32, message = "bqk,bkd->bqd"}> : () -> ()
    %cst_176 = arith.constant dense<0.000000e+00> : vector<2x16x8xf32>
    %611 = tpu.matmul %609, %610, %cst_176 {dimension_numbers = #tpu.dot_dimension_numbers<[2], [1], [1], [2], [0, 0, 0, 1, 1, 2], [0], [0]>} : vector<2x16x16xbf16>, vector<2x16x8xbf16>, vector<2x16x8xf32> -> vector<2x16x8xf32>
    "tpu.trace_stop"() : () -> ()
    %612 = vector.shape_cast %589 : vector<1x8xf32> to vector<1x1x8xf32>
    %613 = vector.broadcast %605 : vector<2x16x1xf32> to vector<2x16x8xf32>
    %614 = vector.broadcast %612 : vector<1x1x8xf32> to vector<2x16x8xf32>
    %615 = arith.mulf %613, %614 : vector<2x16x8xf32>
    %616 = arith.addf %611, %615 : vector<2x16x8xf32>
    %617 = vector.broadcast %608 : vector<2x16x1xf32> to vector<2x16x8xf32>
    %618 = arith.divf %616, %617 : vector<2x16x8xf32>
    %619 = vector.extract_strided_slice %580 {offsets = [0, 0, 8], sizes = [2, 16, 8], strides = [1, 1, 1]} : vector<2x16x32xf32> to vector<2x16x8xf32>
    %620 = vector.extract_strided_slice %581 {offsets = [0, 0, 8], sizes = [2, 16, 8], strides = [1, 1, 1]} : vector<2x16x32xf32> to vector<2x16x8xf32>
    %621 = vector.extract_strided_slice %582 {offsets = [0, 0, 8], sizes = [2, 16, 8], strides = [1, 1, 1]} : vector<2x16x32xf32> to vector<2x16x8xf32>
    %622 = vector.extract_strided_slice %583 {offsets = [0, 8], sizes = [1, 8], strides = [1, 1]} : vector<1x32xf32> to vector<1x8xf32>
    %623 = vector.extract_strided_slice %584 {offsets = [0, 8], sizes = [1, 8], strides = [1, 1]} : vector<1x32xf32> to vector<1x8xf32>
    %624 = arith.truncf %619 : vector<2x16x8xf32> to vector<2x16x8xbf16>
    %625 = arith.truncf %620 : vector<2x16x8xf32> to vector<2x16x8xbf16>
    "tpu.trace_start"() <{level = 10 : i32, message = "bqd,bkd->bqk"}> : () -> ()
    %cst_177 = arith.constant dense<0.000000e+00> : vector<2x16x16xf32>
    %626 = tpu.matmul %624, %625, %cst_177 {dimension_numbers = #tpu.dot_dimension_numbers<[2], [2], [1], [1], [0, 0, 0, 1, 1, 1], [0], [0]>} : vector<2x16x8xbf16>, vector<2x16x8xbf16>, vector<2x16x16xf32> -> vector<2x16x16xf32>
    "tpu.trace_stop"() : () -> ()
    %627 = vector.shape_cast %622 : vector<1x8xf32> to vector<1x1x8xf32>
    %628 = vector.broadcast %627 : vector<1x1x8xf32> to vector<2x16x8xf32>
    %629 = arith.mulf %619, %628 : vector<2x16x8xf32>
    %cst_178 = arith.constant dense<0.000000e+00> : vector<2x16xf32>
    %630 = vector.multi_reduction <add>, %629, %cst_178 [2] : vector<2x16x8xf32> to vector<2x16xf32>
    %631 = vector.shape_cast %630 : vector<2x16xf32> to vector<2x16x1xf32>
    %cst_179 = arith.constant dense<0xFF800000> : vector<2x16xf32>
    %632 = vector.multi_reduction <maximumf>, %626, %cst_179 [2] : vector<2x16x16xf32> to vector<2x16xf32>
    %633 = vector.shape_cast %632 : vector<2x16xf32> to vector<2x16x1xf32>
    %634 = arith.maximumf %633, %631 : vector<2x16x1xf32>
    %635 = vector.broadcast %634 : vector<2x16x1xf32> to vector<2x16x16xf32>
    %636 = arith.subf %626, %635 : vector<2x16x16xf32>
    %637 = math.exp %636 : vector<2x16x16xf32>
    %638 = arith.subf %631, %634 : vector<2x16x1xf32>
    %639 = math.exp %638 : vector<2x16x1xf32>
    %cst_180 = arith.constant dense<0.000000e+00> : vector<2x16xf32>
    %640 = vector.multi_reduction <add>, %637, %cst_180 [2] : vector<2x16x16xf32> to vector<2x16xf32>
    %641 = vector.shape_cast %640 : vector<2x16xf32> to vector<2x16x1xf32>
    %642 = arith.addf %641, %639 : vector<2x16x1xf32>
    %643 = arith.truncf %637 : vector<2x16x16xf32> to vector<2x16x16xbf16>
    %644 = arith.truncf %621 : vector<2x16x8xf32> to vector<2x16x8xbf16>
    "tpu.trace_start"() <{level = 10 : i32, message = "bqk,bkd->bqd"}> : () -> ()
    %cst_181 = arith.constant dense<0.000000e+00> : vector<2x16x8xf32>
    %645 = tpu.matmul %643, %644, %cst_181 {dimension_numbers = #tpu.dot_dimension_numbers<[2], [1], [1], [2], [0, 0, 0, 1, 1, 2], [0], [0]>} : vector<2x16x16xbf16>, vector<2x16x8xbf16>, vector<2x16x8xf32> -> vector<2x16x8xf32>
    "tpu.trace_stop"() : () -> ()
    %646 = vector.shape_cast %623 : vector<1x8xf32> to vector<1x1x8xf32>
    %647 = vector.broadcast %639 : vector<2x16x1xf32> to vector<2x16x8xf32>
    %648 = vector.broadcast %646 : vector<1x1x8xf32> to vector<2x16x8xf32>
    %649 = arith.mulf %647, %648 : vector<2x16x8xf32>
    %650 = arith.addf %645, %649 : vector<2x16x8xf32>
    %651 = vector.broadcast %642 : vector<2x16x1xf32> to vector<2x16x8xf32>
    %652 = arith.divf %650, %651 : vector<2x16x8xf32>
    %653 = vector.extract_strided_slice %580 {offsets = [0, 0, 16], sizes = [2, 16, 8], strides = [1, 1, 1]} : vector<2x16x32xf32> to vector<2x16x8xf32>
    %654 = vector.extract_strided_slice %581 {offsets = [0, 0, 16], sizes = [2, 16, 8], strides = [1, 1, 1]} : vector<2x16x32xf32> to vector<2x16x8xf32>
    %655 = vector.extract_strided_slice %582 {offsets = [0, 0, 16], sizes = [2, 16, 8], strides = [1, 1, 1]} : vector<2x16x32xf32> to vector<2x16x8xf32>
    %656 = vector.extract_strided_slice %583 {offsets = [0, 16], sizes = [1, 8], strides = [1, 1]} : vector<1x32xf32> to vector<1x8xf32>
    %657 = vector.extract_strided_slice %584 {offsets = [0, 16], sizes = [1, 8], strides = [1, 1]} : vector<1x32xf32> to vector<1x8xf32>
    %658 = arith.truncf %653 : vector<2x16x8xf32> to vector<2x16x8xbf16>
    %659 = arith.truncf %654 : vector<2x16x8xf32> to vector<2x16x8xbf16>
    "tpu.trace_start"() <{level = 10 : i32, message = "bqd,bkd->bqk"}> : () -> ()
    %cst_182 = arith.constant dense<0.000000e+00> : vector<2x16x16xf32>
    %660 = tpu.matmul %658, %659, %cst_182 {dimension_numbers = #tpu.dot_dimension_numbers<[2], [2], [1], [1], [0, 0, 0, 1, 1, 1], [0], [0]>} : vector<2x16x8xbf16>, vector<2x16x8xbf16>, vector<2x16x16xf32> -> vector<2x16x16xf32>
    "tpu.trace_stop"() : () -> ()
    %661 = vector.shape_cast %656 : vector<1x8xf32> to vector<1x1x8xf32>
    %662 = vector.broadcast %661 : vector<1x1x8xf32> to vector<2x16x8xf32>
    %663 = arith.mulf %653, %662 : vector<2x16x8xf32>
    %cst_183 = arith.constant dense<0.000000e+00> : vector<2x16xf32>
    %664 = vector.multi_reduction <add>, %663, %cst_183 [2] : vector<2x16x8xf32> to vector<2x16xf32>
    %665 = vector.shape_cast %664 : vector<2x16xf32> to vector<2x16x1xf32>
    %cst_184 = arith.constant dense<0xFF800000> : vector<2x16xf32>
    %666 = vector.multi_reduction <maximumf>, %660, %cst_184 [2] : vector<2x16x16xf32> to vector<2x16xf32>
    %667 = vector.shape_cast %666 : vector<2x16xf32> to vector<2x16x1xf32>
    %668 = arith.maximumf %667, %665 : vector<2x16x1xf32>
    %669 = vector.broadcast %668 : vector<2x16x1xf32> to vector<2x16x16xf32>
    %670 = arith.subf %660, %669 : vector<2x16x16xf32>
    %671 = math.exp %670 : vector<2x16x16xf32>
    %672 = arith.subf %665, %668 : vector<2x16x1xf32>
    %673 = math.exp %672 : vector<2x16x1xf32>
    %cst_185 = arith.constant dense<0.000000e+00> : vector<2x16xf32>
    %674 = vector.multi_reduction <add>, %671, %cst_185 [2] : vector<2x16x16xf32> to vector<2x16xf32>
    %675 = vector.shape_cast %674 : vector<2x16xf32> to vector<2x16x1xf32>
    %676 = arith.addf %675, %673 : vector<2x16x1xf32>
    %677 = arith.truncf %671 : vector<2x16x16xf32> to vector<2x16x16xbf16>
    %678 = arith.truncf %655 : vector<2x16x8xf32> to vector<2x16x8xbf16>
    "tpu.trace_start"() <{level = 10 : i32, message = "bqk,bkd->bqd"}> : () -> ()
    %cst_186 = arith.constant dense<0.000000e+00> : vector<2x16x8xf32>
    %679 = tpu.matmul %677, %678, %cst_186 {dimension_numbers = #tpu.dot_dimension_numbers<[2], [1], [1], [2], [0, 0, 0, 1, 1, 2], [0], [0]>} : vector<2x16x16xbf16>, vector<2x16x8xbf16>, vector<2x16x8xf32> -> vector<2x16x8xf32>
    "tpu.trace_stop"() : () -> ()
    %680 = vector.shape_cast %657 : vector<1x8xf32> to vector<1x1x8xf32>
    %681 = vector.broadcast %673 : vector<2x16x1xf32> to vector<2x16x8xf32>
    %682 = vector.broadcast %680 : vector<1x1x8xf32> to vector<2x16x8xf32>
    %683 = arith.mulf %681, %682 : vector<2x16x8xf32>
    %684 = arith.addf %679, %683 : vector<2x16x8xf32>
    %685 = vector.broadcast %676 : vector<2x16x1xf32> to vector<2x16x8xf32>
    %686 = arith.divf %684, %685 : vector<2x16x8xf32>
    %687 = vector.extract_strided_slice %580 {offsets = [0, 0, 24], sizes = [2, 16, 8], strides = [1, 1, 1]} : vector<2x16x32xf32> to vector<2x16x8xf32>
    %688 = vector.extract_strided_slice %581 {offsets = [0, 0, 24], sizes = [2, 16, 8], strides = [1, 1, 1]} : vector<2x16x32xf32> to vector<2x16x8xf32>
    %689 = vector.extract_strided_slice %582 {offsets = [0, 0, 24], sizes = [2, 16, 8], strides = [1, 1, 1]} : vector<2x16x32xf32> to vector<2x16x8xf32>
    %690 = vector.extract_strided_slice %583 {offsets = [0, 24], sizes = [1, 8], strides = [1, 1]} : vector<1x32xf32> to vector<1x8xf32>
    %691 = vector.extract_strided_slice %584 {offsets = [0, 24], sizes = [1, 8], strides = [1, 1]} : vector<1x32xf32> to vector<1x8xf32>
    %692 = arith.truncf %687 : vector<2x16x8xf32> to vector<2x16x8xbf16>
    %693 = arith.truncf %688 : vector<2x16x8xf32> to vector<2x16x8xbf16>
    "tpu.trace_start"() <{level = 10 : i32, message = "bqd,bkd->bqk"}> : () -> ()
    %cst_187 = arith.constant dense<0.000000e+00> : vector<2x16x16xf32>
    %694 = tpu.matmul %692, %693, %cst_187 {dimension_numbers = #tpu.dot_dimension_numbers<[2], [2], [1], [1], [0, 0, 0, 1, 1, 1], [0], [0]>} : vector<2x16x8xbf16>, vector<2x16x8xbf16>, vector<2x16x16xf32> -> vector<2x16x16xf32>
    "tpu.trace_stop"() : () -> ()
    %695 = vector.shape_cast %690 : vector<1x8xf32> to vector<1x1x8xf32>
    %696 = vector.broadcast %695 : vector<1x1x8xf32> to vector<2x16x8xf32>
    %697 = arith.mulf %687, %696 : vector<2x16x8xf32>
    %cst_188 = arith.constant dense<0.000000e+00> : vector<2x16xf32>
    %698 = vector.multi_reduction <add>, %697, %cst_188 [2] : vector<2x16x8xf32> to vector<2x16xf32>
    %699 = vector.shape_cast %698 : vector<2x16xf32> to vector<2x16x1xf32>
    %cst_189 = arith.constant dense<0xFF800000> : vector<2x16xf32>
    %700 = vector.multi_reduction <maximumf>, %694, %cst_189 [2] : vector<2x16x16xf32> to vector<2x16xf32>
    %701 = vector.shape_cast %700 : vector<2x16xf32> to vector<2x16x1xf32>
    %702 = arith.maximumf %701, %699 : vector<2x16x1xf32>
    %703 = vector.broadcast %702 : vector<2x16x1xf32> to vector<2x16x16xf32>
    %704 = arith.subf %694, %703 : vector<2x16x16xf32>
    %705 = math.exp %704 : vector<2x16x16xf32>
    %706 = arith.subf %699, %702 : vector<2x16x1xf32>
    %707 = math.exp %706 : vector<2x16x1xf32>
    %cst_190 = arith.constant dense<0.000000e+00> : vector<2x16xf32>
    %708 = vector.multi_reduction <add>, %705, %cst_190 [2] : vector<2x16x16xf32> to vector<2x16xf32>
    %709 = vector.shape_cast %708 : vector<2x16xf32> to vector<2x16x1xf32>
    %710 = arith.addf %709, %707 : vector<2x16x1xf32>
    %711 = arith.truncf %705 : vector<2x16x16xf32> to vector<2x16x16xbf16>
    %712 = arith.truncf %689 : vector<2x16x8xf32> to vector<2x16x8xbf16>
    "tpu.trace_start"() <{level = 10 : i32, message = "bqk,bkd->bqd"}> : () -> ()
    %cst_191 = arith.constant dense<0.000000e+00> : vector<2x16x8xf32>
    %713 = tpu.matmul %711, %712, %cst_191 {dimension_numbers = #tpu.dot_dimension_numbers<[2], [1], [1], [2], [0, 0, 0, 1, 1, 2], [0], [0]>} : vector<2x16x16xbf16>, vector<2x16x8xbf16>, vector<2x16x8xf32> -> vector<2x16x8xf32>
    "tpu.trace_stop"() : () -> ()
    %714 = vector.shape_cast %691 : vector<1x8xf32> to vector<1x1x8xf32>
    %715 = vector.broadcast %707 : vector<2x16x1xf32> to vector<2x16x8xf32>
    %716 = vector.broadcast %714 : vector<1x1x8xf32> to vector<2x16x8xf32>
    %717 = arith.mulf %715, %716 : vector<2x16x8xf32>
    %718 = arith.addf %713, %717 : vector<2x16x8xf32>
    %719 = vector.broadcast %710 : vector<2x16x1xf32> to vector<2x16x8xf32>
    %720 = arith.divf %718, %719 : vector<2x16x8xf32>
    %721 = tpu.concatenate %618, %652, %686, %720 in 2 : vector<2x16x8xf32>, vector<2x16x8xf32>, vector<2x16x8xf32>, vector<2x16x8xf32> -> vector<2x16x32xf32>
    %722 = vector.shape_cast %721 : vector<2x16x32xf32> to vector<32x32xf32>
    %723 = arith.truncf %722 : vector<32x32xf32> to vector<32x32xbf16>
    %c0_192 = arith.constant 0 : index
    %c17 = arith.constant 17 : index
    %c0_193 = arith.constant 0 : index
    %c0_194 = arith.constant 0 : index
    %724 = vector.load %arg6[%c0_192, %c17, %c0_193, %c0_194] : memref<1x21x32x32xbf16, #tpu.memory_space<vmem>>, vector<1x1x32x32xbf16>
    %725 = vector.shape_cast %724 : vector<1x1x32x32xbf16> to vector<32x32xbf16>
    %cst_195 = arith.constant dense<0.000000e+00> : vector<32x32xf32>
    %726 = tpu.matmul %723, %725, %cst_195 {dimension_numbers = #tpu.dot_dimension_numbers<[1], [0], [0], [1], [0, 0, 1, 1], [], []>} : vector<32x32xbf16>, vector<32x32xbf16>, vector<32x32xf32> -> vector<32x32xf32>
    %727 = vector.extract_strided_slice %6 {offsets = [41, 0], sizes = [1, 32], strides = [1, 1]} : vector<48x32xf32> to vector<1x32xf32>
    %728 = vector.broadcast %727 : vector<1x32xf32> to vector<32x32xf32>
    %729 = arith.addf %726, %728 : vector<32x32xf32>
    %730 = arith.truncf %729 : vector<32x32xf32> to vector<32x32xbf16>
    %c0_196 = arith.constant 0 : index
    %c18 = arith.constant 18 : index
    %c0_197 = arith.constant 0 : index
    %c0_198 = arith.constant 0 : index
    %731 = vector.load %arg6[%c0_196, %c18, %c0_197, %c0_198] : memref<1x21x32x32xbf16, #tpu.memory_space<vmem>>, vector<1x1x32x32xbf16>
    %732 = vector.shape_cast %731 : vector<1x1x32x32xbf16> to vector<32x32xbf16>
    %cst_199 = arith.constant dense<0.000000e+00> : vector<32x32xf32>
    %733 = tpu.matmul %730, %732, %cst_199 {dimension_numbers = #tpu.dot_dimension_numbers<[1], [0], [0], [1], [0, 0, 1, 1], [], []>} : vector<32x32xbf16>, vector<32x32xbf16>, vector<32x32xf32> -> vector<32x32xf32>
    %734 = vector.extract_strided_slice %6 {offsets = [42, 0], sizes = [1, 32], strides = [1, 1]} : vector<48x32xf32> to vector<1x32xf32>
    %735 = vector.broadcast %734 : vector<1x32xf32> to vector<32x32xf32>
    %736 = arith.addf %733, %735 : vector<32x32xf32>
    %737 = vector.extract_strided_slice %6 {offsets = [43, 0], sizes = [1, 32], strides = [1, 1]} : vector<48x32xf32> to vector<1x32xf32>
    %738 = vector.extract_strided_slice %6 {offsets = [44, 0], sizes = [1, 32], strides = [1, 1]} : vector<48x32xf32> to vector<1x32xf32>
    %cst_200 = arith.constant dense<0.000000e+00> : vector<32xf32>
    %739 = vector.multi_reduction <add>, %736, %cst_200 [1] : vector<32x32xf32> to vector<32xf32>
    %740 = vector.shape_cast %739 : vector<32xf32> to vector<32x1xf32>
    %cst_201 = arith.constant 3.200000e+01 : f32
    %741 = vector.broadcast %cst_201 : f32 to vector<32x1xf32>
    %742 = arith.divf %740, %741 : vector<32x1xf32>
    %743 = vector.broadcast %742 : vector<32x1xf32> to vector<32x32xf32>
    %744 = arith.subf %736, %743 : vector<32x32xf32>
    %745 = arith.mulf %744, %744 : vector<32x32xf32>
    %cst_202 = arith.constant dense<0.000000e+00> : vector<32xf32>
    %746 = vector.multi_reduction <add>, %745, %cst_202 [1] : vector<32x32xf32> to vector<32xf32>
    %747 = vector.shape_cast %746 : vector<32xf32> to vector<32x1xf32>
    %cst_203 = arith.constant 3.200000e+01 : f32
    %748 = vector.broadcast %cst_203 : f32 to vector<32x1xf32>
    %749 = arith.divf %747, %748 : vector<32x1xf32>
    %750 = vector.broadcast %742 : vector<32x1xf32> to vector<32x32xf32>
    %751 = arith.subf %736, %750 : vector<32x32xf32>
    %cst_204 = arith.constant 9.99999974E-6 : f32
    %752 = vector.broadcast %cst_204 : f32 to vector<32x1xf32>
    %753 = arith.addf %749, %752 : vector<32x1xf32>
    %754 = math.rsqrt %753 : vector<32x1xf32>
    %755 = vector.broadcast %754 : vector<32x1xf32> to vector<32x32xf32>
    %756 = arith.mulf %751, %755 : vector<32x32xf32>
    %757 = vector.broadcast %737 : vector<1x32xf32> to vector<32x32xf32>
    %758 = arith.mulf %756, %757 : vector<32x32xf32>
    %759 = vector.broadcast %738 : vector<1x32xf32> to vector<32x32xf32>
    %760 = arith.addf %758, %759 : vector<32x32xf32>
    %761 = arith.truncf %760 : vector<32x32xf32> to vector<32x32xbf16>
    %c0_205 = arith.constant 0 : index
    %c19 = arith.constant 19 : index
    %c0_206 = arith.constant 0 : index
    %c0_207 = arith.constant 0 : index
    %762 = vector.load %arg6[%c0_205, %c19, %c0_206, %c0_207] : memref<1x21x32x32xbf16, #tpu.memory_space<vmem>>, vector<1x1x32x32xbf16>
    %763 = vector.shape_cast %762 : vector<1x1x32x32xbf16> to vector<32x32xbf16>
    %cst_208 = arith.constant dense<0.000000e+00> : vector<32x32xf32>
    %764 = tpu.matmul %761, %763, %cst_208 {dimension_numbers = #tpu.dot_dimension_numbers<[1], [0], [0], [1], [0, 0, 1, 1], [], []>} : vector<32x32xbf16>, vector<32x32xbf16>, vector<32x32xf32> -> vector<32x32xf32>
    %765 = vector.extract_strided_slice %6 {offsets = [45, 0], sizes = [1, 32], strides = [1, 1]} : vector<48x32xf32> to vector<1x32xf32>
    %766 = vector.broadcast %765 : vector<1x32xf32> to vector<32x32xf32>
    %767 = arith.addf %764, %766 : vector<32x32xf32>
    %cst_209 = arith.constant 5.000000e-01 : f32
    %768 = vector.broadcast %cst_209 : f32 to vector<32x32xf32>
    %769 = arith.mulf %767, %768 : vector<32x32xf32>
    %cst_210 = arith.constant 0.707106769 : f32
    %770 = vector.broadcast %cst_210 : f32 to vector<32x32xf32>
    %771 = arith.mulf %767, %770 : vector<32x32xf32>
    %cst_211 = arith.constant 0.000000e+00 : f32
    %772 = vector.broadcast %cst_211 : f32 to vector<32x32xf32>
    %773 = arith.cmpf oge, %771, %772 : vector<32x32xf32>
    %cst_212 = arith.constant 1.000000e+00 : f32
    %cst_213 = arith.constant -1.000000e+00 : f32
    %774 = vector.broadcast %cst_212 : f32 to vector<32x32xf32>
    %775 = vector.broadcast %cst_213 : f32 to vector<32x32xf32>
    %776 = arith.select %773, %774, %775 : vector<32x32xi1>, vector<32x32xf32>
    %777 = math.absf %771 : vector<32x32xf32>
    %cst_214 = arith.constant 0.327591091 : f32
    %778 = vector.broadcast %cst_214 : f32 to vector<32x32xf32>
    %779 = arith.mulf %778, %777 : vector<32x32xf32>
    %cst_215 = arith.constant 1.000000e+00 : f32
    %780 = vector.broadcast %cst_215 : f32 to vector<32x32xf32>
    %781 = arith.addf %780, %779 : vector<32x32xf32>
    %cst_216 = arith.constant 1.000000e+00 : f32
    %782 = vector.broadcast %cst_216 : f32 to vector<32x32xf32>
    %783 = arith.divf %782, %781 : vector<32x32xf32>
    %cst_217 = arith.constant 1.06140542 : f32
    %784 = vector.broadcast %cst_217 : f32 to vector<32x32xf32>
    %785 = arith.mulf %784, %783 : vector<32x32xf32>
    %cst_218 = arith.constant -1.45315206 : f32
    %786 = vector.broadcast %cst_218 : f32 to vector<32x32xf32>
    %787 = arith.addf %785, %786 : vector<32x32xf32>
    %788 = arith.mulf %787, %783 : vector<32x32xf32>
    %cst_219 = arith.constant 1.42141378 : f32
    %789 = vector.broadcast %cst_219 : f32 to vector<32x32xf32>
    %790 = arith.addf %788, %789 : vector<32x32xf32>
    %791 = arith.mulf %790, %783 : vector<32x32xf32>
    %cst_220 = arith.constant -0.284496725 : f32
    %792 = vector.broadcast %cst_220 : f32 to vector<32x32xf32>
    %793 = arith.addf %791, %792 : vector<32x32xf32>
    %794 = arith.mulf %793, %783 : vector<32x32xf32>
    %cst_221 = arith.constant 0.254829586 : f32
    %795 = vector.broadcast %cst_221 : f32 to vector<32x32xf32>
    %796 = arith.addf %794, %795 : vector<32x32xf32>
    %797 = arith.mulf %796, %783 : vector<32x32xf32>
    %cst_222 = arith.constant 0.000000e+00 : f32
    %798 = vector.broadcast %cst_222 : f32 to vector<32x32xf32>
    %799 = arith.subf %798, %777 : vector<32x32xf32>
    %800 = arith.mulf %799, %777 : vector<32x32xf32>
    %801 = math.exp %800 : vector<32x32xf32>
    %802 = arith.mulf %797, %801 : vector<32x32xf32>
    %cst_223 = arith.constant 1.000000e+00 : f32
    %803 = vector.broadcast %cst_223 : f32 to vector<32x32xf32>
    %804 = arith.subf %803, %802 : vector<32x32xf32>
    %805 = arith.mulf %776, %804 : vector<32x32xf32>
    %cst_224 = arith.constant 1.000000e+00 : f32
    %806 = vector.broadcast %cst_224 : f32 to vector<32x32xf32>
    %807 = arith.addf %806, %805 : vector<32x32xf32>
    %808 = arith.mulf %769, %807 : vector<32x32xf32>
    %809 = arith.truncf %808 : vector<32x32xf32> to vector<32x32xbf16>
    %c0_225 = arith.constant 0 : index
    %c20 = arith.constant 20 : index
    %c0_226 = arith.constant 0 : index
    %c0_227 = arith.constant 0 : index
    %810 = vector.load %arg6[%c0_225, %c20, %c0_226, %c0_227] : memref<1x21x32x32xbf16, #tpu.memory_space<vmem>>, vector<1x1x32x32xbf16>
    %811 = vector.shape_cast %810 : vector<1x1x32x32xbf16> to vector<32x32xbf16>
    %cst_228 = arith.constant dense<0.000000e+00> : vector<32x32xf32>
    %812 = tpu.matmul %809, %811, %cst_228 {dimension_numbers = #tpu.dot_dimension_numbers<[1], [0], [0], [1], [0, 0, 1, 1], [], []>} : vector<32x32xbf16>, vector<32x32xbf16>, vector<32x32xf32> -> vector<32x32xf32>
    %813 = vector.extract_strided_slice %6 {offsets = [46, 0], sizes = [1, 32], strides = [1, 1]} : vector<48x32xf32> to vector<1x32xf32>
    %814 = vector.broadcast %813 : vector<1x32xf32> to vector<32x32xf32>
    %815 = arith.addf %812, %814 : vector<32x32xf32>
    %816 = arith.addf %815, %510 : vector<32x32xf32>
    %c0_229 = arith.constant 0 : index
    %c0_230 = arith.constant 0 : index
    %817 = vector.load %arg14[%c0_229, %c0_230] : memref<32x32xf32, #tpu.memory_space<vmem>>, vector<32x32xf32>
    tpu.vector_store %arg14[%c0_229, %c0_230], %816 {strides = array<i32>} : memref<32x32xf32, #tpu.memory_space<vmem>>, vector<32x32xf32>,
    %c1_i32 = arith.constant 1 : i32
    %818 = arith.cmpi eq, %arg1, %c1_i32 : i32
    %819 = arith.extui %818 : i1 to i32
    %c0_i32_231 = arith.constant 0 : i32
    %820 = arith.cmpi ne, %819, %c0_i32_231 : i32
    scf.if %820 {
      %821 = vector.extract_strided_slice %816 {offsets = [0, 0], sizes = [16, 32], strides = [1, 1]} : vector<32x32xf32> to vector<16x32xf32>
      %cst_232 = arith.constant dense<0.000000e+00> : vector<32xf32>
      %822 = vector.multi_reduction <add>, %821, %cst_232 [0] : vector<16x32xf32> to vector<32xf32>
      %823 = vector.shape_cast %822 : vector<32xf32> to vector<1x32xf32>
      %cst_233 = arith.constant 1.600000e+01 : f32
      %824 = vector.broadcast %cst_233 : f32 to vector<1x32xf32>
      %825 = arith.divf %823, %824 : vector<1x32xf32>
      %826 = vector.extract_strided_slice %816 {offsets = [16, 0], sizes = [16, 32], strides = [1, 1]} : vector<32x32xf32> to vector<16x32xf32>
      %cst_234 = arith.constant dense<0.000000e+00> : vector<32xf32>
      %827 = vector.multi_reduction <add>, %826, %cst_234 [0] : vector<16x32xf32> to vector<32xf32>
      %828 = vector.shape_cast %827 : vector<32xf32> to vector<1x32xf32>
      %cst_235 = arith.constant 1.600000e+01 : f32
      %829 = vector.broadcast %cst_235 : f32 to vector<1x32xf32>
      %830 = arith.divf %828, %829 : vector<1x32xf32>
      %831 = tpu.concatenate %825, %830 in 0 : vector<1x32xf32>, vector<1x32xf32> -> vector<2x32xf32>
      %832 = arith.truncf %831 : vector<2x32xf32> to vector<2x32xbf16>
      %c0_236 = arith.constant 0 : index
      %c0_237 = arith.constant 0 : index
      %833 = vector.load %arg8[%c0_236, %c0_237] : memref<32x32xbf16, #tpu.memory_space<vmem>>, vector<32x32xbf16>
      %cst_238 = arith.constant dense<0.000000e+00> : vector<2x32xf32>
      %834 = tpu.matmul %832, %833, %cst_238 {dimension_numbers = #tpu.dot_dimension_numbers<[1], [0], [0], [1], [0, 0, 1, 1], [], []>} : vector<2x32xbf16>, vector<32x32xbf16>, vector<2x32xf32> -> vector<2x32xf32>
      %c0_239 = arith.constant 0 : index
      %c0_240 = arith.constant 0 : index
      %835 = vector.load %arg9[%c0_239, %c0_240] : memref<1x32xf32, #tpu.memory_space<vmem>>, vector<1x32xf32>
      %836 = vector.broadcast %835 : vector<1x32xf32> to vector<2x32xf32>
      %837 = arith.addf %834, %836 : vector<2x32xf32>
      %838 = arith.truncf %837 : vector<2x32xf32> to vector<2x32xbf16>
      %c0_241 = arith.constant 0 : index
      %c0_242 = arith.constant 0 : index
      %839 = vector.load %arg10[%c0_241, %c0_242] : memref<32x128xbf16, #tpu.memory_space<vmem>>, vector<32x128xbf16>
      %cst_243 = arith.constant dense<0.000000e+00> : vector<2x128xf32>
      %840 = tpu.matmul %838, %839, %cst_243 {dimension_numbers = #tpu.dot_dimension_numbers<[1], [0], [0], [1], [0, 0, 1, 1], [], []>} : vector<2x32xbf16>, vector<32x128xbf16>, vector<2x128xf32> -> vector<2x128xf32>
      %c0_244 = arith.constant 0 : index
      %c0_245 = arith.constant 0 : index
      %841 = vector.load %arg11[%c0_244, %c0_245] : memref<1x128xf32, #tpu.memory_space<vmem>>, vector<1x128xf32>
      %842 = vector.broadcast %841 : vector<1x128xf32> to vector<2x128xf32>
      %843 = arith.addf %840, %842 : vector<2x128xf32>
      %cst_246 = arith.constant dense<0xFF800000> : vector<2xf32>
      %844 = vector.multi_reduction <maximumf>, %843, %cst_246 [1] : vector<2x128xf32> to vector<2xf32>
      %845 = vector.shape_cast %844 : vector<2xf32> to vector<2x1xf32>
      %846 = vector.broadcast %845 : vector<2x1xf32> to vector<2x128xf32>
      %847 = arith.subf %843, %846 : vector<2x128xf32>
      %848 = math.exp %847 : vector<2x128xf32>
      %cst_247 = arith.constant dense<0.000000e+00> : vector<2xf32>
      %849 = vector.multi_reduction <add>, %848, %cst_247 [1] : vector<2x128xf32> to vector<2xf32>
      %850 = vector.shape_cast %849 : vector<2xf32> to vector<2x1xf32>
      %851 = math.log %850 : vector<2x1xf32>
      %852 = vector.broadcast %851 : vector<2x1xf32> to vector<2x128xf32>
      %853 = arith.subf %847, %852 : vector<2x128xf32>
      %c0_248 = arith.constant 0 : index
      %c0_249 = arith.constant 0 : index
      %854 = vector.load %arg12[%c0_248, %c0_249] : memref<2x128xf32, #tpu.memory_space<vmem>>, vector<2x128xf32>
      tpu.vector_store %arg12[%c0_248, %c0_249], %853 {strides = array<i32>} : memref<2x128xf32, #tpu.memory_space<vmem>>, vector<2x128xf32>,
    } else {
    }
    return
  }
  func.func @transform_0(%arg0: i32, %arg1: i32) -> (i32, i32) {
    %c0_i32 = arith.constant 0 : i32
    %c0_i32_0 = arith.constant 0 : i32
    return %arg0, %c0_i32 : i32, i32
  }
  func.func @transform_1(%arg0: i32, %arg1: i32) -> (i32, i32) {
    %c0_i32 = arith.constant 0 : i32
    %c0_i32_0 = arith.constant 0 : i32
    %c0_i32_1 = arith.constant 0 : i32
    return %c0_i32, %c0_i32_0 : i32, i32
  }
  func.func @transform_2(%arg0: i32, %arg1: i32) -> (i32, i32) {
    %c0_i32 = arith.constant 0 : i32
    %c0_i32_0 = arith.constant 0 : i32
    %c0_i32_1 = arith.constant 0 : i32
    return %c0_i32, %c0_i32_0 : i32, i32
  }
  func.func @transform_3(%arg0: i32, %arg1: i32) -> (i32, i32) {
    %c0_i32 = arith.constant 0 : i32
    %c0_i32_0 = arith.constant 0 : i32
    %c0_i32_1 = arith.constant 0 : i32
    return %c0_i32, %c0_i32_0 : i32, i32
  }
  func.func @transform_4(%arg0: i32, %arg1: i32) -> (i32, i32, i32, i32) {
    %c1_i32 = arith.constant 1 : i32
    %0 = arith.minsi %arg1, %c1_i32 : i32
    %c0_i32 = arith.constant 0 : i32
    %c0_i32_0 = arith.constant 0 : i32
    %c0_i32_1 = arith.constant 0 : i32
    %c0_i32_2 = arith.constant 0 : i32
    return %0, %c0_i32, %c0_i32_0, %c0_i32_1 : i32, i32, i32, i32
  }
  func.func @transform_5(%arg0: i32, %arg1: i32) -> (i32, i32, i32) {
    %c1_i32 = arith.constant 1 : i32
    %0 = arith.minsi %arg1, %c1_i32 : i32
    %c0_i32 = arith.constant 0 : i32
    %c0_i32_0 = arith.constant 0 : i32
    %c0_i32_1 = arith.constant 0 : i32
    return %0, %c0_i32, %c0_i32_0 : i32, i32, i32
  }
  func.func @transform_6(%arg0: i32, %arg1: i32) -> (i32, i32) {
    %c0_i32 = arith.constant 0 : i32
    %c0_i32_0 = arith.constant 0 : i32
    %c0_i32_1 = arith.constant 0 : i32
    return %c0_i32, %c0_i32_0 : i32, i32
  }
  func.func @transform_7(%arg0: i32, %arg1: i32) -> (i32, i32) {
    %c0_i32 = arith.constant 0 : i32
    %c0_i32_0 = arith.constant 0 : i32
    %c0_i32_1 = arith.constant 0 : i32
    return %c0_i32, %c0_i32_0 : i32, i32
  }
  func.func @transform_8(%arg0: i32, %arg1: i32) -> (i32, i32) {
    %c0_i32 = arith.constant 0 : i32
    %c0_i32_0 = arith.constant 0 : i32
    %c0_i32_1 = arith.constant 0 : i32
    return %c0_i32, %c0_i32_0 : i32, i32
  }
  func.func @transform_9(%arg0: i32, %arg1: i32) -> (i32, i32) {
    %c0_i32 = arith.constant 0 : i32
    %c0_i32_0 = arith.constant 0 : i32
    %c0_i32_1 = arith.constant 0 : i32
    return %c0_i32, %c0_i32_0 : i32, i32
  }
  func.func @transform_10(%arg0: i32, %arg1: i32) -> (i32, i32) {
    %c0_i32 = arith.constant 0 : i32
    %c0_i32_0 = arith.constant 0 : i32
    return %arg0, %c0_i32 : i32, i32
  }
}

</mosaic_0001>

<llo_original>
// kernel: forward.1
$region0: #{forward.1}
  #allocation0 [shape = 'u32[]', space=smem, size = 0x4, offset = 0x4, fixed_abs, tag = 'smem constant byte address 0x4 - core index']
  #allocation1 [shape = 'u32[144,128]{1,0:T(1,128)}', space=vmem, size = 0x12000, scoped, tag = 'internal scratch']
  #allocation2 [shape = 'f32[128,32]{1,0:T(8,128)}', space=vmem, size = 0x10000, scoped, tag = 'scratch operand']
  #allocation3 [shape = 'f32[32,32]{1,0:T(8,128)}', space=vmem, size = 0x4000, scoped, tag = 'scratch operand']
  %s0 = inlined_call_operand.vmem [shape: bf16[128,20], index: 0, kind: input, shape index: {}]
  %s1 = inlined_call_operand.vmem [shape: bf16[20,32], index: 1, kind: input, shape index: {}]
  %s2 = inlined_call_operand.vmem [shape: f32[1,32], index: 2, kind: input, shape index: {}]
  %s3 = inlined_call_operand.vmem [shape: f32[16,32], index: 3, kind: input, shape index: {}]
  %s4 = inlined_call_operand.hbm [shape: bf16[2,21,32,32], index: 4, kind: input, shape index: {}]
  %s5 = inlined_call_operand.vmem [shape: f32[2,48,32], index: 5, kind: input, shape index: {}]
  %s6 = inlined_call_operand.vmem [shape: bf16[32,32], index: 6, kind: input, shape index: {}]
  %s7 = inlined_call_operand.vmem [shape: f32[1,32], index: 7, kind: input, shape index: {}]
  %s8 = inlined_call_operand.vmem [shape: bf16[32,128], index: 8, kind: input, shape index: {}]
  %s9 = inlined_call_operand.vmem [shape: f32[1,128], index: 9, kind: input, shape index: {}]
  %s10 = inlined_call_operand.hbm [shape: f32[2,128], index: 10, kind: output, shape index: {}]
  %s11 = sld [smem:[#allocation0]]
  $region85: #{forward.1} parent=0
    _
  %s13 = ssub.s32 1, %s11
  %s14 = scalar_select 0, %s13, %s11
  $region1: #{forward.1} parent=0
    #allocation4 [shape = 'u8[344064]{0}', space=vmem, size = 0x54000, scoped, tag = 'input window, operand 4']
    #allocation5 [shape = 's32[2]{0}', space=sflag, size = 0x8, scoped, tag = 'scoped memory for forward.1']
    #allocation6 [shape = 's32[2]{0}', space=sflag, size = 0x8, scoped, tag = 'scoped memory for forward.1']
    #allocation7 [shape = 'u8[1024]{0}', space=vmem, size = 0x400, scoped, tag = 'output window, operand 0, single buffered']
    %15 = vsyncpa [#allocation5], 0
    %s16 = scalar_lea.sflag [#allocation5], 1
    %17 = vsyncpa %s16, 0
    %18 = vsyncpa [#allocation6], 0
    loop: start=0, step=1, limit=4
    $region2: #{forward.1} parent=1 // loop_pre_header
      _
    $region3: #{forward.1} parent=1 // loop_header
      %s20 = sphi 0, %s24
      %p21 = scmp.ge.s32.totalorder %s20, 4
      %s27 = sphi 0, %s39
      %s28 = sphi 0, %s35
      %s29 = sphi 0, %s27
      %s30 = sphi 0, %s28
      %s31 = sphi 0, %s29
      %s32 = sphi 0, %s30
      %s42 = sphi 0, %s44
      %s45 = sphi 0, %s42
      %s46 = sphi 0, %s45
      %s62 = sphi 0, %s46
      %s66 = sphi 0, %s66
      %s68 = sphi 0, %s66
      %s69 = sphi 0, %s68
      %s83 = sphi 0, %s69
      %s87 = sphi 0, %s87
      %s89 = sphi 0, %s87
      %s90 = sphi 0, %s89
      %s104 = sphi 0, %s90
      %s108 = sphi 0, %s108
      %s110 = sphi 0, %s108
      %s111 = sphi 0, %s110
      %s125 = sphi 0, %s111
      %s135 = sphi 0, %s137
      %s138 = sphi 0, %s135
      %s139 = sphi 0, %s138
      %s155 = sphi 0, %s139
      %s165 = sphi 0, %s167
      %s168 = sphi 0, %s165
      %s169 = sphi 0, %s168
      %s185 = sphi 0, %s169
      %s189 = sphi 0, %s189
      %s191 = sphi 0, %s189
      %s192 = sphi 0, %s191
      %s206 = sphi 0, %s192
      %s210 = sphi 0, %s210
      %s212 = sphi 0, %s210
      %s213 = sphi 0, %s212
      %s227 = sphi 0, %s213
      %s231 = sphi 0, %s231
      %s233 = sphi 0, %s231
      %s234 = sphi 0, %s233
      %s248 = sphi 0, %s234
      %s252 = sphi 0, %s252
      %s254 = sphi 0, %s252
      %s255 = sphi 0, %s254
      %s269 = sphi 0, %s255
      %s275 = sphi 0, %s277
      %s278 = sphi 0, %s275
      %s279 = sphi 0, %s278
      %s295 = sphi 0, %s279
    $region4: #{forward.1} parent=1 // loop_header_branch
      %23 = sbr.rel (%p21) target = $region8
    $region5: #{forward.1} parent=1 // loop_body
      %s25 = ssub.s32 %s20, 1
      %s26 = ssub.s32 %s20, 2
      %s33 = sadd.s32 1, %s28
      %p34 = scmp.ge.s32.totalorder %s33, 2
      %s35 = scalar_select %p34, 0, %s33
      %s36 = sadd.s32 1, %s27
      %s37 = scalar_select %p34, %s36, %s27
      %p38 = scmp.ge.s32.totalorder %s37, 1
      %s39 = scalar_select %p38, 0, %s37
      %s40 = ssub.s32 %s27, %s39
      %p41 = scmp.eq.s32.totalorder %s40, 0
      %s43 = sadd.s32 %s42, 1
      %s44 = scalar_select %p41, %s42, %s43
      %p47 = pneg %p41
      %p48 = scmp.eq.s32.totalorder %s20, 1
      %p49 = por %p47, %p48
      %p50 = scmp.ne.s32.totalorder %s42, %s45
      %p51 = scmp.eq.s32.totalorder %s20, 0
      %p52 = por %p50, %p51
      %p53 = scmp.ne.s32.totalorder %s42, %s45
      %p54 = scmp.eq.s32.totalorder %s25, 1
      %p55 = por %p53, %p54
      %p56 = scmp.ne.s32.totalorder %s45, %s46
      %p57 = scmp.eq.s32.totalorder %s25, 0
      %p58 = por %p56, %p57
      %p59 = scmp.ne.s32.totalorder %s45, %s46
      %p60 = scmp.eq.s32.totalorder %s26, 1
      %p61 = por %p59, %p60
      %p63 = scmp.ne.s32.totalorder %s46, %s62
      %p64 = scmp.eq.s32.totalorder %s26, 0
      %p65 = por %p63, %p64
      %s67 = sadd.s32 %s66, 1
      %p70 = scmp.eq.s32.totalorder %s20, 1
      %p71 = scmp.ne.s32.totalorder %s66, %s68
      %p72 = scmp.eq.s32.totalorder %s20, 0
      %p73 = por %p71, %p72
      %p74 = scmp.ne.s32.totalorder %s66, %s68
      %p75 = scmp.eq.s32.totalorder %s25, 1
      %p76 = por %p74, %p75
      %p77 = scmp.ne.s32.totalorder %s68, %s69
      %p78 = scmp.eq.s32.totalorder %s25, 0
      %p79 = por %p77, %p78
      %p80 = scmp.ne.s32.totalorder %s68, %s69
      %p81 = scmp.eq.s32.totalorder %s26, 1
      %p82 = por %p80, %p81
      %p84 = scmp.ne.s32.totalorder %s69, %s83
      %p85 = scmp.eq.s32.totalorder %s26, 0
      %p86 = por %p84, %p85
      %s88 = sadd.s32 %s87, 1
      %p91 = scmp.eq.s32.totalorder %s20, 1
      %p92 = scmp.ne.s32.totalorder %s87, %s89
      %p93 = scmp.eq.s32.totalorder %s20, 0
      %p94 = por %p92, %p93
      %p95 = scmp.ne.s32.totalorder %s87, %s89
      %p96 = scmp.eq.s32.totalorder %s25, 1
      %p97 = por %p95, %p96
      %p98 = scmp.ne.s32.totalorder %s89, %s90
      %p99 = scmp.eq.s32.totalorder %s25, 0
      %p100 = por %p98, %p99
      %p101 = scmp.ne.s32.totalorder %s89, %s90
      %p102 = scmp.eq.s32.totalorder %s26, 1
      %p103 = por %p101, %p102
      %p105 = scmp.ne.s32.totalorder %s90, %s104
      %p106 = scmp.eq.s32.totalorder %s26, 0
      %p107 = por %p105, %p106
      %s109 = sadd.s32 %s108, 1
      %p112 = scmp.eq.s32.totalorder %s20, 1
      %p113 = scmp.ne.s32.totalorder %s108, %s110
      %p114 = scmp.eq.s32.totalorder %s20, 0
      %p115 = por %p113, %p114
      %p116 = scmp.ne.s32.totalorder %s108, %s110
      %p117 = scmp.eq.s32.totalorder %s25, 1
      %p118 = por %p116, %p117
      %p119 = scmp.ne.s32.totalorder %s110, %s111
      %p120 = scmp.eq.s32.totalorder %s25, 0
      %p121 = por %p119, %p120
      %p122 = scmp.ne.s32.totalorder %s110, %s111
      %p123 = scmp.eq.s32.totalorder %s26, 1
      %p124 = por %p122, %p123
      %p126 = scmp.ne.s32.totalorder %s111, %s125
      %p127 = scmp.eq.s32.totalorder %s26, 0
      %p128 = por %p126, %p127
      %p129 = scmp.lt.s32.totalorder %s28, 1
      %s130 = scalar_select %p129, %s28, 1
      %p131 = scmp.lt.s32.totalorder %s35, 1
      %s132 = scalar_select %p131, %s35, 1
      %s133 = ssub.s32 %s130, %s132
      %p134 = scmp.eq.s32.totalorder %s133, 0
      %s136 = sadd.s32 %s135, 1
      %s137 = scalar_select %p134, %s135, %s136
      %p140 = pneg %p134
      %p141 = scmp.eq.s32.totalorder %s20, 1
      %p142 = por %p140, %p141
      %p143 = scmp.ne.s32.totalorder %s135, %s138
      %p144 = scmp.eq.s32.totalorder %s20, 0
      %p145 = por %p143, %p144
      %p146 = scmp.ne.s32.totalorder %s135, %s138
      %p147 = scmp.eq.s32.totalorder %s25, 1
      %p148 = por %p146, %p147
      %p149 = scmp.ne.s32.totalorder %s138, %s139
      %p150 = scmp.eq.s32.totalorder %s25, 0
      %p151 = por %p149, %p150
      %p152 = scmp.ne.s32.totalorder %s138, %s139
      %p153 = scmp.eq.s32.totalorder %s26, 1
      %p154 = por %p152, %p153
      %p156 = scmp.ne.s32.totalorder %s139, %s155
      %p157 = scmp.eq.s32.totalorder %s26, 0
      %p158 = por %p156, %p157
      %p159 = scmp.lt.s32.totalorder %s28, 1
      %s160 = scalar_select %p159, %s28, 1
      %p161 = scmp.lt.s32.totalorder %s35, 1
      %s162 = scalar_select %p161, %s35, 1
      %s163 = ssub.s32 %s160, %s162
      %p164 = scmp.eq.s32.totalorder %s163, 0
      %s166 = sadd.s32 %s165, 1
      %s167 = scalar_select %p164, %s165, %s166
      %p170 = pneg %p164
      %p171 = scmp.eq.s32.totalorder %s20, 1
      %p172 = por %p170, %p171
      %p173 = scmp.ne.s32.totalorder %s165, %s168
      %p174 = scmp.eq.s32.totalorder %s20, 0
      %p175 = por %p173, %p174
      %p176 = scmp.ne.s32.totalorder %s165, %s168
      %p177 = scmp.eq.s32.totalorder %s25, 1
      %p178 = por %p176, %p177
      %p179 = scmp.ne.s32.totalorder %s168, %s169
      %p180 = scmp.eq.s32.totalorder %s25, 0
      %p181 = por %p179, %p180
      %p182 = scmp.ne.s32.totalorder %s168, %s169
      %p183 = scmp.eq.s32.totalorder %s26, 1
      %p184 = por %p182, %p183
      %p186 = scmp.ne.s32.totalorder %s169, %s185
      %p187 = scmp.eq.s32.totalorder %s26, 0
      %p188 = por %p186, %p187
      %s190 = sadd.s32 %s189, 1
      %p193 = scmp.eq.s32.totalorder %s20, 1
      %p194 = scmp.ne.s32.totalorder %s189, %s191
      %p195 = scmp.eq.s32.totalorder %s20, 0
      %p196 = por %p194, %p195
      %p197 = scmp.ne.s32.totalorder %s189, %s191
      %p198 = scmp.eq.s32.totalorder %s25, 1
      %p199 = por %p197, %p198
      %p200 = scmp.ne.s32.totalorder %s191, %s192
      %p201 = scmp.eq.s32.totalorder %s25, 0
      %p202 = por %p200, %p201
      %p203 = scmp.ne.s32.totalorder %s191, %s192
      %p204 = scmp.eq.s32.totalorder %s26, 1
      %p205 = por %p203, %p204
      %p207 = scmp.ne.s32.totalorder %s192, %s206
      %p208 = scmp.eq.s32.totalorder %s26, 0
      %p209 = por %p207, %p208
      %s211 = sadd.s32 %s210, 1
      %p214 = scmp.eq.s32.totalorder %s20, 1
      %p215 = scmp.ne.s32.totalorder %s210, %s212
      %p216 = scmp.eq.s32.totalorder %s20, 0
      %p217 = por %p215, %p216
      %p218 = scmp.ne.s32.totalorder %s210, %s212
      %p219 = scmp.eq.s32.totalorder %s25, 1
      %p220 = por %p218, %p219
      %p221 = scmp.ne.s32.totalorder %s212, %s213
      %p222 = scmp.eq.s32.totalorder %s25, 0
      %p223 = por %p221, %p222
      %p224 = scmp.ne.s32.totalorder %s212, %s213
      %p225 = scmp.eq.s32.totalorder %s26, 1
      %p226 = por %p224, %p225
      %p228 = scmp.ne.s32.totalorder %s213, %s227
      %p229 = scmp.eq.s32.totalorder %s26, 0
      %p230 = por %p228, %p229
      %s232 = sadd.s32 %s231, 1
      %p235 = scmp.eq.s32.totalorder %s20, 1
      %p236 = scmp.ne.s32.totalorder %s231, %s233
      %p237 = scmp.eq.s32.totalorder %s20, 0
      %p238 = por %p236, %p237
      %p239 = scmp.ne.s32.totalorder %s231, %s233
      %p240 = scmp.eq.s32.totalorder %s25, 1
      %p241 = por %p239, %p240
      %p242 = scmp.ne.s32.totalorder %s233, %s234
      %p243 = scmp.eq.s32.totalorder %s25, 0
      %p244 = por %p242, %p243
      %p245 = scmp.ne.s32.totalorder %s233, %s234
      %p246 = scmp.eq.s32.totalorder %s26, 1
      %p247 = por %p245, %p246
      %p249 = scmp.ne.s32.totalorder %s234, %s248
      %p250 = scmp.eq.s32.totalorder %s26, 0
      %p251 = por %p249, %p250
      %s253 = sadd.s32 %s252, 1
      %p256 = scmp.eq.s32.totalorder %s20, 1
      %p257 = scmp.ne.s32.totalorder %s252, %s254
      %p258 = scmp.eq.s32.totalorder %s20, 0
      %p259 = por %p257, %p258
      %p260 = scmp.ne.s32.totalorder %s252, %s254
      %p261 = scmp.eq.s32.totalorder %s25, 1
      %p262 = por %p260, %p261
      %p263 = scmp.ne.s32.totalorder %s254, %s255
      %p264 = scmp.eq.s32.totalorder %s25, 0
      %p265 = por %p263, %p264
      %p266 = scmp.ne.s32.totalorder %s254, %s255
      %p267 = scmp.eq.s32.totalorder %s26, 1
      %p268 = por %p266, %p267
      %p270 = scmp.ne.s32.totalorder %s255, %s269
      %p271 = scmp.eq.s32.totalorder %s26, 0
      %p272 = por %p270, %p271
      %s273 = ssub.s32 %s27, %s39
      %p274 = scmp.eq.s32.totalorder %s273, 0
      %s276 = sadd.s32 %s275, 1
      %s277 = scalar_select %p274, %s275, %s276
      %p280 = pneg %p274
      %p281 = scmp.eq.s32.totalorder %s20, 1
      %p282 = por %p280, %p281
      %p283 = scmp.ne.s32.totalorder %s275, %s278
      %p284 = scmp.eq.s32.totalorder %s20, 0
      %p285 = por %p283, %p284
      %p286 = scmp.ne.s32.totalorder %s275, %s278
      %p287 = scmp.eq.s32.totalorder %s25, 1
      %p288 = por %p286, %p287
      %p289 = scmp.ne.s32.totalorder %s278, %s279
      %p290 = scmp.eq.s32.totalorder %s25, 0
      %p291 = por %p289, %p290
      %p292 = scmp.ne.s32.totalorder %s278, %s279
      %p293 = scmp.eq.s32.totalorder %s26, 1
      %p294 = por %p292, %p293
      %p296 = scmp.ne.s32.totalorder %s279, %s295
      %p297 = scmp.eq.s32.totalorder %s26, 0
      %p298 = por %p296, %p297
      %p299 = scmp.le.s32.totalorder 1, %s20
      %p300 = scmp.lt.s32.totalorder %s20, 3
      %p301 = pnand %p299, %p300
      %p302 = pneg %p301
      // Predicated region
      $region9: #{forward.1} parent=5 // pred_check
        _
      $region10: #{forward.1} parent=5 // pred_check_branch
        %304 = sbr.rel (%p301) target = $region12
      $region11: #{forward.1} parent=5 // pred_region
        %s305 = ssub.s32 %s20, 1
        // Predicated region
        $region13: #{forward.1} parent=11 // pred_check
          %p306 = pneg %p58
        $region14: #{forward.1} parent=11 // pred_check_branch
          %308 = sbr.rel (%p306) target = $region16
        $region15: #{forward.1} parent=11 // pred_region
          %s309 = smul.u32 16, %s29
          %p310 = scmp.lt.s32.totalorder %s309, 15
          %s311 = scalar_select %p310, %s309, 15
          %s312 = smul.addr %s311, 4
          %s313 = scalar_lea.vmem %s0, %s312
          %s314 = smul.u32 16, %s29
        $region16: #{forward.1} parent=11 // pred_fallthru
          _
        // Predicated region
        $region17: #{forward.1} parent=11 // pred_check
          %p315 = pneg %p79
        $region18: #{forward.1} parent=11 // pred_check_branch
          %317 = sbr.rel (%p315) target = $region20
        $region19: #{forward.1} parent=11 // pred_region
          _
        $region20: #{forward.1} parent=11 // pred_fallthru
          _
        // Predicated region
        $region21: #{forward.1} parent=11 // pred_check
          %p318 = pneg %p100
        $region22: #{forward.1} parent=11 // pred_check_branch
          %320 = sbr.rel (%p318) target = $region24
        $region23: #{forward.1} parent=11 // pred_region
          _
        $region24: #{forward.1} parent=11 // pred_fallthru
          _
        // Predicated region
        $region25: #{forward.1} parent=11 // pred_check
          %p321 = pneg %p121
        $region26: #{forward.1} parent=11 // pred_check_branch
          %323 = sbr.rel (%p321) target = $region28
        $region27: #{forward.1} parent=11 // pred_region
          _
        $region28: #{forward.1} parent=11 // pred_fallthru
          _
        // Predicated region
        $region29: #{forward.1} parent=11 // pred_check
          %p324 = pneg %p202
        $region30: #{forward.1} parent=11 // pred_check_branch
          %326 = sbr.rel (%p324) target = $region32
        $region31: #{forward.1} parent=11 // pred_region
          _
        $region32: #{forward.1} parent=11 // pred_fallthru
          _
        // Predicated region
        $region33: #{forward.1} parent=11 // pred_check
          %p327 = pneg %p223
        $region34: #{forward.1} parent=11 // pred_check_branch
          %329 = sbr.rel (%p327) target = $region36
        $region35: #{forward.1} parent=11 // pred_region
          _
        $region36: #{forward.1} parent=11 // pred_fallthru
          _
        // Predicated region
        $region37: #{forward.1} parent=11 // pred_check
          %p330 = pneg %p244
        $region38: #{forward.1} parent=11 // pred_check_branch
          %332 = sbr.rel (%p330) target = $region40
        $region39: #{forward.1} parent=11 // pred_region
          _
        $region40: #{forward.1} parent=11 // pred_fallthru
          _
        // Predicated region
        $region41: #{forward.1} parent=11 // pred_check
          %p333 = pneg %p265
        $region42: #{forward.1} parent=11 // pred_check_branch
          %335 = sbr.rel (%p333) target = $region44
        $region43: #{forward.1} parent=11 // pred_region
          _
        $region44: #{forward.1} parent=11 // pred_fallthru
          _
      $region12: #{forward.1} parent=5 // pred_fallthru
        _
      %p336 = scmp.lt.s32.totalorder %s20, 2
      // Predicated region
      $region45: #{forward.1} parent=5 // pred_check
        %p337 = pneg %p336
      $region46: #{forward.1} parent=5 // pred_check_branch
        %339 = sbr.rel (%p337) target = $region48
      $region47: #{forward.1} parent=5 // pred_region
        // Predicated region
        $region49: #{forward.1} parent=47 // pred_check
          %p340 = pneg %p145
        $region50: #{forward.1} parent=47 // pred_check_branch
          %342 = sbr.rel (%p340) target = $region52
        $region51: #{forward.1} parent=47 // pred_region
          %s343 = sand.u32 %s135, 1
          %s344 = scalar_lea.sflag [#allocation5], %s343
          %s345 = sand.u32 %s135, 1
          %s346 = smul.addr %s345, 336
          %s347 = scalar_lea.vmem [#allocation4], %s346
          %p348 = scmp.lt.s32.totalorder %s28, 1
          %s349 = scalar_select %p348, %s28, 1
          %s351 = ssub.s32 5376, 5376
          %352 = vsyncadd %s344, %s351
          %s353 = smul.addr %s349, 84
          %s354 = smul.addr %s353, 64
          %s355 = scalar_lea.hbm %s4, %s354
          %s356 = sshll.u32 %s347, 4
          %s357 = int_to_ptr.vmem [resolvable:$true] %s356
          %362 = dma.hbm_to_vmem [thread:$0]  %s355, 5376, %s357, %s344, 64, 64, 4
        $region52: #{forward.1} parent=47 // pred_fallthru
          _
        // Predicated region
        $region53: #{forward.1} parent=47 // pred_check
          %p363 = pneg %p175
        $region54: #{forward.1} parent=47 // pred_check_branch
          %365 = sbr.rel (%p363) target = $region56
        $region55: #{forward.1} parent=47 // pred_region
          %p366 = scmp.lt.s32.totalorder %s28, 1
          %s367 = scalar_select %p366, %s28, 1
          %p368 = scmp.lt.s32.totalorder %s367, 1
          %s369 = scalar_select %p368, %s367, 1
          %s370 = smul.addr %s369, 6
          %s371 = smul.addr %s370, 8
          %s372 = scalar_lea.vmem %s5, %s371
          %p373 = scmp.lt.s32.totalorder %s28, 1
          %s374 = scalar_select %p373, %s28, 1
        $region56: #{forward.1} parent=47 // pred_fallthru
          _
      $region48: #{forward.1} parent=5 // pred_fallthru
        _
      %p375 = scmp.le.s32.totalorder 1, %s20
      %p376 = scmp.lt.s32.totalorder %s20, 3
      %p377 = pnand %p375, %p376
      %p378 = pneg %p377
      // Predicated region
      $region57: #{forward.1} parent=5 // pred_check
        _
      $region58: #{forward.1} parent=5 // pred_check_branch
        %380 = sbr.rel (%p377) target = $region60
      $region59: #{forward.1} parent=5 // pred_region
        %s381 = ssub.s32 %s20, 1
        %s382 = sand.u32 %s138, 1
        %s383 = scalar_lea.sflag [#allocation5], %s382
        %s384 = sand.u32 %s138, 1
        %s385 = smul.addr %s384, 336
        %s386 = scalar_lea.vmem [#allocation4], %s385
        // Predicated region
        $region61: #{forward.1} parent=59 // pred_check
          %p387 = pneg %p151
        $region62: #{forward.1} parent=59 // pred_check_branch
          %389 = sbr.rel (%p387) target = $region64
        $region63: #{forward.1} parent=59 // pred_region
          %390 = dma.done %s383, 5376
        $region64: #{forward.1} parent=59 // pred_fallthru
          _
        %s391 = smul.u32 16, %s29
        %p392 = scmp.lt.s32.totalorder %s391, 15
        %s393 = scalar_select %p392, %s391, 15
        %s394 = smul.addr %s393, 4
        %s395 = scalar_lea.vmem %s0, %s394
        %p396 = pneg %p58
        %p397 = pneg %p55
        %p398 = pneg %p79
        %p399 = pneg %p76
        %p400 = pneg %p100
        %p401 = pneg %p97
        %p402 = pneg %p121
        %p403 = pneg %p118
        %s404 = sand.u32 %s138, 1
        %s405 = scalar_lea.sflag [#allocation5], %s404
        %s406 = sand.u32 %s138, 1
        %s407 = smul.addr %s406, 336
        %s408 = scalar_lea.vmem [#allocation4], %s407
        %p409 = pneg %p151
        %p410 = pneg %p148
        %p411 = scmp.lt.s32.totalorder %s30, 1
        %s412 = scalar_select %p411, %s30, 1
        %p413 = scmp.lt.s32.totalorder %s412, 1
        %s414 = scalar_select %p413, %s412, 1
        %s415 = smul.addr %s414, 6
        %s416 = smul.addr %s415, 8
        %s417 = scalar_lea.vmem %s5, %s416
        %p418 = pneg %p181
        %p419 = pneg %p178
        %p420 = pneg %p202
        %p421 = pneg %p199
        %p422 = pneg %p223
        %p423 = pneg %p220
        %p424 = pneg %p244
        %p425 = pneg %p241
        %p426 = pneg %p265
        %p427 = pneg %p262
        %p428 = pneg %p291
        %p429 = pneg %p288
        %s430 = smul.u32 16, %s29
        %p431 = scmp.lt.s32.totalorder %s430, 15
        %s432 = scalar_select %p431, %s430, 15
        %s433 = smul.addr %s432, 4
        %s434 = scalar_lea.vmem %s0, %s433
        %s435 = smul.u32 16, %s29
        %p436 = scmp.lt.s32.totalorder %s30, 1
        %s437 = scalar_select %p436, %s30, 1
        %p438 = scmp.lt.s32.totalorder %s30, 1
        %s439 = scalar_select %p438, %s30, 1
        %p440 = scmp.lt.s32.totalorder %s439, 1
        %s441 = scalar_select %p440, %s439, 1
        %s442 = smul.addr %s441, 6
        %s443 = smul.addr %s442, 8
        %s444 = scalar_lea.vmem %s5, %s443
        %p445 = scmp.lt.s32.totalorder %s30, 1
        %s446 = scalar_select %p445, %s30, 1
        %p448 = scmp.eq.s32.totalorder %s30, 0
        // Predicated region
        $region65: #{forward.1} parent=59 // pred_check
          %p449 = pneg %p448
        $region66: #{forward.1} parent=59 // pred_check_branch
          %451 = sbr.rel (%p449) target = $region68
        $region67: #{forward.1} parent=59 // pred_region
          %v452 = vld [vmem:[%s434] sm:$0xf]
          %v453 = vld [vmem:[%s434 + $0x4] sm:$0xf]
          %v454 = vld [vmem:[%s434 + $0x8] sm:$0xf]
          %v455 = vld [vmem:[%s434 + $0xc] sm:$0xf]
          %v456 = vld [vmem:[%s434 + $0x10] sm:$0xf]
          %v457 = vld [vmem:[%s434 + $0x14] sm:$0xf]
          %v458 = vld [vmem:[%s434 + $0x18] sm:$0xf]
          %v459 = vld [vmem:[%s434 + $0x1c] sm:$0xf]
          %v460 = vld [vmem:[%s434 + $0x20] sm:$0xf]
          %v461 = vld [vmem:[%s434 + $0x24] sm:$0xf]
          %v462 = vld [vmem:[%s434 + $0x28] sm:$0xf]
          %v463 = vld [vmem:[%s434 + $0x2c] sm:$0xf]
          %v464 = vld [vmem:[%s434 + $0x30] sm:$0xf]
          %v465 = vld [vmem:[%s434 + $0x34] sm:$0xf]
          %v466 = vld [vmem:[%s434 + $0x38] sm:$0xf]
          %v467 = vld [vmem:[%s434 + $0x3c] sm:$0xf]
          %v468 = vld [vmem:[%s1] sm:$0xf]
          %v469 = vld [vmem:[%s1 + $0x4] sm:$0xf]
          %v470 = vld [vmem:[%s1 + $0x8] sm:$0x3]
          %v471 = vld [vmem:[%s2] sm:$0x1]
          %v473 = vlaneseq
          %v474 = vshrl.u32 %v473, 7
          %v475 = vsub.s32 0, %v474
          %v476 = vrot.slane %v471, %v475
          %v494 = vunpack.c.l.b16 %v452
          %v495 = vunpack.c.l.b16 %v453
          %v496 = vunpack.c.l.b16 %v454
          %v497 = vunpack.c.l.b16 %v455
          %v498 = vunpack.c.l.b16 %v456
          %v499 = vunpack.c.l.b16 %v457
          %v500 = vunpack.c.l.b16 %v458
          %v501 = vunpack.c.l.b16 %v459
          %v502 = vunpack.c.l.b16 %v460
          %v503 = vunpack.c.l.b16 %v461
          %v504 = vunpack.c.l.b16 %v462
          %v505 = vunpack.c.l.b16 %v463
          %v506 = vunpack.c.l.b16 %v464
          %v507 = vunpack.c.l.b16 %v465
          %v508 = vunpack.c.l.b16 %v466
          %v509 = vunpack.c.l.b16 %v467
          %v510 = vpack.c.b16 %v495, %v494
          %v511 = vpack.c.b16 %v497, %v496
          %v512 = vpack.c.b16 %v499, %v498
          %v513 = vpack.c.b16 %v501, %v500
          %v514 = vpack.c.b16 %v503, %v502
          %v515 = vpack.c.b16 %v505, %v504
          %v516 = vpack.c.b16 %v507, %v506
          %v517 = vpack.c.b16 %v509, %v508
          %v521 = vunpack.c.l.b16 %v468
          %v522 = vunpack.c.l.b16 %v469
          %v523 = vunpack.c.l.b16 %v470
          %v524 = vpack.c.b16 %v522, %v521
          %v525 = vpack.c.b16 %v523, %v523
          %vm527 = vcmask 162816
          %v529 = vsel %vm527, %v510, 0
          %v532 = vsel %vm527, %v511, 0
          %v535 = vsel %vm527, %v512, 0
          %v538 = vsel %vm527, %v513, 0
          %v541 = vsel %vm527, %v514, 0
          %v544 = vsel %vm527, %v515, 0
          %v547 = vsel %vm527, %v516, 0
          %v550 = vsel %vm527, %v517, 0
          %vm552 = vcmask 1041408
          %v554 = vsel %vm552, %v525, 0
          %556 = vmatprep.subr.bf16.mxu0 0
          %557 = vmatpush1.bf16.msra.mxu0 %v524
          %558 = vmatprep.subr.bf16.mxu0 0
          %559 = vmatpush1.bf16.msra.mxu0 %v554
          %560 = vmatprep.subr.bf16.mxu0 0
          %561 = vmatpush1.bf16.msra.mxu0 0
          %562 = vmatprep.subr.bf16.mxu0 0
          %563 = vmatpush1.bf16.msra.mxu0 0
          %564 = vmatprep.subr.bf16.mxu0 0
          %565 = vmatpush1.bf16.msra.mxu0 0
          %566 = vmatprep.subr.bf16.mxu0 0
          %567 = vmatpush1.bf16.msra.mxu0 0
          %568 = vmatprep.subr.bf16.mxu0 0
          %569 = vmatpush1.bf16.msra.mxu0 0
          %570 = vmatprep.subr.bf16.mxu0 0
          %571 = vmatpush1.bf16.msra.mxu0 0
          %572 = vmatprep.subr.bf16.mxu0 0
          %573 = vmatpush1.bf16.msra.mxu0 0
          %574 = vmatprep.subr.bf16.mxu0 0
          %575 = vmatpush1.bf16.msra.mxu0 0
          %576 = vmatprep.subr.bf16.mxu0 0
          %577 = vmatpush1.bf16.msra.mxu0 0
          %578 = vmatprep.subr.bf16.mxu0 0
          %579 = vmatpush1.bf16.msra.mxu0 0
          %580 = vmatprep.subr.bf16.mxu0 0
          %581 = vmatpush1.bf16.msra.mxu0 0
          %582 = vmatprep.subr.bf16.mxu0 0
          %583 = vmatpush1.bf16.msra.mxu0 0
          %584 = vmatprep.subr.bf16.mxu0 0
          %585 = vmatpush1.bf16.msra.mxu0 0
          %586 = vmatprep.subr.bf16.mxu0 0
          %587 = vmatpush1.bf16.msra.mxu0 0
          %588 = vmatprep.mubr.bf16.mxu0 0
          %589 = vmatmul.mubr.bf16.gmra.mrb[0].mxu0 %v529
          %v590 = vpop.f32.mrb[0].mxu0
          %v591 = vadd.f32 %v476, %v590
          %v592 = vpop.f32.mrb[0].mxu0
          %v593 = vpop.f32.mrb[0].mxu0
          %v594 = vadd.f32 %v476, %v593
          %v595 = vpop.f32.mrb[0].mxu0
          %596 = vmatprep.mubr.bf16.mxu0 0
          %597 = vmatmul.mubr.bf16.gmra.mrb[0].mxu0 %v532
          %v598 = vpop.f32.mrb[0].mxu0
          %v599 = vadd.f32 %v476, %v598
          %v600 = vpop.f32.mrb[0].mxu0
          %v601 = vpop.f32.mrb[0].mxu0
          %v602 = vadd.f32 %v476, %v601
          %v603 = vpop.f32.mrb[0].mxu0
          %604 = vmatprep.mubr.bf16.mxu0 0
          %605 = vmatmul.mubr.bf16.gmra.mrb[0].mxu0 %v535
          %v606 = vpop.f32.mrb[0].mxu0
          %v607 = vadd.f32 %v476, %v606
          %v608 = vpop.f32.mrb[0].mxu0
          %v609 = vpop.f32.mrb[0].mxu0
          %v610 = vadd.f32 %v476, %v609
          %v611 = vpop.f32.mrb[0].mxu0
          %612 = vmatprep.mubr.bf16.mxu0 0
          %613 = vmatmul.mubr.bf16.gmra.mrb[0].mxu0 %v538
          %v614 = vpop.f32.mrb[0].mxu0
          %v615 = vadd.f32 %v476, %v614
          %v616 = vpop.f32.mrb[0].mxu0
          %v617 = vpop.f32.mrb[0].mxu0
          %v618 = vadd.f32 %v476, %v617
          %v619 = vpop.f32.mrb[0].mxu0
          %620 = vmatprep.mubr.bf16.mxu0 0
          %621 = vmatmul.mubr.bf16.gmra.mrb[0].mxu0 %v541
          %v622 = vpop.f32.mrb[0].mxu0
          %v623 = vadd.f32 %v476, %v622
          %v624 = vpop.f32.mrb[0].mxu0
          %v625 = vpop.f32.mrb[0].mxu0
          %v626 = vadd.f32 %v476, %v625
          %v627 = vpop.f32.mrb[0].mxu0
          %628 = vmatprep.mubr.bf16.mxu0 0
          %629 = vmatmul.mubr.bf16.gmra.mrb[0].mxu0 %v544
          %v630 = vpop.f32.mrb[0].mxu0
          %v631 = vadd.f32 %v476, %v630
          %v632 = vpop.f32.mrb[0].mxu0
          %v633 = vpop.f32.mrb[0].mxu0
          %v634 = vadd.f32 %v476, %v633
          %v635 = vpop.f32.mrb[0].mxu0
          %636 = vmatprep.mubr.bf16.mxu0 0
          %637 = vmatmul.mubr.bf16.gmra.mrb[0].mxu0 %v547
          %v638 = vpop.f32.mrb[0].mxu0
          %v639 = vadd.f32 %v476, %v638
          %v640 = vpop.f32.mrb[0].mxu0
          %v641 = vpop.f32.mrb[0].mxu0
          %v642 = vadd.f32 %v476, %v641
          %v643 = vpop.f32.mrb[0].mxu0
          %644 = vmatprep.mubr.bf16.mxu0 0
          %645 = vmatmul.mubr.bf16.gmra.mrb[0].mxu0 %v550
          %v646 = vpop.f32.mrb[0].mxu0
          %v647 = vadd.f32 %v476, %v646
          %v648 = vpop.f32.mrb[0].mxu0
          %v649 = vpop.f32.mrb[0].mxu0
          %v650 = vadd.f32 %v476, %v649
          %v651 = vpop.f32.mrb[0].mxu0
          %652 = vdwg.mxu0
          %vm653 = vcmask 261120
          %654 = vst.msk [vmem:[#allocation2] sm:$0xff] %vm653, %v591
          %655 = vst.msk [vmem:[#allocation2 + $0x8] sm:$0xff] %vm653, %v594
          %656 = vst.msk [vmem:[#allocation2 + $0x10] sm:$0xff] %vm653, %v599
          %657 = vst.msk [vmem:[#allocation2 + $0x18] sm:$0xff] %vm653, %v602
          %658 = vst.msk [vmem:[#allocation2 + $0x20] sm:$0xff] %vm653, %v607
          %659 = vst.msk [vmem:[#allocation2 + $0x28] sm:$0xff] %vm653, %v610
          %660 = vst.msk [vmem:[#allocation2 + $0x30] sm:$0xff] %vm653, %v615
          %661 = vst.msk [vmem:[#allocation2 + $0x38] sm:$0xff] %vm653, %v618
          %662 = vst.msk [vmem:[#allocation2 + $0x40] sm:$0xff] %vm653, %v623
          %663 = vst.msk [vmem:[#allocation2 + $0x48] sm:$0xff] %vm653, %v626
          %664 = vst.msk [vmem:[#allocation2 + $0x50] sm:$0xff] %vm653, %v631
          %665 = vst.msk [vmem:[#allocation2 + $0x58] sm:$0xff] %vm653, %v634
          %666 = vst.msk [vmem:[#allocation2 + $0x60] sm:$0xff] %vm653, %v639
          %667 = vst.msk [vmem:[#allocation2 + $0x68] sm:$0xff] %vm653, %v642
          %668 = vst.msk [vmem:[#allocation2 + $0x70] sm:$0xff] %vm653, %v647
          %669 = vst.msk [vmem:[#allocation2 + $0x78] sm:$0xff] %vm653, %v650
          %v670 = vld [vmem:[%s3] sm:$0xff]
          %v671 = vld [vmem:[%s3 + $0x8] sm:$0xff]
          %672 = vst.msk [vmem:[#allocation3] sm:$0xff] %vm653, %v670
          %673 = vst.msk [vmem:[#allocation3 + $0x8] sm:$0xff] %vm653, %v671
          %v674 = vld [vmem:[%s3] sm:$0xff]
          %v675 = vld [vmem:[%s3 + $0x8] sm:$0xff]
          %676 = vst.msk [vmem:[#allocation3 + $0x10] sm:$0xff] %vm653, %v674
          %677 = vst.msk [vmem:[#allocation3 + $0x18] sm:$0xff] %vm653, %v675
        $region68: #{forward.1} parent=59 // pred_fallthru
          _
        %v678 = vld [vmem:[#allocation2] sm:$0xff]
        %v679 = vld [vmem:[#allocation2 + $0x8] sm:$0xff]
        %v680 = vld [vmem:[#allocation2 + $0x10] sm:$0xff]
        %v681 = vld [vmem:[#allocation2 + $0x18] sm:$0xff]
        %v682 = vld [vmem:[#allocation2 + $0x20] sm:$0xff]
        %v683 = vld [vmem:[#allocation2 + $0x28] sm:$0xff]
        %v684 = vld [vmem:[#allocation2 + $0x30] sm:$0xff]
        %v685 = vld [vmem:[#allocation2 + $0x38] sm:$0xff]
        %v686 = vld [vmem:[#allocation2 + $0x40] sm:$0xff]
        %v687 = vld [vmem:[#allocation2 + $0x48] sm:$0xff]
        %v688 = vld [vmem:[#allocation2 + $0x50] sm:$0xff]
        %v689 = vld [vmem:[#allocation2 + $0x58] sm:$0xff]
        %v690 = vld [vmem:[#allocation2 + $0x60] sm:$0xff]
        %v691 = vld [vmem:[#allocation2 + $0x68] sm:$0xff]
        %v692 = vld [vmem:[#allocation2 + $0x70] sm:$0xff]
        %v693 = vld [vmem:[#allocation2 + $0x78] sm:$0xff]
        %v694 = vld [vmem:[#allocation3] sm:$0xff]
        %v695 = vld [vmem:[#allocation3 + $0x8] sm:$0xff]
        %v696 = vld [vmem:[#allocation3 + $0x10] sm:$0xff]
        %v697 = vld [vmem:[#allocation3 + $0x18] sm:$0xff]
        %v698 = vld [vmem:[%s444] sm:$0xff]
        %v699 = vld [vmem:[%s444 + $0x8] sm:$0xff]
        %v700 = vld [vmem:[%s444 + $0x10] sm:$0xff]
        %v701 = vld [vmem:[%s444 + $0x18] sm:$0xff]
        %v702 = vld [vmem:[%s444 + $0x20] sm:$0xff]
        %v703 = vld [vmem:[%s444 + $0x28] sm:$0xff]
        %vm704 = vcmask 261120
        %v705 = vsel %vm704, %v678, 0.0
        %706 = vadd.xlane.f32.xlu0 %v705
        %v707 = vpop.xlane.xlu0 %706
        %v708 = vsel %vm704, %v679, 0.0
        %709 = vadd.xlane.f32.xlu0 %v708
        %v710 = vpop.xlane.xlu0 %709
        %v711 = vsel %vm704, %v680, 0.0
        %712 = vadd.xlane.f32.xlu0 %v711
        %v713 = vpop.xlane.xlu0 %712
        %v714 = vsel %vm704, %v681, 0.0
        %715 = vadd.xlane.f32.xlu0 %v714
        %v716 = vpop.xlane.xlu0 %715
        %v717 = vsel %vm704, %v682, 0.0
        %718 = vadd.xlane.f32.xlu0 %v717
        %v719 = vpop.xlane.xlu0 %718
        %v720 = vsel %vm704, %v683, 0.0
        %721 = vadd.xlane.f32.xlu0 %v720
        %v722 = vpop.xlane.xlu0 %721
        %v723 = vsel %vm704, %v684, 0.0
        %724 = vadd.xlane.f32.xlu0 %v723
        %v725 = vpop.xlane.xlu0 %724
        %v726 = vsel %vm704, %v685, 0.0
        %727 = vadd.xlane.f32.xlu0 %v726
        %v728 = vpop.xlane.xlu0 %727
        %v729 = vsel %vm704, %v686, 0.0
        %730 = vadd.xlane.f32.xlu0 %v729
        %v731 = vpop.xlane.xlu0 %730
        %v732 = vsel %vm704, %v687, 0.0
        %733 = vadd.xlane.f32.xlu0 %v732
        %v734 = vpop.xlane.xlu0 %733
        %v735 = vsel %vm704, %v688, 0.0
        %736 = vadd.xlane.f32.xlu0 %v735
        %v737 = vpop.xlane.xlu0 %736
        %v738 = vsel %vm704, %v689, 0.0
        %739 = vadd.xlane.f32.xlu0 %v738
        %v740 = vpop.xlane.xlu0 %739
        %v741 = vsel %vm704, %v690, 0.0
        %742 = vadd.xlane.f32.xlu0 %v741
        %v743 = vpop.xlane.xlu0 %742
        %v744 = vsel %vm704, %v691, 0.0
        %745 = vadd.xlane.f32.xlu0 %v744
        %v746 = vpop.xlane.xlu0 %745
        %v747 = vsel %vm704, %v692, 0.0
        %748 = vadd.xlane.f32.xlu0 %v747
        %v749 = vpop.xlane.xlu0 %748
        %v750 = vsel %vm704, %v693, 0.0
        %751 = vadd.xlane.f32.xlu0 %v750
        %v752 = vpop.xlane.xlu0 %751
        %v753 = vrcp.pop 32.0
        %v754 = vmul.f32 %v707, %v753
        %v755 = vmul.f32 %v710, %v753
        %v756 = vmul.f32 %v713, %v753
        %v757 = vmul.f32 %v716, %v753
        %v758 = vmul.f32 %v719, %v753
        %v759 = vmul.f32 %v722, %v753
        %v760 = vmul.f32 %v725, %v753
        %v761 = vmul.f32 %v728, %v753
        %v762 = vmul.f32 %v731, %v753
        %v763 = vmul.f32 %v734, %v753
        %v764 = vmul.f32 %v737, %v753
        %v765 = vmul.f32 %v740, %v753
        %v766 = vmul.f32 %v743, %v753
        %v767 = vmul.f32 %v746, %v753
        %v768 = vmul.f32 %v749, %v753
        %v769 = vmul.f32 %v752, %v753
        %v770 = vsub.f32 %v678, %v754
        %v771 = vsub.f32 %v679, %v755
        %v772 = vsub.f32 %v680, %v756
        %v773 = vsub.f32 %v681, %v757
        %v774 = vsub.f32 %v682, %v758
        %v775 = vsub.f32 %v683, %v759
        %v776 = vsub.f32 %v684, %v760
        %v777 = vsub.f32 %v685, %v761
        %v778 = vsub.f32 %v686, %v762
        %v779 = vsub.f32 %v687, %v763
        %v780 = vsub.f32 %v688, %v764
        %v781 = vsub.f32 %v689, %v765
        %v782 = vsub.f32 %v690, %v766
        %v783 = vsub.f32 %v691, %v767
        %v784 = vsub.f32 %v692, %v768
        %v785 = vsub.f32 %v693, %v769
        %v786 = vmul.f32 %v770, %v770
        %v787 = vmul.f32 %v771, %v771
        %v788 = vmul.f32 %v772, %v772
        %v789 = vmul.f32 %v773, %v773
        %v790 = vmul.f32 %v774, %v774
        %v791 = vmul.f32 %v775, %v775
        %v792 = vmul.f32 %v776, %v776
        %v793 = vmul.f32 %v777, %v777
        %v794 = vmul.f32 %v778, %v778
        %v795 = vmul.f32 %v779, %v779
        %v796 = vmul.f32 %v780, %v780
        %v797 = vmul.f32 %v781, %v781
        %v798 = vmul.f32 %v782, %v782
        %v799 = vmul.f32 %v783, %v783
        %v800 = vmul.f32 %v784, %v784
        %v801 = vmul.f32 %v785, %v785
        %v802 = vsel %vm704, %v786, 0.0
        %803 = vadd.xlane.f32.xlu0 %v802
        %v804 = vpop.xlane.xlu0 %803
        %v805 = vsel %vm704, %v787, 0.0
        %806 = vadd.xlane.f32.xlu0 %v805
        %v807 = vpop.xlane.xlu0 %806
        %v808 = vsel %vm704, %v788, 0.0
        %809 = vadd.xlane.f32.xlu0 %v808
        %v810 = vpop.xlane.xlu0 %809
        %v811 = vsel %vm704, %v789, 0.0
        %812 = vadd.xlane.f32.xlu0 %v811
        %v813 = vpop.xlane.xlu0 %812
        %v814 = vsel %vm704, %v790, 0.0
        %815 = vadd.xlane.f32.xlu0 %v814
        %v816 = vpop.xlane.xlu0 %815
        %v817 = vsel %vm704, %v791, 0.0
        %818 = vadd.xlane.f32.xlu0 %v817
        %v819 = vpop.xlane.xlu0 %818
        %v820 = vsel %vm704, %v792, 0.0
        %821 = vadd.xlane.f32.xlu0 %v820
        %v822 = vpop.xlane.xlu0 %821
        %v823 = vsel %vm704, %v793, 0.0
        %824 = vadd.xlane.f32.xlu0 %v823
        %v825 = vpop.xlane.xlu0 %824
        %v826 = vsel %vm704, %v794, 0.0
        %827 = vadd.xlane.f32.xlu0 %v826
        %v828 = vpop.xlane.xlu0 %827
        %v829 = vsel %vm704, %v795, 0.0
        %830 = vadd.xlane.f32.xlu0 %v829
        %v831 = vpop.xlane.xlu0 %830
        %v832 = vsel %vm704, %v796, 0.0
        %833 = vadd.xlane.f32.xlu0 %v832
        %v834 = vpop.xlane.xlu0 %833
        %v835 = vsel %vm704, %v797, 0.0
        %836 = vadd.xlane.f32.xlu0 %v835
        %v837 = vpop.xlane.xlu0 %836
        %v838 = vsel %vm704, %v798, 0.0
        %839 = vadd.xlane.f32.xlu0 %v838
        %v840 = vpop.xlane.xlu0 %839
        %v841 = vsel %vm704, %v799, 0.0
        %842 = vadd.xlane.f32.xlu0 %v841
        %v843 = vpop.xlane.xlu0 %842
        %v844 = vsel %vm704, %v800, 0.0
        %845 = vadd.xlane.f32.xlu0 %v844
        %v846 = vpop.xlane.xlu0 %845
        %v847 = vsel %vm704, %v801, 0.0
        %848 = vadd.xlane.f32.xlu0 %v847
        %v849 = vpop.xlane.xlu0 %848
        %v850 = vmul.f32 %v804, %v753
        %v851 = vmul.f32 %v807, %v753
        %v852 = vmul.f32 %v810, %v753
        %v853 = vmul.f32 %v813, %v753
        %v854 = vmul.f32 %v816, %v753
        %v855 = vmul.f32 %v819, %v753
        %v856 = vmul.f32 %v822, %v753
        %v857 = vmul.f32 %v825, %v753
        %v858 = vmul.f32 %v828, %v753
        %v859 = vmul.f32 %v831, %v753
        %v860 = vmul.f32 %v834, %v753
        %v861 = vmul.f32 %v837, %v753
        %v862 = vmul.f32 %v840, %v753
        %v863 = vmul.f32 %v843, %v753
        %v864 = vmul.f32 %v846, %v753
        %v865 = vmul.f32 %v849, %v753
        %v866 = vadd.f32 %v850, 1e-05
        %v867 = vadd.f32 %v851, 1e-05
        %v868 = vadd.f32 %v852, 1e-05
        %v869 = vadd.f32 %v853, 1e-05
        %v870 = vadd.f32 %v854, 1e-05
        %v871 = vadd.f32 %v855, 1e-05
        %v872 = vadd.f32 %v856, 1e-05
        %v873 = vadd.f32 %v857, 1e-05
        %v874 = vadd.f32 %v858, 1e-05
        %v875 = vadd.f32 %v859, 1e-05
        %v876 = vadd.f32 %v860, 1e-05
        %v877 = vadd.f32 %v861, 1e-05
        %v878 = vadd.f32 %v862, 1e-05
        %v879 = vadd.f32 %v863, 1e-05
        %v880 = vadd.f32 %v864, 1e-05
        %v881 = vadd.f32 %v865, 1e-05
        %v882 = vrsqrt.pop %v866
        %v883 = vrsqrt.pop %v867
        %v884 = vrsqrt.pop %v868
        %v885 = vrsqrt.pop %v869
        %v886 = vrsqrt.pop %v870
        %v887 = vrsqrt.pop %v871
        %v888 = vrsqrt.pop %v872
        %v889 = vrsqrt.pop %v873
        %v890 = vrsqrt.pop %v874
        %v891 = vrsqrt.pop %v875
        %v892 = vrsqrt.pop %v876
        %v893 = vrsqrt.pop %v877
        %v894 = vrsqrt.pop %v878
        %v895 = vrsqrt.pop %v879
        %v896 = vrsqrt.pop %v880
        %v897 = vrsqrt.pop %v881
        %v898 = vmul.f32 %v770, %v882
        %v899 = vmul.f32 %v771, %v883
        %v900 = vmul.f32 %v772, %v884
        %v901 = vmul.f32 %v773, %v885
        %v902 = vmul.f32 %v774, %v886
        %v903 = vmul.f32 %v775, %v887
        %v904 = vmul.f32 %v776, %v888
        %v905 = vmul.f32 %v777, %v889
        %v906 = vmul.f32 %v778, %v890
        %v907 = vmul.f32 %v779, %v891
        %v908 = vmul.f32 %v780, %v892
        %v909 = vmul.f32 %v781, %v893
        %v910 = vmul.f32 %v782, %v894
        %v911 = vmul.f32 %v783, %v895
        %v912 = vmul.f32 %v784, %v896
        %v913 = vmul.f32 %v785, %v897
        %v914 = vlaneseq
        %v915 = vshrl.u32 %v914, 7
        %v916 = vsub.s32 0, %v915
        %v917 = vrot.slane %v698, %v916
        %v918 = vmul.f32 %v898, %v917
        %v919 = vmul.f32 %v899, %v917
        %v920 = vmul.f32 %v900, %v917
        %v921 = vmul.f32 %v901, %v917
        %v922 = vmul.f32 %v902, %v917
        %v923 = vmul.f32 %v903, %v917
        %v924 = vmul.f32 %v904, %v917
        %v925 = vmul.f32 %v905, %v917
        %v926 = vmul.f32 %v906, %v917
        %v927 = vmul.f32 %v907, %v917
        %v928 = vmul.f32 %v908, %v917
        %v929 = vmul.f32 %v909, %v917
        %v930 = vmul.f32 %v910, %v917
        %v931 = vmul.f32 %v911, %v917
        %v932 = vmul.f32 %v912, %v917
        %v933 = vmul.f32 %v913, %v917
        %v934 = vlaneseq
        %v935 = vshrl.u32 %v934, 7
        %v936 = vsub.s32 1, %v935
        %v937 = vrot.slane %v698, %v936
        %v938 = vadd.f32 %v918, %v937
        %v939 = vadd.f32 %v919, %v937
        %v940 = vadd.f32 %v920, %v937
        %v941 = vadd.f32 %v921, %v937
        %v942 = vadd.f32 %v922, %v937
        %v943 = vadd.f32 %v923, %v937
        %v944 = vadd.f32 %v924, %v937
        %v945 = vadd.f32 %v925, %v937
        %v946 = vadd.f32 %v926, %v937
        %v947 = vadd.f32 %v927, %v937
        %v948 = vadd.f32 %v928, %v937
        %v949 = vadd.f32 %v929, %v937
        %v950 = vadd.f32 %v930, %v937
        %v951 = vadd.f32 %v931, %v937
        %v952 = vadd.f32 %v932, %v937
        %v953 = vadd.f32 %v933, %v937
        %v954 = vsel %vm704, %v694, 0.0
        %955 = vadd.xlane.f32.xlu0 %v954
        %v956 = vpop.xlane.xlu0 %955
        %v957 = vsel %vm704, %v695, 0.0
        %958 = vadd.xlane.f32.xlu0 %v957
        %v959 = vpop.xlane.xlu0 %958
        %v960 = vsel %vm704, %v696, 0.0
        %961 = vadd.xlane.f32.xlu0 %v960
        %v962 = vpop.xlane.xlu0 %961
        %v963 = vsel %vm704, %v697, 0.0
        %964 = vadd.xlane.f32.xlu0 %v963
        %v965 = vpop.xlane.xlu0 %964
        %v966 = vmul.f32 %v956, %v753
        %v967 = vmul.f32 %v959, %v753
        %v968 = vmul.f32 %v962, %v753
        %v969 = vmul.f32 %v965, %v753
        %v970 = vsub.f32 %v694, %v966
        %v971 = vsub.f32 %v695, %v967
        %v972 = vsub.f32 %v696, %v968
        %v973 = vsub.f32 %v697, %v969
        %v974 = vmul.f32 %v970, %v970
        %v975 = vmul.f32 %v971, %v971
        %v976 = vmul.f32 %v972, %v972
        %v977 = vmul.f32 %v973, %v973
        %v978 = vsel %vm704, %v974, 0.0
        %979 = vadd.xlane.f32.xlu0 %v978
        %v980 = vpop.xlane.xlu0 %979
        %v981 = vsel %vm704, %v975, 0.0
        %982 = vadd.xlane.f32.xlu0 %v981
        %v983 = vpop.xlane.xlu0 %982
        %v984 = vsel %vm704, %v976, 0.0
        %985 = vadd.xlane.f32.xlu0 %v984
        %v986 = vpop.xlane.xlu0 %985
        %v987 = vsel %vm704, %v977, 0.0
        %988 = vadd.xlane.f32.xlu0 %v987
        %v989 = vpop.xlane.xlu0 %988
        %v990 = vmul.f32 %v980, %v753
        %v991 = vmul.f32 %v983, %v753
        %v992 = vmul.f32 %v986, %v753
        %v993 = vmul.f32 %v989, %v753
        %v994 = vadd.f32 %v990, 1e-05
        %v995 = vadd.f32 %v991, 1e-05
        %v996 = vadd.f32 %v992, 1e-05
        %v997 = vadd.f32 %v993, 1e-05
        %v998 = vrsqrt.pop %v994
        %v999 = vrsqrt.pop %v995
        %v1000 = vrsqrt.pop %v996
        %v1001 = vrsqrt.pop %v997
        %v1002 = vmul.f32 %v970, %v998
        %v1003 = vmul.f32 %v971, %v999
        %v1004 = vmul.f32 %v972, %v1000
        %v1005 = vmul.f32 %v973, %v1001
        %v1006 = vlaneseq
        %v1007 = vshrl.u32 %v1006, 7
        %v1008 = vsub.s32 2, %v1007
        %v1009 = vrot.slane %v698, %v1008
        %v1010 = vmul.f32 %v1002, %v1009
        %v1011 = vmul.f32 %v1003, %v1009
        %v1012 = vmul.f32 %v1004, %v1009
        %v1013 = vmul.f32 %v1005, %v1009
        %v1014 = vlaneseq
        %v1015 = vshrl.u32 %v1014, 7
        %v1016 = vsub.s32 3, %v1015
        %v1017 = vrot.slane %v698, %v1016
        %v1018 = vadd.f32 %v1010, %v1017
        %v1019 = vadd.f32 %v1011, %v1017
        %v1020 = vadd.f32 %v1012, %v1017
        %v1021 = vadd.f32 %v1013, %v1017
        %v1022 = vpack.c.bf16 %v1019, %v1018
        %v1023 = vpack.c.bf16 %v1021, %v1020
        %v1024 = vld [vmem:[%s386] sm:$0xf]
        %v1025 = vld [vmem:[%s386 + $0x4] sm:$0xf]
        %v1026 = vld [vmem:[%s386 + $0x8] sm:$0xf]
        %v1027 = vld [vmem:[%s386 + $0xc] sm:$0xf]
        %v1028 = vlaneseq
        %v1029 = vshrl.u32 %v1028, 7
        %v1030 = vsub.s32 4, %v1029
        %v1031 = vrot.slane %v698, %v1030
        %v1036 = vunpack.c.l.b16 %v1024
        %v1037 = vunpack.c.l.b16 %v1025
        %v1038 = vunpack.c.l.b16 %v1026
        %v1039 = vunpack.c.l.b16 %v1027
        %v1040 = vpack.c.b16 %v1037, %v1036
        %v1041 = vpack.c.b16 %v1039, %v1038
        %v1045 = vsel %vm704, %v1022, 0
        %v1048 = vsel %vm704, %v1023, 0
        %1050 = vmatprep.subr.bf16.mxu0 0
        %1051 = vmatpush1.bf16.msra.mxu0 %v1040
        %1052 = vmatprep.subr.bf16.mxu0 0
        %1053 = vmatpush1.bf16.msra.mxu0 %v1041
        %1054 = vmatprep.subr.bf16.mxu0 0
        %1055 = vmatpush1.bf16.msra.mxu0 0
        %1056 = vmatprep.subr.bf16.mxu0 0
        %1057 = vmatpush1.bf16.msra.mxu0 0
        %1058 = vmatprep.subr.bf16.mxu0 0
        %1059 = vmatpush1.bf16.msra.mxu0 0
        %1060 = vmatprep.subr.bf16.mxu0 0
        %1061 = vmatpush1.bf16.msra.mxu0 0
        %1062 = vmatprep.subr.bf16.mxu0 0
        %1063 = vmatpush1.bf16.msra.mxu0 0
        %1064 = vmatprep.subr.bf16.mxu0 0
        %1065 = vmatpush1.bf16.msra.mxu0 0
        %1066 = vmatprep.subr.bf16.mxu0 0
        %1067 = vmatpush1.bf16.msra.mxu0 0
        %1068 = vmatprep.subr.bf16.mxu0 0
        %1069 = vmatpush1.bf16.msra.mxu0 0
        %1070 = vmatprep.subr.bf16.mxu0 0
        %1071 = vmatpush1.bf16.msra.mxu0 0
        %1072 = vmatprep.subr.bf16.mxu0 0
        %1073 = vmatpush1.bf16.msra.mxu0 0
        %1074 = vmatprep.subr.bf16.mxu0 0
        %1075 = vmatpush1.bf16.msra.mxu0 0
        %1076 = vmatprep.subr.bf16.mxu0 0
        %1077 = vmatpush1.bf16.msra.mxu0 0
        %1078 = vmatprep.subr.bf16.mxu0 0
        %1079 = vmatpush1.bf16.msra.mxu0 0
        %1080 = vmatprep.subr.bf16.mxu0 0
        %1081 = vmatpush1.bf16.msra.mxu0 0
        %1082 = vmatprep.mubr.bf16.mxu0 0
        %1083 = vmatmul.mubr.bf16.gmra.mrb[0].mxu0 %v1045
        %v1084 = vpop.f32.mrb[0].mxu0
        %v1085 = vadd.f32 %v1031, %v1084
        %v1086 = vpop.f32.mrb[0].mxu0
        %v1087 = vpop.f32.mrb[0].mxu0
        %v1088 = vadd.f32 %v1031, %v1087
        %v1089 = vpop.f32.mrb[0].mxu0
        %1090 = vmatprep.mubr.bf16.mxu0 0
        %1091 = vmatmul.mubr.bf16.gmra.mrb[0].mxu0 %v1048
        %v1092 = vpop.f32.mrb[0].mxu0
        %v1093 = vadd.f32 %v1031, %v1092
        %v1094 = vpop.f32.mrb[0].mxu0
        %v1095 = vpop.f32.mrb[0].mxu0
        %v1096 = vadd.f32 %v1031, %v1095
        %v1097 = vpop.f32.mrb[0].mxu0
        %1098 = vdwg.mxu0
        %v1099 = vpack.c.bf16 %v939, %v938
        %v1100 = vpack.c.bf16 %v941, %v940
        %v1101 = vpack.c.bf16 %v943, %v942
        %v1102 = vpack.c.bf16 %v945, %v944
        %v1103 = vpack.c.bf16 %v947, %v946
        %v1104 = vpack.c.bf16 %v949, %v948
        %v1105 = vpack.c.bf16 %v951, %v950
        %v1106 = vpack.c.bf16 %v953, %v952
        %s1107 = scalar_lea.vmem %s386, 16 [#allocation4]
        %v1108 = vld [vmem:[%s1107] sm:$0xf]
        %v1109 = vld [vmem:[%s1107 + $0x4] sm:$0xf]
        %v1110 = vld [vmem:[%s1107 + $0x8] sm:$0xf]
        %v1111 = vld [vmem:[%s1107 + $0xc] sm:$0xf]
        %v1112 = vlaneseq
        %v1113 = vshrl.u32 %v1112, 7
        %v1114 = vsub.s32 5, %v1113
        %v1115 = vrot.slane %v698, %v1114
        %v1120 = vunpack.c.l.b16 %v1108
        %v1121 = vunpack.c.l.b16 %v1109
        %v1122 = vunpack.c.l.b16 %v1110
        %v1123 = vunpack.c.l.b16 %v1111
        %v1124 = vpack.c.b16 %v1121, %v1120
        %v1125 = vpack.c.b16 %v1123, %v1122
        %v1129 = vsel %vm704, %v1099, 0
        %v1132 = vsel %vm704, %v1100, 0
        %v1135 = vsel %vm704, %v1101, 0
        %v1138 = vsel %vm704, %v1102, 0
        %v1141 = vsel %vm704, %v1103, 0
        %v1144 = vsel %vm704, %v1104, 0
        %v1147 = vsel %vm704, %v1105, 0
        %v1150 = vsel %vm704, %v1106, 0
        %1152 = vmatprep.subr.bf16.mxu0 0
        %1153 = vmatpush1.bf16.msra.mxu0 %v1124
        %1154 = vmatprep.subr.bf16.mxu0 0
        %1155 = vmatpush1.bf16.msra.mxu0 %v1125
        %1156 = vmatprep.subr.bf16.mxu0 0
        %1157 = vmatpush1.bf16.msra.mxu0 0
        %1158 = vmatprep.subr.bf16.mxu0 0
        %1159 = vmatpush1.bf16.msra.mxu0 0
        %1160 = vmatprep.subr.bf16.mxu0 0
        %1161 = vmatpush1.bf16.msra.mxu0 0
        %1162 = vmatprep.subr.bf16.mxu0 0
        %1163 = vmatpush1.bf16.msra.mxu0 0
        %1164 = vmatprep.subr.bf16.mxu0 0
        %1165 = vmatpush1.bf16.msra.mxu0 0
        %1166 = vmatprep.subr.bf16.mxu0 0
        %1167 = vmatpush1.bf16.msra.mxu0 0
        %1168 = vmatprep.subr.bf16.mxu0 0
        %1169 = vmatpush1.bf16.msra.mxu0 0
        %1170 = vmatprep.subr.bf16.mxu0 0
        %1171 = vmatpush1.bf16.msra.mxu0 0
        %1172 = vmatprep.subr.bf16.mxu0 0
        %1173 = vmatpush1.bf16.msra.mxu0 0
        %1174 = vmatprep.subr.bf16.mxu0 0
        %1175 = vmatpush1.bf16.msra.mxu0 0
        %1176 = vmatprep.subr.bf16.mxu0 0
        %1177 = vmatpush1.bf16.msra.mxu0 0
        %1178 = vmatprep.subr.bf16.mxu0 0
        %1179 = vmatpush1.bf16.msra.mxu0 0
        %1180 = vmatprep.subr.bf16.mxu0 0
        %1181 = vmatpush1.bf16.msra.mxu0 0
        %1182 = vmatprep.subr.bf16.mxu0 0
        %1183 = vmatpush1.bf16.msra.mxu0 0
        %1184 = vmatprep.mubr.bf16.mxu0 0
        %1185 = vmatmul.mubr.bf16.gmra.mrb[0].mxu0 %v1129
        %v1186 = vpop.f32.mrb[0].mxu0
        %v1187 = vadd.f32 %v1115, %v1186
        %v1188 = vpop.f32.mrb[0].mxu0
        %v1189 = vpop.f32.mrb[0].mxu0
        %v1190 = vadd.f32 %v1115, %v1189
        %v1191 = vpop.f32.mrb[0].mxu0
        %1192 = vmatprep.mubr.bf16.mxu0 0
        %1193 = vmatmul.mubr.bf16.gmra.mrb[0].mxu0 %v1132
        %v1194 = vpop.f32.mrb[0].mxu0
        %v1195 = vadd.f32 %v1115, %v1194
        %v1196 = vpop.f32.mrb[0].mxu0
        %v1197 = vpop.f32.mrb[0].mxu0
        %v1198 = vadd.f32 %v1115, %v1197
        %v1199 = vpop.f32.mrb[0].mxu0
        %1200 = vmatprep.mubr.bf16.mxu0 0
        %1201 = vmatmul.mubr.bf16.gmra.mrb[0].mxu0 %v1135
        %v1202 = vpop.f32.mrb[0].mxu0
        %v1203 = vadd.f32 %v1115, %v1202
        %v1204 = vpop.f32.mrb[0].mxu0
        %v1205 = vpop.f32.mrb[0].mxu0
        %v1206 = vadd.f32 %v1115, %v1205
        %v1207 = vpop.f32.mrb[0].mxu0
        %1208 = vmatprep.mubr.bf16.mxu0 0
        %1209 = vmatmul.mubr.bf16.gmra.mrb[0].mxu0 %v1138
        %v1210 = vpop.f32.mrb[0].mxu0
        %v1211 = vadd.f32 %v1115, %v1210
        %v1212 = vpop.f32.mrb[0].mxu0
        %v1213 = vpop.f32.mrb[0].mxu0
        %v1214 = vadd.f32 %v1115, %v1213
        %v1215 = vpop.f32.mrb[0].mxu0
        %1216 = vmatprep.mubr.bf16.mxu0 0
        %1217 = vmatmul.mubr.bf16.gmra.mrb[0].mxu0 %v1141
        %v1218 = vpop.f32.mrb[0].mxu0
        %v1219 = vadd.f32 %v1115, %v1218
        %v1220 = vpop.f32.mrb[0].mxu0
        %v1221 = vpop.f32.mrb[0].mxu0
        %v1222 = vadd.f32 %v1115, %v1221
        %v1223 = vpop.f32.mrb[0].mxu0
        %1224 = vmatprep.mubr.bf16.mxu0 0
        %1225 = vmatmul.mubr.bf16.gmra.mrb[0].mxu0 %v1144
        %v1226 = vpop.f32.mrb[0].mxu0
        %v1227 = vadd.f32 %v1115, %v1226
        %v1228 = vpop.f32.mrb[0].mxu0
        %v1229 = vpop.f32.mrb[0].mxu0
        %v1230 = vadd.f32 %v1115, %v1229
        %v1231 = vpop.f32.mrb[0].mxu0
        %1232 = vmatprep.mubr.bf16.mxu0 0
        %1233 = vmatmul.mubr.bf16.gmra.mrb[0].mxu0 %v1147
        %v1234 = vpop.f32.mrb[0].mxu0
        %v1235 = vadd.f32 %v1115, %v1234
        %v1236 = vpop.f32.mrb[0].mxu0
        %v1237 = vpop.f32.mrb[0].mxu0
        %v1238 = vadd.f32 %v1115, %v1237
        %v1239 = vpop.f32.mrb[0].mxu0
        %1240 = vmatprep.mubr.bf16.mxu0 0
        %1241 = vmatmul.mubr.bf16.gmra.mrb[0].mxu0 %v1150
        %v1242 = vpop.f32.mrb[0].mxu0
        %v1243 = vadd.f32 %v1115, %v1242
        %v1244 = vpop.f32.mrb[0].mxu0
        %v1245 = vpop.f32.mrb[0].mxu0
        %v1246 = vadd.f32 %v1115, %v1245
        %v1247 = vpop.f32.mrb[0].mxu0
        %1248 = vdwg.mxu0
        %s1249 = scalar_lea.vmem %s386, 32 [#allocation4]
        %v1250 = vld [vmem:[%s1249] sm:$0xf]
        %v1251 = vld [vmem:[%s1249 + $0x4] sm:$0xf]
        %v1252 = vld [vmem:[%s1249 + $0x8] sm:$0xf]
        %v1253 = vld [vmem:[%s1249 + $0xc] sm:$0xf]
        %v1254 = vlaneseq
        %v1255 = vshrl.u32 %v1254, 7
        %v1256 = vsub.s32 6, %v1255
        %v1257 = vrot.slane %v698, %v1256
        %v1262 = vunpack.c.l.b16 %v1250
        %v1263 = vunpack.c.l.b16 %v1251
        %v1264 = vunpack.c.l.b16 %v1252
        %v1265 = vunpack.c.l.b16 %v1253
        %v1266 = vpack.c.b16 %v1263, %v1262
        %v1267 = vpack.c.b16 %v1265, %v1264
        %1270 = vmatprep.subr.bf16.mxu0 0
        %1271 = vmatpush1.bf16.msra.mxu0 %v1266
        %1272 = vmatprep.subr.bf16.mxu0 0
        %1273 = vmatpush1.bf16.msra.mxu0 %v1267
        %1274 = vmatprep.subr.bf16.mxu0 0
        %1275 = vmatpush1.bf16.msra.mxu0 0
        %1276 = vmatprep.subr.bf16.mxu0 0
        %1277 = vmatpush1.bf16.msra.mxu0 0
        %1278 = vmatprep.subr.bf16.mxu0 0
        %1279 = vmatpush1.bf16.msra.mxu0 0
        %1280 = vmatprep.subr.bf16.mxu0 0
        %1281 = vmatpush1.bf16.msra.mxu0 0
        %1282 = vmatprep.subr.bf16.mxu0 0
        %1283 = vmatpush1.bf16.msra.mxu0 0
        %1284 = vmatprep.subr.bf16.mxu0 0
        %1285 = vmatpush1.bf16.msra.mxu0 0
        %1286 = vmatprep.subr.bf16.mxu0 0
        %1287 = vmatpush1.bf16.msra.mxu0 0
        %1288 = vmatprep.subr.bf16.mxu0 0
        %1289 = vmatpush1.bf16.msra.mxu0 0
        %1290 = vmatprep.subr.bf16.mxu0 0
        %1291 = vmatpush1.bf16.msra.mxu0 0
        %1292 = vmatprep.subr.bf16.mxu0 0
        %1293 = vmatpush1.bf16.msra.mxu0 0
        %1294 = vmatprep.subr.bf16.mxu0 0
        %1295 = vmatpush1.bf16.msra.mxu0 0
        %1296 = vmatprep.subr.bf16.mxu0 0
        %1297 = vmatpush1.bf16.msra.mxu0 0
        %1298 = vmatprep.subr.bf16.mxu0 0
        %1299 = vmatpush1.bf16.msra.mxu0 0
        %1300 = vmatprep.subr.bf16.mxu0 0
        %1301 = vmatpush1.bf16.msra.mxu0 0
        %1302 = vmatprep.mubr.bf16.mxu0 0
        %1303 = vmatmul.mubr.bf16.gmra.mrb[0].mxu0 %v1129
        %v1304 = vpop.f32.mrb[0].mxu0
        %v1305 = vadd.f32 %v1257, %v1304
        %v1306 = vpop.f32.mrb[0].mxu0
        %v1307 = vpop.f32.mrb[0].mxu0
        %v1308 = vadd.f32 %v1257, %v1307
        %v1309 = vpop.f32.mrb[0].mxu0
        %1310 = vmatprep.mubr.bf16.mxu0 0
        %1311 = vmatmul.mubr.bf16.gmra.mrb[0].mxu0 %v1132
        %v1312 = vpop.f32.mrb[0].mxu0
        %v1313 = vadd.f32 %v1257, %v1312
        %v1314 = vpop.f32.mrb[0].mxu0
        %v1315 = vpop.f32.mrb[0].mxu0
        %v1316 = vadd.f32 %v1257, %v1315
        %v1317 = vpop.f32.mrb[0].mxu0
        %1318 = vmatprep.mubr.bf16.mxu0 0
        %1319 = vmatmul.mubr.bf16.gmra.mrb[0].mxu0 %v1135
        %v1320 = vpop.f32.mrb[0].mxu0
        %v1321 = vadd.f32 %v1257, %v1320
        %v1322 = vpop.f32.mrb[0].mxu0
        %v1323 = vpop.f32.mrb[0].mxu0
        %v1324 = vadd.f32 %v1257, %v1323
        %v1325 = vpop.f32.mrb[0].mxu0
        %1326 = vmatprep.mubr.bf16.mxu0 0
        %1327 = vmatmul.mubr.bf16.gmra.mrb[0].mxu0 %v1138
        %v1328 = vpop.f32.mrb[0].mxu0
        %v1329 = vadd.f32 %v1257, %v1328
        %v1330 = vpop.f32.mrb[0].mxu0
        %v1331 = vpop.f32.mrb[0].mxu0
        %v1332 = vadd.f32 %v1257, %v1331
        %v1333 = vpop.f32.mrb[0].mxu0
        %1334 = vmatprep.mubr.bf16.mxu0 0
        %1335 = vmatmul.mubr.bf16.gmra.mrb[0].mxu0 %v1141
        %v1336 = vpop.f32.mrb[0].mxu0
        %v1337 = vadd.f32 %v1257, %v1336
        %v1338 = vpop.f32.mrb[0].mxu0
        %v1339 = vpop.f32.mrb[0].mxu0
        %v1340 = vadd.f32 %v1257, %v1339
        %v1341 = vpop.f32.mrb[0].mxu0
        %1342 = vmatprep.mubr.bf16.mxu0 0
        %1343 = vmatmul.mubr.bf16.gmra.mrb[0].mxu0 %v1144
        %v1344 = vpop.f32.mrb[0].mxu0
        %v1345 = vadd.f32 %v1257, %v1344
        %v1346 = vpop.f32.mrb[0].mxu0
        %v1347 = vpop.f32.mrb[0].mxu0
        %v1348 = vadd.f32 %v1257, %v1347
        %v1349 = vpop.f32.mrb[0].mxu0
        %1350 = vmatprep.mubr.bf16.mxu0 0
        %1351 = vmatmul.mubr.bf16.gmra.mrb[0].mxu0 %v1147
        %v1352 = vpop.f32.mrb[0].mxu0
        %v1353 = vadd.f32 %v1257, %v1352
        %v1354 = vpop.f32.mrb[0].mxu0
        %v1355 = vpop.f32.mrb[0].mxu0
        %v1356 = vadd.f32 %v1257, %v1355
        %v1357 = vpop.f32.mrb[0].mxu0
        %1358 = vmatprep.mubr.bf16.mxu0 0
        %1359 = vmatmul.mubr.bf16.gmra.mrb[0].mxu0 %v1150
        %v1360 = vpop.f32.mrb[0].mxu0
        %v1361 = vadd.f32 %v1257, %v1360
        %v1362 = vpop.f32.mrb[0].mxu0
        %v1363 = vpop.f32.mrb[0].mxu0
        %v1364 = vadd.f32 %v1257, %v1363
        %v1365 = vpop.f32.mrb[0].mxu0
        %1366 = vdwg.mxu0
        %v1367 = vpack.c.bf16 %v1088, %v1085
        %v1368 = vpack.c.bf16 %v1096, %v1093
        %v1369 = vpack.c.bf16 %v1190, %v1187
        %v1370 = vpack.c.bf16 %v1198, %v1195
        %v1371 = vpack.c.bf16 %v1206, %v1203
        %v1372 = vpack.c.bf16 %v1214, %v1211
        %v1373 = vpack.c.bf16 %v1222, %v1219
        %v1374 = vpack.c.bf16 %v1230, %v1227
        %v1375 = vpack.c.bf16 %v1238, %v1235
        %v1376 = vpack.c.bf16 %v1246, %v1243
        %v1378 = vsel %vm704, %v1367, 0
        %v1381 = vsel %vm704, %v1369, 0
        %v1384 = vsel %vm704, %v1370, 0
        %v1387 = vsel %vm704, %v1371, 0
        %v1390 = vsel %vm704, %v1372, 0
        %1392 = vmatprep.subr.bf16.mxu0 0
        %1393 = vmatpush1.bf16.xpose.msra.mxu0 %v1381
        %1394 = vmatprep.subr.bf16.mxu0 0
        %1395 = vmatpush1.bf16.xpose.msra.mxu0 %v1384
        %1396 = vmatprep.subr.bf16.mxu0 0
        %1397 = vmatpush1.bf16.xpose.msra.mxu0 %v1387
        %1398 = vmatprep.subr.bf16.mxu0 0
        %1399 = vmatpush1.bf16.xpose.msra.mxu0 %v1390
        %1400 = vmatprep.subr.bf16.mxu0 0
        %1401 = vmatpush1.bf16.xpose.msra.mxu0 0
        %1402 = vmatprep.subr.bf16.mxu0 0
        %1403 = vmatpush1.bf16.xpose.msra.mxu0 0
        %1404 = vmatprep.subr.bf16.mxu0 0
        %1405 = vmatpush1.bf16.xpose.msra.mxu0 0
        %1406 = vmatprep.subr.bf16.mxu0 0
        %1407 = vmatpush1.bf16.xpose.msra.mxu0 0
        %1408 = vmatprep.subr.bf16.mxu0 0
        %1409 = vmatpush1.bf16.xpose.msra.mxu0 0
        %1410 = vmatprep.subr.bf16.mxu0 0
        %1411 = vmatpush1.bf16.xpose.msra.mxu0 0
        %1412 = vmatprep.subr.bf16.mxu0 0
        %1413 = vmatpush1.bf16.xpose.msra.mxu0 0
        %1414 = vmatprep.subr.bf16.mxu0 0
        %1415 = vmatpush1.bf16.xpose.msra.mxu0 0
        %1416 = vmatprep.subr.bf16.mxu0 0
        %1417 = vmatpush1.bf16.xpose.msra.mxu0 0
        %1418 = vmatprep.subr.bf16.mxu0 0
        %1419 = vmatpush1.bf16.xpose.msra.mxu0 0
        %1420 = vmatprep.subr.bf16.mxu0 0
        %1421 = vmatpush1.bf16.xpose.msra.mxu0 0
        %1422 = vmatprep.subr.bf16.mxu0 0
        %1423 = vmatpush1.bf16.xpose.msra.mxu0 0
        %1424 = vmatprep.mubr.bf16.mxu0 0
        %1425 = vmatmul.mubr.bf16.gmra.mrb[0].mxu0 %v1378
        %v1426 = vpop.f32.mrb[0].mxu0
        %v1427 = vadd.f32 0.0, %v1426
        %v1428 = vpop.f32.mrb[0].mxu0
        %v1429 = vpop.f32.mrb[0].mxu0
        %v1430 = vadd.f32 0.0, %v1429
        %v1431 = vpop.f32.mrb[0].mxu0
        %1432 = vdwg.mxu0
        %v1434 = vsel %vm704, %v1368, 0
        %v1437 = vsel %vm704, %v1373, 0
        %v1440 = vsel %vm704, %v1374, 0
        %v1443 = vsel %vm704, %v1375, 0
        %v1446 = vsel %vm704, %v1376, 0
        %1448 = vmatprep.subr.bf16.mxu0 0
        %1449 = vmatpush1.bf16.xpose.msra.mxu0 %v1437
        %1450 = vmatprep.subr.bf16.mxu0 0
        %1451 = vmatpush1.bf16.xpose.msra.mxu0 %v1440
        %1452 = vmatprep.subr.bf16.mxu0 0
        %1453 = vmatpush1.bf16.xpose.msra.mxu0 %v1443
        %1454 = vmatprep.subr.bf16.mxu0 0
        %1455 = vmatpush1.bf16.xpose.msra.mxu0 %v1446
        %1456 = vmatprep.subr.bf16.mxu0 0
        %1457 = vmatpush1.bf16.xpose.msra.mxu0 0
        %1458 = vmatprep.subr.bf16.mxu0 0
        %1459 = vmatpush1.bf16.xpose.msra.mxu0 0
        %1460 = vmatprep.subr.bf16.mxu0 0
        %1461 = vmatpush1.bf16.xpose.msra.mxu0 0
        %1462 = vmatprep.subr.bf16.mxu0 0
        %1463 = vmatpush1.bf16.xpose.msra.mxu0 0
        %1464 = vmatprep.subr.bf16.mxu0 0
        %1465 = vmatpush1.bf16.xpose.msra.mxu0 0
        %1466 = vmatprep.subr.bf16.mxu0 0
        %1467 = vmatpush1.bf16.xpose.msra.mxu0 0
        %1468 = vmatprep.subr.bf16.mxu0 0
        %1469 = vmatpush1.bf16.xpose.msra.mxu0 0
        %1470 = vmatprep.subr.bf16.mxu0 0
        %1471 = vmatpush1.bf16.xpose.msra.mxu0 0
        %1472 = vmatprep.subr.bf16.mxu0 0
        %1473 = vmatpush1.bf16.xpose.msra.mxu0 0
        %1474 = vmatprep.subr.bf16.mxu0 0
        %1475 = vmatpush1.bf16.xpose.msra.mxu0 0
        %1476 = vmatprep.subr.bf16.mxu0 0
        %1477 = vmatpush1.bf16.xpose.msra.mxu0 0
        %1478 = vmatprep.subr.bf16.mxu0 0
        %1479 = vmatpush1.bf16.xpose.msra.mxu0 0
        %1480 = vmatprep.mubr.bf16.mxu0 0
        %1481 = vmatmul.mubr.bf16.gmra.mrb[0].mxu0 %v1434
        %v1482 = vpop.f32.mrb[0].mxu0
        %v1483 = vadd.f32 0.0, %v1482
        %v1484 = vpop.f32.mrb[0].mxu0
        %v1485 = vpop.f32.mrb[0].mxu0
        %v1486 = vadd.f32 0.0, %v1485
        %v1487 = vpop.f32.mrb[0].mxu0
        %1488 = vdwg.mxu0
        %v1489 = vlaneseq
        %v1490 = vshrl.u32 %v1489, 7
        %v1491 = vsub.s32 7, %v1490
        %v1492 = vrot.slane %v698, %v1491
        %v1493 = vmul.f32 %v1085, %v1492
        %v1494 = vmul.f32 %v1088, %v1492
        %v1495 = vmul.f32 %v1093, %v1492
        %v1496 = vmul.f32 %v1096, %v1492
        %v1497 = vsel %vm704, %v1493, 0.0
        %1498 = vadd.xlane.f32.xlu0 %v1497
        %v1499 = vpop.xlane.xlu0 %1498
        %v1500 = vsel %vm704, %v1494, 0.0
        %1501 = vadd.xlane.f32.xlu0 %v1500
        %v1502 = vpop.xlane.xlu0 %1501
        %v1503 = vsel %vm704, %v1495, 0.0
        %1504 = vadd.xlane.f32.xlu0 %v1503
        %v1505 = vpop.xlane.xlu0 %1504
        %v1506 = vsel %vm704, %v1496, 0.0
        %1507 = vadd.xlane.f32.xlu0 %v1506
        %v1508 = vpop.xlane.xlu0 %1507
        %vm1509 = vcmask 523264
        %v1510 = vsel %vm1509, %v1427, -inf
        %1511 = vmax.xlane.f32.xlu0 %v1510
        %v1512 = vpop.xlane.xlu0 %1511
        %v1513 = vsel %vm1509, %v1430, -inf
        %1514 = vmax.xlane.f32.xlu0 %v1513
        %v1515 = vpop.xlane.xlu0 %1514
        %v1516 = vsel %vm1509, %v1483, -inf
        %1517 = vmax.xlane.f32.xlu0 %v1516
        %v1518 = vpop.xlane.xlu0 %1517
        %v1519 = vsel %vm1509, %v1486, -inf
        %1520 = vmax.xlane.f32.xlu0 %v1519
        %v1521 = vpop.xlane.xlu0 %1520
        %v1522 = vmax.f32 %v1512, %v1499
        %v1523 = vmax.f32 %v1515, %v1502
        %v1524 = vmax.f32 %v1518, %v1505
        %v1525 = vmax.f32 %v1521, %v1508
        %v1526 = vsub.f32 %v1427, %v1522
        %v1527 = vsub.f32 %v1430, %v1523
        %v1528 = vsub.f32 %v1483, %v1524
        %v1529 = vsub.f32 %v1486, %v1525
        %v1530 = vmul.f32 %v1526, 1.442695
        %v1531 = vpow.pop %v1530
        %v1532 = vmul.f32 %v1527, 1.442695
        %v1533 = vpow.pop %v1532
        %v1534 = vmul.f32 %v1528, 1.442695
        %v1535 = vpow.pop %v1534
        %v1536 = vmul.f32 %v1529, 1.442695
        %v1537 = vpow.pop %v1536
        %v1538 = vsub.f32 %v1499, %v1522
        %v1539 = vsub.f32 %v1502, %v1523
        %v1540 = vsub.f32 %v1505, %v1524
        %v1541 = vsub.f32 %v1508, %v1525
        %v1542 = vmul.f32 %v1538, 1.442695
        %v1543 = vpow.pop %v1542
        %v1544 = vmul.f32 %v1539, 1.442695
        %v1545 = vpow.pop %v1544
        %v1546 = vmul.f32 %v1540, 1.442695
        %v1547 = vpow.pop %v1546
        %v1548 = vmul.f32 %v1541, 1.442695
        %v1549 = vpow.pop %v1548
        %v1550 = vsel %vm1509, %v1531, 0.0
        %1551 = vadd.xlane.f32.xlu0 %v1550
        %v1552 = vpop.xlane.xlu0 %1551
        %v1553 = vsel %vm1509, %v1533, 0.0
        %1554 = vadd.xlane.f32.xlu0 %v1553
        %v1555 = vpop.xlane.xlu0 %1554
        %v1556 = vsel %vm1509, %v1535, 0.0
        %1557 = vadd.xlane.f32.xlu0 %v1556
        %v1558 = vpop.xlane.xlu0 %1557
        %v1559 = vsel %vm1509, %v1537, 0.0
        %1560 = vadd.xlane.f32.xlu0 %v1559
        %v1561 = vpop.xlane.xlu0 %1560
        %v1562 = vadd.f32 %v1552, %v1543
        %v1563 = vadd.f32 %v1555, %v1545
        %v1564 = vadd.f32 %v1558, %v1547
        %v1565 = vadd.f32 %v1561, %v1549
        %v1566 = vpack.c.bf16 %v1533, %v1531
        %v1567 = vpack.c.bf16 %v1537, %v1535
        %v1568 = vpack.c.bf16 %v1308, %v1305
        %v1569 = vpack.c.bf16 %v1316, %v1313
        %v1570 = vpack.c.bf16 %v1324, %v1321
        %v1571 = vpack.c.bf16 %v1332, %v1329
        %v1572 = vpack.c.bf16 %v1340, %v1337
        %v1573 = vpack.c.bf16 %v1348, %v1345
        %v1574 = vpack.c.bf16 %v1356, %v1353
        %v1575 = vpack.c.bf16 %v1364, %v1361
        %v1576 = vlaneseq
        %v1577 = vshrl.u32 %v1576, 7
        %v1578 = vsub.s32 0, %v1577
        %v1579 = vrot.slane %v699, %v1578
        %v1580 = vmul.f32 %v1543, %v1579
        %v1581 = vmul.f32 %v1545, %v1579
        %v1582 = vmul.f32 %v1547, %v1579
        %v1583 = vmul.f32 %v1549, %v1579
        %v1585 = vsel %vm1509, %v1566, 0
        %1587 = vmatprep.subr.bf16.mxu0 0
        %1588 = vmatpush1.bf16.msra.mxu0 %v1568
        %1589 = vmatprep.subr.bf16.mxu0 0
        %1590 = vmatpush1.bf16.msra.mxu0 %v1569
        %1591 = vmatprep.subr.bf16.mxu0 0
        %1592 = vmatpush1.bf16.msra.mxu0 %v1570
        %1593 = vmatprep.subr.bf16.mxu0 0
        %1594 = vmatpush1.bf16.msra.mxu0 %v1571
        %1595 = vmatprep.subr.bf16.mxu0 0
        %1596 = vmatpush1.bf16.msra.mxu0 0
        %1597 = vmatprep.subr.bf16.mxu0 0
        %1598 = vmatpush1.bf16.msra.mxu0 0
        %1599 = vmatprep.subr.bf16.mxu0 0
        %1600 = vmatpush1.bf16.msra.mxu0 0
        %1601 = vmatprep.subr.bf16.mxu0 0
        %1602 = vmatpush1.bf16.msra.mxu0 0
        %1603 = vmatprep.subr.bf16.mxu0 0
        %1604 = vmatpush1.bf16.msra.mxu0 0
        %1605 = vmatprep.subr.bf16.mxu0 0
        %1606 = vmatpush1.bf16.msra.mxu0 0
        %1607 = vmatprep.subr.bf16.mxu0 0
        %1608 = vmatpush1.bf16.msra.mxu0 0
        %1609 = vmatprep.subr.bf16.mxu0 0
        %1610 = vmatpush1.bf16.msra.mxu0 0
        %1611 = vmatprep.subr.bf16.mxu0 0
        %1612 = vmatpush1.bf16.msra.mxu0 0
        %1613 = vmatprep.subr.bf16.mxu0 0
        %1614 = vmatpush1.bf16.msra.mxu0 0
        %1615 = vmatprep.subr.bf16.mxu0 0
        %1616 = vmatpush1.bf16.msra.mxu0 0
        %1617 = vmatprep.subr.bf16.mxu0 0
        %1618 = vmatpush1.bf16.msra.mxu0 0
        %1619 = vmatprep.mubr.bf16.mxu0 0
        %1620 = vmatmul.mubr.bf16.gmra.mrb[0].mxu0 %v1585
        %v1621 = vpop.f32.mrb[0].mxu0
        %v1622 = vadd.f32 %v1580, %v1621
        %v1623 = vpop.f32.mrb[0].mxu0
        %v1624 = vpop.f32.mrb[0].mxu0
        %v1625 = vadd.f32 %v1581, %v1624
        %v1626 = vpop.f32.mrb[0].mxu0
        %1627 = vdwg.mxu0
        %v1629 = vsel %vm1509, %v1567, 0
        %1631 = vmatprep.subr.bf16.mxu0 0
        %1632 = vmatpush1.bf16.msra.mxu0 %v1572
        %1633 = vmatprep.subr.bf16.mxu0 0
        %1634 = vmatpush1.bf16.msra.mxu0 %v1573
        %1635 = vmatprep.subr.bf16.mxu0 0
        %1636 = vmatpush1.bf16.msra.mxu0 %v1574
        %1637 = vmatprep.subr.bf16.mxu0 0
        %1638 = vmatpush1.bf16.msra.mxu0 %v1575
        %1639 = vmatprep.subr.bf16.mxu0 0
        %1640 = vmatpush1.bf16.msra.mxu0 0
        %1641 = vmatprep.subr.bf16.mxu0 0
        %1642 = vmatpush1.bf16.msra.mxu0 0
        %1643 = vmatprep.subr.bf16.mxu0 0
        %1644 = vmatpush1.bf16.msra.mxu0 0
        %1645 = vmatprep.subr.bf16.mxu0 0
        %1646 = vmatpush1.bf16.msra.mxu0 0
        %1647 = vmatprep.subr.bf16.mxu0 0
        %1648 = vmatpush1.bf16.msra.mxu0 0
        %1649 = vmatprep.subr.bf16.mxu0 0
        %1650 = vmatpush1.bf16.msra.mxu0 0
        %1651 = vmatprep.subr.bf16.mxu0 0
        %1652 = vmatpush1.bf16.msra.mxu0 0
        %1653 = vmatprep.subr.bf16.mxu0 0
        %1654 = vmatpush1.bf16.msra.mxu0 0
        %1655 = vmatprep.subr.bf16.mxu0 0
        %1656 = vmatpush1.bf16.msra.mxu0 0
        %1657 = vmatprep.subr.bf16.mxu0 0
        %1658 = vmatpush1.bf16.msra.mxu0 0
        %1659 = vmatprep.subr.bf16.mxu0 0
        %1660 = vmatpush1.bf16.msra.mxu0 0
        %1661 = vmatprep.subr.bf16.mxu0 0
        %1662 = vmatpush1.bf16.msra.mxu0 0
        %1663 = vmatprep.mubr.bf16.mxu0 0
        %1664 = vmatmul.mubr.bf16.gmra.mrb[0].mxu0 %v1629
        %v1665 = vpop.f32.mrb[0].mxu0
        %v1666 = vadd.f32 %v1582, %v1665
        %v1667 = vpop.f32.mrb[0].mxu0
        %v1668 = vpop.f32.mrb[0].mxu0
        %v1669 = vadd.f32 %v1583, %v1668
        %v1670 = vpop.f32.mrb[0].mxu0
        %1671 = vdwg.mxu0
        %v1672 = vrcp.pop %v1562
        %v1673 = vmul.f32 %v1622, %v1672
        %v1674 = vrcp.pop %v1563
        %v1675 = vmul.f32 %v1625, %v1674
        %v1676 = vrcp.pop %v1564
        %v1677 = vmul.f32 %v1666, %v1676
        %v1678 = vrcp.pop %v1565
        %v1679 = vmul.f32 %v1669, %v1678
        %v1680 = vpack.c.bf16 %v1675, %v1673
        %v1681 = vpack.c.bf16 %v1679, %v1677
        %s1682 = scalar_lea.vmem %s386, 48 [#allocation4]
        %v1683 = vld [vmem:[%s1682] sm:$0xf]
        %v1684 = vld [vmem:[%s1682 + $0x4] sm:$0xf]
        %v1685 = vld [vmem:[%s1682 + $0x8] sm:$0xf]
        %v1686 = vld [vmem:[%s1682 + $0xc] sm:$0xf]
        %v1687 = vlaneseq
        %v1688 = vshrl.u32 %v1687, 7
        %v1689 = vsub.s32 1, %v1688
        %v1690 = vrot.slane %v699, %v1689
        %v1695 = vunpack.c.l.b16 %v1683
        %v1696 = vunpack.c.l.b16 %v1684
        %v1697 = vunpack.c.l.b16 %v1685
        %v1698 = vunpack.c.l.b16 %v1686
        %v1699 = vpack.c.b16 %v1696, %v1695
        %v1700 = vpack.c.b16 %v1698, %v1697
        %v1704 = vsel %vm704, %v1680, 0
        %v1707 = vsel %vm704, %v1681, 0
        %1709 = vmatprep.subr.bf16.mxu0 0
        %1710 = vmatpush1.bf16.msra.mxu0 %v1699
        %1711 = vmatprep.subr.bf16.mxu0 0
        %1712 = vmatpush1.bf16.msra.mxu0 %v1700
        %1713 = vmatprep.subr.bf16.mxu0 0
        %1714 = vmatpush1.bf16.msra.mxu0 0
        %1715 = vmatprep.subr.bf16.mxu0 0
        %1716 = vmatpush1.bf16.msra.mxu0 0
        %1717 = vmatprep.subr.bf16.mxu0 0
        %1718 = vmatpush1.bf16.msra.mxu0 0
        %1719 = vmatprep.subr.bf16.mxu0 0
        %1720 = vmatpush1.bf16.msra.mxu0 0
        %1721 = vmatprep.subr.bf16.mxu0 0
        %1722 = vmatpush1.bf16.msra.mxu0 0
        %1723 = vmatprep.subr.bf16.mxu0 0
        %1724 = vmatpush1.bf16.msra.mxu0 0
        %1725 = vmatprep.subr.bf16.mxu0 0
        %1726 = vmatpush1.bf16.msra.mxu0 0
        %1727 = vmatprep.subr.bf16.mxu0 0
        %1728 = vmatpush1.bf16.msra.mxu0 0
        %1729 = vmatprep.subr.bf16.mxu0 0
        %1730 = vmatpush1.bf16.msra.mxu0 0
        %1731 = vmatprep.subr.bf16.mxu0 0
        %1732 = vmatpush1.bf16.msra.mxu0 0
        %1733 = vmatprep.subr.bf16.mxu0 0
        %1734 = vmatpush1.bf16.msra.mxu0 0
        %1735 = vmatprep.subr.bf16.mxu0 0
        %1736 = vmatpush1.bf16.msra.mxu0 0
        %1737 = vmatprep.subr.bf16.mxu0 0
        %1738 = vmatpush1.bf16.msra.mxu0 0
        %1739 = vmatprep.subr.bf16.mxu0 0
        %1740 = vmatpush1.bf16.msra.mxu0 0
        %1741 = vmatprep.mubr.bf16.mxu0 0
        %1742 = vmatmul.mubr.bf16.gmra.mrb[0].mxu0 %v1704
        %v1743 = vpop.f32.mrb[0].mxu0
        %v1744 = vadd.f32 %v1690, %v1743
        %v1745 = vpop.f32.mrb[0].mxu0
        %v1746 = vpop.f32.mrb[0].mxu0
        %v1747 = vadd.f32 %v1690, %v1746
        %v1748 = vpop.f32.mrb[0].mxu0
        %1749 = vmatprep.mubr.bf16.mxu0 0
        %1750 = vmatmul.mubr.bf16.gmra.mrb[0].mxu0 %v1707
        %v1751 = vpop.f32.mrb[0].mxu0
        %v1752 = vadd.f32 %v1690, %v1751
        %v1753 = vpop.f32.mrb[0].mxu0
        %v1754 = vpop.f32.mrb[0].mxu0
        %v1755 = vadd.f32 %v1690, %v1754
        %v1756 = vpop.f32.mrb[0].mxu0
        %1757 = vdwg.mxu0
        %v1758 = vpack.c.bf16 %v1747, %v1744
        %v1759 = vpack.c.bf16 %v1755, %v1752
        %s1760 = scalar_lea.vmem %s386, 64 [#allocation4]
        %v1761 = vld [vmem:[%s1760] sm:$0xf]
        %v1762 = vld [vmem:[%s1760 + $0x4] sm:$0xf]
        %v1763 = vld [vmem:[%s1760 + $0x8] sm:$0xf]
        %v1764 = vld [vmem:[%s1760 + $0xc] sm:$0xf]
        %v1765 = vlaneseq
        %v1766 = vshrl.u32 %v1765, 7
        %v1767 = vsub.s32 2, %v1766
        %v1768 = vrot.slane %v699, %v1767
        %v1773 = vunpack.c.l.b16 %v1761
        %v1774 = vunpack.c.l.b16 %v1762
        %v1775 = vunpack.c.l.b16 %v1763
        %v1776 = vunpack.c.l.b16 %v1764
        %v1777 = vpack.c.b16 %v1774, %v1773
        %v1778 = vpack.c.b16 %v1776, %v1775
        %v1782 = vsel %vm704, %v1758, 0
        %v1785 = vsel %vm704, %v1759, 0
        %1787 = vmatprep.subr.bf16.mxu0 0
        %1788 = vmatpush1.bf16.msra.mxu0 %v1777
        %1789 = vmatprep.subr.bf16.mxu0 0
        %1790 = vmatpush1.bf16.msra.mxu0 %v1778
        %1791 = vmatprep.subr.bf16.mxu0 0
        %1792 = vmatpush1.bf16.msra.mxu0 0
        %1793 = vmatprep.subr.bf16.mxu0 0
        %1794 = vmatpush1.bf16.msra.mxu0 0
        %1795 = vmatprep.subr.bf16.mxu0 0
        %1796 = vmatpush1.bf16.msra.mxu0 0
        %1797 = vmatprep.subr.bf16.mxu0 0
        %1798 = vmatpush1.bf16.msra.mxu0 0
        %1799 = vmatprep.subr.bf16.mxu0 0
        %1800 = vmatpush1.bf16.msra.mxu0 0
        %1801 = vmatprep.subr.bf16.mxu0 0
        %1802 = vmatpush1.bf16.msra.mxu0 0
        %1803 = vmatprep.subr.bf16.mxu0 0
        %1804 = vmatpush1.bf16.msra.mxu0 0
        %1805 = vmatprep.subr.bf16.mxu0 0
        %1806 = vmatpush1.bf16.msra.mxu0 0
        %1807 = vmatprep.subr.bf16.mxu0 0
        %1808 = vmatpush1.bf16.msra.mxu0 0
        %1809 = vmatprep.subr.bf16.mxu0 0
        %1810 = vmatpush1.bf16.msra.mxu0 0
        %1811 = vmatprep.subr.bf16.mxu0 0
        %1812 = vmatpush1.bf16.msra.mxu0 0
        %1813 = vmatprep.subr.bf16.mxu0 0
        %1814 = vmatpush1.bf16.msra.mxu0 0
        %1815 = vmatprep.subr.bf16.mxu0 0
        %1816 = vmatpush1.bf16.msra.mxu0 0
        %1817 = vmatprep.subr.bf16.mxu0 0
        %1818 = vmatpush1.bf16.msra.mxu0 0
        %1819 = vmatprep.mubr.bf16.mxu0 0
        %1820 = vmatmul.mubr.bf16.gmra.mrb[0].mxu0 %v1782
        %v1821 = vpop.f32.mrb[0].mxu0
        %v1822 = vadd.f32 %v1768, %v1821
        %v1823 = vpop.f32.mrb[0].mxu0
        %v1824 = vpop.f32.mrb[0].mxu0
        %v1825 = vadd.f32 %v1768, %v1824
        %v1826 = vpop.f32.mrb[0].mxu0
        %1827 = vmatprep.mubr.bf16.mxu0 0
        %1828 = vmatmul.mubr.bf16.gmra.mrb[0].mxu0 %v1785
        %v1829 = vpop.f32.mrb[0].mxu0
        %v1830 = vadd.f32 %v1768, %v1829
        %v1831 = vpop.f32.mrb[0].mxu0
        %v1832 = vpop.f32.mrb[0].mxu0
        %v1833 = vadd.f32 %v1768, %v1832
        %v1834 = vpop.f32.mrb[0].mxu0
        %1835 = vdwg.mxu0
        %v1836 = vsel %vm704, %v1822, 0.0
        %1837 = vadd.xlane.f32.xlu0 %v1836
        %v1838 = vpop.xlane.xlu0 %1837
        %v1839 = vsel %vm704, %v1825, 0.0
        %1840 = vadd.xlane.f32.xlu0 %v1839
        %v1841 = vpop.xlane.xlu0 %1840
        %v1842 = vsel %vm704, %v1830, 0.0
        %1843 = vadd.xlane.f32.xlu0 %v1842
        %v1844 = vpop.xlane.xlu0 %1843
        %v1845 = vsel %vm704, %v1833, 0.0
        %1846 = vadd.xlane.f32.xlu0 %v1845
        %v1847 = vpop.xlane.xlu0 %1846
        %v1848 = vmul.f32 %v1838, %v753
        %v1849 = vmul.f32 %v1841, %v753
        %v1850 = vmul.f32 %v1844, %v753
        %v1851 = vmul.f32 %v1847, %v753
        %v1852 = vsub.f32 %v1822, %v1848
        %v1853 = vsub.f32 %v1825, %v1849
        %v1854 = vsub.f32 %v1830, %v1850
        %v1855 = vsub.f32 %v1833, %v1851
        %v1856 = vmul.f32 %v1852, %v1852
        %v1857 = vmul.f32 %v1853, %v1853
        %v1858 = vmul.f32 %v1854, %v1854
        %v1859 = vmul.f32 %v1855, %v1855
        %v1860 = vsel %vm704, %v1856, 0.0
        %1861 = vadd.xlane.f32.xlu0 %v1860
        %v1862 = vpop.xlane.xlu0 %1861
        %v1863 = vsel %vm704, %v1857, 0.0
        %1864 = vadd.xlane.f32.xlu0 %v1863
        %v1865 = vpop.xlane.xlu0 %1864
        %v1866 = vsel %vm704, %v1858, 0.0
        %1867 = vadd.xlane.f32.xlu0 %v1866
        %v1868 = vpop.xlane.xlu0 %1867
        %v1869 = vsel %vm704, %v1859, 0.0
        %1870 = vadd.xlane.f32.xlu0 %v1869
        %v1871 = vpop.xlane.xlu0 %1870
        %v1872 = vmul.f32 %v1862, %v753
        %v1873 = vmul.f32 %v1865, %v753
        %v1874 = vmul.f32 %v1868, %v753
        %v1875 = vmul.f32 %v1871, %v753
        %v1876 = vadd.f32 %v1872, 1e-05
        %v1877 = vadd.f32 %v1873, 1e-05
        %v1878 = vadd.f32 %v1874, 1e-05
        %v1879 = vadd.f32 %v1875, 1e-05
        %v1880 = vrsqrt.pop %v1876
        %v1881 = vrsqrt.pop %v1877
        %v1882 = vrsqrt.pop %v1878
        %v1883 = vrsqrt.pop %v1879
        %v1884 = vmul.f32 %v1852, %v1880
        %v1885 = vmul.f32 %v1853, %v1881
        %v1886 = vmul.f32 %v1854, %v1882
        %v1887 = vmul.f32 %v1855, %v1883
        %v1888 = vlaneseq
        %v1889 = vshrl.u32 %v1888, 7
        %v1890 = vsub.s32 3, %v1889
        %v1891 = vrot.slane %v699, %v1890
        %v1892 = vmul.f32 %v1884, %v1891
        %v1893 = vmul.f32 %v1885, %v1891
        %v1894 = vmul.f32 %v1886, %v1891
        %v1895 = vmul.f32 %v1887, %v1891
        %v1896 = vlaneseq
        %v1897 = vshrl.u32 %v1896, 7
        %v1898 = vsub.s32 4, %v1897
        %v1899 = vrot.slane %v699, %v1898
        %v1900 = vadd.f32 %v1892, %v1899
        %v1901 = vadd.f32 %v1893, %v1899
        %v1902 = vadd.f32 %v1894, %v1899
        %v1903 = vadd.f32 %v1895, %v1899
        %v1904 = vpack.c.bf16 %v1901, %v1900
        %v1905 = vpack.c.bf16 %v1903, %v1902
        %s1906 = scalar_lea.vmem %s386, 80 [#allocation4]
        %v1907 = vld [vmem:[%s1906] sm:$0xf]
        %v1908 = vld [vmem:[%s1906 + $0x4] sm:$0xf]
        %v1909 = vld [vmem:[%s1906 + $0x8] sm:$0xf]
        %v1910 = vld [vmem:[%s1906 + $0xc] sm:$0xf]
        %v1911 = vlaneseq
        %v1912 = vshrl.u32 %v1911, 7
        %v1913 = vsub.s32 5, %v1912
        %v1914 = vrot.slane %v699, %v1913
        %v1919 = vunpack.c.l.b16 %v1907
        %v1920 = vunpack.c.l.b16 %v1908
        %v1921 = vunpack.c.l.b16 %v1909
        %v1922 = vunpack.c.l.b16 %v1910
        %v1923 = vpack.c.b16 %v1920, %v1919
        %v1924 = vpack.c.b16 %v1922, %v1921
        %v1928 = vsel %vm704, %v1904, 0
        %v1931 = vsel %vm704, %v1905, 0
        %1933 = vmatprep.subr.bf16.mxu0 0
        %1934 = vmatpush1.bf16.msra.mxu0 %v1923
        %1935 = vmatprep.subr.bf16.mxu0 0
        %1936 = vmatpush1.bf16.msra.mxu0 %v1924
        %1937 = vmatprep.subr.bf16.mxu0 0
        %1938 = vmatpush1.bf16.msra.mxu0 0
        %1939 = vmatprep.subr.bf16.mxu0 0
        %1940 = vmatpush1.bf16.msra.mxu0 0
        %1941 = vmatprep.subr.bf16.mxu0 0
        %1942 = vmatpush1.bf16.msra.mxu0 0
        %1943 = vmatprep.subr.bf16.mxu0 0
        %1944 = vmatpush1.bf16.msra.mxu0 0
        %1945 = vmatprep.subr.bf16.mxu0 0
        %1946 = vmatpush1.bf16.msra.mxu0 0
        %1947 = vmatprep.subr.bf16.mxu0 0
        %1948 = vmatpush1.bf16.msra.mxu0 0
        %1949 = vmatprep.subr.bf16.mxu0 0
        %1950 = vmatpush1.bf16.msra.mxu0 0
        %1951 = vmatprep.subr.bf16.mxu0 0
        %1952 = vmatpush1.bf16.msra.mxu0 0
        %1953 = vmatprep.subr.bf16.mxu0 0
        %1954 = vmatpush1.bf16.msra.mxu0 0
        %1955 = vmatprep.subr.bf16.mxu0 0
        %1956 = vmatpush1.bf16.msra.mxu0 0
        %1957 = vmatprep.subr.bf16.mxu0 0
        %1958 = vmatpush1.bf16.msra.mxu0 0
        %1959 = vmatprep.subr.bf16.mxu0 0
        %1960 = vmatpush1.bf16.msra.mxu0 0
        %1961 = vmatprep.subr.bf16.mxu0 0
        %1962 = vmatpush1.bf16.msra.mxu0 0
        %1963 = vmatprep.subr.bf16.mxu0 0
        %1964 = vmatpush1.bf16.msra.mxu0 0
        %1965 = vmatprep.mubr.bf16.mxu0 0
        %1966 = vmatmul.mubr.bf16.gmra.mrb[0].mxu0 %v1928
        %v1967 = vpop.f32.mrb[0].mxu0
        %v1968 = vadd.f32 %v1914, %v1967
        %v1969 = vpop.f32.mrb[0].mxu0
        %v1970 = vpop.f32.mrb[0].mxu0
        %v1971 = vadd.f32 %v1914, %v1970
        %v1972 = vpop.f32.mrb[0].mxu0
        %1973 = vmatprep.mubr.bf16.mxu0 0
        %1974 = vmatmul.mubr.bf16.gmra.mrb[0].mxu0 %v1931
        %v1975 = vpop.f32.mrb[0].mxu0
        %v1976 = vadd.f32 %v1914, %v1975
        %v1977 = vpop.f32.mrb[0].mxu0
        %v1978 = vpop.f32.mrb[0].mxu0
        %v1979 = vadd.f32 %v1914, %v1978
        %v1980 = vpop.f32.mrb[0].mxu0
        %1981 = vdwg.mxu0
        %v1982 = vmul.f32 %v1968, 0.5
        %v1983 = vmul.f32 %v1971, 0.5
        %v1984 = vmul.f32 %v1976, 0.5
        %v1985 = vmul.f32 %v1979, 0.5
        %v1986 = vmul.f32 %v1968, 0.70710677
        %v1987 = vmul.f32 %v1971, 0.70710677
        %v1988 = vmul.f32 %v1976, 0.70710677
        %v1989 = vmul.f32 %v1979, 0.70710677
        %vm1990 = vcmp.ge.f32.partialorder %v1986, 0.0
        %vm1991 = vcmp.ge.f32.partialorder %v1987, 0.0
        %vm1992 = vcmp.ge.f32.partialorder %v1988, 0.0
        %vm1993 = vcmp.ge.f32.partialorder %v1989, 0.0
        %v1994 = vsel %vm1990, 1.0, -1.0
        %v1995 = vsel %vm1991, 1.0, -1.0
        %v1996 = vsel %vm1992, 1.0, -1.0
        %v1997 = vsel %vm1993, 1.0, -1.0
        %v1998 = vand.u32 2147483647, %v1986
        %v1999 = vand.u32 2147483647, %v1987
        %v2000 = vand.u32 2147483647, %v1988
        %v2001 = vand.u32 2147483647, %v1989
        %v2002 = vmul.f32 %v1998, 0.3275911
        %v2003 = vmul.f32 %v1999, 0.3275911
        %v2004 = vmul.f32 %v2000, 0.3275911
        %v2005 = vmul.f32 %v2001, 0.3275911
        %v2006 = vadd.f32 %v2002, 1.0
        %v2007 = vadd.f32 %v2003, 1.0
        %v2008 = vadd.f32 %v2004, 1.0
        %v2009 = vadd.f32 %v2005, 1.0
        %v2010 = vrcp.pop %v2006
        %v2011 = vmul.f32 1.0, %v2010
        %v2012 = vrcp.pop %v2007
        %v2013 = vmul.f32 1.0, %v2012
        %v2014 = vrcp.pop %v2008
        %v2015 = vmul.f32 1.0, %v2014
        %v2016 = vrcp.pop %v2009
        %v2017 = vmul.f32 1.0, %v2016
        %v2018 = vmul.f32 %v2011, 1.0614054
        %v2019 = vmul.f32 %v2013, 1.0614054
        %v2020 = vmul.f32 %v2015, 1.0614054
        %v2021 = vmul.f32 %v2017, 1.0614054
        %v2022 = vadd.f32 %v2018, -1.4531521
        %v2023 = vadd.f32 %v2019, -1.4531521
        %v2024 = vadd.f32 %v2020, -1.4531521
        %v2025 = vadd.f32 %v2021, -1.4531521
        %v2026 = vmul.f32 %v2022, %v2011
        %v2027 = vmul.f32 %v2023, %v2013
        %v2028 = vmul.f32 %v2024, %v2015
        %v2029 = vmul.f32 %v2025, %v2017
        %v2030 = vadd.f32 %v2026, 1.4214138
        %v2031 = vadd.f32 %v2027, 1.4214138
        %v2032 = vadd.f32 %v2028, 1.4214138
        %v2033 = vadd.f32 %v2029, 1.4214138
        %v2034 = vmul.f32 %v2030, %v2011
        %v2035 = vmul.f32 %v2031, %v2013
        %v2036 = vmul.f32 %v2032, %v2015
        %v2037 = vmul.f32 %v2033, %v2017
        %v2038 = vadd.f32 %v2034, -0.28449672
        %v2039 = vadd.f32 %v2035, -0.28449672
        %v2040 = vadd.f32 %v2036, -0.28449672
        %v2041 = vadd.f32 %v2037, -0.28449672
        %v2042 = vmul.f32 %v2038, %v2011
        %v2043 = vmul.f32 %v2039, %v2013
        %v2044 = vmul.f32 %v2040, %v2015
        %v2045 = vmul.f32 %v2041, %v2017
        %v2046 = vadd.f32 %v2042, 0.2548296
        %v2047 = vadd.f32 %v2043, 0.2548296
        %v2048 = vadd.f32 %v2044, 0.2548296
        %v2049 = vadd.f32 %v2045, 0.2548296
        %v2050 = vmul.f32 %v2046, %v2011
        %v2051 = vmul.f32 %v2047, %v2013
        %v2052 = vmul.f32 %v2048, %v2015
        %v2053 = vmul.f32 %v2049, %v2017
        %v2054 = vsub.f32 0.0, %v1998
        %v2055 = vsub.f32 0.0, %v1999
        %v2056 = vsub.f32 0.0, %v2000
        %v2057 = vsub.f32 0.0, %v2001
        %v2058 = vmul.f32 %v2054, %v1998
        %v2059 = vmul.f32 %v2055, %v1999
        %v2060 = vmul.f32 %v2056, %v2000
        %v2061 = vmul.f32 %v2057, %v2001
        %v2062 = vmul.f32 %v2058, 1.442695
        %v2063 = vpow.pop %v2062
        %v2064 = vmul.f32 %v2059, 1.442695
        %v2065 = vpow.pop %v2064
        %v2066 = vmul.f32 %v2060, 1.442695
        %v2067 = vpow.pop %v2066
        %v2068 = vmul.f32 %v2061, 1.442695
        %v2069 = vpow.pop %v2068
        %v2070 = vmul.f32 %v2050, %v2063
        %v2071 = vmul.f32 %v2051, %v2065
        %v2072 = vmul.f32 %v2052, %v2067
        %v2073 = vmul.f32 %v2053, %v2069
        %v2074 = vsub.f32 1.0, %v2070
        %v2075 = vsub.f32 1.0, %v2071
        %v2076 = vsub.f32 1.0, %v2072
        %v2077 = vsub.f32 1.0, %v2073
        %v2078 = vmul.f32 %v1994, %v2074
        %v2079 = vmul.f32 %v1995, %v2075
        %v2080 = vmul.f32 %v1996, %v2076
        %v2081 = vmul.f32 %v1997, %v2077
        %v2082 = vadd.f32 %v2078, 1.0
        %v2083 = vadd.f32 %v2079, 1.0
        %v2084 = vadd.f32 %v2080, 1.0
        %v2085 = vadd.f32 %v2081, 1.0
        %v2086 = vmul.f32 %v1982, %v2082
        %v2087 = vmul.f32 %v1983, %v2083
        %v2088 = vmul.f32 %v1984, %v2084
        %v2089 = vmul.f32 %v1985, %v2085
        %v2090 = vpack.c.bf16 %v2087, %v2086
        %v2091 = vpack.c.bf16 %v2089, %v2088
        %s2092 = scalar_lea.vmem %s386, 96 [#allocation4]
        %v2093 = vld [vmem:[%s2092] sm:$0xf]
        %v2094 = vld [vmem:[%s2092 + $0x4] sm:$0xf]
        %v2095 = vld [vmem:[%s2092 + $0x8] sm:$0xf]
        %v2096 = vld [vmem:[%s2092 + $0xc] sm:$0xf]
        %v2097 = vlaneseq
        %v2098 = vshrl.u32 %v2097, 7
        %v2099 = vsub.s32 6, %v2098
        %v2100 = vrot.slane %v699, %v2099
        %v2105 = vunpack.c.l.b16 %v2093
        %v2106 = vunpack.c.l.b16 %v2094
        %v2107 = vunpack.c.l.b16 %v2095
        %v2108 = vunpack.c.l.b16 %v2096
        %v2109 = vpack.c.b16 %v2106, %v2105
        %v2110 = vpack.c.b16 %v2108, %v2107
        %v2114 = vsel %vm704, %v2090, 0
        %v2117 = vsel %vm704, %v2091, 0
        %2119 = vmatprep.subr.bf16.mxu0 0
        %2120 = vmatpush1.bf16.msra.mxu0 %v2109
        %2121 = vmatprep.subr.bf16.mxu0 0
        %2122 = vmatpush1.bf16.msra.mxu0 %v2110
        %2123 = vmatprep.subr.bf16.mxu0 0
        %2124 = vmatpush1.bf16.msra.mxu0 0
        %2125 = vmatprep.subr.bf16.mxu0 0
        %2126 = vmatpush1.bf16.msra.mxu0 0
        %2127 = vmatprep.subr.bf16.mxu0 0
        %2128 = vmatpush1.bf16.msra.mxu0 0
        %2129 = vmatprep.subr.bf16.mxu0 0
        %2130 = vmatpush1.bf16.msra.mxu0 0
        %2131 = vmatprep.subr.bf16.mxu0 0
        %2132 = vmatpush1.bf16.msra.mxu0 0
        %2133 = vmatprep.subr.bf16.mxu0 0
        %2134 = vmatpush1.bf16.msra.mxu0 0
        %2135 = vmatprep.subr.bf16.mxu0 0
        %2136 = vmatpush1.bf16.msra.mxu0 0
        %2137 = vmatprep.subr.bf16.mxu0 0
        %2138 = vmatpush1.bf16.msra.mxu0 0
        %2139 = vmatprep.subr.bf16.mxu0 0
        %2140 = vmatpush1.bf16.msra.mxu0 0
        %2141 = vmatprep.subr.bf16.mxu0 0
        %2142 = vmatpush1.bf16.msra.mxu0 0
        %2143 = vmatprep.subr.bf16.mxu0 0
        %2144 = vmatpush1.bf16.msra.mxu0 0
        %2145 = vmatprep.subr.bf16.mxu0 0
        %2146 = vmatpush1.bf16.msra.mxu0 0
        %2147 = vmatprep.subr.bf16.mxu0 0
        %2148 = vmatpush1.bf16.msra.mxu0 0
        %2149 = vmatprep.subr.bf16.mxu0 0
        %2150 = vmatpush1.bf16.msra.mxu0 0
        %2151 = vmatprep.mubr.bf16.mxu0 0
        %2152 = vmatmul.mubr.bf16.gmra.mrb[0].mxu0 %v2114
        %v2153 = vpop.f32.mrb[0].mxu0
        %v2154 = vadd.f32 %v2100, %v2153
        %v2155 = vpop.f32.mrb[0].mxu0
        %v2156 = vpop.f32.mrb[0].mxu0
        %v2157 = vadd.f32 %v2100, %v2156
        %v2158 = vpop.f32.mrb[0].mxu0
        %2159 = vmatprep.mubr.bf16.mxu0 0
        %2160 = vmatmul.mubr.bf16.gmra.mrb[0].mxu0 %v2117
        %v2161 = vpop.f32.mrb[0].mxu0
        %v2162 = vadd.f32 %v2100, %v2161
        %v2163 = vpop.f32.mrb[0].mxu0
        %v2164 = vpop.f32.mrb[0].mxu0
        %v2165 = vadd.f32 %v2100, %v2164
        %v2166 = vpop.f32.mrb[0].mxu0
        %2167 = vdwg.mxu0
        %v2168 = vadd.f32 %v2154, %v694
        %v2169 = vadd.f32 %v2157, %v695
        %v2170 = vadd.f32 %v2162, %v696
        %v2171 = vadd.f32 %v2165, %v697
        %v2172 = vsel %vm704, %v2168, 0.0
        %2173 = vadd.xlane.f32.xlu0 %v2172
        %v2174 = vpop.xlane.xlu0 %2173
        %v2175 = vsel %vm704, %v2169, 0.0
        %2176 = vadd.xlane.f32.xlu0 %v2175
        %v2177 = vpop.xlane.xlu0 %2176
        %v2178 = vsel %vm704, %v2170, 0.0
        %2179 = vadd.xlane.f32.xlu0 %v2178
        %v2180 = vpop.xlane.xlu0 %2179
        %v2181 = vsel %vm704, %v2171, 0.0
        %2182 = vadd.xlane.f32.xlu0 %v2181
        %v2183 = vpop.xlane.xlu0 %2182
        %v2184 = vmul.f32 %v2174, %v753
        %v2185 = vmul.f32 %v2177, %v753
        %v2186 = vmul.f32 %v2180, %v753
        %v2187 = vmul.f32 %v2183, %v753
        %v2188 = vsub.f32 %v2168, %v2184
        %v2189 = vsub.f32 %v2169, %v2185
        %v2190 = vsub.f32 %v2170, %v2186
        %v2191 = vsub.f32 %v2171, %v2187
        %v2192 = vmul.f32 %v2188, %v2188
        %v2193 = vmul.f32 %v2189, %v2189
        %v2194 = vmul.f32 %v2190, %v2190
        %v2195 = vmul.f32 %v2191, %v2191
        %v2196 = vsel %vm704, %v2192, 0.0
        %2197 = vadd.xlane.f32.xlu0 %v2196
        %v2198 = vpop.xlane.xlu0 %2197
        %v2199 = vsel %vm704, %v2193, 0.0
        %2200 = vadd.xlane.f32.xlu0 %v2199
        %v2201 = vpop.xlane.xlu0 %2200
        %v2202 = vsel %vm704, %v2194, 0.0
        %2203 = vadd.xlane.f32.xlu0 %v2202
        %v2204 = vpop.xlane.xlu0 %2203
        %v2205 = vsel %vm704, %v2195, 0.0
        %2206 = vadd.xlane.f32.xlu0 %v2205
        %v2207 = vpop.xlane.xlu0 %2206
        %v2208 = vmul.f32 %v2198, %v753
        %v2209 = vmul.f32 %v2201, %v753
        %v2210 = vmul.f32 %v2204, %v753
        %v2211 = vmul.f32 %v2207, %v753
        %v2212 = vadd.f32 %v2208, 1e-05
        %v2213 = vadd.f32 %v2209, 1e-05
        %v2214 = vadd.f32 %v2210, 1e-05
        %v2215 = vadd.f32 %v2211, 1e-05
        %v2216 = vrsqrt.pop %v2212
        %v2217 = vrsqrt.pop %v2213
        %v2218 = vrsqrt.pop %v2214
        %v2219 = vrsqrt.pop %v2215
        %v2220 = vmul.f32 %v2188, %v2216
        %v2221 = vmul.f32 %v2189, %v2217
        %v2222 = vmul.f32 %v2190, %v2218
        %v2223 = vmul.f32 %v2191, %v2219
        %v2224 = vlaneseq
        %v2225 = vshrl.u32 %v2224, 7
        %v2226 = vsub.s32 0, %v2225
        %v2227 = vrot.slane %v700, %v2226
        %v2228 = vmul.f32 %v2220, %v2227
        %v2229 = vmul.f32 %v2221, %v2227
        %v2230 = vmul.f32 %v2222, %v2227
        %v2231 = vmul.f32 %v2223, %v2227
        %v2232 = vlaneseq
        %v2233 = vshrl.u32 %v2232, 7
        %v2234 = vsub.s32 1, %v2233
        %v2235 = vrot.slane %v700, %v2234
        %v2236 = vadd.f32 %v2228, %v2235
        %v2237 = vadd.f32 %v2229, %v2235
        %v2238 = vadd.f32 %v2230, %v2235
        %v2239 = vadd.f32 %v2231, %v2235
        %v2240 = vlaneseq
        %v2241 = vshrl.u32 %v2240, 7
        %v2242 = vsub.s32 2, %v2241
        %v2243 = vrot.slane %v700, %v2242
        %v2244 = vmul.f32 %v2220, %v2243
        %v2245 = vmul.f32 %v2221, %v2243
        %v2246 = vmul.f32 %v2222, %v2243
        %v2247 = vmul.f32 %v2223, %v2243
        %v2248 = vlaneseq
        %v2249 = vshrl.u32 %v2248, 7
        %v2250 = vsub.s32 3, %v2249
        %v2251 = vrot.slane %v700, %v2250
        %v2252 = vadd.f32 %v2244, %v2251
        %v2253 = vadd.f32 %v2245, %v2251
        %v2254 = vadd.f32 %v2246, %v2251
        %v2255 = vadd.f32 %v2247, %v2251
        %v2256 = vpack.c.bf16 %v2253, %v2252
        %v2257 = vpack.c.bf16 %v2255, %v2254
        %s2258 = scalar_lea.vmem %s386, 112 [#allocation4]
        %v2259 = vld [vmem:[%s2258] sm:$0xf]
        %v2260 = vld [vmem:[%s2258 + $0x4] sm:$0xf]
        %v2261 = vld [vmem:[%s2258 + $0x8] sm:$0xf]
        %v2262 = vld [vmem:[%s2258 + $0xc] sm:$0xf]
        %v2263 = vlaneseq
        %v2264 = vshrl.u32 %v2263, 7
        %v2265 = vsub.s32 4, %v2264
        %v2266 = vrot.slane %v700, %v2265
        %v2271 = vunpack.c.l.b16 %v2259
        %v2272 = vunpack.c.l.b16 %v2260
        %v2273 = vunpack.c.l.b16 %v2261
        %v2274 = vunpack.c.l.b16 %v2262
        %v2275 = vpack.c.b16 %v2272, %v2271
        %v2276 = vpack.c.b16 %v2274, %v2273
        %v2280 = vsel %vm704, %v2256, 0
        %v2283 = vsel %vm704, %v2257, 0
        %2285 = vmatprep.subr.bf16.mxu0 0
        %2286 = vmatpush1.bf16.msra.mxu0 %v2275
        %2287 = vmatprep.subr.bf16.mxu0 0
        %2288 = vmatpush1.bf16.msra.mxu0 %v2276
        %2289 = vmatprep.subr.bf16.mxu0 0
        %2290 = vmatpush1.bf16.msra.mxu0 0
        %2291 = vmatprep.subr.bf16.mxu0 0
        %2292 = vmatpush1.bf16.msra.mxu0 0
        %2293 = vmatprep.subr.bf16.mxu0 0
        %2294 = vmatpush1.bf16.msra.mxu0 0
        %2295 = vmatprep.subr.bf16.mxu0 0
        %2296 = vmatpush1.bf16.msra.mxu0 0
        %2297 = vmatprep.subr.bf16.mxu0 0
        %2298 = vmatpush1.bf16.msra.mxu0 0
        %2299 = vmatprep.subr.bf16.mxu0 0
        %2300 = vmatpush1.bf16.msra.mxu0 0
        %2301 = vmatprep.subr.bf16.mxu0 0
        %2302 = vmatpush1.bf16.msra.mxu0 0
        %2303 = vmatprep.subr.bf16.mxu0 0
        %2304 = vmatpush1.bf16.msra.mxu0 0
        %2305 = vmatprep.subr.bf16.mxu0 0
        %2306 = vmatpush1.bf16.msra.mxu0 0
        %2307 = vmatprep.subr.bf16.mxu0 0
        %2308 = vmatpush1.bf16.msra.mxu0 0
        %2309 = vmatprep.subr.bf16.mxu0 0
        %2310 = vmatpush1.bf16.msra.mxu0 0
        %2311 = vmatprep.subr.bf16.mxu0 0
        %2312 = vmatpush1.bf16.msra.mxu0 0
        %2313 = vmatprep.subr.bf16.mxu0 0
        %2314 = vmatpush1.bf16.msra.mxu0 0
        %2315 = vmatprep.subr.bf16.mxu0 0
        %2316 = vmatpush1.bf16.msra.mxu0 0
        %2317 = vmatprep.mubr.bf16.mxu0 0
        %2318 = vmatmul.mubr.bf16.gmra.mrb[0].mxu0 %v2280
        %v2319 = vpop.f32.mrb[0].mxu0
        %v2320 = vadd.f32 %v2266, %v2319
        %v2321 = vpop.f32.mrb[0].mxu0
        %v2322 = vpop.f32.mrb[0].mxu0
        %v2323 = vadd.f32 %v2266, %v2322
        %v2324 = vpop.f32.mrb[0].mxu0
        %2325 = vmatprep.mubr.bf16.mxu0 0
        %2326 = vmatmul.mubr.bf16.gmra.mrb[0].mxu0 %v2283
        %v2327 = vpop.f32.mrb[0].mxu0
        %v2328 = vadd.f32 %v2266, %v2327
        %v2329 = vpop.f32.mrb[0].mxu0
        %v2330 = vpop.f32.mrb[0].mxu0
        %v2331 = vadd.f32 %v2266, %v2330
        %v2332 = vpop.f32.mrb[0].mxu0
        %2333 = vdwg.mxu0
        %v2334 = vpack.c.bf16 %v2237, %v2236
        %v2335 = vpack.c.bf16 %v2239, %v2238
        %s2336 = scalar_lea.vmem %s386, 128 [#allocation4]
        %v2337 = vld [vmem:[%s2336] sm:$0xf]
        %v2338 = vld [vmem:[%s2336 + $0x4] sm:$0xf]
        %v2339 = vld [vmem:[%s2336 + $0x8] sm:$0xf]
        %v2340 = vld [vmem:[%s2336 + $0xc] sm:$0xf]
        %v2341 = vlaneseq
        %v2342 = vshrl.u32 %v2341, 7
        %v2343 = vsub.s32 5, %v2342
        %v2344 = vrot.slane %v700, %v2343
        %v2349 = vunpack.c.l.b16 %v2337
        %v2350 = vunpack.c.l.b16 %v2338
        %v2351 = vunpack.c.l.b16 %v2339
        %v2352 = vunpack.c.l.b16 %v2340
        %v2353 = vpack.c.b16 %v2350, %v2349
        %v2354 = vpack.c.b16 %v2352, %v2351
        %v2358 = vsel %vm704, %v2334, 0
        %v2361 = vsel %vm704, %v2335, 0
        %2363 = vmatprep.subr.bf16.mxu0 0
        %2364 = vmatpush1.bf16.msra.mxu0 %v2353
        %2365 = vmatprep.subr.bf16.mxu0 0
        %2366 = vmatpush1.bf16.msra.mxu0 %v2354
        %2367 = vmatprep.subr.bf16.mxu0 0
        %2368 = vmatpush1.bf16.msra.mxu0 0
        %2369 = vmatprep.subr.bf16.mxu0 0
        %2370 = vmatpush1.bf16.msra.mxu0 0
        %2371 = vmatprep.subr.bf16.mxu0 0
        %2372 = vmatpush1.bf16.msra.mxu0 0
        %2373 = vmatprep.subr.bf16.mxu0 0
        %2374 = vmatpush1.bf16.msra.mxu0 0
        %2375 = vmatprep.subr.bf16.mxu0 0
        %2376 = vmatpush1.bf16.msra.mxu0 0
        %2377 = vmatprep.subr.bf16.mxu0 0
        %2378 = vmatpush1.bf16.msra.mxu0 0
        %2379 = vmatprep.subr.bf16.mxu0 0
        %2380 = vmatpush1.bf16.msra.mxu0 0
        %2381 = vmatprep.subr.bf16.mxu0 0
        %2382 = vmatpush1.bf16.msra.mxu0 0
        %2383 = vmatprep.subr.bf16.mxu0 0
        %2384 = vmatpush1.bf16.msra.mxu0 0
        %2385 = vmatprep.subr.bf16.mxu0 0
        %2386 = vmatpush1.bf16.msra.mxu0 0
        %2387 = vmatprep.subr.bf16.mxu0 0
        %2388 = vmatpush1.bf16.msra.mxu0 0
        %2389 = vmatprep.subr.bf16.mxu0 0
        %2390 = vmatpush1.bf16.msra.mxu0 0
        %2391 = vmatprep.subr.bf16.mxu0 0
        %2392 = vmatpush1.bf16.msra.mxu0 0
        %2393 = vmatprep.subr.bf16.mxu0 0
        %2394 = vmatpush1.bf16.msra.mxu0 0
        %2395 = vmatprep.mubr.bf16.mxu0 0
        %2396 = vmatmul.mubr.bf16.gmra.mrb[0].mxu0 %v2358
        %v2397 = vpop.f32.mrb[0].mxu0
        %v2398 = vadd.f32 %v2344, %v2397
        %v2399 = vpop.f32.mrb[0].mxu0
        %v2400 = vpop.f32.mrb[0].mxu0
        %v2401 = vadd.f32 %v2344, %v2400
        %v2402 = vpop.f32.mrb[0].mxu0
        %2403 = vmatprep.mubr.bf16.mxu0 0
        %2404 = vmatmul.mubr.bf16.gmra.mrb[0].mxu0 %v2361
        %v2405 = vpop.f32.mrb[0].mxu0
        %v2406 = vadd.f32 %v2344, %v2405
        %v2407 = vpop.f32.mrb[0].mxu0
        %v2408 = vpop.f32.mrb[0].mxu0
        %v2409 = vadd.f32 %v2344, %v2408
        %v2410 = vpop.f32.mrb[0].mxu0
        %2411 = vdwg.mxu0
        %s2412 = scalar_lea.vmem %s386, 144 [#allocation4]
        %v2413 = vld [vmem:[%s2412] sm:$0xf]
        %v2414 = vld [vmem:[%s2412 + $0x4] sm:$0xf]
        %v2415 = vld [vmem:[%s2412 + $0x8] sm:$0xf]
        %v2416 = vld [vmem:[%s2412 + $0xc] sm:$0xf]
        %v2417 = vlaneseq
        %v2418 = vshrl.u32 %v2417, 7
        %v2419 = vsub.s32 6, %v2418
        %v2420 = vrot.slane %v700, %v2419
        %v2425 = vunpack.c.l.b16 %v2413
        %v2426 = vunpack.c.l.b16 %v2414
        %v2427 = vunpack.c.l.b16 %v2415
        %v2428 = vunpack.c.l.b16 %v2416
        %v2429 = vpack.c.b16 %v2426, %v2425
        %v2430 = vpack.c.b16 %v2428, %v2427
        %2433 = vmatprep.subr.bf16.mxu0 0
        %2434 = vmatpush1.bf16.msra.mxu0 %v2429
        %2435 = vmatprep.subr.bf16.mxu0 0
        %2436 = vmatpush1.bf16.msra.mxu0 %v2430
        %2437 = vmatprep.subr.bf16.mxu0 0
        %2438 = vmatpush1.bf16.msra.mxu0 0
        %2439 = vmatprep.subr.bf16.mxu0 0
        %2440 = vmatpush1.bf16.msra.mxu0 0
        %2441 = vmatprep.subr.bf16.mxu0 0
        %2442 = vmatpush1.bf16.msra.mxu0 0
        %2443 = vmatprep.subr.bf16.mxu0 0
        %2444 = vmatpush1.bf16.msra.mxu0 0
        %2445 = vmatprep.subr.bf16.mxu0 0
        %2446 = vmatpush1.bf16.msra.mxu0 0
        %2447 = vmatprep.subr.bf16.mxu0 0
        %2448 = vmatpush1.bf16.msra.mxu0 0
        %2449 = vmatprep.subr.bf16.mxu0 0
        %2450 = vmatpush1.bf16.msra.mxu0 0
        %2451 = vmatprep.subr.bf16.mxu0 0
        %2452 = vmatpush1.bf16.msra.mxu0 0
        %2453 = vmatprep.subr.bf16.mxu0 0
        %2454 = vmatpush1.bf16.msra.mxu0 0
        %2455 = vmatprep.subr.bf16.mxu0 0
        %2456 = vmatpush1.bf16.msra.mxu0 0
        %2457 = vmatprep.subr.bf16.mxu0 0
        %2458 = vmatpush1.bf16.msra.mxu0 0
        %2459 = vmatprep.subr.bf16.mxu0 0
        %2460 = vmatpush1.bf16.msra.mxu0 0
        %2461 = vmatprep.subr.bf16.mxu0 0
        %2462 = vmatpush1.bf16.msra.mxu0 0
        %2463 = vmatprep.subr.bf16.mxu0 0
        %2464 = vmatpush1.bf16.msra.mxu0 0
        %2465 = vmatprep.mubr.bf16.mxu0 0
        %2466 = vmatmul.mubr.bf16.gmra.mrb[0].mxu0 %v2358
        %v2467 = vpop.f32.mrb[0].mxu0
        %v2468 = vadd.f32 %v2420, %v2467
        %v2469 = vpop.f32.mrb[0].mxu0
        %v2470 = vpop.f32.mrb[0].mxu0
        %v2471 = vadd.f32 %v2420, %v2470
        %v2472 = vpop.f32.mrb[0].mxu0
        %2473 = vmatprep.mubr.bf16.mxu0 0
        %2474 = vmatmul.mubr.bf16.gmra.mrb[0].mxu0 %v2361
        %v2475 = vpop.f32.mrb[0].mxu0
        %v2476 = vadd.f32 %v2420, %v2475
        %v2477 = vpop.f32.mrb[0].mxu0
        %v2478 = vpop.f32.mrb[0].mxu0
        %v2479 = vadd.f32 %v2420, %v2478
        %v2480 = vpop.f32.mrb[0].mxu0
        %2481 = vdwg.mxu0
        %v2482 = vpack.c.bf16 %v2323, %v2320
        %v2483 = vpack.c.bf16 %v2331, %v2328
        %v2484 = vpack.c.bf16 %v2401, %v2398
        %v2485 = vpack.c.bf16 %v2409, %v2406
        %vm2486 = vcmask 64512
        %v2488 = vsel %vm2486, %v2482, 0
        %v2491 = vsel %vm2486, %v2484, 0
        %2493 = vmatprep.subr.bf16.mxu0 0
        %2494 = vmatpush1.bf16.xpose.msra.mxu0 %v2491
        %2495 = vmatprep.subr.bf16.mxu0 0
        %2496 = vmatpush1.bf16.xpose.msra.mxu0 0
        %2497 = vmatprep.subr.bf16.mxu0 0
        %2498 = vmatpush1.bf16.xpose.msra.mxu0 0
        %2499 = vmatprep.subr.bf16.mxu0 0
        %2500 = vmatpush1.bf16.xpose.msra.mxu0 0
        %2501 = vmatprep.subr.bf16.mxu0 0
        %2502 = vmatpush1.bf16.xpose.msra.mxu0 0
        %2503 = vmatprep.subr.bf16.mxu0 0
        %2504 = vmatpush1.bf16.xpose.msra.mxu0 0
        %2505 = vmatprep.subr.bf16.mxu0 0
        %2506 = vmatpush1.bf16.xpose.msra.mxu0 0
        %2507 = vmatprep.subr.bf16.mxu0 0
        %2508 = vmatpush1.bf16.xpose.msra.mxu0 0
        %2509 = vmatprep.subr.bf16.mxu0 0
        %2510 = vmatpush1.bf16.xpose.msra.mxu0 0
        %2511 = vmatprep.subr.bf16.mxu0 0
        %2512 = vmatpush1.bf16.xpose.msra.mxu0 0
        %2513 = vmatprep.subr.bf16.mxu0 0
        %2514 = vmatpush1.bf16.xpose.msra.mxu0 0
        %2515 = vmatprep.subr.bf16.mxu0 0
        %2516 = vmatpush1.bf16.xpose.msra.mxu0 0
        %2517 = vmatprep.subr.bf16.mxu0 0
        %2518 = vmatpush1.bf16.xpose.msra.mxu0 0
        %2519 = vmatprep.subr.bf16.mxu0 0
        %2520 = vmatpush1.bf16.xpose.msra.mxu0 0
        %2521 = vmatprep.subr.bf16.mxu0 0
        %2522 = vmatpush1.bf16.xpose.msra.mxu0 0
        %2523 = vmatprep.subr.bf16.mxu0 0
        %2524 = vmatpush1.bf16.xpose.msra.mxu0 0
        %2525 = vmatprep.mubr.bf16.mxu0 0
        %2526 = vmatmul.mubr.bf16.gmra.mrb[0].mxu0 %v2488
        %v2527 = vpop.f32.mrb[0].mxu0
        %v2528 = vadd.f32 0.0, %v2527
        %v2529 = vpop.f32.mrb[0].mxu0
        %v2530 = vpop.f32.mrb[0].mxu0
        %v2531 = vadd.f32 0.0, %v2530
        %v2532 = vpop.f32.mrb[0].mxu0
        %2533 = vdwg.mxu0
        %v2535 = vsel %vm2486, %v2483, 0
        %v2538 = vsel %vm2486, %v2485, 0
        %2540 = vmatprep.subr.bf16.mxu0 0
        %2541 = vmatpush1.bf16.xpose.msra.mxu0 %v2538
        %2542 = vmatprep.subr.bf16.mxu0 0
        %2543 = vmatpush1.bf16.xpose.msra.mxu0 0
        %2544 = vmatprep.subr.bf16.mxu0 0
        %2545 = vmatpush1.bf16.xpose.msra.mxu0 0
        %2546 = vmatprep.subr.bf16.mxu0 0
        %2547 = vmatpush1.bf16.xpose.msra.mxu0 0
        %2548 = vmatprep.subr.bf16.mxu0 0
        %2549 = vmatpush1.bf16.xpose.msra.mxu0 0
        %2550 = vmatprep.subr.bf16.mxu0 0
        %2551 = vmatpush1.bf16.xpose.msra.mxu0 0
        %2552 = vmatprep.subr.bf16.mxu0 0
        %2553 = vmatpush1.bf16.xpose.msra.mxu0 0
        %2554 = vmatprep.subr.bf16.mxu0 0
        %2555 = vmatpush1.bf16.xpose.msra.mxu0 0
        %2556 = vmatprep.subr.bf16.mxu0 0
        %2557 = vmatpush1.bf16.xpose.msra.mxu0 0
        %2558 = vmatprep.subr.bf16.mxu0 0
        %2559 = vmatpush1.bf16.xpose.msra.mxu0 0
        %2560 = vmatprep.subr.bf16.mxu0 0
        %2561 = vmatpush1.bf16.xpose.msra.mxu0 0
        %2562 = vmatprep.subr.bf16.mxu0 0
        %2563 = vmatpush1.bf16.xpose.msra.mxu0 0
        %2564 = vmatprep.subr.bf16.mxu0 0
        %2565 = vmatpush1.bf16.xpose.msra.mxu0 0
        %2566 = vmatprep.subr.bf16.mxu0 0
        %2567 = vmatpush1.bf16.xpose.msra.mxu0 0
        %2568 = vmatprep.subr.bf16.mxu0 0
        %2569 = vmatpush1.bf16.xpose.msra.mxu0 0
        %2570 = vmatprep.subr.bf16.mxu0 0
        %2571 = vmatpush1.bf16.xpose.msra.mxu0 0
        %2572 = vmatprep.mubr.bf16.mxu0 0
        %2573 = vmatmul.mubr.bf16.gmra.mrb[0].mxu0 %v2535
        %v2574 = vpop.f32.mrb[0].mxu0
        %v2575 = vadd.f32 0.0, %v2574
        %v2576 = vpop.f32.mrb[0].mxu0
        %v2577 = vpop.f32.mrb[0].mxu0
        %v2578 = vadd.f32 0.0, %v2577
        %v2579 = vpop.f32.mrb[0].mxu0
        %2580 = vdwg.mxu0
        %v2581 = vlaneseq
        %v2582 = vshrl.u32 %v2581, 7
        %v2583 = vsub.s32 7, %v2582
        %v2584 = vrot.slane %v700, %v2583
        %v2585 = vmul.f32 %v2320, %v2584
        %v2586 = vmul.f32 %v2323, %v2584
        %v2587 = vmul.f32 %v2328, %v2584
        %v2588 = vmul.f32 %v2331, %v2584
        %v2589 = vsel %vm2486, %v2585, 0.0
        %2590 = vadd.xlane.f32.xlu0 %v2589
        %v2591 = vpop.xlane.xlu0 %2590
        %v2592 = vsel %vm2486, %v2586, 0.0
        %2593 = vadd.xlane.f32.xlu0 %v2592
        %v2594 = vpop.xlane.xlu0 %2593
        %v2595 = vsel %vm2486, %v2587, 0.0
        %2596 = vadd.xlane.f32.xlu0 %v2595
        %v2597 = vpop.xlane.xlu0 %2596
        %v2598 = vsel %vm2486, %v2588, 0.0
        %2599 = vadd.xlane.f32.xlu0 %v2598
        %v2600 = vpop.xlane.xlu0 %2599
        %vm2601 = vcmask 130048
        %v2602 = vsel %vm2601, %v2528, -inf
        %2603 = vmax.xlane.f32.xlu0 %v2602
        %v2604 = vpop.xlane.xlu0 %2603
        %v2605 = vsel %vm2601, %v2531, -inf
        %2606 = vmax.xlane.f32.xlu0 %v2605
        %v2607 = vpop.xlane.xlu0 %2606
        %v2608 = vsel %vm2601, %v2575, -inf
        %2609 = vmax.xlane.f32.xlu0 %v2608
        %v2610 = vpop.xlane.xlu0 %2609
        %v2611 = vsel %vm2601, %v2578, -inf
        %2612 = vmax.xlane.f32.xlu0 %v2611
        %v2613 = vpop.xlane.xlu0 %2612
        %v2614 = vmax.f32 %v2604, %v2591
        %v2615 = vmax.f32 %v2607, %v2594
        %v2616 = vmax.f32 %v2610, %v2597
        %v2617 = vmax.f32 %v2613, %v2600
        %v2618 = vsub.f32 %v2528, %v2614
        %v2619 = vsub.f32 %v2531, %v2615
        %v2620 = vsub.f32 %v2575, %v2616
        %v2621 = vsub.f32 %v2578, %v2617
        %v2622 = vmul.f32 %v2618, 1.442695
        %v2623 = vpow.pop %v2622
        %v2624 = vmul.f32 %v2619, 1.442695
        %v2625 = vpow.pop %v2624
        %v2626 = vmul.f32 %v2620, 1.442695
        %v2627 = vpow.pop %v2626
        %v2628 = vmul.f32 %v2621, 1.442695
        %v2629 = vpow.pop %v2628
        %v2630 = vsub.f32 %v2591, %v2614
        %v2631 = vsub.f32 %v2594, %v2615
        %v2632 = vsub.f32 %v2597, %v2616
        %v2633 = vsub.f32 %v2600, %v2617
        %v2634 = vmul.f32 %v2630, 1.442695
        %v2635 = vpow.pop %v2634
        %v2636 = vmul.f32 %v2631, 1.442695
        %v2637 = vpow.pop %v2636
        %v2638 = vmul.f32 %v2632, 1.442695
        %v2639 = vpow.pop %v2638
        %v2640 = vmul.f32 %v2633, 1.442695
        %v2641 = vpow.pop %v2640
        %v2642 = vsel %vm2601, %v2623, 0.0
        %2643 = vadd.xlane.f32.xlu0 %v2642
        %v2644 = vpop.xlane.xlu0 %2643
        %v2645 = vsel %vm2601, %v2625, 0.0
        %2646 = vadd.xlane.f32.xlu0 %v2645
        %v2647 = vpop.xlane.xlu0 %2646
        %v2648 = vsel %vm2601, %v2627, 0.0
        %2649 = vadd.xlane.f32.xlu0 %v2648
        %v2650 = vpop.xlane.xlu0 %2649
        %v2651 = vsel %vm2601, %v2629, 0.0
        %2652 = vadd.xlane.f32.xlu0 %v2651
        %v2653 = vpop.xlane.xlu0 %2652
        %v2654 = vadd.f32 %v2644, %v2635
        %v2655 = vadd.f32 %v2647, %v2637
        %v2656 = vadd.f32 %v2650, %v2639
        %v2657 = vadd.f32 %v2653, %v2641
        %v2658 = vpack.c.bf16 %v2625, %v2623
        %v2659 = vpack.c.bf16 %v2629, %v2627
        %v2660 = vpack.c.bf16 %v2471, %v2468
        %v2661 = vpack.c.bf16 %v2479, %v2476
        %v2662 = vlaneseq
        %v2663 = vshrl.u32 %v2662, 7
        %v2664 = vsub.s32 0, %v2663
        %v2665 = vrot.slane %v701, %v2664
        %v2666 = vmul.f32 %v2635, %v2665
        %v2667 = vmul.f32 %v2637, %v2665
        %v2668 = vmul.f32 %v2639, %v2665
        %v2669 = vmul.f32 %v2641, %v2665
        %v2671 = vsel %vm2601, %v2658, 0
        %2673 = vmatprep.subr.bf16.mxu0 0
        %2674 = vmatpush1.bf16.msra.mxu0 %v2660
        %2675 = vmatprep.subr.bf16.mxu0 0
        %2676 = vmatpush1.bf16.msra.mxu0 0
        %2677 = vmatprep.subr.bf16.mxu0 0
        %2678 = vmatpush1.bf16.msra.mxu0 0
        %2679 = vmatprep.subr.bf16.mxu0 0
        %2680 = vmatpush1.bf16.msra.mxu0 0
        %2681 = vmatprep.subr.bf16.mxu0 0
        %2682 = vmatpush1.bf16.msra.mxu0 0
        %2683 = vmatprep.subr.bf16.mxu0 0
        %2684 = vmatpush1.bf16.msra.mxu0 0
        %2685 = vmatprep.subr.bf16.mxu0 0
        %2686 = vmatpush1.bf16.msra.mxu0 0
        %2687 = vmatprep.subr.bf16.mxu0 0
        %2688 = vmatpush1.bf16.msra.mxu0 0
        %2689 = vmatprep.subr.bf16.mxu0 0
        %2690 = vmatpush1.bf16.msra.mxu0 0
        %2691 = vmatprep.subr.bf16.mxu0 0
        %2692 = vmatpush1.bf16.msra.mxu0 0
        %2693 = vmatprep.subr.bf16.mxu0 0
        %2694 = vmatpush1.bf16.msra.mxu0 0
        %2695 = vmatprep.subr.bf16.mxu0 0
        %2696 = vmatpush1.bf16.msra.mxu0 0
        %2697 = vmatprep.subr.bf16.mxu0 0
        %2698 = vmatpush1.bf16.msra.mxu0 0
        %2699 = vmatprep.subr.bf16.mxu0 0
        %2700 = vmatpush1.bf16.msra.mxu0 0
        %2701 = vmatprep.subr.bf16.mxu0 0
        %2702 = vmatpush1.bf16.msra.mxu0 0
        %2703 = vmatprep.subr.bf16.mxu0 0
        %2704 = vmatpush1.bf16.msra.mxu0 0
        %2705 = vmatprep.mubr.bf16.mxu0 0
        %2706 = vmatmul.mubr.bf16.gmra.mrb[0].mxu0 %v2671
        %v2707 = vpop.f32.mrb[0].mxu0
        %v2708 = vadd.f32 %v2666, %v2707
        %v2709 = vpop.f32.mrb[0].mxu0
        %v2710 = vpop.f32.mrb[0].mxu0
        %v2711 = vadd.f32 %v2667, %v2710
        %v2712 = vpop.f32.mrb[0].mxu0
        %2713 = vdwg.mxu0
        %v2715 = vsel %vm2601, %v2659, 0
        %2717 = vmatprep.subr.bf16.mxu0 0
        %2718 = vmatpush1.bf16.msra.mxu0 %v2661
        %2719 = vmatprep.subr.bf16.mxu0 0
        %2720 = vmatpush1.bf16.msra.mxu0 0
        %2721 = vmatprep.subr.bf16.mxu0 0
        %2722 = vmatpush1.bf16.msra.mxu0 0
        %2723 = vmatprep.subr.bf16.mxu0 0
        %2724 = vmatpush1.bf16.msra.mxu0 0
        %2725 = vmatprep.subr.bf16.mxu0 0
        %2726 = vmatpush1.bf16.msra.mxu0 0
        %2727 = vmatprep.subr.bf16.mxu0 0
        %2728 = vmatpush1.bf16.msra.mxu0 0
        %2729 = vmatprep.subr.bf16.mxu0 0
        %2730 = vmatpush1.bf16.msra.mxu0 0
        %2731 = vmatprep.subr.bf16.mxu0 0
        %2732 = vmatpush1.bf16.msra.mxu0 0
        %2733 = vmatprep.subr.bf16.mxu0 0
        %2734 = vmatpush1.bf16.msra.mxu0 0
        %2735 = vmatprep.subr.bf16.mxu0 0
        %2736 = vmatpush1.bf16.msra.mxu0 0
        %2737 = vmatprep.subr.bf16.mxu0 0
        %2738 = vmatpush1.bf16.msra.mxu0 0
        %2739 = vmatprep.subr.bf16.mxu0 0
        %2740 = vmatpush1.bf16.msra.mxu0 0
        %2741 = vmatprep.subr.bf16.mxu0 0
        %2742 = vmatpush1.bf16.msra.mxu0 0
        %2743 = vmatprep.subr.bf16.mxu0 0
        %2744 = vmatpush1.bf16.msra.mxu0 0
        %2745 = vmatprep.subr.bf16.mxu0 0
        %2746 = vmatpush1.bf16.msra.mxu0 0
        %2747 = vmatprep.subr.bf16.mxu0 0
        %2748 = vmatpush1.bf16.msra.mxu0 0
        %2749 = vmatprep.mubr.bf16.mxu0 0
        %2750 = vmatmul.mubr.bf16.gmra.mrb[0].mxu0 %v2715
        %v2751 = vpop.f32.mrb[0].mxu0
        %v2752 = vadd.f32 %v2668, %v2751
        %v2753 = vpop.f32.mrb[0].mxu0
        %v2754 = vpop.f32.mrb[0].mxu0
        %v2755 = vadd.f32 %v2669, %v2754
        %v2756 = vpop.f32.mrb[0].mxu0
        %2757 = vdwg.mxu0
        %v2758 = vrcp.pop %v2654
        %v2759 = vmul.f32 %v2708, %v2758
        %v2760 = vrcp.pop %v2655
        %v2761 = vmul.f32 %v2711, %v2760
        %v2762 = vrcp.pop %v2656
        %v2763 = vmul.f32 %v2752, %v2762
        %v2764 = vrcp.pop %v2657
        %v2765 = vmul.f32 %v2755, %v2764
        %2767 = vrot.lane.b32.xlu0 %v2482, 120
        %v2768 = vpop.permute.xlu0 %2767
        %2770 = vrot.lane.b32.xlu0 %v2484, 120
        %v2771 = vpop.permute.xlu0 %2770
        %v2773 = vsel %vm2486, %v2768, 0
        %v2776 = vsel %vm2486, %v2771, 0
        %2778 = vmatprep.subr.bf16.mxu0 0
        %2779 = vmatpush1.bf16.xpose.msra.mxu0 %v2776
        %2780 = vmatprep.subr.bf16.mxu0 0
        %2781 = vmatpush1.bf16.xpose.msra.mxu0 0
        %2782 = vmatprep.subr.bf16.mxu0 0
        %2783 = vmatpush1.bf16.xpose.msra.mxu0 0
        %2784 = vmatprep.subr.bf16.mxu0 0
        %2785 = vmatpush1.bf16.xpose.msra.mxu0 0
        %2786 = vmatprep.subr.bf16.mxu0 0
        %2787 = vmatpush1.bf16.xpose.msra.mxu0 0
        %2788 = vmatprep.subr.bf16.mxu0 0
        %2789 = vmatpush1.bf16.xpose.msra.mxu0 0
        %2790 = vmatprep.subr.bf16.mxu0 0
        %2791 = vmatpush1.bf16.xpose.msra.mxu0 0
        %2792 = vmatprep.subr.bf16.mxu0 0
        %2793 = vmatpush1.bf16.xpose.msra.mxu0 0
        %2794 = vmatprep.subr.bf16.mxu0 0
        %2795 = vmatpush1.bf16.xpose.msra.mxu0 0
        %2796 = vmatprep.subr.bf16.mxu0 0
        %2797 = vmatpush1.bf16.xpose.msra.mxu0 0
        %2798 = vmatprep.subr.bf16.mxu0 0
        %2799 = vmatpush1.bf16.xpose.msra.mxu0 0
        %2800 = vmatprep.subr.bf16.mxu0 0
        %2801 = vmatpush1.bf16.xpose.msra.mxu0 0
        %2802 = vmatprep.subr.bf16.mxu0 0
        %2803 = vmatpush1.bf16.xpose.msra.mxu0 0
        %2804 = vmatprep.subr.bf16.mxu0 0
        %2805 = vmatpush1.bf16.xpose.msra.mxu0 0
        %2806 = vmatprep.subr.bf16.mxu0 0
        %2807 = vmatpush1.bf16.xpose.msra.mxu0 0
        %2808 = vmatprep.subr.bf16.mxu0 0
        %2809 = vmatpush1.bf16.xpose.msra.mxu0 0
        %2810 = vmatprep.mubr.bf16.mxu0 0
        %2811 = vmatmul.mubr.bf16.gmra.mrb[0].mxu0 %v2773
        %v2812 = vpop.f32.mrb[0].mxu0
        %v2813 = vadd.f32 0.0, %v2812
        %v2814 = vpop.f32.mrb[0].mxu0
        %v2815 = vpop.f32.mrb[0].mxu0
        %v2816 = vadd.f32 0.0, %v2815
        %v2817 = vpop.f32.mrb[0].mxu0
        %2818 = vdwg.mxu0
        %2820 = vrot.lane.b32.xlu0 %v2483, 120
        %v2821 = vpop.permute.xlu0 %2820
        %2823 = vrot.lane.b32.xlu0 %v2485, 120
        %v2824 = vpop.permute.xlu0 %2823
        %v2826 = vsel %vm2486, %v2821, 0
        %v2829 = vsel %vm2486, %v2824, 0
        %2831 = vmatprep.subr.bf16.mxu0 0
        %2832 = vmatpush1.bf16.xpose.msra.mxu0 %v2829
        %2833 = vmatprep.subr.bf16.mxu0 0
        %2834 = vmatpush1.bf16.xpose.msra.mxu0 0
        %2835 = vmatprep.subr.bf16.mxu0 0
        %2836 = vmatpush1.bf16.xpose.msra.mxu0 0
        %2837 = vmatprep.subr.bf16.mxu0 0
        %2838 = vmatpush1.bf16.xpose.msra.mxu0 0
        %2839 = vmatprep.subr.bf16.mxu0 0
        %2840 = vmatpush1.bf16.xpose.msra.mxu0 0
        %2841 = vmatprep.subr.bf16.mxu0 0
        %2842 = vmatpush1.bf16.xpose.msra.mxu0 0
        %2843 = vmatprep.subr.bf16.mxu0 0
        %2844 = vmatpush1.bf16.xpose.msra.mxu0 0
        %2845 = vmatprep.subr.bf16.mxu0 0
        %2846 = vmatpush1.bf16.xpose.msra.mxu0 0
        %2847 = vmatprep.subr.bf16.mxu0 0
        %2848 = vmatpush1.bf16.xpose.msra.mxu0 0
        %2849 = vmatprep.subr.bf16.mxu0 0
        %2850 = vmatpush1.bf16.xpose.msra.mxu0 0
        %2851 = vmatprep.subr.bf16.mxu0 0
        %2852 = vmatpush1.bf16.xpose.msra.mxu0 0
        %2853 = vmatprep.subr.bf16.mxu0 0
        %2854 = vmatpush1.bf16.xpose.msra.mxu0 0
        %2855 = vmatprep.subr.bf16.mxu0 0
        %2856 = vmatpush1.bf16.xpose.msra.mxu0 0
        %2857 = vmatprep.subr.bf16.mxu0 0
        %2858 = vmatpush1.bf16.xpose.msra.mxu0 0
        %2859 = vmatprep.subr.bf16.mxu0 0
        %2860 = vmatpush1.bf16.xpose.msra.mxu0 0
        %2861 = vmatprep.subr.bf16.mxu0 0
        %2862 = vmatpush1.bf16.xpose.msra.mxu0 0
        %2863 = vmatprep.mubr.bf16.mxu0 0
        %2864 = vmatmul.mubr.bf16.gmra.mrb[0].mxu0 %v2826
        %v2865 = vpop.f32.mrb[0].mxu0
        %v2866 = vadd.f32 0.0, %v2865
        %v2867 = vpop.f32.mrb[0].mxu0
        %v2868 = vpop.f32.mrb[0].mxu0
        %v2869 = vadd.f32 0.0, %v2868
        %v2870 = vpop.f32.mrb[0].mxu0
        %2871 = vdwg.mxu0
        %2876 = vrot.lane.b32.xlu0 %v2585, 120
        %v2877 = vpop.permute.xlu0 %2876
        %2878 = vrot.lane.b32.xlu0 %v2586, 120
        %v2879 = vpop.permute.xlu0 %2878
        %2880 = vrot.lane.b32.xlu0 %v2587, 120
        %v2881 = vpop.permute.xlu0 %2880
        %2882 = vrot.lane.b32.xlu0 %v2588, 120
        %v2883 = vpop.permute.xlu0 %2882
        %v2888 = vsel %vm2486, %v2877, 0.0
        %2889 = vadd.xlane.f32.xlu0 %v2888
        %v2890 = vpop.xlane.xlu0 %2889
        %v2891 = vsel %vm2486, %v2879, 0.0
        %2892 = vadd.xlane.f32.xlu0 %v2891
        %v2893 = vpop.xlane.xlu0 %2892
        %v2894 = vsel %vm2486, %v2881, 0.0
        %2895 = vadd.xlane.f32.xlu0 %v2894
        %v2896 = vpop.xlane.xlu0 %2895
        %v2897 = vsel %vm2486, %v2883, 0.0
        %2898 = vadd.xlane.f32.xlu0 %v2897
        %v2899 = vpop.xlane.xlu0 %2898
        %v2900 = vsel %vm2601, %v2813, -inf
        %2901 = vmax.xlane.f32.xlu0 %v2900
        %v2902 = vpop.xlane.xlu0 %2901
        %v2903 = vsel %vm2601, %v2816, -inf
        %2904 = vmax.xlane.f32.xlu0 %v2903
        %v2905 = vpop.xlane.xlu0 %2904
        %v2906 = vsel %vm2601, %v2866, -inf
        %2907 = vmax.xlane.f32.xlu0 %v2906
        %v2908 = vpop.xlane.xlu0 %2907
        %v2909 = vsel %vm2601, %v2869, -inf
        %2910 = vmax.xlane.f32.xlu0 %v2909
        %v2911 = vpop.xlane.xlu0 %2910
        %v2912 = vmax.f32 %v2902, %v2890
        %v2913 = vmax.f32 %v2905, %v2893
        %v2914 = vmax.f32 %v2908, %v2896
        %v2915 = vmax.f32 %v2911, %v2899
        %v2916 = vsub.f32 %v2813, %v2912
        %v2917 = vsub.f32 %v2816, %v2913
        %v2918 = vsub.f32 %v2866, %v2914
        %v2919 = vsub.f32 %v2869, %v2915
        %v2920 = vmul.f32 %v2916, 1.442695
        %v2921 = vpow.pop %v2920
        %v2922 = vmul.f32 %v2917, 1.442695
        %v2923 = vpow.pop %v2922
        %v2924 = vmul.f32 %v2918, 1.442695
        %v2925 = vpow.pop %v2924
        %v2926 = vmul.f32 %v2919, 1.442695
        %v2927 = vpow.pop %v2926
        %v2928 = vsub.f32 %v2890, %v2912
        %v2929 = vsub.f32 %v2893, %v2913
        %v2930 = vsub.f32 %v2896, %v2914
        %v2931 = vsub.f32 %v2899, %v2915
        %v2932 = vmul.f32 %v2928, 1.442695
        %v2933 = vpow.pop %v2932
        %v2934 = vmul.f32 %v2929, 1.442695
        %v2935 = vpow.pop %v2934
        %v2936 = vmul.f32 %v2930, 1.442695
        %v2937 = vpow.pop %v2936
        %v2938 = vmul.f32 %v2931, 1.442695
        %v2939 = vpow.pop %v2938
        %v2940 = vsel %vm2601, %v2921, 0.0
        %2941 = vadd.xlane.f32.xlu0 %v2940
        %v2942 = vpop.xlane.xlu0 %2941
        %v2943 = vsel %vm2601, %v2923, 0.0
        %2944 = vadd.xlane.f32.xlu0 %v2943
        %v2945 = vpop.xlane.xlu0 %2944
        %v2946 = vsel %vm2601, %v2925, 0.0
        %2947 = vadd.xlane.f32.xlu0 %v2946
        %v2948 = vpop.xlane.xlu0 %2947
        %v2949 = vsel %vm2601, %v2927, 0.0
        %2950 = vadd.xlane.f32.xlu0 %v2949
        %v2951 = vpop.xlane.xlu0 %2950
        %v2952 = vadd.f32 %v2942, %v2933
        %v2953 = vadd.f32 %v2945, %v2935
        %v2954 = vadd.f32 %v2948, %v2937
        %v2955 = vadd.f32 %v2951, %v2939
        %v2956 = vpack.c.bf16 %v2923, %v2921
        %v2957 = vpack.c.bf16 %v2927, %v2925
        %v2958 = vmul.f32 %v2933, %v2665
        %v2959 = vmul.f32 %v2935, %v2665
        %v2960 = vmul.f32 %v2937, %v2665
        %v2961 = vmul.f32 %v2939, %v2665
        %2963 = vrot.lane.b32.xlu0 %v2660, 120
        %v2964 = vpop.permute.xlu0 %2963
        %2968 = vrot.lane.b32.xlu0 %v2958, 120
        %v2969 = vpop.permute.xlu0 %2968
        %2970 = vrot.lane.b32.xlu0 %v2959, 120
        %v2971 = vpop.permute.xlu0 %2970
        %v2975 = vsel %vm2601, %v2956, 0
        %2977 = vmatprep.subr.bf16.mxu0 0
        %2978 = vmatpush1.bf16.msra.mxu0 %v2964
        %2979 = vmatprep.subr.bf16.mxu0 0
        %2980 = vmatpush1.bf16.msra.mxu0 0
        %2981 = vmatprep.subr.bf16.mxu0 0
        %2982 = vmatpush1.bf16.msra.mxu0 0
        %2983 = vmatprep.subr.bf16.mxu0 0
        %2984 = vmatpush1.bf16.msra.mxu0 0
        %2985 = vmatprep.subr.bf16.mxu0 0
        %2986 = vmatpush1.bf16.msra.mxu0 0
        %2987 = vmatprep.subr.bf16.mxu0 0
        %2988 = vmatpush1.bf16.msra.mxu0 0
        %2989 = vmatprep.subr.bf16.mxu0 0
        %2990 = vmatpush1.bf16.msra.mxu0 0
        %2991 = vmatprep.subr.bf16.mxu0 0
        %2992 = vmatpush1.bf16.msra.mxu0 0
        %2993 = vmatprep.subr.bf16.mxu0 0
        %2994 = vmatpush1.bf16.msra.mxu0 0
        %2995 = vmatprep.subr.bf16.mxu0 0
        %2996 = vmatpush1.bf16.msra.mxu0 0
        %2997 = vmatprep.subr.bf16.mxu0 0
        %2998 = vmatpush1.bf16.msra.mxu0 0
        %2999 = vmatprep.subr.bf16.mxu0 0
        %3000 = vmatpush1.bf16.msra.mxu0 0
        %3001 = vmatprep.subr.bf16.mxu0 0
        %3002 = vmatpush1.bf16.msra.mxu0 0
        %3003 = vmatprep.subr.bf16.mxu0 0
        %3004 = vmatpush1.bf16.msra.mxu0 0
        %3005 = vmatprep.subr.bf16.mxu0 0
        %3006 = vmatpush1.bf16.msra.mxu0 0
        %3007 = vmatprep.subr.bf16.mxu0 0
        %3008 = vmatpush1.bf16.msra.mxu0 0
        %3009 = vmatprep.mubr.bf16.mxu0 0
        %3010 = vmatmul.mubr.bf16.gmra.mrb[0].mxu0 %v2975
        %v3011 = vpop.f32.mrb[0].mxu0
        %v3012 = vadd.f32 %v2969, %v3011
        %v3013 = vpop.f32.mrb[0].mxu0
        %v3014 = vpop.f32.mrb[0].mxu0
        %v3015 = vadd.f32 %v2971, %v3014
        %v3016 = vpop.f32.mrb[0].mxu0
        %3017 = vdwg.mxu0
        %3019 = vrot.lane.b32.xlu0 %v2661, 120
        %v3020 = vpop.permute.xlu0 %3019
        %3024 = vrot.lane.b32.xlu0 %v2960, 120
        %v3025 = vpop.permute.xlu0 %3024
        %3026 = vrot.lane.b32.xlu0 %v2961, 120
        %v3027 = vpop.permute.xlu0 %3026
        %v3031 = vsel %vm2601, %v2957, 0
        %3033 = vmatprep.subr.bf16.mxu0 0
        %3034 = vmatpush1.bf16.msra.mxu0 %v3020
        %3035 = vmatprep.subr.bf16.mxu0 0
        %3036 = vmatpush1.bf16.msra.mxu0 0
        %3037 = vmatprep.subr.bf16.mxu0 0
        %3038 = vmatpush1.bf16.msra.mxu0 0
        %3039 = vmatprep.subr.bf16.mxu0 0
        %3040 = vmatpush1.bf16.msra.mxu0 0
        %3041 = vmatprep.subr.bf16.mxu0 0
        %3042 = vmatpush1.bf16.msra.mxu0 0
        %3043 = vmatprep.subr.bf16.mxu0 0
        %3044 = vmatpush1.bf16.msra.mxu0 0
        %3045 = vmatprep.subr.bf16.mxu0 0
        %3046 = vmatpush1.bf16.msra.mxu0 0
        %3047 = vmatprep.subr.bf16.mxu0 0
        %3048 = vmatpush1.bf16.msra.mxu0 0
        %3049 = vmatprep.subr.bf16.mxu0 0
        %3050 = vmatpush1.bf16.msra.mxu0 0
        %3051 = vmatprep.subr.bf16.mxu0 0
        %3052 = vmatpush1.bf16.msra.mxu0 0
        %3053 = vmatprep.subr.bf16.mxu0 0
        %3054 = vmatpush1.bf16.msra.mxu0 0
        %3055 = vmatprep.subr.bf16.mxu0 0
        %3056 = vmatpush1.bf16.msra.mxu0 0
        %3057 = vmatprep.subr.bf16.mxu0 0
        %3058 = vmatpush1.bf16.msra.mxu0 0
        %3059 = vmatprep.subr.bf16.mxu0 0
        %3060 = vmatpush1.bf16.msra.mxu0 0
        %3061 = vmatprep.subr.bf16.mxu0 0
        %3062 = vmatpush1.bf16.msra.mxu0 0
        %3063 = vmatprep.subr.bf16.mxu0 0
        %3064 = vmatpush1.bf16.msra.mxu0 0
        %3065 = vmatprep.mubr.bf16.mxu0 0
        %3066 = vmatmul.mubr.bf16.gmra.mrb[0].mxu0 %v3031
        %v3067 = vpop.f32.mrb[0].mxu0
        %v3068 = vadd.f32 %v3025, %v3067
        %v3069 = vpop.f32.mrb[0].mxu0
        %v3070 = vpop.f32.mrb[0].mxu0
        %v3071 = vadd.f32 %v3027, %v3070
        %v3072 = vpop.f32.mrb[0].mxu0
        %3073 = vdwg.mxu0
        %v3074 = vrcp.pop %v2952
        %v3075 = vmul.f32 %v3012, %v3074
        %v3076 = vrcp.pop %v2953
        %v3077 = vmul.f32 %v3015, %v3076
        %v3078 = vrcp.pop %v2954
        %v3079 = vmul.f32 %v3068, %v3078
        %v3080 = vrcp.pop %v2955
        %v3081 = vmul.f32 %v3071, %v3080
        %3082 = vrot.lane.b32.xlu0 %v2482, 112
        %v3083 = vpop.permute.xlu0 %3082
        %3084 = vrot.lane.b32.xlu0 %v2484, 112
        %v3085 = vpop.permute.xlu0 %3084
        %v3087 = vsel %vm2486, %v3083, 0
        %v3090 = vsel %vm2486, %v3085, 0
        %3092 = vmatprep.subr.bf16.mxu0 0
        %3093 = vmatpush1.bf16.xpose.msra.mxu0 %v3090
        %3094 = vmatprep.subr.bf16.mxu0 0
        %3095 = vmatpush1.bf16.xpose.msra.mxu0 0
        %3096 = vmatprep.subr.bf16.mxu0 0
        %3097 = vmatpush1.bf16.xpose.msra.mxu0 0
        %3098 = vmatprep.subr.bf16.mxu0 0
        %3099 = vmatpush1.bf16.xpose.msra.mxu0 0
        %3100 = vmatprep.subr.bf16.mxu0 0
        %3101 = vmatpush1.bf16.xpose.msra.mxu0 0
        %3102 = vmatprep.subr.bf16.mxu0 0
        %3103 = vmatpush1.bf16.xpose.msra.mxu0 0
        %3104 = vmatprep.subr.bf16.mxu0 0
        %3105 = vmatpush1.bf16.xpose.msra.mxu0 0
        %3106 = vmatprep.subr.bf16.mxu0 0
        %3107 = vmatpush1.bf16.xpose.msra.mxu0 0
        %3108 = vmatprep.subr.bf16.mxu0 0
        %3109 = vmatpush1.bf16.xpose.msra.mxu0 0
        %3110 = vmatprep.subr.bf16.mxu0 0
        %3111 = vmatpush1.bf16.xpose.msra.mxu0 0
        %3112 = vmatprep.subr.bf16.mxu0 0
        %3113 = vmatpush1.bf16.xpose.msra.mxu0 0
        %3114 = vmatprep.subr.bf16.mxu0 0
        %3115 = vmatpush1.bf16.xpose.msra.mxu0 0
        %3116 = vmatprep.subr.bf16.mxu0 0
        %3117 = vmatpush1.bf16.xpose.msra.mxu0 0
        %3118 = vmatprep.subr.bf16.mxu0 0
        %3119 = vmatpush1.bf16.xpose.msra.mxu0 0
        %3120 = vmatprep.subr.bf16.mxu0 0
        %3121 = vmatpush1.bf16.xpose.msra.mxu0 0
        %3122 = vmatprep.subr.bf16.mxu0 0
        %3123 = vmatpush1.bf16.xpose.msra.mxu0 0
        %3124 = vmatprep.mubr.bf16.mxu0 0
        %3125 = vmatmul.mubr.bf16.gmra.mrb[0].mxu0 %v3087
        %v3126 = vpop.f32.mrb[0].mxu0
        %v3127 = vadd.f32 0.0, %v3126
        %v3128 = vpop.f32.mrb[0].mxu0
        %v3129 = vpop.f32.mrb[0].mxu0
        %v3130 = vadd.f32 0.0, %v3129
        %v3131 = vpop.f32.mrb[0].mxu0
        %3132 = vdwg.mxu0
        %3133 = vrot.lane.b32.xlu0 %v2483, 112
        %v3134 = vpop.permute.xlu0 %3133
        %3135 = vrot.lane.b32.xlu0 %v2485, 112
        %v3136 = vpop.permute.xlu0 %3135
        %v3138 = vsel %vm2486, %v3134, 0
        %v3141 = vsel %vm2486, %v3136, 0
        %3143 = vmatprep.subr.bf16.mxu0 0
        %3144 = vmatpush1.bf16.xpose.msra.mxu0 %v3141
        %3145 = vmatprep.subr.bf16.mxu0 0
        %3146 = vmatpush1.bf16.xpose.msra.mxu0 0
        %3147 = vmatprep.subr.bf16.mxu0 0
        %3148 = vmatpush1.bf16.xpose.msra.mxu0 0
        %3149 = vmatprep.subr.bf16.mxu0 0
        %3150 = vmatpush1.bf16.xpose.msra.mxu0 0
        %3151 = vmatprep.subr.bf16.mxu0 0
        %3152 = vmatpush1.bf16.xpose.msra.mxu0 0
        %3153 = vmatprep.subr.bf16.mxu0 0
        %3154 = vmatpush1.bf16.xpose.msra.mxu0 0
        %3155 = vmatprep.subr.bf16.mxu0 0
        %3156 = vmatpush1.bf16.xpose.msra.mxu0 0
        %3157 = vmatprep.subr.bf16.mxu0 0
        %3158 = vmatpush1.bf16.xpose.msra.mxu0 0
        %3159 = vmatprep.subr.bf16.mxu0 0
        %3160 = vmatpush1.bf16.xpose.msra.mxu0 0
        %3161 = vmatprep.subr.bf16.mxu0 0
        %3162 = vmatpush1.bf16.xpose.msra.mxu0 0
        %3163 = vmatprep.subr.bf16.mxu0 0
        %3164 = vmatpush1.bf16.xpose.msra.mxu0 0
        %3165 = vmatprep.subr.bf16.mxu0 0
        %3166 = vmatpush1.bf16.xpose.msra.mxu0 0
        %3167 = vmatprep.subr.bf16.mxu0 0
        %3168 = vmatpush1.bf16.xpose.msra.mxu0 0
        %3169 = vmatprep.subr.bf16.mxu0 0
        %3170 = vmatpush1.bf16.xpose.msra.mxu0 0
        %3171 = vmatprep.subr.bf16.mxu0 0
        %3172 = vmatpush1.bf16.xpose.msra.mxu0 0
        %3173 = vmatprep.subr.bf16.mxu0 0
        %3174 = vmatpush1.bf16.xpose.msra.mxu0 0
        %3175 = vmatprep.mubr.bf16.mxu0 0
        %3176 = vmatmul.mubr.bf16.gmra.mrb[0].mxu0 %v3138
        %v3177 = vpop.f32.mrb[0].mxu0
        %v3178 = vadd.f32 0.0, %v3177
        %v3179 = vpop.f32.mrb[0].mxu0
        %v3180 = vpop.f32.mrb[0].mxu0
        %v3181 = vadd.f32 0.0, %v3180
        %v3182 = vpop.f32.mrb[0].mxu0
        %3183 = vdwg.mxu0
        %3184 = vrot.lane.b32.xlu0 %v2585, 112
        %v3185 = vpop.permute.xlu0 %3184
        %3186 = vrot.lane.b32.xlu0 %v2586, 112
        %v3187 = vpop.permute.xlu0 %3186
        %3188 = vrot.lane.b32.xlu0 %v2587, 112
        %v3189 = vpop.permute.xlu0 %3188
        %3190 = vrot.lane.b32.xlu0 %v2588, 112
        %v3191 = vpop.permute.xlu0 %3190
        %v3196 = vsel %vm2486, %v3185, 0.0
        %3197 = vadd.xlane.f32.xlu0 %v3196
        %v3198 = vpop.xlane.xlu0 %3197
        %v3199 = vsel %vm2486, %v3187, 0.0
        %3200 = vadd.xlane.f32.xlu0 %v3199
        %v3201 = vpop.xlane.xlu0 %3200
        %v3202 = vsel %vm2486, %v3189, 0.0
        %3203 = vadd.xlane.f32.xlu0 %v3202
        %v3204 = vpop.xlane.xlu0 %3203
        %v3205 = vsel %vm2486, %v3191, 0.0
        %3206 = vadd.xlane.f32.xlu0 %v3205
        %v3207 = vpop.xlane.xlu0 %3206
        %v3208 = vsel %vm2601, %v3127, -inf
        %3209 = vmax.xlane.f32.xlu0 %v3208
        %v3210 = vpop.xlane.xlu0 %3209
        %v3211 = vsel %vm2601, %v3130, -inf
        %3212 = vmax.xlane.f32.xlu0 %v3211
        %v3213 = vpop.xlane.xlu0 %3212
        %v3214 = vsel %vm2601, %v3178, -inf
        %3215 = vmax.xlane.f32.xlu0 %v3214
        %v3216 = vpop.xlane.xlu0 %3215
        %v3217 = vsel %vm2601, %v3181, -inf
        %3218 = vmax.xlane.f32.xlu0 %v3217
        %v3219 = vpop.xlane.xlu0 %3218
        %v3220 = vmax.f32 %v3210, %v3198
        %v3221 = vmax.f32 %v3213, %v3201
        %v3222 = vmax.f32 %v3216, %v3204
        %v3223 = vmax.f32 %v3219, %v3207
        %v3224 = vsub.f32 %v3127, %v3220
        %v3225 = vsub.f32 %v3130, %v3221
        %v3226 = vsub.f32 %v3178, %v3222
        %v3227 = vsub.f32 %v3181, %v3223
        %v3228 = vmul.f32 %v3224, 1.442695
        %v3229 = vpow.pop %v3228
        %v3230 = vmul.f32 %v3225, 1.442695
        %v3231 = vpow.pop %v3230
        %v3232 = vmul.f32 %v3226, 1.442695
        %v3233 = vpow.pop %v3232
        %v3234 = vmul.f32 %v3227, 1.442695
        %v3235 = vpow.pop %v3234
        %v3236 = vsub.f32 %v3198, %v3220
        %v3237 = vsub.f32 %v3201, %v3221
        %v3238 = vsub.f32 %v3204, %v3222
        %v3239 = vsub.f32 %v3207, %v3223
        %v3240 = vmul.f32 %v3236, 1.442695
        %v3241 = vpow.pop %v3240
        %v3242 = vmul.f32 %v3237, 1.442695
        %v3243 = vpow.pop %v3242
        %v3244 = vmul.f32 %v3238, 1.442695
        %v3245 = vpow.pop %v3244
        %v3246 = vmul.f32 %v3239, 1.442695
        %v3247 = vpow.pop %v3246
        %v3248 = vsel %vm2601, %v3229, 0.0
        %3249 = vadd.xlane.f32.xlu0 %v3248
        %v3250 = vpop.xlane.xlu0 %3249
        %v3251 = vsel %vm2601, %v3231, 0.0
        %3252 = vadd.xlane.f32.xlu0 %v3251
        %v3253 = vpop.xlane.xlu0 %3252
        %v3254 = vsel %vm2601, %v3233, 0.0
        %3255 = vadd.xlane.f32.xlu0 %v3254
        %v3256 = vpop.xlane.xlu0 %3255
        %v3257 = vsel %vm2601, %v3235, 0.0
        %3258 = vadd.xlane.f32.xlu0 %v3257
        %v3259 = vpop.xlane.xlu0 %3258
        %v3260 = vadd.f32 %v3250, %v3241
        %v3261 = vadd.f32 %v3253, %v3243
        %v3262 = vadd.f32 %v3256, %v3245
        %v3263 = vadd.f32 %v3259, %v3247
        %v3264 = vpack.c.bf16 %v3231, %v3229
        %v3265 = vpack.c.bf16 %v3235, %v3233
        %v3266 = vmul.f32 %v3241, %v2665
        %v3267 = vmul.f32 %v3243, %v2665
        %v3268 = vmul.f32 %v3245, %v2665
        %v3269 = vmul.f32 %v3247, %v2665
        %3270 = vrot.lane.b32.xlu0 %v2660, 112
        %v3271 = vpop.permute.xlu0 %3270
        %3275 = vrot.lane.b32.xlu0 %v3266, 112
        %v3276 = vpop.permute.xlu0 %3275
        %3277 = vrot.lane.b32.xlu0 %v3267, 112
        %v3278 = vpop.permute.xlu0 %3277
        %v3282 = vsel %vm2601, %v3264, 0
        %3284 = vmatprep.subr.bf16.mxu0 0
        %3285 = vmatpush1.bf16.msra.mxu0 %v3271
        %3286 = vmatprep.subr.bf16.mxu0 0
        %3287 = vmatpush1.bf16.msra.mxu0 0
        %3288 = vmatprep.subr.bf16.mxu0 0
        %3289 = vmatpush1.bf16.msra.mxu0 0
        %3290 = vmatprep.subr.bf16.mxu0 0
        %3291 = vmatpush1.bf16.msra.mxu0 0
        %3292 = vmatprep.subr.bf16.mxu0 0
        %3293 = vmatpush1.bf16.msra.mxu0 0
        %3294 = vmatprep.subr.bf16.mxu0 0
        %3295 = vmatpush1.bf16.msra.mxu0 0
        %3296 = vmatprep.subr.bf16.mxu0 0
        %3297 = vmatpush1.bf16.msra.mxu0 0
        %3298 = vmatprep.subr.bf16.mxu0 0
        %3299 = vmatpush1.bf16.msra.mxu0 0
        %3300 = vmatprep.subr.bf16.mxu0 0
        %3301 = vmatpush1.bf16.msra.mxu0 0
        %3302 = vmatprep.subr.bf16.mxu0 0
        %3303 = vmatpush1.bf16.msra.mxu0 0
        %3304 = vmatprep.subr.bf16.mxu0 0
        %3305 = vmatpush1.bf16.msra.mxu0 0
        %3306 = vmatprep.subr.bf16.mxu0 0
        %3307 = vmatpush1.bf16.msra.mxu0 0
        %3308 = vmatprep.subr.bf16.mxu0 0
        %3309 = vmatpush1.bf16.msra.mxu0 0
        %3310 = vmatprep.subr.bf16.mxu0 0
        %3311 = vmatpush1.bf16.msra.mxu0 0
        %3312 = vmatprep.subr.bf16.mxu0 0
        %3313 = vmatpush1.bf16.msra.mxu0 0
        %3314 = vmatprep.subr.bf16.mxu0 0
        %3315 = vmatpush1.bf16.msra.mxu0 0
        %3316 = vmatprep.mubr.bf16.mxu0 0
        %3317 = vmatmul.mubr.bf16.gmra.mrb[0].mxu0 %v3282
        %v3318 = vpop.f32.mrb[0].mxu0
        %v3319 = vadd.f32 %v3276, %v3318
        %v3320 = vpop.f32.mrb[0].mxu0
        %v3321 = vpop.f32.mrb[0].mxu0
        %v3322 = vadd.f32 %v3278, %v3321
        %v3323 = vpop.f32.mrb[0].mxu0
        %3324 = vdwg.mxu0
        %3325 = vrot.lane.b32.xlu0 %v2661, 112
        %v3326 = vpop.permute.xlu0 %3325
        %3330 = vrot.lane.b32.xlu0 %v3268, 112
        %v3331 = vpop.permute.xlu0 %3330
        %3332 = vrot.lane.b32.xlu0 %v3269, 112
        %v3333 = vpop.permute.xlu0 %3332
        %v3337 = vsel %vm2601, %v3265, 0
        %3339 = vmatprep.subr.bf16.mxu0 0
        %3340 = vmatpush1.bf16.msra.mxu0 %v3326
        %3341 = vmatprep.subr.bf16.mxu0 0
        %3342 = vmatpush1.bf16.msra.mxu0 0
        %3343 = vmatprep.subr.bf16.mxu0 0
        %3344 = vmatpush1.bf16.msra.mxu0 0
        %3345 = vmatprep.subr.bf16.mxu0 0
        %3346 = vmatpush1.bf16.msra.mxu0 0
        %3347 = vmatprep.subr.bf16.mxu0 0
        %3348 = vmatpush1.bf16.msra.mxu0 0
        %3349 = vmatprep.subr.bf16.mxu0 0
        %3350 = vmatpush1.bf16.msra.mxu0 0
        %3351 = vmatprep.subr.bf16.mxu0 0
        %3352 = vmatpush1.bf16.msra.mxu0 0
        %3353 = vmatprep.subr.bf16.mxu0 0
        %3354 = vmatpush1.bf16.msra.mxu0 0
        %3355 = vmatprep.subr.bf16.mxu0 0
        %3356 = vmatpush1.bf16.msra.mxu0 0
        %3357 = vmatprep.subr.bf16.mxu0 0
        %3358 = vmatpush1.bf16.msra.mxu0 0
        %3359 = vmatprep.subr.bf16.mxu0 0
        %3360 = vmatpush1.bf16.msra.mxu0 0
        %3361 = vmatprep.subr.bf16.mxu0 0
        %3362 = vmatpush1.bf16.msra.mxu0 0
        %3363 = vmatprep.subr.bf16.mxu0 0
        %3364 = vmatpush1.bf16.msra.mxu0 0
        %3365 = vmatprep.subr.bf16.mxu0 0
        %3366 = vmatpush1.bf16.msra.mxu0 0
        %3367 = vmatprep.subr.bf16.mxu0 0
        %3368 = vmatpush1.bf16.msra.mxu0 0
        %3369 = vmatprep.subr.bf16.mxu0 0
        %3370 = vmatpush1.bf16.msra.mxu0 0
        %3371 = vmatprep.mubr.bf16.mxu0 0
        %3372 = vmatmul.mubr.bf16.gmra.mrb[0].mxu0 %v3337
        %v3373 = vpop.f32.mrb[0].mxu0
        %v3374 = vadd.f32 %v3331, %v3373
        %v3375 = vpop.f32.mrb[0].mxu0
        %v3376 = vpop.f32.mrb[0].mxu0
        %v3377 = vadd.f32 %v3333, %v3376
        %v3378 = vpop.f32.mrb[0].mxu0
        %3379 = vdwg.mxu0
        %v3380 = vrcp.pop %v3260
        %v3381 = vmul.f32 %v3319, %v3380
        %v3382 = vrcp.pop %v3261
        %v3383 = vmul.f32 %v3322, %v3382
        %v3384 = vrcp.pop %v3262
        %v3385 = vmul.f32 %v3374, %v3384
        %v3386 = vrcp.pop %v3263
        %v3387 = vmul.f32 %v3377, %v3386
        %3388 = vrot.lane.b32.xlu0 %v2482, 104
        %v3389 = vpop.permute.xlu0 %3388
        %3390 = vrot.lane.b32.xlu0 %v2484, 104
        %v3391 = vpop.permute.xlu0 %3390
        %v3393 = vsel %vm2486, %v3389, 0
        %v3396 = vsel %vm2486, %v3391, 0
        %3398 = vmatprep.subr.bf16.mxu0 0
        %3399 = vmatpush1.bf16.xpose.msra.mxu0 %v3396
        %3400 = vmatprep.subr.bf16.mxu0 0
        %3401 = vmatpush1.bf16.xpose.msra.mxu0 0
        %3402 = vmatprep.subr.bf16.mxu0 0
        %3403 = vmatpush1.bf16.xpose.msra.mxu0 0
        %3404 = vmatprep.subr.bf16.mxu0 0
        %3405 = vmatpush1.bf16.xpose.msra.mxu0 0
        %3406 = vmatprep.subr.bf16.mxu0 0
        %3407 = vmatpush1.bf16.xpose.msra.mxu0 0
        %3408 = vmatprep.subr.bf16.mxu0 0
        %3409 = vmatpush1.bf16.xpose.msra.mxu0 0
        %3410 = vmatprep.subr.bf16.mxu0 0
        %3411 = vmatpush1.bf16.xpose.msra.mxu0 0
        %3412 = vmatprep.subr.bf16.mxu0 0
        %3413 = vmatpush1.bf16.xpose.msra.mxu0 0
        %3414 = vmatprep.subr.bf16.mxu0 0
        %3415 = vmatpush1.bf16.xpose.msra.mxu0 0
        %3416 = vmatprep.subr.bf16.mxu0 0
        %3417 = vmatpush1.bf16.xpose.msra.mxu0 0
        %3418 = vmatprep.subr.bf16.mxu0 0
        %3419 = vmatpush1.bf16.xpose.msra.mxu0 0
        %3420 = vmatprep.subr.bf16.mxu0 0
        %3421 = vmatpush1.bf16.xpose.msra.mxu0 0
        %3422 = vmatprep.subr.bf16.mxu0 0
        %3423 = vmatpush1.bf16.xpose.msra.mxu0 0
        %3424 = vmatprep.subr.bf16.mxu0 0
        %3425 = vmatpush1.bf16.xpose.msra.mxu0 0
        %3426 = vmatprep.subr.bf16.mxu0 0
        %3427 = vmatpush1.bf16.xpose.msra.mxu0 0
        %3428 = vmatprep.subr.bf16.mxu0 0
        %3429 = vmatpush1.bf16.xpose.msra.mxu0 0
        %3430 = vmatprep.mubr.bf16.mxu0 0
        %3431 = vmatmul.mubr.bf16.gmra.mrb[0].mxu0 %v3393
        %v3432 = vpop.f32.mrb[0].mxu0
        %v3433 = vadd.f32 0.0, %v3432
        %v3434 = vpop.f32.mrb[0].mxu0
        %v3435 = vpop.f32.mrb[0].mxu0
        %v3436 = vadd.f32 0.0, %v3435
        %v3437 = vpop.f32.mrb[0].mxu0
        %3438 = vdwg.mxu0
        %3439 = vrot.lane.b32.xlu0 %v2483, 104
        %v3440 = vpop.permute.xlu0 %3439
        %3441 = vrot.lane.b32.xlu0 %v2485, 104
        %v3442 = vpop.permute.xlu0 %3441
        %v3444 = vsel %vm2486, %v3440, 0
        %v3447 = vsel %vm2486, %v3442, 0
        %3449 = vmatprep.subr.bf16.mxu0 0
        %3450 = vmatpush1.bf16.xpose.msra.mxu0 %v3447
        %3451 = vmatprep.subr.bf16.mxu0 0
        %3452 = vmatpush1.bf16.xpose.msra.mxu0 0
        %3453 = vmatprep.subr.bf16.mxu0 0
        %3454 = vmatpush1.bf16.xpose.msra.mxu0 0
        %3455 = vmatprep.subr.bf16.mxu0 0
        %3456 = vmatpush1.bf16.xpose.msra.mxu0 0
        %3457 = vmatprep.subr.bf16.mxu0 0
        %3458 = vmatpush1.bf16.xpose.msra.mxu0 0
        %3459 = vmatprep.subr.bf16.mxu0 0
        %3460 = vmatpush1.bf16.xpose.msra.mxu0 0
        %3461 = vmatprep.subr.bf16.mxu0 0
        %3462 = vmatpush1.bf16.xpose.msra.mxu0 0
        %3463 = vmatprep.subr.bf16.mxu0 0
        %3464 = vmatpush1.bf16.xpose.msra.mxu0 0
        %3465 = vmatprep.subr.bf16.mxu0 0
        %3466 = vmatpush1.bf16.xpose.msra.mxu0 0
        %3467 = vmatprep.subr.bf16.mxu0 0
        %3468 = vmatpush1.bf16.xpose.msra.mxu0 0
        %3469 = vmatprep.subr.bf16.mxu0 0
        %3470 = vmatpush1.bf16.xpose.msra.mxu0 0
        %3471 = vmatprep.subr.bf16.mxu0 0
        %3472 = vmatpush1.bf16.xpose.msra.mxu0 0
        %3473 = vmatprep.subr.bf16.mxu0 0
        %3474 = vmatpush1.bf16.xpose.msra.mxu0 0
        %3475 = vmatprep.subr.bf16.mxu0 0
        %3476 = vmatpush1.bf16.xpose.msra.mxu0 0
        %3477 = vmatprep.subr.bf16.mxu0 0
        %3478 = vmatpush1.bf16.xpose.msra.mxu0 0
        %3479 = vmatprep.subr.bf16.mxu0 0
        %3480 = vmatpush1.bf16.xpose.msra.mxu0 0
        %3481 = vmatprep.mubr.bf16.mxu0 0
        %3482 = vmatmul.mubr.bf16.gmra.mrb[0].mxu0 %v3444
        %v3483 = vpop.f32.mrb[0].mxu0
        %v3484 = vadd.f32 0.0, %v3483
        %v3485 = vpop.f32.mrb[0].mxu0
        %v3486 = vpop.f32.mrb[0].mxu0
        %v3487 = vadd.f32 0.0, %v3486
        %v3488 = vpop.f32.mrb[0].mxu0
        %3489 = vdwg.mxu0
        %3490 = vrot.lane.b32.xlu0 %v2585, 104
        %v3491 = vpop.permute.xlu0 %3490
        %3492 = vrot.lane.b32.xlu0 %v2586, 104
        %v3493 = vpop.permute.xlu0 %3492
        %3494 = vrot.lane.b32.xlu0 %v2587, 104
        %v3495 = vpop.permute.xlu0 %3494
        %3496 = vrot.lane.b32.xlu0 %v2588, 104
        %v3497 = vpop.permute.xlu0 %3496
        %v3502 = vsel %vm2486, %v3491, 0.0
        %3503 = vadd.xlane.f32.xlu0 %v3502
        %v3504 = vpop.xlane.xlu0 %3503
        %v3505 = vsel %vm2486, %v3493, 0.0
        %3506 = vadd.xlane.f32.xlu0 %v3505
        %v3507 = vpop.xlane.xlu0 %3506
        %v3508 = vsel %vm2486, %v3495, 0.0
        %3509 = vadd.xlane.f32.xlu0 %v3508
        %v3510 = vpop.xlane.xlu0 %3509
        %v3511 = vsel %vm2486, %v3497, 0.0
        %3512 = vadd.xlane.f32.xlu0 %v3511
        %v3513 = vpop.xlane.xlu0 %3512
        %v3514 = vsel %vm2601, %v3433, -inf
        %3515 = vmax.xlane.f32.xlu0 %v3514
        %v3516 = vpop.xlane.xlu0 %3515
        %v3517 = vsel %vm2601, %v3436, -inf
        %3518 = vmax.xlane.f32.xlu0 %v3517
        %v3519 = vpop.xlane.xlu0 %3518
        %v3520 = vsel %vm2601, %v3484, -inf
        %3521 = vmax.xlane.f32.xlu0 %v3520
        %v3522 = vpop.xlane.xlu0 %3521
        %v3523 = vsel %vm2601, %v3487, -inf
        %3524 = vmax.xlane.f32.xlu0 %v3523
        %v3525 = vpop.xlane.xlu0 %3524
        %v3526 = vmax.f32 %v3516, %v3504
        %v3527 = vmax.f32 %v3519, %v3507
        %v3528 = vmax.f32 %v3522, %v3510
        %v3529 = vmax.f32 %v3525, %v3513
        %v3530 = vsub.f32 %v3433, %v3526
        %v3531 = vsub.f32 %v3436, %v3527
        %v3532 = vsub.f32 %v3484, %v3528
        %v3533 = vsub.f32 %v3487, %v3529
        %v3534 = vmul.f32 %v3530, 1.442695
        %v3535 = vpow.pop %v3534
        %v3536 = vmul.f32 %v3531, 1.442695
        %v3537 = vpow.pop %v3536
        %v3538 = vmul.f32 %v3532, 1.442695
        %v3539 = vpow.pop %v3538
        %v3540 = vmul.f32 %v3533, 1.442695
        %v3541 = vpow.pop %v3540
        %v3542 = vsub.f32 %v3504, %v3526
        %v3543 = vsub.f32 %v3507, %v3527
        %v3544 = vsub.f32 %v3510, %v3528
        %v3545 = vsub.f32 %v3513, %v3529
        %v3546 = vmul.f32 %v3542, 1.442695
        %v3547 = vpow.pop %v3546
        %v3548 = vmul.f32 %v3543, 1.442695
        %v3549 = vpow.pop %v3548
        %v3550 = vmul.f32 %v3544, 1.442695
        %v3551 = vpow.pop %v3550
        %v3552 = vmul.f32 %v3545, 1.442695
        %v3553 = vpow.pop %v3552
        %v3554 = vsel %vm2601, %v3535, 0.0
        %3555 = vadd.xlane.f32.xlu0 %v3554
        %v3556 = vpop.xlane.xlu0 %3555
        %v3557 = vsel %vm2601, %v3537, 0.0
        %3558 = vadd.xlane.f32.xlu0 %v3557
        %v3559 = vpop.xlane.xlu0 %3558
        %v3560 = vsel %vm2601, %v3539, 0.0
        %3561 = vadd.xlane.f32.xlu0 %v3560
        %v3562 = vpop.xlane.xlu0 %3561
        %v3563 = vsel %vm2601, %v3541, 0.0
        %3564 = vadd.xlane.f32.xlu0 %v3563
        %v3565 = vpop.xlane.xlu0 %3564
        %v3566 = vadd.f32 %v3556, %v3547
        %v3567 = vadd.f32 %v3559, %v3549
        %v3568 = vadd.f32 %v3562, %v3551
        %v3569 = vadd.f32 %v3565, %v3553
        %v3570 = vpack.c.bf16 %v3537, %v3535
        %v3571 = vpack.c.bf16 %v3541, %v3539
        %v3572 = vmul.f32 %v3547, %v2665
        %v3573 = vmul.f32 %v3549, %v2665
        %v3574 = vmul.f32 %v3551, %v2665
        %v3575 = vmul.f32 %v3553, %v2665
        %3576 = vrot.lane.b32.xlu0 %v2660, 104
        %v3577 = vpop.permute.xlu0 %3576
        %3581 = vrot.lane.b32.xlu0 %v3572, 104
        %v3582 = vpop.permute.xlu0 %3581
        %3583 = vrot.lane.b32.xlu0 %v3573, 104
        %v3584 = vpop.permute.xlu0 %3583
        %v3588 = vsel %vm2601, %v3570, 0
        %3590 = vmatprep.subr.bf16.mxu0 0
        %3591 = vmatpush1.bf16.msra.mxu0 %v3577
        %3592 = vmatprep.subr.bf16.mxu0 0
        %3593 = vmatpush1.bf16.msra.mxu0 0
        %3594 = vmatprep.subr.bf16.mxu0 0
        %3595 = vmatpush1.bf16.msra.mxu0 0
        %3596 = vmatprep.subr.bf16.mxu0 0
        %3597 = vmatpush1.bf16.msra.mxu0 0
        %3598 = vmatprep.subr.bf16.mxu0 0
        %3599 = vmatpush1.bf16.msra.mxu0 0
        %3600 = vmatprep.subr.bf16.mxu0 0
        %3601 = vmatpush1.bf16.msra.mxu0 0
        %3602 = vmatprep.subr.bf16.mxu0 0
        %3603 = vmatpush1.bf16.msra.mxu0 0
        %3604 = vmatprep.subr.bf16.mxu0 0
        %3605 = vmatpush1.bf16.msra.mxu0 0
        %3606 = vmatprep.subr.bf16.mxu0 0
        %3607 = vmatpush1.bf16.msra.mxu0 0
        %3608 = vmatprep.subr.bf16.mxu0 0
        %3609 = vmatpush1.bf16.msra.mxu0 0
        %3610 = vmatprep.subr.bf16.mxu0 0
        %3611 = vmatpush1.bf16.msra.mxu0 0
        %3612 = vmatprep.subr.bf16.mxu0 0
        %3613 = vmatpush1.bf16.msra.mxu0 0
        %3614 = vmatprep.subr.bf16.mxu0 0
        %3615 = vmatpush1.bf16.msra.mxu0 0
        %3616 = vmatprep.subr.bf16.mxu0 0
        %3617 = vmatpush1.bf16.msra.mxu0 0
        %3618 = vmatprep.subr.bf16.mxu0 0
        %3619 = vmatpush1.bf16.msra.mxu0 0
        %3620 = vmatprep.subr.bf16.mxu0 0
        %3621 = vmatpush1.bf16.msra.mxu0 0
        %3622 = vmatprep.mubr.bf16.mxu0 0
        %3623 = vmatmul.mubr.bf16.gmra.mrb[0].mxu0 %v3588
        %v3624 = vpop.f32.mrb[0].mxu0
        %v3625 = vadd.f32 %v3582, %v3624
        %v3626 = vpop.f32.mrb[0].mxu0
        %v3627 = vpop.f32.mrb[0].mxu0
        %v3628 = vadd.f32 %v3584, %v3627
        %v3629 = vpop.f32.mrb[0].mxu0
        %3630 = vdwg.mxu0
        %3631 = vrot.lane.b32.xlu0 %v2661, 104
        %v3632 = vpop.permute.xlu0 %3631
        %3636 = vrot.lane.b32.xlu0 %v3574, 104
        %v3637 = vpop.permute.xlu0 %3636
        %3638 = vrot.lane.b32.xlu0 %v3575, 104
        %v3639 = vpop.permute.xlu0 %3638
        %v3643 = vsel %vm2601, %v3571, 0
        %3645 = vmatprep.subr.bf16.mxu0 0
        %3646 = vmatpush1.bf16.msra.mxu0 %v3632
        %3647 = vmatprep.subr.bf16.mxu0 0
        %3648 = vmatpush1.bf16.msra.mxu0 0
        %3649 = vmatprep.subr.bf16.mxu0 0
        %3650 = vmatpush1.bf16.msra.mxu0 0
        %3651 = vmatprep.subr.bf16.mxu0 0
        %3652 = vmatpush1.bf16.msra.mxu0 0
        %3653 = vmatprep.subr.bf16.mxu0 0
        %3654 = vmatpush1.bf16.msra.mxu0 0
        %3655 = vmatprep.subr.bf16.mxu0 0
        %3656 = vmatpush1.bf16.msra.mxu0 0
        %3657 = vmatprep.subr.bf16.mxu0 0
        %3658 = vmatpush1.bf16.msra.mxu0 0
        %3659 = vmatprep.subr.bf16.mxu0 0
        %3660 = vmatpush1.bf16.msra.mxu0 0
        %3661 = vmatprep.subr.bf16.mxu0 0
        %3662 = vmatpush1.bf16.msra.mxu0 0
        %3663 = vmatprep.subr.bf16.mxu0 0
        %3664 = vmatpush1.bf16.msra.mxu0 0
        %3665 = vmatprep.subr.bf16.mxu0 0
        %3666 = vmatpush1.bf16.msra.mxu0 0
        %3667 = vmatprep.subr.bf16.mxu0 0
        %3668 = vmatpush1.bf16.msra.mxu0 0
        %3669 = vmatprep.subr.bf16.mxu0 0
        %3670 = vmatpush1.bf16.msra.mxu0 0
        %3671 = vmatprep.subr.bf16.mxu0 0
        %3672 = vmatpush1.bf16.msra.mxu0 0
        %3673 = vmatprep.subr.bf16.mxu0 0
        %3674 = vmatpush1.bf16.msra.mxu0 0
        %3675 = vmatprep.subr.bf16.mxu0 0
        %3676 = vmatpush1.bf16.msra.mxu0 0
        %3677 = vmatprep.mubr.bf16.mxu0 0
        %3678 = vmatmul.mubr.bf16.gmra.mrb[0].mxu0 %v3643
        %v3679 = vpop.f32.mrb[0].mxu0
        %v3680 = vadd.f32 %v3637, %v3679
        %v3681 = vpop.f32.mrb[0].mxu0
        %v3682 = vpop.f32.mrb[0].mxu0
        %v3683 = vadd.f32 %v3639, %v3682
        %v3684 = vpop.f32.mrb[0].mxu0
        %3685 = vdwg.mxu0
        %v3686 = vrcp.pop %v3566
        %v3687 = vmul.f32 %v3625, %v3686
        %v3688 = vrcp.pop %v3567
        %v3689 = vmul.f32 %v3628, %v3688
        %v3690 = vrcp.pop %v3568
        %v3691 = vmul.f32 %v3680, %v3690
        %v3692 = vrcp.pop %v3569
        %v3693 = vmul.f32 %v3683, %v3692
        %3698 = vrot.lane.b32.xlu0 %v3075, 8
        %v3699 = vpop.permute.xlu0 %3698
        %3700 = vrot.lane.b32.xlu0 %v3077, 8
        %v3701 = vpop.permute.xlu0 %3700
        %3702 = vrot.lane.b32.xlu0 %v3079, 8
        %v3703 = vpop.permute.xlu0 %3702
        %3704 = vrot.lane.b32.xlu0 %v3081, 8
        %v3705 = vpop.permute.xlu0 %3704
        %3714 = vrot.lane.b32.xlu0 %v3381, 16
        %v3715 = vpop.permute.xlu0 %3714
        %3716 = vrot.lane.b32.xlu0 %v3383, 16
        %v3717 = vpop.permute.xlu0 %3716
        %3718 = vrot.lane.b32.xlu0 %v3385, 16
        %v3719 = vpop.permute.xlu0 %3718
        %3720 = vrot.lane.b32.xlu0 %v3387, 16
        %v3721 = vpop.permute.xlu0 %3720
        %3730 = vrot.lane.b32.xlu0 %v3687, 24
        %v3731 = vpop.permute.xlu0 %3730
        %3732 = vrot.lane.b32.xlu0 %v3689, 24
        %v3733 = vpop.permute.xlu0 %3732
        %3734 = vrot.lane.b32.xlu0 %v3691, 24
        %v3735 = vpop.permute.xlu0 %3734
        %3736 = vrot.lane.b32.xlu0 %v3693, 24
        %v3737 = vpop.permute.xlu0 %3736
        %v3742 = vsel %vm2486, %v2759, %v3699
        %v3743 = vsel %vm2486, %v2761, %v3701
        %v3744 = vsel %vm2486, %v2763, %v3703
        %v3745 = vsel %vm2486, %v2765, %v3705
        %v3746 = vsel %vm2601, %v3742, %v3715
        %v3747 = vsel %vm2601, %v3743, %v3717
        %v3748 = vsel %vm2601, %v3744, %v3719
        %v3749 = vsel %vm2601, %v3745, %v3721
        %vm3750 = vcmask 195584
        %v3751 = vsel %vm3750, %v3746, %v3731
        %v3752 = vsel %vm3750, %v3747, %v3733
        %v3753 = vsel %vm3750, %v3748, %v3735
        %v3754 = vsel %vm3750, %v3749, %v3737
        %v3755 = vpack.c.bf16 %v3752, %v3751
        %v3756 = vpack.c.bf16 %v3754, %v3753
        %s3757 = scalar_lea.vmem %s386, 160 [#allocation4]
        %v3758 = vld [vmem:[%s3757] sm:$0xf]
        %v3759 = vld [vmem:[%s3757 + $0x4] sm:$0xf]
        %v3760 = vld [vmem:[%s3757 + $0x8] sm:$0xf]
        %v3761 = vld [vmem:[%s3757 + $0xc] sm:$0xf]
        %v3762 = vlaneseq
        %v3763 = vshrl.u32 %v3762, 7
        %v3764 = vsub.s32 1, %v3763
        %v3765 = vrot.slane %v701, %v3764
        %v3770 = vunpack.c.l.b16 %v3758
        %v3771 = vunpack.c.l.b16 %v3759
        %v3772 = vunpack.c.l.b16 %v3760
        %v3773 = vunpack.c.l.b16 %v3761
        %v3774 = vpack.c.b16 %v3771, %v3770
        %v3775 = vpack.c.b16 %v3773, %v3772
        %v3779 = vsel %vm704, %v3755, 0
        %v3782 = vsel %vm704, %v3756, 0
        %3784 = vmatprep.subr.bf16.mxu0 0
        %3785 = vmatpush1.bf16.msra.mxu0 %v3774
        %3786 = vmatprep.subr.bf16.mxu0 0
        %3787 = vmatpush1.bf16.msra.mxu0 %v3775
        %3788 = vmatprep.subr.bf16.mxu0 0
        %3789 = vmatpush1.bf16.msra.mxu0 0
        %3790 = vmatprep.subr.bf16.mxu0 0
        %3791 = vmatpush1.bf16.msra.mxu0 0
        %3792 = vmatprep.subr.bf16.mxu0 0
        %3793 = vmatpush1.bf16.msra.mxu0 0
        %3794 = vmatprep.subr.bf16.mxu0 0
        %3795 = vmatpush1.bf16.msra.mxu0 0
        %3796 = vmatprep.subr.bf16.mxu0 0
        %3797 = vmatpush1.bf16.msra.mxu0 0
        %3798 = vmatprep.subr.bf16.mxu0 0
        %3799 = vmatpush1.bf16.msra.mxu0 0
        %3800 = vmatprep.subr.bf16.mxu0 0
        %3801 = vmatpush1.bf16.msra.mxu0 0
        %3802 = vmatprep.subr.bf16.mxu0 0
        %3803 = vmatpush1.bf16.msra.mxu0 0
        %3804 = vmatprep.subr.bf16.mxu0 0
        %3805 = vmatpush1.bf16.msra.mxu0 0
        %3806 = vmatprep.subr.bf16.mxu0 0
        %3807 = vmatpush1.bf16.msra.mxu0 0
        %3808 = vmatprep.subr.bf16.mxu0 0
        %3809 = vmatpush1.bf16.msra.mxu0 0
        %3810 = vmatprep.subr.bf16.mxu0 0
        %3811 = vmatpush1.bf16.msra.mxu0 0
        %3812 = vmatprep.subr.bf16.mxu0 0
        %3813 = vmatpush1.bf16.msra.mxu0 0
        %3814 = vmatprep.subr.bf16.mxu0 0
        %3815 = vmatpush1.bf16.msra.mxu0 0
        %3816 = vmatprep.mubr.bf16.mxu0 0
        %3817 = vmatmul.mubr.bf16.gmra.mrb[0].mxu0 %v3779
        %v3818 = vpop.f32.mrb[0].mxu0
        %v3819 = vadd.f32 %v3765, %v3818
        %v3820 = vpop.f32.mrb[0].mxu0
        %v3821 = vpop.f32.mrb[0].mxu0
        %v3822 = vadd.f32 %v3765, %v3821
        %v3823 = vpop.f32.mrb[0].mxu0
        %3824 = vmatprep.mubr.bf16.mxu0 0
        %3825 = vmatmul.mubr.bf16.gmra.mrb[0].mxu0 %v3782
        %v3826 = vpop.f32.mrb[0].mxu0
        %v3827 = vadd.f32 %v3765, %v3826
        %v3828 = vpop.f32.mrb[0].mxu0
        %v3829 = vpop.f32.mrb[0].mxu0
        %v3830 = vadd.f32 %v3765, %v3829
        %v3831 = vpop.f32.mrb[0].mxu0
        %3832 = vdwg.mxu0
        %v3833 = vpack.c.bf16 %v3822, %v3819
        %v3834 = vpack.c.bf16 %v3830, %v3827
        %s3835 = scalar_lea.vmem %s386, 176 [#allocation4]
        %v3836 = vld [vmem:[%s3835] sm:$0xf]
        %v3837 = vld [vmem:[%s3835 + $0x4] sm:$0xf]
        %v3838 = vld [vmem:[%s3835 + $0x8] sm:$0xf]
        %v3839 = vld [vmem:[%s3835 + $0xc] sm:$0xf]
        %v3840 = vlaneseq
        %v3841 = vshrl.u32 %v3840, 7
        %v3842 = vsub.s32 2, %v3841
        %v3843 = vrot.slane %v701, %v3842
        %v3848 = vunpack.c.l.b16 %v3836
        %v3849 = vunpack.c.l.b16 %v3837
        %v3850 = vunpack.c.l.b16 %v3838
        %v3851 = vunpack.c.l.b16 %v3839
        %v3852 = vpack.c.b16 %v3849, %v3848
        %v3853 = vpack.c.b16 %v3851, %v3850
        %v3857 = vsel %vm704, %v3833, 0
        %v3860 = vsel %vm704, %v3834, 0
        %3862 = vmatprep.subr.bf16.mxu0 0
        %3863 = vmatpush1.bf16.msra.mxu0 %v3852
        %3864 = vmatprep.subr.bf16.mxu0 0
        %3865 = vmatpush1.bf16.msra.mxu0 %v3853
        %3866 = vmatprep.subr.bf16.mxu0 0
        %3867 = vmatpush1.bf16.msra.mxu0 0
        %3868 = vmatprep.subr.bf16.mxu0 0
        %3869 = vmatpush1.bf16.msra.mxu0 0
        %3870 = vmatprep.subr.bf16.mxu0 0
        %3871 = vmatpush1.bf16.msra.mxu0 0
        %3872 = vmatprep.subr.bf16.mxu0 0
        %3873 = vmatpush1.bf16.msra.mxu0 0
        %3874 = vmatprep.subr.bf16.mxu0 0
        %3875 = vmatpush1.bf16.msra.mxu0 0
        %3876 = vmatprep.subr.bf16.mxu0 0
        %3877 = vmatpush1.bf16.msra.mxu0 0
        %3878 = vmatprep.subr.bf16.mxu0 0
        %3879 = vmatpush1.bf16.msra.mxu0 0
        %3880 = vmatprep.subr.bf16.mxu0 0
        %3881 = vmatpush1.bf16.msra.mxu0 0
        %3882 = vmatprep.subr.bf16.mxu0 0
        %3883 = vmatpush1.bf16.msra.mxu0 0
        %3884 = vmatprep.subr.bf16.mxu0 0
        %3885 = vmatpush1.bf16.msra.mxu0 0
        %3886 = vmatprep.subr.bf16.mxu0 0
        %3887 = vmatpush1.bf16.msra.mxu0 0
        %3888 = vmatprep.subr.bf16.mxu0 0
        %3889 = vmatpush1.bf16.msra.mxu0 0
        %3890 = vmatprep.subr.bf16.mxu0 0
        %3891 = vmatpush1.bf16.msra.mxu0 0
        %3892 = vmatprep.subr.bf16.mxu0 0
        %3893 = vmatpush1.bf16.msra.mxu0 0
        %3894 = vmatprep.mubr.bf16.mxu0 0
        %3895 = vmatmul.mubr.bf16.gmra.mrb[0].mxu0 %v3857
        %v3896 = vpop.f32.mrb[0].mxu0
        %v3897 = vadd.f32 %v3843, %v3896
        %v3898 = vpop.f32.mrb[0].mxu0
        %v3899 = vpop.f32.mrb[0].mxu0
        %v3900 = vadd.f32 %v3843, %v3899
        %v3901 = vpop.f32.mrb[0].mxu0
        %3902 = vmatprep.mubr.bf16.mxu0 0
        %3903 = vmatmul.mubr.bf16.gmra.mrb[0].mxu0 %v3860
        %v3904 = vpop.f32.mrb[0].mxu0
        %v3905 = vadd.f32 %v3843, %v3904
        %v3906 = vpop.f32.mrb[0].mxu0
        %v3907 = vpop.f32.mrb[0].mxu0
        %v3908 = vadd.f32 %v3843, %v3907
        %v3909 = vpop.f32.mrb[0].mxu0
        %3910 = vdwg.mxu0
        %v3911 = vsel %vm704, %v3897, 0.0
        %3912 = vadd.xlane.f32.xlu0 %v3911
        %v3913 = vpop.xlane.xlu0 %3912
        %v3914 = vsel %vm704, %v3900, 0.0
        %3915 = vadd.xlane.f32.xlu0 %v3914
        %v3916 = vpop.xlane.xlu0 %3915
        %v3917 = vsel %vm704, %v3905, 0.0
        %3918 = vadd.xlane.f32.xlu0 %v3917
        %v3919 = vpop.xlane.xlu0 %3918
        %v3920 = vsel %vm704, %v3908, 0.0
        %3921 = vadd.xlane.f32.xlu0 %v3920
        %v3922 = vpop.xlane.xlu0 %3921
        %v3923 = vmul.f32 %v3913, %v753
        %v3924 = vmul.f32 %v3916, %v753
        %v3925 = vmul.f32 %v3919, %v753
        %v3926 = vmul.f32 %v3922, %v753
        %v3927 = vsub.f32 %v3897, %v3923
        %v3928 = vsub.f32 %v3900, %v3924
        %v3929 = vsub.f32 %v3905, %v3925
        %v3930 = vsub.f32 %v3908, %v3926
        %v3931 = vmul.f32 %v3927, %v3927
        %v3932 = vmul.f32 %v3928, %v3928
        %v3933 = vmul.f32 %v3929, %v3929
        %v3934 = vmul.f32 %v3930, %v3930
        %v3935 = vsel %vm704, %v3931, 0.0
        %3936 = vadd.xlane.f32.xlu0 %v3935
        %v3937 = vpop.xlane.xlu0 %3936
        %v3938 = vsel %vm704, %v3932, 0.0
        %3939 = vadd.xlane.f32.xlu0 %v3938
        %v3940 = vpop.xlane.xlu0 %3939
        %v3941 = vsel %vm704, %v3933, 0.0
        %3942 = vadd.xlane.f32.xlu0 %v3941
        %v3943 = vpop.xlane.xlu0 %3942
        %v3944 = vsel %vm704, %v3934, 0.0
        %3945 = vadd.xlane.f32.xlu0 %v3944
        %v3946 = vpop.xlane.xlu0 %3945
        %v3947 = vmul.f32 %v3937, %v753
        %v3948 = vmul.f32 %v3940, %v753
        %v3949 = vmul.f32 %v3943, %v753
        %v3950 = vmul.f32 %v3946, %v753
        %v3951 = vadd.f32 %v3947, 1e-05
        %v3952 = vadd.f32 %v3948, 1e-05
        %v3953 = vadd.f32 %v3949, 1e-05
        %v3954 = vadd.f32 %v3950, 1e-05
        %v3955 = vrsqrt.pop %v3951
        %v3956 = vrsqrt.pop %v3952
        %v3957 = vrsqrt.pop %v3953
        %v3958 = vrsqrt.pop %v3954
        %v3959 = vmul.f32 %v3927, %v3955
        %v3960 = vmul.f32 %v3928, %v3956
        %v3961 = vmul.f32 %v3929, %v3957
        %v3962 = vmul.f32 %v3930, %v3958
        %v3963 = vlaneseq
        %v3964 = vshrl.u32 %v3963, 7
        %v3965 = vsub.s32 3, %v3964
        %v3966 = vrot.slane %v701, %v3965
        %v3967 = vmul.f32 %v3959, %v3966
        %v3968 = vmul.f32 %v3960, %v3966
        %v3969 = vmul.f32 %v3961, %v3966
        %v3970 = vmul.f32 %v3962, %v3966
        %v3971 = vlaneseq
        %v3972 = vshrl.u32 %v3971, 7
        %v3973 = vsub.s32 4, %v3972
        %v3974 = vrot.slane %v701, %v3973
        %v3975 = vadd.f32 %v3967, %v3974
        %v3976 = vadd.f32 %v3968, %v3974
        %v3977 = vadd.f32 %v3969, %v3974
        %v3978 = vadd.f32 %v3970, %v3974
        %v3979 = vpack.c.bf16 %v3976, %v3975
        %v3980 = vpack.c.bf16 %v3978, %v3977
        %s3981 = scalar_lea.vmem %s386, 192 [#allocation4]
        %v3982 = vld [vmem:[%s3981] sm:$0xf]
        %v3983 = vld [vmem:[%s3981 + $0x4] sm:$0xf]
        %v3984 = vld [vmem:[%s3981 + $0x8] sm:$0xf]
        %v3985 = vld [vmem:[%s3981 + $0xc] sm:$0xf]
        %v3986 = vlaneseq
        %v3987 = vshrl.u32 %v3986, 7
        %v3988 = vsub.s32 5, %v3987
        %v3989 = vrot.slane %v701, %v3988
        %v3994 = vunpack.c.l.b16 %v3982
        %v3995 = vunpack.c.l.b16 %v3983
        %v3996 = vunpack.c.l.b16 %v3984
        %v3997 = vunpack.c.l.b16 %v3985
        %v3998 = vpack.c.b16 %v3995, %v3994
        %v3999 = vpack.c.b16 %v3997, %v3996
        %v4003 = vsel %vm704, %v3979, 0
        %v4006 = vsel %vm704, %v3980, 0
        %4008 = vmatprep.subr.bf16.mxu0 0
        %4009 = vmatpush1.bf16.msra.mxu0 %v3998
        %4010 = vmatprep.subr.bf16.mxu0 0
        %4011 = vmatpush1.bf16.msra.mxu0 %v3999
        %4012 = vmatprep.subr.bf16.mxu0 0
        %4013 = vmatpush1.bf16.msra.mxu0 0
        %4014 = vmatprep.subr.bf16.mxu0 0
        %4015 = vmatpush1.bf16.msra.mxu0 0
        %4016 = vmatprep.subr.bf16.mxu0 0
        %4017 = vmatpush1.bf16.msra.mxu0 0
        %4018 = vmatprep.subr.bf16.mxu0 0
        %4019 = vmatpush1.bf16.msra.mxu0 0
        %4020 = vmatprep.subr.bf16.mxu0 0
        %4021 = vmatpush1.bf16.msra.mxu0 0
        %4022 = vmatprep.subr.bf16.mxu0 0
        %4023 = vmatpush1.bf16.msra.mxu0 0
        %4024 = vmatprep.subr.bf16.mxu0 0
        %4025 = vmatpush1.bf16.msra.mxu0 0
        %4026 = vmatprep.subr.bf16.mxu0 0
        %4027 = vmatpush1.bf16.msra.mxu0 0
        %4028 = vmatprep.subr.bf16.mxu0 0
        %4029 = vmatpush1.bf16.msra.mxu0 0
        %4030 = vmatprep.subr.bf16.mxu0 0
        %4031 = vmatpush1.bf16.msra.mxu0 0
        %4032 = vmatprep.subr.bf16.mxu0 0
        %4033 = vmatpush1.bf16.msra.mxu0 0
        %4034 = vmatprep.subr.bf16.mxu0 0
        %4035 = vmatpush1.bf16.msra.mxu0 0
        %4036 = vmatprep.subr.bf16.mxu0 0
        %4037 = vmatpush1.bf16.msra.mxu0 0
        %4038 = vmatprep.subr.bf16.mxu0 0
        %4039 = vmatpush1.bf16.msra.mxu0 0
        %4040 = vmatprep.mubr.bf16.mxu0 0
        %4041 = vmatmul.mubr.bf16.gmra.mrb[0].mxu0 %v4003
        %v4042 = vpop.f32.mrb[0].mxu0
        %v4043 = vadd.f32 %v3989, %v4042
        %v4044 = vpop.f32.mrb[0].mxu0
        %v4045 = vpop.f32.mrb[0].mxu0
        %v4046 = vadd.f32 %v3989, %v4045
        %v4047 = vpop.f32.mrb[0].mxu0
        %4048 = vmatprep.mubr.bf16.mxu0 0
        %4049 = vmatmul.mubr.bf16.gmra.mrb[0].mxu0 %v4006
        %v4050 = vpop.f32.mrb[0].mxu0
        %v4051 = vadd.f32 %v3989, %v4050
        %v4052 = vpop.f32.mrb[0].mxu0
        %v4053 = vpop.f32.mrb[0].mxu0
        %v4054 = vadd.f32 %v3989, %v4053
        %v4055 = vpop.f32.mrb[0].mxu0
        %4056 = vdwg.mxu0
        %v4057 = vmul.f32 %v4043, 0.5
        %v4058 = vmul.f32 %v4046, 0.5
        %v4059 = vmul.f32 %v4051, 0.5
        %v4060 = vmul.f32 %v4054, 0.5
        %v4061 = vmul.f32 %v4043, 0.70710677
        %v4062 = vmul.f32 %v4046, 0.70710677
        %v4063 = vmul.f32 %v4051, 0.70710677
        %v4064 = vmul.f32 %v4054, 0.70710677
        %vm4065 = vcmp.ge.f32.partialorder %v4061, 0.0
        %vm4066 = vcmp.ge.f32.partialorder %v4062, 0.0
        %vm4067 = vcmp.ge.f32.partialorder %v4063, 0.0
        %vm4068 = vcmp.ge.f32.partialorder %v4064, 0.0
        %v4069 = vsel %vm4065, 1.0, -1.0
        %v4070 = vsel %vm4066, 1.0, -1.0
        %v4071 = vsel %vm4067, 1.0, -1.0
        %v4072 = vsel %vm4068, 1.0, -1.0
        %v4073 = vand.u32 2147483647, %v4061
        %v4074 = vand.u32 2147483647, %v4062
        %v4075 = vand.u32 2147483647, %v4063
        %v4076 = vand.u32 2147483647, %v4064
        %v4077 = vmul.f32 %v4073, 0.3275911
        %v4078 = vmul.f32 %v4074, 0.3275911
        %v4079 = vmul.f32 %v4075, 0.3275911
        %v4080 = vmul.f32 %v4076, 0.3275911
        %v4081 = vadd.f32 %v4077, 1.0
        %v4082 = vadd.f32 %v4078, 1.0
        %v4083 = vadd.f32 %v4079, 1.0
        %v4084 = vadd.f32 %v4080, 1.0
        %v4085 = vrcp.pop %v4081
        %v4086 = vmul.f32 1.0, %v4085
        %v4087 = vrcp.pop %v4082
        %v4088 = vmul.f32 1.0, %v4087
        %v4089 = vrcp.pop %v4083
        %v4090 = vmul.f32 1.0, %v4089
        %v4091 = vrcp.pop %v4084
        %v4092 = vmul.f32 1.0, %v4091
        %v4093 = vmul.f32 %v4086, 1.0614054
        %v4094 = vmul.f32 %v4088, 1.0614054
        %v4095 = vmul.f32 %v4090, 1.0614054
        %v4096 = vmul.f32 %v4092, 1.0614054
        %v4097 = vadd.f32 %v4093, -1.4531521
        %v4098 = vadd.f32 %v4094, -1.4531521
        %v4099 = vadd.f32 %v4095, -1.4531521
        %v4100 = vadd.f32 %v4096, -1.4531521
        %v4101 = vmul.f32 %v4097, %v4086
        %v4102 = vmul.f32 %v4098, %v4088
        %v4103 = vmul.f32 %v4099, %v4090
        %v4104 = vmul.f32 %v4100, %v4092
        %v4105 = vadd.f32 %v4101, 1.4214138
        %v4106 = vadd.f32 %v4102, 1.4214138
        %v4107 = vadd.f32 %v4103, 1.4214138
        %v4108 = vadd.f32 %v4104, 1.4214138
        %v4109 = vmul.f32 %v4105, %v4086
        %v4110 = vmul.f32 %v4106, %v4088
        %v4111 = vmul.f32 %v4107, %v4090
        %v4112 = vmul.f32 %v4108, %v4092
        %v4113 = vadd.f32 %v4109, -0.28449672
        %v4114 = vadd.f32 %v4110, -0.28449672
        %v4115 = vadd.f32 %v4111, -0.28449672
        %v4116 = vadd.f32 %v4112, -0.28449672
        %v4117 = vmul.f32 %v4113, %v4086
        %v4118 = vmul.f32 %v4114, %v4088
        %v4119 = vmul.f32 %v4115, %v4090
        %v4120 = vmul.f32 %v4116, %v4092
        %v4121 = vadd.f32 %v4117, 0.2548296
        %v4122 = vadd.f32 %v4118, 0.2548296
        %v4123 = vadd.f32 %v4119, 0.2548296
        %v4124 = vadd.f32 %v4120, 0.2548296
        %v4125 = vmul.f32 %v4121, %v4086
        %v4126 = vmul.f32 %v4122, %v4088
        %v4127 = vmul.f32 %v4123, %v4090
        %v4128 = vmul.f32 %v4124, %v4092
        %v4129 = vsub.f32 0.0, %v4073
        %v4130 = vsub.f32 0.0, %v4074
        %v4131 = vsub.f32 0.0, %v4075
        %v4132 = vsub.f32 0.0, %v4076
        %v4133 = vmul.f32 %v4129, %v4073
        %v4134 = vmul.f32 %v4130, %v4074
        %v4135 = vmul.f32 %v4131, %v4075
        %v4136 = vmul.f32 %v4132, %v4076
        %v4137 = vmul.f32 %v4133, 1.442695
        %v4138 = vpow.pop %v4137
        %v4139 = vmul.f32 %v4134, 1.442695
        %v4140 = vpow.pop %v4139
        %v4141 = vmul.f32 %v4135, 1.442695
        %v4142 = vpow.pop %v4141
        %v4143 = vmul.f32 %v4136, 1.442695
        %v4144 = vpow.pop %v4143
        %v4145 = vmul.f32 %v4125, %v4138
        %v4146 = vmul.f32 %v4126, %v4140
        %v4147 = vmul.f32 %v4127, %v4142
        %v4148 = vmul.f32 %v4128, %v4144
        %v4149 = vsub.f32 1.0, %v4145
        %v4150 = vsub.f32 1.0, %v4146
        %v4151 = vsub.f32 1.0, %v4147
        %v4152 = vsub.f32 1.0, %v4148
        %v4153 = vmul.f32 %v4069, %v4149
        %v4154 = vmul.f32 %v4070, %v4150
        %v4155 = vmul.f32 %v4071, %v4151
        %v4156 = vmul.f32 %v4072, %v4152
        %v4157 = vadd.f32 %v4153, 1.0
        %v4158 = vadd.f32 %v4154, 1.0
        %v4159 = vadd.f32 %v4155, 1.0
        %v4160 = vadd.f32 %v4156, 1.0
        %v4161 = vmul.f32 %v4057, %v4157
        %v4162 = vmul.f32 %v4058, %v4158
        %v4163 = vmul.f32 %v4059, %v4159
        %v4164 = vmul.f32 %v4060, %v4160
        %v4165 = vpack.c.bf16 %v4162, %v4161
        %v4166 = vpack.c.bf16 %v4164, %v4163
        %s4167 = scalar_lea.vmem %s386, 208 [#allocation4]
        %v4168 = vld [vmem:[%s4167] sm:$0xf]
        %v4169 = vld [vmem:[%s4167 + $0x4] sm:$0xf]
        %v4170 = vld [vmem:[%s4167 + $0x8] sm:$0xf]
        %v4171 = vld [vmem:[%s4167 + $0xc] sm:$0xf]
        %v4172 = vlaneseq
        %v4173 = vshrl.u32 %v4172, 7
        %v4174 = vsub.s32 6, %v4173
        %v4175 = vrot.slane %v701, %v4174
        %v4180 = vunpack.c.l.b16 %v4168
        %v4181 = vunpack.c.l.b16 %v4169
        %v4182 = vunpack.c.l.b16 %v4170
        %v4183 = vunpack.c.l.b16 %v4171
        %v4184 = vpack.c.b16 %v4181, %v4180
        %v4185 = vpack.c.b16 %v4183, %v4182
        %v4189 = vsel %vm704, %v4165, 0
        %v4192 = vsel %vm704, %v4166, 0
        %4194 = vmatprep.subr.bf16.mxu0 0
        %4195 = vmatpush1.bf16.msra.mxu0 %v4184
        %4196 = vmatprep.subr.bf16.mxu0 0
        %4197 = vmatpush1.bf16.msra.mxu0 %v4185
        %4198 = vmatprep.subr.bf16.mxu0 0
        %4199 = vmatpush1.bf16.msra.mxu0 0
        %4200 = vmatprep.subr.bf16.mxu0 0
        %4201 = vmatpush1.bf16.msra.mxu0 0
        %4202 = vmatprep.subr.bf16.mxu0 0
        %4203 = vmatpush1.bf16.msra.mxu0 0
        %4204 = vmatprep.subr.bf16.mxu0 0
        %4205 = vmatpush1.bf16.msra.mxu0 0
        %4206 = vmatprep.subr.bf16.mxu0 0
        %4207 = vmatpush1.bf16.msra.mxu0 0
        %4208 = vmatprep.subr.bf16.mxu0 0
        %4209 = vmatpush1.bf16.msra.mxu0 0
        %4210 = vmatprep.subr.bf16.mxu0 0
        %4211 = vmatpush1.bf16.msra.mxu0 0
        %4212 = vmatprep.subr.bf16.mxu0 0
        %4213 = vmatpush1.bf16.msra.mxu0 0
        %4214 = vmatprep.subr.bf16.mxu0 0
        %4215 = vmatpush1.bf16.msra.mxu0 0
        %4216 = vmatprep.subr.bf16.mxu0 0
        %4217 = vmatpush1.bf16.msra.mxu0 0
        %4218 = vmatprep.subr.bf16.mxu0 0
        %4219 = vmatpush1.bf16.msra.mxu0 0
        %4220 = vmatprep.subr.bf16.mxu0 0
        %4221 = vmatpush1.bf16.msra.mxu0 0
        %4222 = vmatprep.subr.bf16.mxu0 0
        %4223 = vmatpush1.bf16.msra.mxu0 0
        %4224 = vmatprep.subr.bf16.mxu0 0
        %4225 = vmatpush1.bf16.msra.mxu0 0
        %4226 = vmatprep.mubr.bf16.mxu0 0
        %4227 = vmatmul.mubr.bf16.gmra.mrb[0].mxu0 %v4189
        %v4228 = vpop.f32.mrb[0].mxu0
        %v4229 = vadd.f32 %v4175, %v4228
        %v4230 = vpop.f32.mrb[0].mxu0
        %v4231 = vpop.f32.mrb[0].mxu0
        %v4232 = vadd.f32 %v4175, %v4231
        %v4233 = vpop.f32.mrb[0].mxu0
        %4234 = vmatprep.mubr.bf16.mxu0 0
        %4235 = vmatmul.mubr.bf16.gmra.mrb[0].mxu0 %v4192
        %v4236 = vpop.f32.mrb[0].mxu0
        %v4237 = vadd.f32 %v4175, %v4236
        %v4238 = vpop.f32.mrb[0].mxu0
        %v4239 = vpop.f32.mrb[0].mxu0
        %v4240 = vadd.f32 %v4175, %v4239
        %v4241 = vpop.f32.mrb[0].mxu0
        %4242 = vdwg.mxu0
        %v4243 = vadd.f32 %v4229, %v2168
        %v4244 = vadd.f32 %v4232, %v2169
        %v4245 = vadd.f32 %v4237, %v2170
        %v4246 = vadd.f32 %v4240, %v2171
        %v4247 = vsel %vm704, %v4243, 0.0
        %4248 = vadd.xlane.f32.xlu0 %v4247
        %v4249 = vpop.xlane.xlu0 %4248
        %v4250 = vsel %vm704, %v4244, 0.0
        %4251 = vadd.xlane.f32.xlu0 %v4250
        %v4252 = vpop.xlane.xlu0 %4251
        %v4253 = vsel %vm704, %v4245, 0.0
        %4254 = vadd.xlane.f32.xlu0 %v4253
        %v4255 = vpop.xlane.xlu0 %4254
        %v4256 = vsel %vm704, %v4246, 0.0
        %4257 = vadd.xlane.f32.xlu0 %v4256
        %v4258 = vpop.xlane.xlu0 %4257
        %v4259 = vmul.f32 %v4249, %v753
        %v4260 = vmul.f32 %v4252, %v753
        %v4261 = vmul.f32 %v4255, %v753
        %v4262 = vmul.f32 %v4258, %v753
        %v4263 = vsub.f32 %v4243, %v4259
        %v4264 = vsub.f32 %v4244, %v4260
        %v4265 = vsub.f32 %v4245, %v4261
        %v4266 = vsub.f32 %v4246, %v4262
        %v4267 = vmul.f32 %v4263, %v4263
        %v4268 = vmul.f32 %v4264, %v4264
        %v4269 = vmul.f32 %v4265, %v4265
        %v4270 = vmul.f32 %v4266, %v4266
        %v4271 = vsel %vm704, %v4267, 0.0
        %4272 = vadd.xlane.f32.xlu0 %v4271
        %v4273 = vpop.xlane.xlu0 %4272
        %v4274 = vsel %vm704, %v4268, 0.0
        %4275 = vadd.xlane.f32.xlu0 %v4274
        %v4276 = vpop.xlane.xlu0 %4275
        %v4277 = vsel %vm704, %v4269, 0.0
        %4278 = vadd.xlane.f32.xlu0 %v4277
        %v4279 = vpop.xlane.xlu0 %4278
        %v4280 = vsel %vm704, %v4270, 0.0
        %4281 = vadd.xlane.f32.xlu0 %v4280
        %v4282 = vpop.xlane.xlu0 %4281
        %v4283 = vmul.f32 %v4273, %v753
        %v4284 = vmul.f32 %v4276, %v753
        %v4285 = vmul.f32 %v4279, %v753
        %v4286 = vmul.f32 %v4282, %v753
        %v4287 = vadd.f32 %v4283, 1e-05
        %v4288 = vadd.f32 %v4284, 1e-05
        %v4289 = vadd.f32 %v4285, 1e-05
        %v4290 = vadd.f32 %v4286, 1e-05
        %v4291 = vrsqrt.pop %v4287
        %v4292 = vrsqrt.pop %v4288
        %v4293 = vrsqrt.pop %v4289
        %v4294 = vrsqrt.pop %v4290
        %v4295 = vmul.f32 %v4263, %v4291
        %v4296 = vmul.f32 %v4264, %v4292
        %v4297 = vmul.f32 %v4265, %v4293
        %v4298 = vmul.f32 %v4266, %v4294
        %v4299 = vlaneseq
        %v4300 = vshrl.u32 %v4299, 7
        %v4301 = vsub.s32 0, %v4300
        %v4302 = vrot.slane %v702, %v4301
        %v4303 = vmul.f32 %v4295, %v4302
        %v4304 = vmul.f32 %v4296, %v4302
        %v4305 = vmul.f32 %v4297, %v4302
        %v4306 = vmul.f32 %v4298, %v4302
        %v4307 = vlaneseq
        %v4308 = vshrl.u32 %v4307, 7
        %v4309 = vsub.s32 1, %v4308
        %v4310 = vrot.slane %v702, %v4309
        %v4311 = vadd.f32 %v4303, %v4310
        %v4312 = vadd.f32 %v4304, %v4310
        %v4313 = vadd.f32 %v4305, %v4310
        %v4314 = vadd.f32 %v4306, %v4310
        %v4315 = vlaneseq
        %v4316 = vshrl.u32 %v4315, 7
        %v4317 = vsub.s32 2, %v4316
        %v4318 = vrot.slane %v702, %v4317
        %v4319 = vmul.f32 %v4295, %v4318
        %v4320 = vmul.f32 %v4296, %v4318
        %v4321 = vmul.f32 %v4297, %v4318
        %v4322 = vmul.f32 %v4298, %v4318
        %v4323 = vlaneseq
        %v4324 = vshrl.u32 %v4323, 7
        %v4325 = vsub.s32 3, %v4324
        %v4326 = vrot.slane %v702, %v4325
        %v4327 = vadd.f32 %v4319, %v4326
        %v4328 = vadd.f32 %v4320, %v4326
        %v4329 = vadd.f32 %v4321, %v4326
        %v4330 = vadd.f32 %v4322, %v4326
        %v4331 = vpack.c.bf16 %v4328, %v4327
        %v4332 = vpack.c.bf16 %v4330, %v4329
        %s4333 = scalar_lea.vmem %s386, 224 [#allocation4]
        %v4334 = vld [vmem:[%s4333] sm:$0xf]
        %v4335 = vld [vmem:[%s4333 + $0x4] sm:$0xf]
        %v4336 = vld [vmem:[%s4333 + $0x8] sm:$0xf]
        %v4337 = vld [vmem:[%s4333 + $0xc] sm:$0xf]
        %v4338 = vlaneseq
        %v4339 = vshrl.u32 %v4338, 7
        %v4340 = vsub.s32 4, %v4339
        %v4341 = vrot.slane %v702, %v4340
        %v4346 = vunpack.c.l.b16 %v4334
        %v4347 = vunpack.c.l.b16 %v4335
        %v4348 = vunpack.c.l.b16 %v4336
        %v4349 = vunpack.c.l.b16 %v4337
        %v4350 = vpack.c.b16 %v4347, %v4346
        %v4351 = vpack.c.b16 %v4349, %v4348
        %v4355 = vsel %vm704, %v4331, 0
        %v4358 = vsel %vm704, %v4332, 0
        %4360 = vmatprep.subr.bf16.mxu0 0
        %4361 = vmatpush1.bf16.msra.mxu0 %v4350
        %4362 = vmatprep.subr.bf16.mxu0 0
        %4363 = vmatpush1.bf16.msra.mxu0 %v4351
        %4364 = vmatprep.subr.bf16.mxu0 0
        %4365 = vmatpush1.bf16.msra.mxu0 0
        %4366 = vmatprep.subr.bf16.mxu0 0
        %4367 = vmatpush1.bf16.msra.mxu0 0
        %4368 = vmatprep.subr.bf16.mxu0 0
        %4369 = vmatpush1.bf16.msra.mxu0 0
        %4370 = vmatprep.subr.bf16.mxu0 0
        %4371 = vmatpush1.bf16.msra.mxu0 0
        %4372 = vmatprep.subr.bf16.mxu0 0
        %4373 = vmatpush1.bf16.msra.mxu0 0
        %4374 = vmatprep.subr.bf16.mxu0 0
        %4375 = vmatpush1.bf16.msra.mxu0 0
        %4376 = vmatprep.subr.bf16.mxu0 0
        %4377 = vmatpush1.bf16.msra.mxu0 0
        %4378 = vmatprep.subr.bf16.mxu0 0
        %4379 = vmatpush1.bf16.msra.mxu0 0
        %4380 = vmatprep.subr.bf16.mxu0 0
        %4381 = vmatpush1.bf16.msra.mxu0 0
        %4382 = vmatprep.subr.bf16.mxu0 0
        %4383 = vmatpush1.bf16.msra.mxu0 0
        %4384 = vmatprep.subr.bf16.mxu0 0
        %4385 = vmatpush1.bf16.msra.mxu0 0
        %4386 = vmatprep.subr.bf16.mxu0 0
        %4387 = vmatpush1.bf16.msra.mxu0 0
        %4388 = vmatprep.subr.bf16.mxu0 0
        %4389 = vmatpush1.bf16.msra.mxu0 0
        %4390 = vmatprep.subr.bf16.mxu0 0
        %4391 = vmatpush1.bf16.msra.mxu0 0
        %4392 = vmatprep.mubr.bf16.mxu0 0
        %4393 = vmatmul.mubr.bf16.gmra.mrb[0].mxu0 %v4355
        %v4394 = vpop.f32.mrb[0].mxu0
        %v4395 = vadd.f32 %v4341, %v4394
        %v4396 = vpop.f32.mrb[0].mxu0
        %v4397 = vpop.f32.mrb[0].mxu0
        %v4398 = vadd.f32 %v4341, %v4397
        %v4399 = vpop.f32.mrb[0].mxu0
        %4400 = vmatprep.mubr.bf16.mxu0 0
        %4401 = vmatmul.mubr.bf16.gmra.mrb[0].mxu0 %v4358
        %v4402 = vpop.f32.mrb[0].mxu0
        %v4403 = vadd.f32 %v4341, %v4402
        %v4404 = vpop.f32.mrb[0].mxu0
        %v4405 = vpop.f32.mrb[0].mxu0
        %v4406 = vadd.f32 %v4341, %v4405
        %v4407 = vpop.f32.mrb[0].mxu0
        %4408 = vdwg.mxu0
        %v4409 = vpack.c.bf16 %v4312, %v4311
        %v4410 = vpack.c.bf16 %v4314, %v4313
        %s4411 = scalar_lea.vmem %s386, 240 [#allocation4]
        %v4412 = vld [vmem:[%s4411] sm:$0xf]
        %v4413 = vld [vmem:[%s4411 + $0x4] sm:$0xf]
        %v4414 = vld [vmem:[%s4411 + $0x8] sm:$0xf]
        %v4415 = vld [vmem:[%s4411 + $0xc] sm:$0xf]
        %v4416 = vlaneseq
        %v4417 = vshrl.u32 %v4416, 7
        %v4418 = vsub.s32 5, %v4417
        %v4419 = vrot.slane %v702, %v4418
        %v4424 = vunpack.c.l.b16 %v4412
        %v4425 = vunpack.c.l.b16 %v4413
        %v4426 = vunpack.c.l.b16 %v4414
        %v4427 = vunpack.c.l.b16 %v4415
        %v4428 = vpack.c.b16 %v4425, %v4424
        %v4429 = vpack.c.b16 %v4427, %v4426
        %v4433 = vsel %vm704, %v4409, 0
        %v4436 = vsel %vm704, %v4410, 0
        %4438 = vmatprep.subr.bf16.mxu0 0
        %4439 = vmatpush1.bf16.msra.mxu0 %v4428
        %4440 = vmatprep.subr.bf16.mxu0 0
        %4441 = vmatpush1.bf16.msra.mxu0 %v4429
        %4442 = vmatprep.subr.bf16.mxu0 0
        %4443 = vmatpush1.bf16.msra.mxu0 0
        %4444 = vmatprep.subr.bf16.mxu0 0
        %4445 = vmatpush1.bf16.msra.mxu0 0
        %4446 = vmatprep.subr.bf16.mxu0 0
        %4447 = vmatpush1.bf16.msra.mxu0 0
        %4448 = vmatprep.subr.bf16.mxu0 0
        %4449 = vmatpush1.bf16.msra.mxu0 0
        %4450 = vmatprep.subr.bf16.mxu0 0
        %4451 = vmatpush1.bf16.msra.mxu0 0
        %4452 = vmatprep.subr.bf16.mxu0 0
        %4453 = vmatpush1.bf16.msra.mxu0 0
        %4454 = vmatprep.subr.bf16.mxu0 0
        %4455 = vmatpush1.bf16.msra.mxu0 0
        %4456 = vmatprep.subr.bf16.mxu0 0
        %4457 = vmatpush1.bf16.msra.mxu0 0
        %4458 = vmatprep.subr.bf16.mxu0 0
        %4459 = vmatpush1.bf16.msra.mxu0 0
        %4460 = vmatprep.subr.bf16.mxu0 0
        %4461 = vmatpush1.bf16.msra.mxu0 0
        %4462 = vmatprep.subr.bf16.mxu0 0
        %4463 = vmatpush1.bf16.msra.mxu0 0
        %4464 = vmatprep.subr.bf16.mxu0 0
        %4465 = vmatpush1.bf16.msra.mxu0 0
        %4466 = vmatprep.subr.bf16.mxu0 0
        %4467 = vmatpush1.bf16.msra.mxu0 0
        %4468 = vmatprep.subr.bf16.mxu0 0
        %4469 = vmatpush1.bf16.msra.mxu0 0
        %4470 = vmatprep.mubr.bf16.mxu0 0
        %4471 = vmatmul.mubr.bf16.gmra.mrb[0].mxu0 %v4433
        %v4472 = vpop.f32.mrb[0].mxu0
        %v4473 = vadd.f32 %v4419, %v4472
        %v4474 = vpop.f32.mrb[0].mxu0
        %v4475 = vpop.f32.mrb[0].mxu0
        %v4476 = vadd.f32 %v4419, %v4475
        %v4477 = vpop.f32.mrb[0].mxu0
        %4478 = vmatprep.mubr.bf16.mxu0 0
        %4479 = vmatmul.mubr.bf16.gmra.mrb[0].mxu0 %v4436
        %v4480 = vpop.f32.mrb[0].mxu0
        %v4481 = vadd.f32 %v4419, %v4480
        %v4482 = vpop.f32.mrb[0].mxu0
        %v4483 = vpop.f32.mrb[0].mxu0
        %v4484 = vadd.f32 %v4419, %v4483
        %v4485 = vpop.f32.mrb[0].mxu0
        %4486 = vdwg.mxu0
        %s4487 = scalar_lea.vmem %s386, 256 [#allocation4]
        %v4488 = vld [vmem:[%s4487] sm:$0xf]
        %v4489 = vld [vmem:[%s4487 + $0x4] sm:$0xf]
        %v4490 = vld [vmem:[%s4487 + $0x8] sm:$0xf]
        %v4491 = vld [vmem:[%s4487 + $0xc] sm:$0xf]
        %v4492 = vlaneseq
        %v4493 = vshrl.u32 %v4492, 7
        %v4494 = vsub.s32 6, %v4493
        %v4495 = vrot.slane %v702, %v4494
        %v4500 = vunpack.c.l.b16 %v4488
        %v4501 = vunpack.c.l.b16 %v4489
        %v4502 = vunpack.c.l.b16 %v4490
        %v4503 = vunpack.c.l.b16 %v4491
        %v4504 = vpack.c.b16 %v4501, %v4500
        %v4505 = vpack.c.b16 %v4503, %v4502
        %4508 = vmatprep.subr.bf16.mxu0 0
        %4509 = vmatpush1.bf16.msra.mxu0 %v4504
        %4510 = vmatprep.subr.bf16.mxu0 0
        %4511 = vmatpush1.bf16.msra.mxu0 %v4505
        %4512 = vmatprep.subr.bf16.mxu0 0
        %4513 = vmatpush1.bf16.msra.mxu0 0
        %4514 = vmatprep.subr.bf16.mxu0 0
        %4515 = vmatpush1.bf16.msra.mxu0 0
        %4516 = vmatprep.subr.bf16.mxu0 0
        %4517 = vmatpush1.bf16.msra.mxu0 0
        %4518 = vmatprep.subr.bf16.mxu0 0
        %4519 = vmatpush1.bf16.msra.mxu0 0
        %4520 = vmatprep.subr.bf16.mxu0 0
        %4521 = vmatpush1.bf16.msra.mxu0 0
        %4522 = vmatprep.subr.bf16.mxu0 0
        %4523 = vmatpush1.bf16.msra.mxu0 0
        %4524 = vmatprep.subr.bf16.mxu0 0
        %4525 = vmatpush1.bf16.msra.mxu0 0
        %4526 = vmatprep.subr.bf16.mxu0 0
        %4527 = vmatpush1.bf16.msra.mxu0 0
        %4528 = vmatprep.subr.bf16.mxu0 0
        %4529 = vmatpush1.bf16.msra.mxu0 0
        %4530 = vmatprep.subr.bf16.mxu0 0
        %4531 = vmatpush1.bf16.msra.mxu0 0
        %4532 = vmatprep.subr.bf16.mxu0 0
        %4533 = vmatpush1.bf16.msra.mxu0 0
        %4534 = vmatprep.subr.bf16.mxu0 0
        %4535 = vmatpush1.bf16.msra.mxu0 0
        %4536 = vmatprep.subr.bf16.mxu0 0
        %4537 = vmatpush1.bf16.msra.mxu0 0
        %4538 = vmatprep.subr.bf16.mxu0 0
        %4539 = vmatpush1.bf16.msra.mxu0 0
        %4540 = vmatprep.mubr.bf16.mxu0 0
        %4541 = vmatmul.mubr.bf16.gmra.mrb[0].mxu0 %v4433
        %v4542 = vpop.f32.mrb[0].mxu0
        %v4543 = vadd.f32 %v4495, %v4542
        %v4544 = vpop.f32.mrb[0].mxu0
        %v4545 = vpop.f32.mrb[0].mxu0
        %v4546 = vadd.f32 %v4495, %v4545
        %v4547 = vpop.f32.mrb[0].mxu0
        %4548 = vmatprep.mubr.bf16.mxu0 0
        %4549 = vmatmul.mubr.bf16.gmra.mrb[0].mxu0 %v4436
        %v4550 = vpop.f32.mrb[0].mxu0
        %v4551 = vadd.f32 %v4495, %v4550
        %v4552 = vpop.f32.mrb[0].mxu0
        %v4553 = vpop.f32.mrb[0].mxu0
        %v4554 = vadd.f32 %v4495, %v4553
        %v4555 = vpop.f32.mrb[0].mxu0
        %4556 = vdwg.mxu0
        %v4557 = vpack.c.bf16 %v4398, %v4395
        %v4558 = vpack.c.bf16 %v4406, %v4403
        %v4559 = vpack.c.bf16 %v4476, %v4473
        %v4560 = vpack.c.bf16 %v4484, %v4481
        %v4562 = vsel %vm2486, %v4557, 0
        %v4565 = vsel %vm2486, %v4559, 0
        %4567 = vmatprep.subr.bf16.mxu0 0
        %4568 = vmatpush1.bf16.xpose.msra.mxu0 %v4565
        %4569 = vmatprep.subr.bf16.mxu0 0
        %4570 = vmatpush1.bf16.xpose.msra.mxu0 0
        %4571 = vmatprep.subr.bf16.mxu0 0
        %4572 = vmatpush1.bf16.xpose.msra.mxu0 0
        %4573 = vmatprep.subr.bf16.mxu0 0
        %4574 = vmatpush1.bf16.xpose.msra.mxu0 0
        %4575 = vmatprep.subr.bf16.mxu0 0
        %4576 = vmatpush1.bf16.xpose.msra.mxu0 0
        %4577 = vmatprep.subr.bf16.mxu0 0
        %4578 = vmatpush1.bf16.xpose.msra.mxu0 0
        %4579 = vmatprep.subr.bf16.mxu0 0
        %4580 = vmatpush1.bf16.xpose.msra.mxu0 0
        %4581 = vmatprep.subr.bf16.mxu0 0
        %4582 = vmatpush1.bf16.xpose.msra.mxu0 0
        %4583 = vmatprep.subr.bf16.mxu0 0
        %4584 = vmatpush1.bf16.xpose.msra.mxu0 0
        %4585 = vmatprep.subr.bf16.mxu0 0
        %4586 = vmatpush1.bf16.xpose.msra.mxu0 0
        %4587 = vmatprep.subr.bf16.mxu0 0
        %4588 = vmatpush1.bf16.xpose.msra.mxu0 0
        %4589 = vmatprep.subr.bf16.mxu0 0
        %4590 = vmatpush1.bf16.xpose.msra.mxu0 0
        %4591 = vmatprep.subr.bf16.mxu0 0
        %4592 = vmatpush1.bf16.xpose.msra.mxu0 0
        %4593 = vmatprep.subr.bf16.mxu0 0
        %4594 = vmatpush1.bf16.xpose.msra.mxu0 0
        %4595 = vmatprep.subr.bf16.mxu0 0
        %4596 = vmatpush1.bf16.xpose.msra.mxu0 0
        %4597 = vmatprep.subr.bf16.mxu0 0
        %4598 = vmatpush1.bf16.xpose.msra.mxu0 0
        %4599 = vmatprep.mubr.bf16.mxu0 0
        %4600 = vmatmul.mubr.bf16.gmra.mrb[0].mxu0 %v4562
        %v4601 = vpop.f32.mrb[0].mxu0
        %v4602 = vadd.f32 0.0, %v4601
        %v4603 = vpop.f32.mrb[0].mxu0
        %v4604 = vpop.f32.mrb[0].mxu0
        %v4605 = vadd.f32 0.0, %v4604
        %v4606 = vpop.f32.mrb[0].mxu0
        %4607 = vdwg.mxu0
        %v4609 = vsel %vm2486, %v4558, 0
        %v4612 = vsel %vm2486, %v4560, 0
        %4614 = vmatprep.subr.bf16.mxu0 0
        %4615 = vmatpush1.bf16.xpose.msra.mxu0 %v4612
        %4616 = vmatprep.subr.bf16.mxu0 0
        %4617 = vmatpush1.bf16.xpose.msra.mxu0 0
        %4618 = vmatprep.subr.bf16.mxu0 0
        %4619 = vmatpush1.bf16.xpose.msra.mxu0 0
        %4620 = vmatprep.subr.bf16.mxu0 0
        %4621 = vmatpush1.bf16.xpose.msra.mxu0 0
        %4622 = vmatprep.subr.bf16.mxu0 0
        %4623 = vmatpush1.bf16.xpose.msra.mxu0 0
        %4624 = vmatprep.subr.bf16.mxu0 0
        %4625 = vmatpush1.bf16.xpose.msra.mxu0 0
        %4626 = vmatprep.subr.bf16.mxu0 0
        %4627 = vmatpush1.bf16.xpose.msra.mxu0 0
        %4628 = vmatprep.subr.bf16.mxu0 0
        %4629 = vmatpush1.bf16.xpose.msra.mxu0 0
        %4630 = vmatprep.subr.bf16.mxu0 0
        %4631 = vmatpush1.bf16.xpose.msra.mxu0 0
        %4632 = vmatprep.subr.bf16.mxu0 0
        %4633 = vmatpush1.bf16.xpose.msra.mxu0 0
        %4634 = vmatprep.subr.bf16.mxu0 0
        %4635 = vmatpush1.bf16.xpose.msra.mxu0 0
        %4636 = vmatprep.subr.bf16.mxu0 0
        %4637 = vmatpush1.bf16.xpose.msra.mxu0 0
        %4638 = vmatprep.subr.bf16.mxu0 0
        %4639 = vmatpush1.bf16.xpose.msra.mxu0 0
        %4640 = vmatprep.subr.bf16.mxu0 0
        %4641 = vmatpush1.bf16.xpose.msra.mxu0 0
        %4642 = vmatprep.subr.bf16.mxu0 0
        %4643 = vmatpush1.bf16.xpose.msra.mxu0 0
        %4644 = vmatprep.subr.bf16.mxu0 0
        %4645 = vmatpush1.bf16.xpose.msra.mxu0 0
        %4646 = vmatprep.mubr.bf16.mxu0 0
        %4647 = vmatmul.mubr.bf16.gmra.mrb[0].mxu0 %v4609
        %v4648 = vpop.f32.mrb[0].mxu0
        %v4649 = vadd.f32 0.0, %v4648
        %v4650 = vpop.f32.mrb[0].mxu0
        %v4651 = vpop.f32.mrb[0].mxu0
        %v4652 = vadd.f32 0.0, %v4651
        %v4653 = vpop.f32.mrb[0].mxu0
        %4654 = vdwg.mxu0
        %v4655 = vlaneseq
        %v4656 = vshrl.u32 %v4655, 7
        %v4657 = vsub.s32 7, %v4656
        %v4658 = vrot.slane %v702, %v4657
        %v4659 = vmul.f32 %v4395, %v4658
        %v4660 = vmul.f32 %v4398, %v4658
        %v4661 = vmul.f32 %v4403, %v4658
        %v4662 = vmul.f32 %v4406, %v4658
        %v4663 = vsel %vm2486, %v4659, 0.0
        %4664 = vadd.xlane.f32.xlu0 %v4663
        %v4665 = vpop.xlane.xlu0 %4664
        %v4666 = vsel %vm2486, %v4660, 0.0
        %4667 = vadd.xlane.f32.xlu0 %v4666
        %v4668 = vpop.xlane.xlu0 %4667
        %v4669 = vsel %vm2486, %v4661, 0.0
        %4670 = vadd.xlane.f32.xlu0 %v4669
        %v4671 = vpop.xlane.xlu0 %4670
        %v4672 = vsel %vm2486, %v4662, 0.0
        %4673 = vadd.xlane.f32.xlu0 %v4672
        %v4674 = vpop.xlane.xlu0 %4673
        %v4675 = vsel %vm2601, %v4602, -inf
        %4676 = vmax.xlane.f32.xlu0 %v4675
        %v4677 = vpop.xlane.xlu0 %4676
        %v4678 = vsel %vm2601, %v4605, -inf
        %4679 = vmax.xlane.f32.xlu0 %v4678
        %v4680 = vpop.xlane.xlu0 %4679
        %v4681 = vsel %vm2601, %v4649, -inf
        %4682 = vmax.xlane.f32.xlu0 %v4681
        %v4683 = vpop.xlane.xlu0 %4682
        %v4684 = vsel %vm2601, %v4652, -inf
        %4685 = vmax.xlane.f32.xlu0 %v4684
        %v4686 = vpop.xlane.xlu0 %4685
        %v4687 = vmax.f32 %v4677, %v4665
        %v4688 = vmax.f32 %v4680, %v4668
        %v4689 = vmax.f32 %v4683, %v4671
        %v4690 = vmax.f32 %v4686, %v4674
        %v4691 = vsub.f32 %v4602, %v4687
        %v4692 = vsub.f32 %v4605, %v4688
        %v4693 = vsub.f32 %v4649, %v4689
        %v4694 = vsub.f32 %v4652, %v4690
        %v4695 = vmul.f32 %v4691, 1.442695
        %v4696 = vpow.pop %v4695
        %v4697 = vmul.f32 %v4692, 1.442695
        %v4698 = vpow.pop %v4697
        %v4699 = vmul.f32 %v4693, 1.442695
        %v4700 = vpow.pop %v4699
        %v4701 = vmul.f32 %v4694, 1.442695
        %v4702 = vpow.pop %v4701
        %v4703 = vsub.f32 %v4665, %v4687
        %v4704 = vsub.f32 %v4668, %v4688
        %v4705 = vsub.f32 %v4671, %v4689
        %v4706 = vsub.f32 %v4674, %v4690
        %v4707 = vmul.f32 %v4703, 1.442695
        %v4708 = vpow.pop %v4707
        %v4709 = vmul.f32 %v4704, 1.442695
        %v4710 = vpow.pop %v4709
        %v4711 = vmul.f32 %v4705, 1.442695
        %v4712 = vpow.pop %v4711
        %v4713 = vmul.f32 %v4706, 1.442695
        %v4714 = vpow.pop %v4713
        %v4715 = vsel %vm2601, %v4696, 0.0
        %4716 = vadd.xlane.f32.xlu0 %v4715
        %v4717 = vpop.xlane.xlu0 %4716
        %v4718 = vsel %vm2601, %v4698, 0.0
        %4719 = vadd.xlane.f32.xlu0 %v4718
        %v4720 = vpop.xlane.xlu0 %4719
        %v4721 = vsel %vm2601, %v4700, 0.0
        %4722 = vadd.xlane.f32.xlu0 %v4721
        %v4723 = vpop.xlane.xlu0 %4722
        %v4724 = vsel %vm2601, %v4702, 0.0
        %4725 = vadd.xlane.f32.xlu0 %v4724
        %v4726 = vpop.xlane.xlu0 %4725
        %v4727 = vadd.f32 %v4717, %v4708
        %v4728 = vadd.f32 %v4720, %v4710
        %v4729 = vadd.f32 %v4723, %v4712
        %v4730 = vadd.f32 %v4726, %v4714
        %v4731 = vpack.c.bf16 %v4698, %v4696
        %v4732 = vpack.c.bf16 %v4702, %v4700
        %v4733 = vpack.c.bf16 %v4546, %v4543
        %v4734 = vpack.c.bf16 %v4554, %v4551
        %v4735 = vlaneseq
        %v4736 = vshrl.u32 %v4735, 7
        %v4737 = vsub.s32 0, %v4736
        %v4738 = vrot.slane %v703, %v4737
        %v4739 = vmul.f32 %v4708, %v4738
        %v4740 = vmul.f32 %v4710, %v4738
        %v4741 = vmul.f32 %v4712, %v4738
        %v4742 = vmul.f32 %v4714, %v4738
        %v4744 = vsel %vm2601, %v4731, 0
        %4746 = vmatprep.subr.bf16.mxu0 0
        %4747 = vmatpush1.bf16.msra.mxu0 %v4733
        %4748 = vmatprep.subr.bf16.mxu0 0
        %4749 = vmatpush1.bf16.msra.mxu0 0
        %4750 = vmatprep.subr.bf16.mxu0 0
        %4751 = vmatpush1.bf16.msra.mxu0 0
        %4752 = vmatprep.subr.bf16.mxu0 0
        %4753 = vmatpush1.bf16.msra.mxu0 0
        %4754 = vmatprep.subr.bf16.mxu0 0
        %4755 = vmatpush1.bf16.msra.mxu0 0
        %4756 = vmatprep.subr.bf16.mxu0 0
        %4757 = vmatpush1.bf16.msra.mxu0 0
        %4758 = vmatprep.subr.bf16.mxu0 0
        %4759 = vmatpush1.bf16.msra.mxu0 0
        %4760 = vmatprep.subr.bf16.mxu0 0
        %4761 = vmatpush1.bf16.msra.mxu0 0
        %4762 = vmatprep.subr.bf16.mxu0 0
        %4763 = vmatpush1.bf16.msra.mxu0 0
        %4764 = vmatprep.subr.bf16.mxu0 0
        %4765 = vmatpush1.bf16.msra.mxu0 0
        %4766 = vmatprep.subr.bf16.mxu0 0
        %4767 = vmatpush1.bf16.msra.mxu0 0
        %4768 = vmatprep.subr.bf16.mxu0 0
        %4769 = vmatpush1.bf16.msra.mxu0 0
        %4770 = vmatprep.subr.bf16.mxu0 0
        %4771 = vmatpush1.bf16.msra.mxu0 0
        %4772 = vmatprep.subr.bf16.mxu0 0
        %4773 = vmatpush1.bf16.msra.mxu0 0
        %4774 = vmatprep.subr.bf16.mxu0 0
        %4775 = vmatpush1.bf16.msra.mxu0 0
        %4776 = vmatprep.subr.bf16.mxu0 0
        %4777 = vmatpush1.bf16.msra.mxu0 0
        %4778 = vmatprep.mubr.bf16.mxu0 0
        %4779 = vmatmul.mubr.bf16.gmra.mrb[0].mxu0 %v4744
        %v4780 = vpop.f32.mrb[0].mxu0
        %v4781 = vadd.f32 %v4739, %v4780
        %v4782 = vpop.f32.mrb[0].mxu0
        %v4783 = vpop.f32.mrb[0].mxu0
        %v4784 = vadd.f32 %v4740, %v4783
        %v4785 = vpop.f32.mrb[0].mxu0
        %4786 = vdwg.mxu0
        %v4788 = vsel %vm2601, %v4732, 0
        %4790 = vmatprep.subr.bf16.mxu0 0
        %4791 = vmatpush1.bf16.msra.mxu0 %v4734
        %4792 = vmatprep.subr.bf16.mxu0 0
        %4793 = vmatpush1.bf16.msra.mxu0 0
        %4794 = vmatprep.subr.bf16.mxu0 0
        %4795 = vmatpush1.bf16.msra.mxu0 0
        %4796 = vmatprep.subr.bf16.mxu0 0
        %4797 = vmatpush1.bf16.msra.mxu0 0
        %4798 = vmatprep.subr.bf16.mxu0 0
        %4799 = vmatpush1.bf16.msra.mxu0 0
        %4800 = vmatprep.subr.bf16.mxu0 0
        %4801 = vmatpush1.bf16.msra.mxu0 0
        %4802 = vmatprep.subr.bf16.mxu0 0
        %4803 = vmatpush1.bf16.msra.mxu0 0
        %4804 = vmatprep.subr.bf16.mxu0 0
        %4805 = vmatpush1.bf16.msra.mxu0 0
        %4806 = vmatprep.subr.bf16.mxu0 0
        %4807 = vmatpush1.bf16.msra.mxu0 0
        %4808 = vmatprep.subr.bf16.mxu0 0
        %4809 = vmatpush1.bf16.msra.mxu0 0
        %4810 = vmatprep.subr.bf16.mxu0 0
        %4811 = vmatpush1.bf16.msra.mxu0 0
        %4812 = vmatprep.subr.bf16.mxu0 0
        %4813 = vmatpush1.bf16.msra.mxu0 0
        %4814 = vmatprep.subr.bf16.mxu0 0
        %4815 = vmatpush1.bf16.msra.mxu0 0
        %4816 = vmatprep.subr.bf16.mxu0 0
        %4817 = vmatpush1.bf16.msra.mxu0 0
        %4818 = vmatprep.subr.bf16.mxu0 0
        %4819 = vmatpush1.bf16.msra.mxu0 0
        %4820 = vmatprep.subr.bf16.mxu0 0
        %4821 = vmatpush1.bf16.msra.mxu0 0
        %4822 = vmatprep.mubr.bf16.mxu0 0
        %4823 = vmatmul.mubr.bf16.gmra.mrb[0].mxu0 %v4788
        %v4824 = vpop.f32.mrb[0].mxu0
        %v4825 = vadd.f32 %v4741, %v4824
        %v4826 = vpop.f32.mrb[0].mxu0
        %v4827 = vpop.f32.mrb[0].mxu0
        %v4828 = vadd.f32 %v4742, %v4827
        %v4829 = vpop.f32.mrb[0].mxu0
        %4830 = vdwg.mxu0
        %v4831 = vrcp.pop %v4727
        %v4832 = vmul.f32 %v4781, %v4831
        %v4833 = vrcp.pop %v4728
        %v4834 = vmul.f32 %v4784, %v4833
        %v4835 = vrcp.pop %v4729
        %v4836 = vmul.f32 %v4825, %v4835
        %v4837 = vrcp.pop %v4730
        %v4838 = vmul.f32 %v4828, %v4837
        %4840 = vrot.lane.b32.xlu0 %v4557, 120
        %v4841 = vpop.permute.xlu0 %4840
        %4843 = vrot.lane.b32.xlu0 %v4559, 120
        %v4844 = vpop.permute.xlu0 %4843
        %v4846 = vsel %vm2486, %v4841, 0
        %v4849 = vsel %vm2486, %v4844, 0
        %4851 = vmatprep.subr.bf16.mxu0 0
        %4852 = vmatpush1.bf16.xpose.msra.mxu0 %v4849
        %4853 = vmatprep.subr.bf16.mxu0 0
        %4854 = vmatpush1.bf16.xpose.msra.mxu0 0
        %4855 = vmatprep.subr.bf16.mxu0 0
        %4856 = vmatpush1.bf16.xpose.msra.mxu0 0
        %4857 = vmatprep.subr.bf16.mxu0 0
        %4858 = vmatpush1.bf16.xpose.msra.mxu0 0
        %4859 = vmatprep.subr.bf16.mxu0 0
        %4860 = vmatpush1.bf16.xpose.msra.mxu0 0
        %4861 = vmatprep.subr.bf16.mxu0 0
        %4862 = vmatpush1.bf16.xpose.msra.mxu0 0
        %4863 = vmatprep.subr.bf16.mxu0 0
        %4864 = vmatpush1.bf16.xpose.msra.mxu0 0
        %4865 = vmatprep.subr.bf16.mxu0 0
        %4866 = vmatpush1.bf16.xpose.msra.mxu0 0
        %4867 = vmatprep.subr.bf16.mxu0 0
        %4868 = vmatpush1.bf16.xpose.msra.mxu0 0
        %4869 = vmatprep.subr.bf16.mxu0 0
        %4870 = vmatpush1.bf16.xpose.msra.mxu0 0
        %4871 = vmatprep.subr.bf16.mxu0 0
        %4872 = vmatpush1.bf16.xpose.msra.mxu0 0
        %4873 = vmatprep.subr.bf16.mxu0 0
        %4874 = vmatpush1.bf16.xpose.msra.mxu0 0
        %4875 = vmatprep.subr.bf16.mxu0 0
        %4876 = vmatpush1.bf16.xpose.msra.mxu0 0
        %4877 = vmatprep.subr.bf16.mxu0 0
        %4878 = vmatpush1.bf16.xpose.msra.mxu0 0
        %4879 = vmatprep.subr.bf16.mxu0 0
        %4880 = vmatpush1.bf16.xpose.msra.mxu0 0
        %4881 = vmatprep.subr.bf16.mxu0 0
        %4882 = vmatpush1.bf16.xpose.msra.mxu0 0
        %4883 = vmatprep.mubr.bf16.mxu0 0
        %4884 = vmatmul.mubr.bf16.gmra.mrb[0].mxu0 %v4846
        %v4885 = vpop.f32.mrb[0].mxu0
        %v4886 = vadd.f32 0.0, %v4885
        %v4887 = vpop.f32.mrb[0].mxu0
        %v4888 = vpop.f32.mrb[0].mxu0
        %v4889 = vadd.f32 0.0, %v4888
        %v4890 = vpop.f32.mrb[0].mxu0
        %4891 = vdwg.mxu0
        %4893 = vrot.lane.b32.xlu0 %v4558, 120
        %v4894 = vpop.permute.xlu0 %4893
        %4896 = vrot.lane.b32.xlu0 %v4560, 120
        %v4897 = vpop.permute.xlu0 %4896
        %v4899 = vsel %vm2486, %v4894, 0
        %v4902 = vsel %vm2486, %v4897, 0
        %4904 = vmatprep.subr.bf16.mxu0 0
        %4905 = vmatpush1.bf16.xpose.msra.mxu0 %v4902
        %4906 = vmatprep.subr.bf16.mxu0 0
        %4907 = vmatpush1.bf16.xpose.msra.mxu0 0
        %4908 = vmatprep.subr.bf16.mxu0 0
        %4909 = vmatpush1.bf16.xpose.msra.mxu0 0
        %4910 = vmatprep.subr.bf16.mxu0 0
        %4911 = vmatpush1.bf16.xpose.msra.mxu0 0
        %4912 = vmatprep.subr.bf16.mxu0 0
        %4913 = vmatpush1.bf16.xpose.msra.mxu0 0
        %4914 = vmatprep.subr.bf16.mxu0 0
        %4915 = vmatpush1.bf16.xpose.msra.mxu0 0
        %4916 = vmatprep.subr.bf16.mxu0 0
        %4917 = vmatpush1.bf16.xpose.msra.mxu0 0
        %4918 = vmatprep.subr.bf16.mxu0 0
        %4919 = vmatpush1.bf16.xpose.msra.mxu0 0
        %4920 = vmatprep.subr.bf16.mxu0 0
        %4921 = vmatpush1.bf16.xpose.msra.mxu0 0
        %4922 = vmatprep.subr.bf16.mxu0 0
        %4923 = vmatpush1.bf16.xpose.msra.mxu0 0
        %4924 = vmatprep.subr.bf16.mxu0 0
        %4925 = vmatpush1.bf16.xpose.msra.mxu0 0
        %4926 = vmatprep.subr.bf16.mxu0 0
        %4927 = vmatpush1.bf16.xpose.msra.mxu0 0
        %4928 = vmatprep.subr.bf16.mxu0 0
        %4929 = vmatpush1.bf16.xpose.msra.mxu0 0
        %4930 = vmatprep.subr.bf16.mxu0 0
        %4931 = vmatpush1.bf16.xpose.msra.mxu0 0
        %4932 = vmatprep.subr.bf16.mxu0 0
        %4933 = vmatpush1.bf16.xpose.msra.mxu0 0
        %4934 = vmatprep.subr.bf16.mxu0 0
        %4935 = vmatpush1.bf16.xpose.msra.mxu0 0
        %4936 = vmatprep.mubr.bf16.mxu0 0
        %4937 = vmatmul.mubr.bf16.gmra.mrb[0].mxu0 %v4899
        %v4938 = vpop.f32.mrb[0].mxu0
        %v4939 = vadd.f32 0.0, %v4938
        %v4940 = vpop.f32.mrb[0].mxu0
        %v4941 = vpop.f32.mrb[0].mxu0
        %v4942 = vadd.f32 0.0, %v4941
        %v4943 = vpop.f32.mrb[0].mxu0
        %4944 = vdwg.mxu0
        %4949 = vrot.lane.b32.xlu0 %v4659, 120
        %v4950 = vpop.permute.xlu0 %4949
        %4951 = vrot.lane.b32.xlu0 %v4660, 120
        %v4952 = vpop.permute.xlu0 %4951
        %4953 = vrot.lane.b32.xlu0 %v4661, 120
        %v4954 = vpop.permute.xlu0 %4953
        %4955 = vrot.lane.b32.xlu0 %v4662, 120
        %v4956 = vpop.permute.xlu0 %4955
        %v4961 = vsel %vm2486, %v4950, 0.0
        %4962 = vadd.xlane.f32.xlu0 %v4961
        %v4963 = vpop.xlane.xlu0 %4962
        %v4964 = vsel %vm2486, %v4952, 0.0
        %4965 = vadd.xlane.f32.xlu0 %v4964
        %v4966 = vpop.xlane.xlu0 %4965
        %v4967 = vsel %vm2486, %v4954, 0.0
        %4968 = vadd.xlane.f32.xlu0 %v4967
        %v4969 = vpop.xlane.xlu0 %4968
        %v4970 = vsel %vm2486, %v4956, 0.0
        %4971 = vadd.xlane.f32.xlu0 %v4970
        %v4972 = vpop.xlane.xlu0 %4971
        %v4973 = vsel %vm2601, %v4886, -inf
        %4974 = vmax.xlane.f32.xlu0 %v4973
        %v4975 = vpop.xlane.xlu0 %4974
        %v4976 = vsel %vm2601, %v4889, -inf
        %4977 = vmax.xlane.f32.xlu0 %v4976
        %v4978 = vpop.xlane.xlu0 %4977
        %v4979 = vsel %vm2601, %v4939, -inf
        %4980 = vmax.xlane.f32.xlu0 %v4979
        %v4981 = vpop.xlane.xlu0 %4980
        %v4982 = vsel %vm2601, %v4942, -inf
        %4983 = vmax.xlane.f32.xlu0 %v4982
        %v4984 = vpop.xlane.xlu0 %4983
        %v4985 = vmax.f32 %v4975, %v4963
        %v4986 = vmax.f32 %v4978, %v4966
        %v4987 = vmax.f32 %v4981, %v4969
        %v4988 = vmax.f32 %v4984, %v4972
        %v4989 = vsub.f32 %v4886, %v4985
        %v4990 = vsub.f32 %v4889, %v4986
        %v4991 = vsub.f32 %v4939, %v4987
        %v4992 = vsub.f32 %v4942, %v4988
        %v4993 = vmul.f32 %v4989, 1.442695
        %v4994 = vpow.pop %v4993
        %v4995 = vmul.f32 %v4990, 1.442695
        %v4996 = vpow.pop %v4995
        %v4997 = vmul.f32 %v4991, 1.442695
        %v4998 = vpow.pop %v4997
        %v4999 = vmul.f32 %v4992, 1.442695
        %v5000 = vpow.pop %v4999
        %v5001 = vsub.f32 %v4963, %v4985
        %v5002 = vsub.f32 %v4966, %v4986
        %v5003 = vsub.f32 %v4969, %v4987
        %v5004 = vsub.f32 %v4972, %v4988
        %v5005 = vmul.f32 %v5001, 1.442695
        %v5006 = vpow.pop %v5005
        %v5007 = vmul.f32 %v5002, 1.442695
        %v5008 = vpow.pop %v5007
        %v5009 = vmul.f32 %v5003, 1.442695
        %v5010 = vpow.pop %v5009
        %v5011 = vmul.f32 %v5004, 1.442695
        %v5012 = vpow.pop %v5011
        %v5013 = vsel %vm2601, %v4994, 0.0
        %5014 = vadd.xlane.f32.xlu0 %v5013
        %v5015 = vpop.xlane.xlu0 %5014
        %v5016 = vsel %vm2601, %v4996, 0.0
        %5017 = vadd.xlane.f32.xlu0 %v5016
        %v5018 = vpop.xlane.xlu0 %5017
        %v5019 = vsel %vm2601, %v4998, 0.0
        %5020 = vadd.xlane.f32.xlu0 %v5019
        %v5021 = vpop.xlane.xlu0 %5020
        %v5022 = vsel %vm2601, %v5000, 0.0
        %5023 = vadd.xlane.f32.xlu0 %v5022
        %v5024 = vpop.xlane.xlu0 %5023
        %v5025 = vadd.f32 %v5015, %v5006
        %v5026 = vadd.f32 %v5018, %v5008
        %v5027 = vadd.f32 %v5021, %v5010
        %v5028 = vadd.f32 %v5024, %v5012
        %v5029 = vpack.c.bf16 %v4996, %v4994
        %v5030 = vpack.c.bf16 %v5000, %v4998
        %v5031 = vmul.f32 %v5006, %v4738
        %v5032 = vmul.f32 %v5008, %v4738
        %v5033 = vmul.f32 %v5010, %v4738
        %v5034 = vmul.f32 %v5012, %v4738
        %5036 = vrot.lane.b32.xlu0 %v4733, 120
        %v5037 = vpop.permute.xlu0 %5036
        %5041 = vrot.lane.b32.xlu0 %v5031, 120
        %v5042 = vpop.permute.xlu0 %5041
        %5043 = vrot.lane.b32.xlu0 %v5032, 120
        %v5044 = vpop.permute.xlu0 %5043
        %v5048 = vsel %vm2601, %v5029, 0
        %5050 = vmatprep.subr.bf16.mxu0 0
        %5051 = vmatpush1.bf16.msra.mxu0 %v5037
        %5052 = vmatprep.subr.bf16.mxu0 0
        %5053 = vmatpush1.bf16.msra.mxu0 0
        %5054 = vmatprep.subr.bf16.mxu0 0
        %5055 = vmatpush1.bf16.msra.mxu0 0
        %5056 = vmatprep.subr.bf16.mxu0 0
        %5057 = vmatpush1.bf16.msra.mxu0 0
        %5058 = vmatprep.subr.bf16.mxu0 0
        %5059 = vmatpush1.bf16.msra.mxu0 0
        %5060 = vmatprep.subr.bf16.mxu0 0
        %5061 = vmatpush1.bf16.msra.mxu0 0
        %5062 = vmatprep.subr.bf16.mxu0 0
        %5063 = vmatpush1.bf16.msra.mxu0 0
        %5064 = vmatprep.subr.bf16.mxu0 0
        %5065 = vmatpush1.bf16.msra.mxu0 0
        %5066 = vmatprep.subr.bf16.mxu0 0
        %5067 = vmatpush1.bf16.msra.mxu0 0
        %5068 = vmatprep.subr.bf16.mxu0 0
        %5069 = vmatpush1.bf16.msra.mxu0 0
        %5070 = vmatprep.subr.bf16.mxu0 0
        %5071 = vmatpush1.bf16.msra.mxu0 0
        %5072 = vmatprep.subr.bf16.mxu0 0
        %5073 = vmatpush1.bf16.msra.mxu0 0
        %5074 = vmatprep.subr.bf16.mxu0 0
        %5075 = vmatpush1.bf16.msra.mxu0 0
        %5076 = vmatprep.subr.bf16.mxu0 0
        %5077 = vmatpush1.bf16.msra.mxu0 0
        %5078 = vmatprep.subr.bf16.mxu0 0
        %5079 = vmatpush1.bf16.msra.mxu0 0
        %5080 = vmatprep.subr.bf16.mxu0 0
        %5081 = vmatpush1.bf16.msra.mxu0 0
        %5082 = vmatprep.mubr.bf16.mxu0 0
        %5083 = vmatmul.mubr.bf16.gmra.mrb[0].mxu0 %v5048
        %v5084 = vpop.f32.mrb[0].mxu0
        %v5085 = vadd.f32 %v5042, %v5084
        %v5086 = vpop.f32.mrb[0].mxu0
        %v5087 = vpop.f32.mrb[0].mxu0
        %v5088 = vadd.f32 %v5044, %v5087
        %v5089 = vpop.f32.mrb[0].mxu0
        %5090 = vdwg.mxu0
        %5092 = vrot.lane.b32.xlu0 %v4734, 120
        %v5093 = vpop.permute.xlu0 %5092
        %5097 = vrot.lane.b32.xlu0 %v5033, 120
        %v5098 = vpop.permute.xlu0 %5097
        %5099 = vrot.lane.b32.xlu0 %v5034, 120
        %v5100 = vpop.permute.xlu0 %5099
        %v5104 = vsel %vm2601, %v5030, 0
        %5106 = vmatprep.subr.bf16.mxu0 0
        %5107 = vmatpush1.bf16.msra.mxu0 %v5093
        %5108 = vmatprep.subr.bf16.mxu0 0
        %5109 = vmatpush1.bf16.msra.mxu0 0
        %5110 = vmatprep.subr.bf16.mxu0 0
        %5111 = vmatpush1.bf16.msra.mxu0 0
        %5112 = vmatprep.subr.bf16.mxu0 0
        %5113 = vmatpush1.bf16.msra.mxu0 0
        %5114 = vmatprep.subr.bf16.mxu0 0
        %5115 = vmatpush1.bf16.msra.mxu0 0
        %5116 = vmatprep.subr.bf16.mxu0 0
        %5117 = vmatpush1.bf16.msra.mxu0 0
        %5118 = vmatprep.subr.bf16.mxu0 0
        %5119 = vmatpush1.bf16.msra.mxu0 0
        %5120 = vmatprep.subr.bf16.mxu0 0
        %5121 = vmatpush1.bf16.msra.mxu0 0
        %5122 = vmatprep.subr.bf16.mxu0 0
        %5123 = vmatpush1.bf16.msra.mxu0 0
        %5124 = vmatprep.subr.bf16.mxu0 0
        %5125 = vmatpush1.bf16.msra.mxu0 0
        %5126 = vmatprep.subr.bf16.mxu0 0
        %5127 = vmatpush1.bf16.msra.mxu0 0
        %5128 = vmatprep.subr.bf16.mxu0 0
        %5129 = vmatpush1.bf16.msra.mxu0 0
        %5130 = vmatprep.subr.bf16.mxu0 0
        %5131 = vmatpush1.bf16.msra.mxu0 0
        %5132 = vmatprep.subr.bf16.mxu0 0
        %5133 = vmatpush1.bf16.msra.mxu0 0
        %5134 = vmatprep.subr.bf16.mxu0 0
        %5135 = vmatpush1.bf16.msra.mxu0 0
        %5136 = vmatprep.subr.bf16.mxu0 0
        %5137 = vmatpush1.bf16.msra.mxu0 0
        %5138 = vmatprep.mubr.bf16.mxu0 0
        %5139 = vmatmul.mubr.bf16.gmra.mrb[0].mxu0 %v5104
        %v5140 = vpop.f32.mrb[0].mxu0
        %v5141 = vadd.f32 %v5098, %v5140
        %v5142 = vpop.f32.mrb[0].mxu0
        %v5143 = vpop.f32.mrb[0].mxu0
        %v5144 = vadd.f32 %v5100, %v5143
        %v5145 = vpop.f32.mrb[0].mxu0
        %5146 = vdwg.mxu0
        %v5147 = vrcp.pop %v5025
        %v5148 = vmul.f32 %v5085, %v5147
        %v5149 = vrcp.pop %v5026
        %v5150 = vmul.f32 %v5088, %v5149
        %v5151 = vrcp.pop %v5027
        %v5152 = vmul.f32 %v5141, %v5151
        %v5153 = vrcp.pop %v5028
        %v5154 = vmul.f32 %v5144, %v5153
        %5155 = vrot.lane.b32.xlu0 %v4557, 112
        %v5156 = vpop.permute.xlu0 %5155
        %5157 = vrot.lane.b32.xlu0 %v4559, 112
        %v5158 = vpop.permute.xlu0 %5157
        %v5160 = vsel %vm2486, %v5156, 0
        %v5163 = vsel %vm2486, %v5158, 0
        %5165 = vmatprep.subr.bf16.mxu0 0
        %5166 = vmatpush1.bf16.xpose.msra.mxu0 %v5163
        %5167 = vmatprep.subr.bf16.mxu0 0
        %5168 = vmatpush1.bf16.xpose.msra.mxu0 0
        %5169 = vmatprep.subr.bf16.mxu0 0
        %5170 = vmatpush1.bf16.xpose.msra.mxu0 0
        %5171 = vmatprep.subr.bf16.mxu0 0
        %5172 = vmatpush1.bf16.xpose.msra.mxu0 0
        %5173 = vmatprep.subr.bf16.mxu0 0
        %5174 = vmatpush1.bf16.xpose.msra.mxu0 0
        %5175 = vmatprep.subr.bf16.mxu0 0
        %5176 = vmatpush1.bf16.xpose.msra.mxu0 0
        %5177 = vmatprep.subr.bf16.mxu0 0
        %5178 = vmatpush1.bf16.xpose.msra.mxu0 0
        %5179 = vmatprep.subr.bf16.mxu0 0
        %5180 = vmatpush1.bf16.xpose.msra.mxu0 0
        %5181 = vmatprep.subr.bf16.mxu0 0
        %5182 = vmatpush1.bf16.xpose.msra.mxu0 0
        %5183 = vmatprep.subr.bf16.mxu0 0
        %5184 = vmatpush1.bf16.xpose.msra.mxu0 0
        %5185 = vmatprep.subr.bf16.mxu0 0
        %5186 = vmatpush1.bf16.xpose.msra.mxu0 0
        %5187 = vmatprep.subr.bf16.mxu0 0
        %5188 = vmatpush1.bf16.xpose.msra.mxu0 0
        %5189 = vmatprep.subr.bf16.mxu0 0
        %5190 = vmatpush1.bf16.xpose.msra.mxu0 0
        %5191 = vmatprep.subr.bf16.mxu0 0
        %5192 = vmatpush1.bf16.xpose.msra.mxu0 0
        %5193 = vmatprep.subr.bf16.mxu0 0
        %5194 = vmatpush1.bf16.xpose.msra.mxu0 0
        %5195 = vmatprep.subr.bf16.mxu0 0
        %5196 = vmatpush1.bf16.xpose.msra.mxu0 0
        %5197 = vmatprep.mubr.bf16.mxu0 0
        %5198 = vmatmul.mubr.bf16.gmra.mrb[0].mxu0 %v5160
        %v5199 = vpop.f32.mrb[0].mxu0
        %v5200 = vadd.f32 0.0, %v5199
        %v5201 = vpop.f32.mrb[0].mxu0
        %v5202 = vpop.f32.mrb[0].mxu0
        %v5203 = vadd.f32 0.0, %v5202
        %v5204 = vpop.f32.mrb[0].mxu0
        %5205 = vdwg.mxu0
        %5206 = vrot.lane.b32.xlu0 %v4558, 112
        %v5207 = vpop.permute.xlu0 %5206
        %5208 = vrot.lane.b32.xlu0 %v4560, 112
        %v5209 = vpop.permute.xlu0 %5208
        %v5211 = vsel %vm2486, %v5207, 0
        %v5214 = vsel %vm2486, %v5209, 0
        %5216 = vmatprep.subr.bf16.mxu0 0
        %5217 = vmatpush1.bf16.xpose.msra.mxu0 %v5214
        %5218 = vmatprep.subr.bf16.mxu0 0
        %5219 = vmatpush1.bf16.xpose.msra.mxu0 0
        %5220 = vmatprep.subr.bf16.mxu0 0
        %5221 = vmatpush1.bf16.xpose.msra.mxu0 0
        %5222 = vmatprep.subr.bf16.mxu0 0
        %5223 = vmatpush1.bf16.xpose.msra.mxu0 0
        %5224 = vmatprep.subr.bf16.mxu0 0
        %5225 = vmatpush1.bf16.xpose.msra.mxu0 0
        %5226 = vmatprep.subr.bf16.mxu0 0
        %5227 = vmatpush1.bf16.xpose.msra.mxu0 0
        %5228 = vmatprep.subr.bf16.mxu0 0
        %5229 = vmatpush1.bf16.xpose.msra.mxu0 0
        %5230 = vmatprep.subr.bf16.mxu0 0
        %5231 = vmatpush1.bf16.xpose.msra.mxu0 0
        %5232 = vmatprep.subr.bf16.mxu0 0
        %5233 = vmatpush1.bf16.xpose.msra.mxu0 0
        %5234 = vmatprep.subr.bf16.mxu0 0
        %5235 = vmatpush1.bf16.xpose.msra.mxu0 0
        %5236 = vmatprep.subr.bf16.mxu0 0
        %5237 = vmatpush1.bf16.xpose.msra.mxu0 0
        %5238 = vmatprep.subr.bf16.mxu0 0
        %5239 = vmatpush1.bf16.xpose.msra.mxu0 0
        %5240 = vmatprep.subr.bf16.mxu0 0
        %5241 = vmatpush1.bf16.xpose.msra.mxu0 0
        %5242 = vmatprep.subr.bf16.mxu0 0
        %5243 = vmatpush1.bf16.xpose.msra.mxu0 0
        %5244 = vmatprep.subr.bf16.mxu0 0
        %5245 = vmatpush1.bf16.xpose.msra.mxu0 0
        %5246 = vmatprep.subr.bf16.mxu0 0
        %5247 = vmatpush1.bf16.xpose.msra.mxu0 0
        %5248 = vmatprep.mubr.bf16.mxu0 0
        %5249 = vmatmul.mubr.bf16.gmra.mrb[0].mxu0 %v5211
        %v5250 = vpop.f32.mrb[0].mxu0
        %v5251 = vadd.f32 0.0, %v5250
        %v5252 = vpop.f32.mrb[0].mxu0
        %v5253 = vpop.f32.mrb[0].mxu0
        %v5254 = vadd.f32 0.0, %v5253
        %v5255 = vpop.f32.mrb[0].mxu0
        %5256 = vdwg.mxu0
        %5257 = vrot.lane.b32.xlu0 %v4659, 112
        %v5258 = vpop.permute.xlu0 %5257
        %5259 = vrot.lane.b32.xlu0 %v4660, 112
        %v5260 = vpop.permute.xlu0 %5259
        %5261 = vrot.lane.b32.xlu0 %v4661, 112
        %v5262 = vpop.permute.xlu0 %5261
        %5263 = vrot.lane.b32.xlu0 %v4662, 112
        %v5264 = vpop.permute.xlu0 %5263
        %v5269 = vsel %vm2486, %v5258, 0.0
        %5270 = vadd.xlane.f32.xlu0 %v5269
        %v5271 = vpop.xlane.xlu0 %5270
        %v5272 = vsel %vm2486, %v5260, 0.0
        %5273 = vadd.xlane.f32.xlu0 %v5272
        %v5274 = vpop.xlane.xlu0 %5273
        %v5275 = vsel %vm2486, %v5262, 0.0
        %5276 = vadd.xlane.f32.xlu0 %v5275
        %v5277 = vpop.xlane.xlu0 %5276
        %v5278 = vsel %vm2486, %v5264, 0.0
        %5279 = vadd.xlane.f32.xlu0 %v5278
        %v5280 = vpop.xlane.xlu0 %5279
        %v5281 = vsel %vm2601, %v5200, -inf
        %5282 = vmax.xlane.f32.xlu0 %v5281
        %v5283 = vpop.xlane.xlu0 %5282
        %v5284 = vsel %vm2601, %v5203, -inf
        %5285 = vmax.xlane.f32.xlu0 %v5284
        %v5286 = vpop.xlane.xlu0 %5285
        %v5287 = vsel %vm2601, %v5251, -inf
        %5288 = vmax.xlane.f32.xlu0 %v5287
        %v5289 = vpop.xlane.xlu0 %5288
        %v5290 = vsel %vm2601, %v5254, -inf
        %5291 = vmax.xlane.f32.xlu0 %v5290
        %v5292 = vpop.xlane.xlu0 %5291
        %v5293 = vmax.f32 %v5283, %v5271
        %v5294 = vmax.f32 %v5286, %v5274
        %v5295 = vmax.f32 %v5289, %v5277
        %v5296 = vmax.f32 %v5292, %v5280
        %v5297 = vsub.f32 %v5200, %v5293
        %v5298 = vsub.f32 %v5203, %v5294
        %v5299 = vsub.f32 %v5251, %v5295
        %v5300 = vsub.f32 %v5254, %v5296
        %v5301 = vmul.f32 %v5297, 1.442695
        %v5302 = vpow.pop %v5301
        %v5303 = vmul.f32 %v5298, 1.442695
        %v5304 = vpow.pop %v5303
        %v5305 = vmul.f32 %v5299, 1.442695
        %v5306 = vpow.pop %v5305
        %v5307 = vmul.f32 %v5300, 1.442695
        %v5308 = vpow.pop %v5307
        %v5309 = vsub.f32 %v5271, %v5293
        %v5310 = vsub.f32 %v5274, %v5294
        %v5311 = vsub.f32 %v5277, %v5295
        %v5312 = vsub.f32 %v5280, %v5296
        %v5313 = vmul.f32 %v5309, 1.442695
        %v5314 = vpow.pop %v5313
        %v5315 = vmul.f32 %v5310, 1.442695
        %v5316 = vpow.pop %v5315
        %v5317 = vmul.f32 %v5311, 1.442695
        %v5318 = vpow.pop %v5317
        %v5319 = vmul.f32 %v5312, 1.442695
        %v5320 = vpow.pop %v5319
        %v5321 = vsel %vm2601, %v5302, 0.0
        %5322 = vadd.xlane.f32.xlu0 %v5321
        %v5323 = vpop.xlane.xlu0 %5322
        %v5324 = vsel %vm2601, %v5304, 0.0
        %5325 = vadd.xlane.f32.xlu0 %v5324
        %v5326 = vpop.xlane.xlu0 %5325
        %v5327 = vsel %vm2601, %v5306, 0.0
        %5328 = vadd.xlane.f32.xlu0 %v5327
        %v5329 = vpop.xlane.xlu0 %5328
        %v5330 = vsel %vm2601, %v5308, 0.0
        %5331 = vadd.xlane.f32.xlu0 %v5330
        %v5332 = vpop.xlane.xlu0 %5331
        %v5333 = vadd.f32 %v5323, %v5314
        %v5334 = vadd.f32 %v5326, %v5316
        %v5335 = vadd.f32 %v5329, %v5318
        %v5336 = vadd.f32 %v5332, %v5320
        %v5337 = vpack.c.bf16 %v5304, %v5302
        %v5338 = vpack.c.bf16 %v5308, %v5306
        %v5339 = vmul.f32 %v5314, %v4738
        %v5340 = vmul.f32 %v5316, %v4738
        %v5341 = vmul.f32 %v5318, %v4738
        %v5342 = vmul.f32 %v5320, %v4738
        %5343 = vrot.lane.b32.xlu0 %v4733, 112
        %v5344 = vpop.permute.xlu0 %5343
        %5348 = vrot.lane.b32.xlu0 %v5339, 112
        %v5349 = vpop.permute.xlu0 %5348
        %5350 = vrot.lane.b32.xlu0 %v5340, 112
        %v5351 = vpop.permute.xlu0 %5350
        %v5355 = vsel %vm2601, %v5337, 0
        %5357 = vmatprep.subr.bf16.mxu0 0
        %5358 = vmatpush1.bf16.msra.mxu0 %v5344
        %5359 = vmatprep.subr.bf16.mxu0 0
        %5360 = vmatpush1.bf16.msra.mxu0 0
        %5361 = vmatprep.subr.bf16.mxu0 0
        %5362 = vmatpush1.bf16.msra.mxu0 0
        %5363 = vmatprep.subr.bf16.mxu0 0
        %5364 = vmatpush1.bf16.msra.mxu0 0
        %5365 = vmatprep.subr.bf16.mxu0 0
        %5366 = vmatpush1.bf16.msra.mxu0 0
        %5367 = vmatprep.subr.bf16.mxu0 0
        %5368 = vmatpush1.bf16.msra.mxu0 0
        %5369 = vmatprep.subr.bf16.mxu0 0
        %5370 = vmatpush1.bf16.msra.mxu0 0
        %5371 = vmatprep.subr.bf16.mxu0 0
        %5372 = vmatpush1.bf16.msra.mxu0 0
        %5373 = vmatprep.subr.bf16.mxu0 0
        %5374 = vmatpush1.bf16.msra.mxu0 0
        %5375 = vmatprep.subr.bf16.mxu0 0
        %5376 = vmatpush1.bf16.msra.mxu0 0
        %5377 = vmatprep.subr.bf16.mxu0 0
        %5378 = vmatpush1.bf16.msra.mxu0 0
        %5379 = vmatprep.subr.bf16.mxu0 0
        %5380 = vmatpush1.bf16.msra.mxu0 0
        %5381 = vmatprep.subr.bf16.mxu0 0
        %5382 = vmatpush1.bf16.msra.mxu0 0
        %5383 = vmatprep.subr.bf16.mxu0 0
        %5384 = vmatpush1.bf16.msra.mxu0 0
        %5385 = vmatprep.subr.bf16.mxu0 0
        %5386 = vmatpush1.bf16.msra.mxu0 0
        %5387 = vmatprep.subr.bf16.mxu0 0
        %5388 = vmatpush1.bf16.msra.mxu0 0
        %5389 = vmatprep.mubr.bf16.mxu0 0
        %5390 = vmatmul.mubr.bf16.gmra.mrb[0].mxu0 %v5355
        %v5391 = vpop.f32.mrb[0].mxu0
        %v5392 = vadd.f32 %v5349, %v5391
        %v5393 = vpop.f32.mrb[0].mxu0
        %v5394 = vpop.f32.mrb[0].mxu0
        %v5395 = vadd.f32 %v5351, %v5394
        %v5396 = vpop.f32.mrb[0].mxu0
        %5397 = vdwg.mxu0
        %5398 = vrot.lane.b32.xlu0 %v4734, 112
        %v5399 = vpop.permute.xlu0 %5398
        %5403 = vrot.lane.b32.xlu0 %v5341, 112
        %v5404 = vpop.permute.xlu0 %5403
        %5405 = vrot.lane.b32.xlu0 %v5342, 112
        %v5406 = vpop.permute.xlu0 %5405
        %v5410 = vsel %vm2601, %v5338, 0
        %5412 = vmatprep.subr.bf16.mxu0 0
        %5413 = vmatpush1.bf16.msra.mxu0 %v5399
        %5414 = vmatprep.subr.bf16.mxu0 0
        %5415 = vmatpush1.bf16.msra.mxu0 0
        %5416 = vmatprep.subr.bf16.mxu0 0
        %5417 = vmatpush1.bf16.msra.mxu0 0
        %5418 = vmatprep.subr.bf16.mxu0 0
        %5419 = vmatpush1.bf16.msra.mxu0 0
        %5420 = vmatprep.subr.bf16.mxu0 0
        %5421 = vmatpush1.bf16.msra.mxu0 0
        %5422 = vmatprep.subr.bf16.mxu0 0
        %5423 = vmatpush1.bf16.msra.mxu0 0
        %5424 = vmatprep.subr.bf16.mxu0 0
        %5425 = vmatpush1.bf16.msra.mxu0 0
        %5426 = vmatprep.subr.bf16.mxu0 0
        %5427 = vmatpush1.bf16.msra.mxu0 0
        %5428 = vmatprep.subr.bf16.mxu0 0
        %5429 = vmatpush1.bf16.msra.mxu0 0
        %5430 = vmatprep.subr.bf16.mxu0 0
        %5431 = vmatpush1.bf16.msra.mxu0 0
        %5432 = vmatprep.subr.bf16.mxu0 0
        %5433 = vmatpush1.bf16.msra.mxu0 0
        %5434 = vmatprep.subr.bf16.mxu0 0
        %5435 = vmatpush1.bf16.msra.mxu0 0
        %5436 = vmatprep.subr.bf16.mxu0 0
        %5437 = vmatpush1.bf16.msra.mxu0 0
        %5438 = vmatprep.subr.bf16.mxu0 0
        %5439 = vmatpush1.bf16.msra.mxu0 0
        %5440 = vmatprep.subr.bf16.mxu0 0
        %5441 = vmatpush1.bf16.msra.mxu0 0
        %5442 = vmatprep.subr.bf16.mxu0 0
        %5443 = vmatpush1.bf16.msra.mxu0 0
        %5444 = vmatprep.mubr.bf16.mxu0 0
        %5445 = vmatmul.mubr.bf16.gmra.mrb[0].mxu0 %v5410
        %v5446 = vpop.f32.mrb[0].mxu0
        %v5447 = vadd.f32 %v5404, %v5446
        %v5448 = vpop.f32.mrb[0].mxu0
        %v5449 = vpop.f32.mrb[0].mxu0
        %v5450 = vadd.f32 %v5406, %v5449
        %v5451 = vpop.f32.mrb[0].mxu0
        %5452 = vdwg.mxu0
        %v5453 = vrcp.pop %v5333
        %v5454 = vmul.f32 %v5392, %v5453
        %v5455 = vrcp.pop %v5334
        %v5456 = vmul.f32 %v5395, %v5455
        %v5457 = vrcp.pop %v5335
        %v5458 = vmul.f32 %v5447, %v5457
        %v5459 = vrcp.pop %v5336
        %v5460 = vmul.f32 %v5450, %v5459
        %5461 = vrot.lane.b32.xlu0 %v4557, 104
        %v5462 = vpop.permute.xlu0 %5461
        %5463 = vrot.lane.b32.xlu0 %v4559, 104
        %v5464 = vpop.permute.xlu0 %5463
        %v5466 = vsel %vm2486, %v5462, 0
        %v5469 = vsel %vm2486, %v5464, 0
        %5471 = vmatprep.subr.bf16.mxu0 0
        %5472 = vmatpush1.bf16.xpose.msra.mxu0 %v5469
        %5473 = vmatprep.subr.bf16.mxu0 0
        %5474 = vmatpush1.bf16.xpose.msra.mxu0 0
        %5475 = vmatprep.subr.bf16.mxu0 0
        %5476 = vmatpush1.bf16.xpose.msra.mxu0 0
        %5477 = vmatprep.subr.bf16.mxu0 0
        %5478 = vmatpush1.bf16.xpose.msra.mxu0 0
        %5479 = vmatprep.subr.bf16.mxu0 0
        %5480 = vmatpush1.bf16.xpose.msra.mxu0 0
        %5481 = vmatprep.subr.bf16.mxu0 0
        %5482 = vmatpush1.bf16.xpose.msra.mxu0 0
        %5483 = vmatprep.subr.bf16.mxu0 0
        %5484 = vmatpush1.bf16.xpose.msra.mxu0 0
        %5485 = vmatprep.subr.bf16.mxu0 0
        %5486 = vmatpush1.bf16.xpose.msra.mxu0 0
        %5487 = vmatprep.subr.bf16.mxu0 0
        %5488 = vmatpush1.bf16.xpose.msra.mxu0 0
        %5489 = vmatprep.subr.bf16.mxu0 0
        %5490 = vmatpush1.bf16.xpose.msra.mxu0 0
        %5491 = vmatprep.subr.bf16.mxu0 0
        %5492 = vmatpush1.bf16.xpose.msra.mxu0 0
        %5493 = vmatprep.subr.bf16.mxu0 0
        %5494 = vmatpush1.bf16.xpose.msra.mxu0 0
        %5495 = vmatprep.subr.bf16.mxu0 0
        %5496 = vmatpush1.bf16.xpose.msra.mxu0 0
        %5497 = vmatprep.subr.bf16.mxu0 0
        %5498 = vmatpush1.bf16.xpose.msra.mxu0 0
        %5499 = vmatprep.subr.bf16.mxu0 0
        %5500 = vmatpush1.bf16.xpose.msra.mxu0 0
        %5501 = vmatprep.subr.bf16.mxu0 0
        %5502 = vmatpush1.bf16.xpose.msra.mxu0 0
        %5503 = vmatprep.mubr.bf16.mxu0 0
        %5504 = vmatmul.mubr.bf16.gmra.mrb[0].mxu0 %v5466
        %v5505 = vpop.f32.mrb[0].mxu0
        %v5506 = vadd.f32 0.0, %v5505
        %v5507 = vpop.f32.mrb[0].mxu0
        %v5508 = vpop.f32.mrb[0].mxu0
        %v5509 = vadd.f32 0.0, %v5508
        %v5510 = vpop.f32.mrb[0].mxu0
        %5511 = vdwg.mxu0
        %5512 = vrot.lane.b32.xlu0 %v4558, 104
        %v5513 = vpop.permute.xlu0 %5512
        %5514 = vrot.lane.b32.xlu0 %v4560, 104
        %v5515 = vpop.permute.xlu0 %5514
        %v5517 = vsel %vm2486, %v5513, 0
        %v5520 = vsel %vm2486, %v5515, 0
        %5522 = vmatprep.subr.bf16.mxu0 0
        %5523 = vmatpush1.bf16.xpose.msra.mxu0 %v5520
        %5524 = vmatprep.subr.bf16.mxu0 0
        %5525 = vmatpush1.bf16.xpose.msra.mxu0 0
        %5526 = vmatprep.subr.bf16.mxu0 0
        %5527 = vmatpush1.bf16.xpose.msra.mxu0 0
        %5528 = vmatprep.subr.bf16.mxu0 0
        %5529 = vmatpush1.bf16.xpose.msra.mxu0 0
        %5530 = vmatprep.subr.bf16.mxu0 0
        %5531 = vmatpush1.bf16.xpose.msra.mxu0 0
        %5532 = vmatprep.subr.bf16.mxu0 0
        %5533 = vmatpush1.bf16.xpose.msra.mxu0 0
        %5534 = vmatprep.subr.bf16.mxu0 0
        %5535 = vmatpush1.bf16.xpose.msra.mxu0 0
        %5536 = vmatprep.subr.bf16.mxu0 0
        %5537 = vmatpush1.bf16.xpose.msra.mxu0 0
        %5538 = vmatprep.subr.bf16.mxu0 0
        %5539 = vmatpush1.bf16.xpose.msra.mxu0 0
        %5540 = vmatprep.subr.bf16.mxu0 0
        %5541 = vmatpush1.bf16.xpose.msra.mxu0 0
        %5542 = vmatprep.subr.bf16.mxu0 0
        %5543 = vmatpush1.bf16.xpose.msra.mxu0 0
        %5544 = vmatprep.subr.bf16.mxu0 0
        %5545 = vmatpush1.bf16.xpose.msra.mxu0 0
        %5546 = vmatprep.subr.bf16.mxu0 0
        %5547 = vmatpush1.bf16.xpose.msra.mxu0 0
        %5548 = vmatprep.subr.bf16.mxu0 0
        %5549 = vmatpush1.bf16.xpose.msra.mxu0 0
        %5550 = vmatprep.subr.bf16.mxu0 0
        %5551 = vmatpush1.bf16.xpose.msra.mxu0 0
        %5552 = vmatprep.subr.bf16.mxu0 0
        %5553 = vmatpush1.bf16.xpose.msra.mxu0 0
        %5554 = vmatprep.mubr.bf16.mxu0 0
        %5555 = vmatmul.mubr.bf16.gmra.mrb[0].mxu0 %v5517
        %v5556 = vpop.f32.mrb[0].mxu0
        %v5557 = vadd.f32 0.0, %v5556
        %v5558 = vpop.f32.mrb[0].mxu0
        %v5559 = vpop.f32.mrb[0].mxu0
        %v5560 = vadd.f32 0.0, %v5559
        %v5561 = vpop.f32.mrb[0].mxu0
        %5562 = vdwg.mxu0
        %5563 = vrot.lane.b32.xlu0 %v4659, 104
        %v5564 = vpop.permute.xlu0 %5563
        %5565 = vrot.lane.b32.xlu0 %v4660, 104
        %v5566 = vpop.permute.xlu0 %5565
        %5567 = vrot.lane.b32.xlu0 %v4661, 104
        %v5568 = vpop.permute.xlu0 %5567
        %5569 = vrot.lane.b32.xlu0 %v4662, 104
        %v5570 = vpop.permute.xlu0 %5569
        %v5575 = vsel %vm2486, %v5564, 0.0
        %5576 = vadd.xlane.f32.xlu0 %v5575
        %v5577 = vpop.xlane.xlu0 %5576
        %v5578 = vsel %vm2486, %v5566, 0.0
        %5579 = vadd.xlane.f32.xlu0 %v5578
        %v5580 = vpop.xlane.xlu0 %5579
        %v5581 = vsel %vm2486, %v5568, 0.0
        %5582 = vadd.xlane.f32.xlu0 %v5581
        %v5583 = vpop.xlane.xlu0 %5582
        %v5584 = vsel %vm2486, %v5570, 0.0
        %5585 = vadd.xlane.f32.xlu0 %v5584
        %v5586 = vpop.xlane.xlu0 %5585
        %v5587 = vsel %vm2601, %v5506, -inf
        %5588 = vmax.xlane.f32.xlu0 %v5587
        %v5589 = vpop.xlane.xlu0 %5588
        %v5590 = vsel %vm2601, %v5509, -inf
        %5591 = vmax.xlane.f32.xlu0 %v5590
        %v5592 = vpop.xlane.xlu0 %5591
        %v5593 = vsel %vm2601, %v5557, -inf
        %5594 = vmax.xlane.f32.xlu0 %v5593
        %v5595 = vpop.xlane.xlu0 %5594
        %v5596 = vsel %vm2601, %v5560, -inf
        %5597 = vmax.xlane.f32.xlu0 %v5596
        %v5598 = vpop.xlane.xlu0 %5597
        %v5599 = vmax.f32 %v5589, %v5577
        %v5600 = vmax.f32 %v5592, %v5580
        %v5601 = vmax.f32 %v5595, %v5583
        %v5602 = vmax.f32 %v5598, %v5586
        %v5603 = vsub.f32 %v5506, %v5599
        %v5604 = vsub.f32 %v5509, %v5600
        %v5605 = vsub.f32 %v5557, %v5601
        %v5606 = vsub.f32 %v5560, %v5602
        %v5607 = vmul.f32 %v5603, 1.442695
        %v5608 = vpow.pop %v5607
        %v5609 = vmul.f32 %v5604, 1.442695
        %v5610 = vpow.pop %v5609
        %v5611 = vmul.f32 %v5605, 1.442695
        %v5612 = vpow.pop %v5611
        %v5613 = vmul.f32 %v5606, 1.442695
        %v5614 = vpow.pop %v5613
        %v5615 = vsub.f32 %v5577, %v5599
        %v5616 = vsub.f32 %v5580, %v5600
        %v5617 = vsub.f32 %v5583, %v5601
        %v5618 = vsub.f32 %v5586, %v5602
        %v5619 = vmul.f32 %v5615, 1.442695
        %v5620 = vpow.pop %v5619
        %v5621 = vmul.f32 %v5616, 1.442695
        %v5622 = vpow.pop %v5621
        %v5623 = vmul.f32 %v5617, 1.442695
        %v5624 = vpow.pop %v5623
        %v5625 = vmul.f32 %v5618, 1.442695
        %v5626 = vpow.pop %v5625
        %v5627 = vsel %vm2601, %v5608, 0.0
        %5628 = vadd.xlane.f32.xlu0 %v5627
        %v5629 = vpop.xlane.xlu0 %5628
        %v5630 = vsel %vm2601, %v5610, 0.0
        %5631 = vadd.xlane.f32.xlu0 %v5630
        %v5632 = vpop.xlane.xlu0 %5631
        %v5633 = vsel %vm2601, %v5612, 0.0
        %5634 = vadd.xlane.f32.xlu0 %v5633
        %v5635 = vpop.xlane.xlu0 %5634
        %v5636 = vsel %vm2601, %v5614, 0.0
        %5637 = vadd.xlane.f32.xlu0 %v5636
        %v5638 = vpop.xlane.xlu0 %5637
        %v5639 = vadd.f32 %v5629, %v5620
        %v5640 = vadd.f32 %v5632, %v5622
        %v5641 = vadd.f32 %v5635, %v5624
        %v5642 = vadd.f32 %v5638, %v5626
        %v5643 = vpack.c.bf16 %v5610, %v5608
        %v5644 = vpack.c.bf16 %v5614, %v5612
        %v5645 = vmul.f32 %v5620, %v4738
        %v5646 = vmul.f32 %v5622, %v4738
        %v5647 = vmul.f32 %v5624, %v4738
        %v5648 = vmul.f32 %v5626, %v4738
        %5649 = vrot.lane.b32.xlu0 %v4733, 104
        %v5650 = vpop.permute.xlu0 %5649
        %5654 = vrot.lane.b32.xlu0 %v5645, 104
        %v5655 = vpop.permute.xlu0 %5654
        %5656 = vrot.lane.b32.xlu0 %v5646, 104
        %v5657 = vpop.permute.xlu0 %5656
        %v5661 = vsel %vm2601, %v5643, 0
        %5663 = vmatprep.subr.bf16.mxu0 0
        %5664 = vmatpush1.bf16.msra.mxu0 %v5650
        %5665 = vmatprep.subr.bf16.mxu0 0
        %5666 = vmatpush1.bf16.msra.mxu0 0
        %5667 = vmatprep.subr.bf16.mxu0 0
        %5668 = vmatpush1.bf16.msra.mxu0 0
        %5669 = vmatprep.subr.bf16.mxu0 0
        %5670 = vmatpush1.bf16.msra.mxu0 0
        %5671 = vmatprep.subr.bf16.mxu0 0
        %5672 = vmatpush1.bf16.msra.mxu0 0
        %5673 = vmatprep.subr.bf16.mxu0 0
        %5674 = vmatpush1.bf16.msra.mxu0 0
        %5675 = vmatprep.subr.bf16.mxu0 0
        %5676 = vmatpush1.bf16.msra.mxu0 0
        %5677 = vmatprep.subr.bf16.mxu0 0
        %5678 = vmatpush1.bf16.msra.mxu0 0
        %5679 = vmatprep.subr.bf16.mxu0 0
        %5680 = vmatpush1.bf16.msra.mxu0 0
        %5681 = vmatprep.subr.bf16.mxu0 0
        %5682 = vmatpush1.bf16.msra.mxu0 0
        %5683 = vmatprep.subr.bf16.mxu0 0
        %5684 = vmatpush1.bf16.msra.mxu0 0
        %5685 = vmatprep.subr.bf16.mxu0 0
        %5686 = vmatpush1.bf16.msra.mxu0 0
        %5687 = vmatprep.subr.bf16.mxu0 0
        %5688 = vmatpush1.bf16.msra.mxu0 0
        %5689 = vmatprep.subr.bf16.mxu0 0
        %5690 = vmatpush1.bf16.msra.mxu0 0
        %5691 = vmatprep.subr.bf16.mxu0 0
        %5692 = vmatpush1.bf16.msra.mxu0 0
        %5693 = vmatprep.subr.bf16.mxu0 0
        %5694 = vmatpush1.bf16.msra.mxu0 0
        %5695 = vmatprep.mubr.bf16.mxu0 0
        %5696 = vmatmul.mubr.bf16.gmra.mrb[0].mxu0 %v5661
        %v5697 = vpop.f32.mrb[0].mxu0
        %v5698 = vadd.f32 %v5655, %v5697
        %v5699 = vpop.f32.mrb[0].mxu0
        %v5700 = vpop.f32.mrb[0].mxu0
        %v5701 = vadd.f32 %v5657, %v5700
        %v5702 = vpop.f32.mrb[0].mxu0
        %5703 = vdwg.mxu0
        %5704 = vrot.lane.b32.xlu0 %v4734, 104
        %v5705 = vpop.permute.xlu0 %5704
        %5709 = vrot.lane.b32.xlu0 %v5647, 104
        %v5710 = vpop.permute.xlu0 %5709
        %5711 = vrot.lane.b32.xlu0 %v5648, 104
        %v5712 = vpop.permute.xlu0 %5711
        %v5716 = vsel %vm2601, %v5644, 0
        %5718 = vmatprep.subr.bf16.mxu0 0
        %5719 = vmatpush1.bf16.msra.mxu0 %v5705
        %5720 = vmatprep.subr.bf16.mxu0 0
        %5721 = vmatpush1.bf16.msra.mxu0 0
        %5722 = vmatprep.subr.bf16.mxu0 0
        %5723 = vmatpush1.bf16.msra.mxu0 0
        %5724 = vmatprep.subr.bf16.mxu0 0
        %5725 = vmatpush1.bf16.msra.mxu0 0
        %5726 = vmatprep.subr.bf16.mxu0 0
        %5727 = vmatpush1.bf16.msra.mxu0 0
        %5728 = vmatprep.subr.bf16.mxu0 0
        %5729 = vmatpush1.bf16.msra.mxu0 0
        %5730 = vmatprep.subr.bf16.mxu0 0
        %5731 = vmatpush1.bf16.msra.mxu0 0
        %5732 = vmatprep.subr.bf16.mxu0 0
        %5733 = vmatpush1.bf16.msra.mxu0 0
        %5734 = vmatprep.subr.bf16.mxu0 0
        %5735 = vmatpush1.bf16.msra.mxu0 0
        %5736 = vmatprep.subr.bf16.mxu0 0
        %5737 = vmatpush1.bf16.msra.mxu0 0
        %5738 = vmatprep.subr.bf16.mxu0 0
        %5739 = vmatpush1.bf16.msra.mxu0 0
        %5740 = vmatprep.subr.bf16.mxu0 0
        %5741 = vmatpush1.bf16.msra.mxu0 0
        %5742 = vmatprep.subr.bf16.mxu0 0
        %5743 = vmatpush1.bf16.msra.mxu0 0
        %5744 = vmatprep.subr.bf16.mxu0 0
        %5745 = vmatpush1.bf16.msra.mxu0 0
        %5746 = vmatprep.subr.bf16.mxu0 0
        %5747 = vmatpush1.bf16.msra.mxu0 0
        %5748 = vmatprep.subr.bf16.mxu0 0
        %5749 = vmatpush1.bf16.msra.mxu0 0
        %5750 = vmatprep.mubr.bf16.mxu0 0
        %5751 = vmatmul.mubr.bf16.gmra.mrb[0].mxu0 %v5716
        %v5752 = vpop.f32.mrb[0].mxu0
        %v5753 = vadd.f32 %v5710, %v5752
        %v5754 = vpop.f32.mrb[0].mxu0
        %v5755 = vpop.f32.mrb[0].mxu0
        %v5756 = vadd.f32 %v5712, %v5755
        %v5757 = vpop.f32.mrb[0].mxu0
        %5758 = vdwg.mxu0
        %v5759 = vrcp.pop %v5639
        %v5760 = vmul.f32 %v5698, %v5759
        %v5761 = vrcp.pop %v5640
        %v5762 = vmul.f32 %v5701, %v5761
        %v5763 = vrcp.pop %v5641
        %v5764 = vmul.f32 %v5753, %v5763
        %v5765 = vrcp.pop %v5642
        %v5766 = vmul.f32 %v5756, %v5765
        %5771 = vrot.lane.b32.xlu0 %v5148, 8
        %v5772 = vpop.permute.xlu0 %5771
        %5773 = vrot.lane.b32.xlu0 %v5150, 8
        %v5774 = vpop.permute.xlu0 %5773
        %5775 = vrot.lane.b32.xlu0 %v5152, 8
        %v5776 = vpop.permute.xlu0 %5775
        %5777 = vrot.lane.b32.xlu0 %v5154, 8
        %v5778 = vpop.permute.xlu0 %5777
        %5787 = vrot.lane.b32.xlu0 %v5454, 16
        %v5788 = vpop.permute.xlu0 %5787
        %5789 = vrot.lane.b32.xlu0 %v5456, 16
        %v5790 = vpop.permute.xlu0 %5789
        %5791 = vrot.lane.b32.xlu0 %v5458, 16
        %v5792 = vpop.permute.xlu0 %5791
        %5793 = vrot.lane.b32.xlu0 %v5460, 16
        %v5794 = vpop.permute.xlu0 %5793
        %5803 = vrot.lane.b32.xlu0 %v5760, 24
        %v5804 = vpop.permute.xlu0 %5803
        %5805 = vrot.lane.b32.xlu0 %v5762, 24
        %v5806 = vpop.permute.xlu0 %5805
        %5807 = vrot.lane.b32.xlu0 %v5764, 24
        %v5808 = vpop.permute.xlu0 %5807
        %5809 = vrot.lane.b32.xlu0 %v5766, 24
        %v5810 = vpop.permute.xlu0 %5809
        %v5815 = vsel %vm2486, %v4832, %v5772
        %v5816 = vsel %vm2486, %v4834, %v5774
        %v5817 = vsel %vm2486, %v4836, %v5776
        %v5818 = vsel %vm2486, %v4838, %v5778
        %v5819 = vsel %vm2601, %v5815, %v5788
        %v5820 = vsel %vm2601, %v5816, %v5790
        %v5821 = vsel %vm2601, %v5817, %v5792
        %v5822 = vsel %vm2601, %v5818, %v5794
        %v5823 = vsel %vm3750, %v5819, %v5804
        %v5824 = vsel %vm3750, %v5820, %v5806
        %v5825 = vsel %vm3750, %v5821, %v5808
        %v5826 = vsel %vm3750, %v5822, %v5810
        %v5827 = vpack.c.bf16 %v5824, %v5823
        %v5828 = vpack.c.bf16 %v5826, %v5825
        %s5829 = scalar_lea.vmem %s386, 272 [#allocation4]
        %v5830 = vld [vmem:[%s5829] sm:$0xf]
        %v5831 = vld [vmem:[%s5829 + $0x4] sm:$0xf]
        %v5832 = vld [vmem:[%s5829 + $0x8] sm:$0xf]
        %v5833 = vld [vmem:[%s5829 + $0xc] sm:$0xf]
        %v5834 = vlaneseq
        %v5835 = vshrl.u32 %v5834, 7
        %v5836 = vsub.s32 1, %v5835
        %v5837 = vrot.slane %v703, %v5836
        %v5842 = vunpack.c.l.b16 %v5830
        %v5843 = vunpack.c.l.b16 %v5831
        %v5844 = vunpack.c.l.b16 %v5832
        %v5845 = vunpack.c.l.b16 %v5833
        %v5846 = vpack.c.b16 %v5843, %v5842
        %v5847 = vpack.c.b16 %v5845, %v5844
        %v5851 = vsel %vm704, %v5827, 0
        %v5854 = vsel %vm704, %v5828, 0
        %5856 = vmatprep.subr.bf16.mxu0 0
        %5857 = vmatpush1.bf16.msra.mxu0 %v5846
        %5858 = vmatprep.subr.bf16.mxu0 0
        %5859 = vmatpush1.bf16.msra.mxu0 %v5847
        %5860 = vmatprep.subr.bf16.mxu0 0
        %5861 = vmatpush1.bf16.msra.mxu0 0
        %5862 = vmatprep.subr.bf16.mxu0 0
        %5863 = vmatpush1.bf16.msra.mxu0 0
        %5864 = vmatprep.subr.bf16.mxu0 0
        %5865 = vmatpush1.bf16.msra.mxu0 0
        %5866 = vmatprep.subr.bf16.mxu0 0
        %5867 = vmatpush1.bf16.msra.mxu0 0
        %5868 = vmatprep.subr.bf16.mxu0 0
        %5869 = vmatpush1.bf16.msra.mxu0 0
        %5870 = vmatprep.subr.bf16.mxu0 0
        %5871 = vmatpush1.bf16.msra.mxu0 0
        %5872 = vmatprep.subr.bf16.mxu0 0
        %5873 = vmatpush1.bf16.msra.mxu0 0
        %5874 = vmatprep.subr.bf16.mxu0 0
        %5875 = vmatpush1.bf16.msra.mxu0 0
        %5876 = vmatprep.subr.bf16.mxu0 0
        %5877 = vmatpush1.bf16.msra.mxu0 0
        %5878 = vmatprep.subr.bf16.mxu0 0
        %5879 = vmatpush1.bf16.msra.mxu0 0
        %5880 = vmatprep.subr.bf16.mxu0 0
        %5881 = vmatpush1.bf16.msra.mxu0 0
        %5882 = vmatprep.subr.bf16.mxu0 0
        %5883 = vmatpush1.bf16.msra.mxu0 0
        %5884 = vmatprep.subr.bf16.mxu0 0
        %5885 = vmatpush1.bf16.msra.mxu0 0
        %5886 = vmatprep.subr.bf16.mxu0 0
        %5887 = vmatpush1.bf16.msra.mxu0 0
        %5888 = vmatprep.mubr.bf16.mxu0 0
        %5889 = vmatmul.mubr.bf16.gmra.mrb[0].mxu0 %v5851
        %v5890 = vpop.f32.mrb[0].mxu0
        %v5891 = vadd.f32 %v5837, %v5890
        %v5892 = vpop.f32.mrb[0].mxu0
        %v5893 = vpop.f32.mrb[0].mxu0
        %v5894 = vadd.f32 %v5837, %v5893
        %v5895 = vpop.f32.mrb[0].mxu0
        %5896 = vmatprep.mubr.bf16.mxu0 0
        %5897 = vmatmul.mubr.bf16.gmra.mrb[0].mxu0 %v5854
        %v5898 = vpop.f32.mrb[0].mxu0
        %v5899 = vadd.f32 %v5837, %v5898
        %v5900 = vpop.f32.mrb[0].mxu0
        %v5901 = vpop.f32.mrb[0].mxu0
        %v5902 = vadd.f32 %v5837, %v5901
        %v5903 = vpop.f32.mrb[0].mxu0
        %5904 = vdwg.mxu0
        %v5905 = vpack.c.bf16 %v5894, %v5891
        %v5906 = vpack.c.bf16 %v5902, %v5899
        %s5907 = scalar_lea.vmem %s386, 288 [#allocation4]
        %v5908 = vld [vmem:[%s5907] sm:$0xf]
        %v5909 = vld [vmem:[%s5907 + $0x4] sm:$0xf]
        %v5910 = vld [vmem:[%s5907 + $0x8] sm:$0xf]
        %v5911 = vld [vmem:[%s5907 + $0xc] sm:$0xf]
        %v5912 = vlaneseq
        %v5913 = vshrl.u32 %v5912, 7
        %v5914 = vsub.s32 2, %v5913
        %v5915 = vrot.slane %v703, %v5914
        %v5920 = vunpack.c.l.b16 %v5908
        %v5921 = vunpack.c.l.b16 %v5909
        %v5922 = vunpack.c.l.b16 %v5910
        %v5923 = vunpack.c.l.b16 %v5911
        %v5924 = vpack.c.b16 %v5921, %v5920
        %v5925 = vpack.c.b16 %v5923, %v5922
        %v5929 = vsel %vm704, %v5905, 0
        %v5932 = vsel %vm704, %v5906, 0
        %5934 = vmatprep.subr.bf16.mxu0 0
        %5935 = vmatpush1.bf16.msra.mxu0 %v5924
        %5936 = vmatprep.subr.bf16.mxu0 0
        %5937 = vmatpush1.bf16.msra.mxu0 %v5925
        %5938 = vmatprep.subr.bf16.mxu0 0
        %5939 = vmatpush1.bf16.msra.mxu0 0
        %5940 = vmatprep.subr.bf16.mxu0 0
        %5941 = vmatpush1.bf16.msra.mxu0 0
        %5942 = vmatprep.subr.bf16.mxu0 0
        %5943 = vmatpush1.bf16.msra.mxu0 0
        %5944 = vmatprep.subr.bf16.mxu0 0
        %5945 = vmatpush1.bf16.msra.mxu0 0
        %5946 = vmatprep.subr.bf16.mxu0 0
        %5947 = vmatpush1.bf16.msra.mxu0 0
        %5948 = vmatprep.subr.bf16.mxu0 0
        %5949 = vmatpush1.bf16.msra.mxu0 0
        %5950 = vmatprep.subr.bf16.mxu0 0
        %5951 = vmatpush1.bf16.msra.mxu0 0
        %5952 = vmatprep.subr.bf16.mxu0 0
        %5953 = vmatpush1.bf16.msra.mxu0 0
        %5954 = vmatprep.subr.bf16.mxu0 0
        %5955 = vmatpush1.bf16.msra.mxu0 0
        %5956 = vmatprep.subr.bf16.mxu0 0
        %5957 = vmatpush1.bf16.msra.mxu0 0
        %5958 = vmatprep.subr.bf16.mxu0 0
        %5959 = vmatpush1.bf16.msra.mxu0 0
        %5960 = vmatprep.subr.bf16.mxu0 0
        %5961 = vmatpush1.bf16.msra.mxu0 0
        %5962 = vmatprep.subr.bf16.mxu0 0
        %5963 = vmatpush1.bf16.msra.mxu0 0
        %5964 = vmatprep.subr.bf16.mxu0 0
        %5965 = vmatpush1.bf16.msra.mxu0 0
        %5966 = vmatprep.mubr.bf16.mxu0 0
        %5967 = vmatmul.mubr.bf16.gmra.mrb[0].mxu0 %v5929
        %v5968 = vpop.f32.mrb[0].mxu0
        %v5969 = vadd.f32 %v5915, %v5968
        %v5970 = vpop.f32.mrb[0].mxu0
        %v5971 = vpop.f32.mrb[0].mxu0
        %v5972 = vadd.f32 %v5915, %v5971
        %v5973 = vpop.f32.mrb[0].mxu0
        %5974 = vmatprep.mubr.bf16.mxu0 0
        %5975 = vmatmul.mubr.bf16.gmra.mrb[0].mxu0 %v5932
        %v5976 = vpop.f32.mrb[0].mxu0
        %v5977 = vadd.f32 %v5915, %v5976
        %v5978 = vpop.f32.mrb[0].mxu0
        %v5979 = vpop.f32.mrb[0].mxu0
        %v5980 = vadd.f32 %v5915, %v5979
        %v5981 = vpop.f32.mrb[0].mxu0
        %5982 = vdwg.mxu0
        %v5983 = vsel %vm704, %v5969, 0.0
        %5984 = vadd.xlane.f32.xlu0 %v5983
        %v5985 = vpop.xlane.xlu0 %5984
        %v5986 = vsel %vm704, %v5972, 0.0
        %5987 = vadd.xlane.f32.xlu0 %v5986
        %v5988 = vpop.xlane.xlu0 %5987
        %v5989 = vsel %vm704, %v5977, 0.0
        %5990 = vadd.xlane.f32.xlu0 %v5989
        %v5991 = vpop.xlane.xlu0 %5990
        %v5992 = vsel %vm704, %v5980, 0.0
        %5993 = vadd.xlane.f32.xlu0 %v5992
        %v5994 = vpop.xlane.xlu0 %5993
        %v5995 = vmul.f32 %v5985, %v753
        %v5996 = vmul.f32 %v5988, %v753
        %v5997 = vmul.f32 %v5991, %v753
        %v5998 = vmul.f32 %v5994, %v753
        %v5999 = vsub.f32 %v5969, %v5995
        %v6000 = vsub.f32 %v5972, %v5996
        %v6001 = vsub.f32 %v5977, %v5997
        %v6002 = vsub.f32 %v5980, %v5998
        %v6003 = vmul.f32 %v5999, %v5999
        %v6004 = vmul.f32 %v6000, %v6000
        %v6005 = vmul.f32 %v6001, %v6001
        %v6006 = vmul.f32 %v6002, %v6002
        %v6007 = vsel %vm704, %v6003, 0.0
        %6008 = vadd.xlane.f32.xlu0 %v6007
        %v6009 = vpop.xlane.xlu0 %6008
        %v6010 = vsel %vm704, %v6004, 0.0
        %6011 = vadd.xlane.f32.xlu0 %v6010
        %v6012 = vpop.xlane.xlu0 %6011
        %v6013 = vsel %vm704, %v6005, 0.0
        %6014 = vadd.xlane.f32.xlu0 %v6013
        %v6015 = vpop.xlane.xlu0 %6014
        %v6016 = vsel %vm704, %v6006, 0.0
        %6017 = vadd.xlane.f32.xlu0 %v6016
        %v6018 = vpop.xlane.xlu0 %6017
        %v6019 = vmul.f32 %v6009, %v753
        %v6020 = vmul.f32 %v6012, %v753
        %v6021 = vmul.f32 %v6015, %v753
        %v6022 = vmul.f32 %v6018, %v753
        %v6023 = vadd.f32 %v6019, 1e-05
        %v6024 = vadd.f32 %v6020, 1e-05
        %v6025 = vadd.f32 %v6021, 1e-05
        %v6026 = vadd.f32 %v6022, 1e-05
        %v6027 = vrsqrt.pop %v6023
        %v6028 = vrsqrt.pop %v6024
        %v6029 = vrsqrt.pop %v6025
        %v6030 = vrsqrt.pop %v6026
        %v6031 = vmul.f32 %v5999, %v6027
        %v6032 = vmul.f32 %v6000, %v6028
        %v6033 = vmul.f32 %v6001, %v6029
        %v6034 = vmul.f32 %v6002, %v6030
        %v6035 = vlaneseq
        %v6036 = vshrl.u32 %v6035, 7
        %v6037 = vsub.s32 3, %v6036
        %v6038 = vrot.slane %v703, %v6037
        %v6039 = vmul.f32 %v6031, %v6038
        %v6040 = vmul.f32 %v6032, %v6038
        %v6041 = vmul.f32 %v6033, %v6038
        %v6042 = vmul.f32 %v6034, %v6038
        %v6043 = vlaneseq
        %v6044 = vshrl.u32 %v6043, 7
        %v6045 = vsub.s32 4, %v6044
        %v6046 = vrot.slane %v703, %v6045
        %v6047 = vadd.f32 %v6039, %v6046
        %v6048 = vadd.f32 %v6040, %v6046
        %v6049 = vadd.f32 %v6041, %v6046
        %v6050 = vadd.f32 %v6042, %v6046
        %v6051 = vpack.c.bf16 %v6048, %v6047
        %v6052 = vpack.c.bf16 %v6050, %v6049
        %s6053 = scalar_lea.vmem %s386, 304 [#allocation4]
        %v6054 = vld [vmem:[%s6053] sm:$0xf]
        %v6055 = vld [vmem:[%s6053 + $0x4] sm:$0xf]
        %v6056 = vld [vmem:[%s6053 + $0x8] sm:$0xf]
        %v6057 = vld [vmem:[%s6053 + $0xc] sm:$0xf]
        %v6058 = vlaneseq
        %v6059 = vshrl.u32 %v6058, 7
        %v6060 = vsub.s32 5, %v6059
        %v6061 = vrot.slane %v703, %v6060
        %v6066 = vunpack.c.l.b16 %v6054
        %v6067 = vunpack.c.l.b16 %v6055
        %v6068 = vunpack.c.l.b16 %v6056
        %v6069 = vunpack.c.l.b16 %v6057
        %v6070 = vpack.c.b16 %v6067, %v6066
        %v6071 = vpack.c.b16 %v6069, %v6068
        %v6075 = vsel %vm704, %v6051, 0
        %v6078 = vsel %vm704, %v6052, 0
        %6080 = vmatprep.subr.bf16.mxu0 0
        %6081 = vmatpush1.bf16.msra.mxu0 %v6070
        %6082 = vmatprep.subr.bf16.mxu0 0
        %6083 = vmatpush1.bf16.msra.mxu0 %v6071
        %6084 = vmatprep.subr.bf16.mxu0 0
        %6085 = vmatpush1.bf16.msra.mxu0 0
        %6086 = vmatprep.subr.bf16.mxu0 0
        %6087 = vmatpush1.bf16.msra.mxu0 0
        %6088 = vmatprep.subr.bf16.mxu0 0
        %6089 = vmatpush1.bf16.msra.mxu0 0
        %6090 = vmatprep.subr.bf16.mxu0 0
        %6091 = vmatpush1.bf16.msra.mxu0 0
        %6092 = vmatprep.subr.bf16.mxu0 0
        %6093 = vmatpush1.bf16.msra.mxu0 0
        %6094 = vmatprep.subr.bf16.mxu0 0
        %6095 = vmatpush1.bf16.msra.mxu0 0
        %6096 = vmatprep.subr.bf16.mxu0 0
        %6097 = vmatpush1.bf16.msra.mxu0 0
        %6098 = vmatprep.subr.bf16.mxu0 0
        %6099 = vmatpush1.bf16.msra.mxu0 0
        %6100 = vmatprep.subr.bf16.mxu0 0
        %6101 = vmatpush1.bf16.msra.mxu0 0
        %6102 = vmatprep.subr.bf16.mxu0 0
        %6103 = vmatpush1.bf16.msra.mxu0 0
        %6104 = vmatprep.subr.bf16.mxu0 0
        %6105 = vmatpush1.bf16.msra.mxu0 0
        %6106 = vmatprep.subr.bf16.mxu0 0
        %6107 = vmatpush1.bf16.msra.mxu0 0
        %6108 = vmatprep.subr.bf16.mxu0 0
        %6109 = vmatpush1.bf16.msra.mxu0 0
        %6110 = vmatprep.subr.bf16.mxu0 0
        %6111 = vmatpush1.bf16.msra.mxu0 0
        %6112 = vmatprep.mubr.bf16.mxu0 0
        %6113 = vmatmul.mubr.bf16.gmra.mrb[0].mxu0 %v6075
        %v6114 = vpop.f32.mrb[0].mxu0
        %v6115 = vadd.f32 %v6061, %v6114
        %v6116 = vpop.f32.mrb[0].mxu0
        %v6117 = vpop.f32.mrb[0].mxu0
        %v6118 = vadd.f32 %v6061, %v6117
        %v6119 = vpop.f32.mrb[0].mxu0
        %6120 = vmatprep.mubr.bf16.mxu0 0
        %6121 = vmatmul.mubr.bf16.gmra.mrb[0].mxu0 %v6078
        %v6122 = vpop.f32.mrb[0].mxu0
        %v6123 = vadd.f32 %v6061, %v6122
        %v6124 = vpop.f32.mrb[0].mxu0
        %v6125 = vpop.f32.mrb[0].mxu0
        %v6126 = vadd.f32 %v6061, %v6125
        %v6127 = vpop.f32.mrb[0].mxu0
        %6128 = vdwg.mxu0
        %v6129 = vmul.f32 %v6115, 0.5
        %v6130 = vmul.f32 %v6118, 0.5
        %v6131 = vmul.f32 %v6123, 0.5
        %v6132 = vmul.f32 %v6126, 0.5
        %v6133 = vmul.f32 %v6115, 0.70710677
        %v6134 = vmul.f32 %v6118, 0.70710677
        %v6135 = vmul.f32 %v6123, 0.70710677
        %v6136 = vmul.f32 %v6126, 0.70710677
        %vm6137 = vcmp.ge.f32.partialorder %v6133, 0.0
        %vm6138 = vcmp.ge.f32.partialorder %v6134, 0.0
        %vm6139 = vcmp.ge.f32.partialorder %v6135, 0.0
        %vm6140 = vcmp.ge.f32.partialorder %v6136, 0.0
        %v6141 = vsel %vm6137, 1.0, -1.0
        %v6142 = vsel %vm6138, 1.0, -1.0
        %v6143 = vsel %vm6139, 1.0, -1.0
        %v6144 = vsel %vm6140, 1.0, -1.0
        %v6145 = vand.u32 2147483647, %v6133
        %v6146 = vand.u32 2147483647, %v6134
        %v6147 = vand.u32 2147483647, %v6135
        %v6148 = vand.u32 2147483647, %v6136
        %v6149 = vmul.f32 %v6145, 0.3275911
        %v6150 = vmul.f32 %v6146, 0.3275911
        %v6151 = vmul.f32 %v6147, 0.3275911
        %v6152 = vmul.f32 %v6148, 0.3275911
        %v6153 = vadd.f32 %v6149, 1.0
        %v6154 = vadd.f32 %v6150, 1.0
        %v6155 = vadd.f32 %v6151, 1.0
        %v6156 = vadd.f32 %v6152, 1.0
        %v6157 = vrcp.pop %v6153
        %v6158 = vmul.f32 1.0, %v6157
        %v6159 = vrcp.pop %v6154
        %v6160 = vmul.f32 1.0, %v6159
        %v6161 = vrcp.pop %v6155
        %v6162 = vmul.f32 1.0, %v6161
        %v6163 = vrcp.pop %v6156
        %v6164 = vmul.f32 1.0, %v6163
        %v6165 = vmul.f32 %v6158, 1.0614054
        %v6166 = vmul.f32 %v6160, 1.0614054
        %v6167 = vmul.f32 %v6162, 1.0614054
        %v6168 = vmul.f32 %v6164, 1.0614054
        %v6169 = vadd.f32 %v6165, -1.4531521
        %v6170 = vadd.f32 %v6166, -1.4531521
        %v6171 = vadd.f32 %v6167, -1.4531521
        %v6172 = vadd.f32 %v6168, -1.4531521
        %v6173 = vmul.f32 %v6169, %v6158
        %v6174 = vmul.f32 %v6170, %v6160
        %v6175 = vmul.f32 %v6171, %v6162
        %v6176 = vmul.f32 %v6172, %v6164
        %v6177 = vadd.f32 %v6173, 1.4214138
        %v6178 = vadd.f32 %v6174, 1.4214138
        %v6179 = vadd.f32 %v6175, 1.4214138
        %v6180 = vadd.f32 %v6176, 1.4214138
        %v6181 = vmul.f32 %v6177, %v6158
        %v6182 = vmul.f32 %v6178, %v6160
        %v6183 = vmul.f32 %v6179, %v6162
        %v6184 = vmul.f32 %v6180, %v6164
        %v6185 = vadd.f32 %v6181, -0.28449672
        %v6186 = vadd.f32 %v6182, -0.28449672
        %v6187 = vadd.f32 %v6183, -0.28449672
        %v6188 = vadd.f32 %v6184, -0.28449672
        %v6189 = vmul.f32 %v6185, %v6158
        %v6190 = vmul.f32 %v6186, %v6160
        %v6191 = vmul.f32 %v6187, %v6162
        %v6192 = vmul.f32 %v6188, %v6164
        %v6193 = vadd.f32 %v6189, 0.2548296
        %v6194 = vadd.f32 %v6190, 0.2548296
        %v6195 = vadd.f32 %v6191, 0.2548296
        %v6196 = vadd.f32 %v6192, 0.2548296
        %v6197 = vmul.f32 %v6193, %v6158
        %v6198 = vmul.f32 %v6194, %v6160
        %v6199 = vmul.f32 %v6195, %v6162
        %v6200 = vmul.f32 %v6196, %v6164
        %v6201 = vsub.f32 0.0, %v6145
        %v6202 = vsub.f32 0.0, %v6146
        %v6203 = vsub.f32 0.0, %v6147
        %v6204 = vsub.f32 0.0, %v6148
        %v6205 = vmul.f32 %v6201, %v6145
        %v6206 = vmul.f32 %v6202, %v6146
        %v6207 = vmul.f32 %v6203, %v6147
        %v6208 = vmul.f32 %v6204, %v6148
        %v6209 = vmul.f32 %v6205, 1.442695
        %v6210 = vpow.pop %v6209
        %v6211 = vmul.f32 %v6206, 1.442695
        %v6212 = vpow.pop %v6211
        %v6213 = vmul.f32 %v6207, 1.442695
        %v6214 = vpow.pop %v6213
        %v6215 = vmul.f32 %v6208, 1.442695
        %v6216 = vpow.pop %v6215
        %v6217 = vmul.f32 %v6197, %v6210
        %v6218 = vmul.f32 %v6198, %v6212
        %v6219 = vmul.f32 %v6199, %v6214
        %v6220 = vmul.f32 %v6200, %v6216
        %v6221 = vsub.f32 1.0, %v6217
        %v6222 = vsub.f32 1.0, %v6218
        %v6223 = vsub.f32 1.0, %v6219
        %v6224 = vsub.f32 1.0, %v6220
        %v6225 = vmul.f32 %v6141, %v6221
        %v6226 = vmul.f32 %v6142, %v6222
        %v6227 = vmul.f32 %v6143, %v6223
        %v6228 = vmul.f32 %v6144, %v6224
        %v6229 = vadd.f32 %v6225, 1.0
        %v6230 = vadd.f32 %v6226, 1.0
        %v6231 = vadd.f32 %v6227, 1.0
        %v6232 = vadd.f32 %v6228, 1.0
        %v6233 = vmul.f32 %v6129, %v6229
        %v6234 = vmul.f32 %v6130, %v6230
        %v6235 = vmul.f32 %v6131, %v6231
        %v6236 = vmul.f32 %v6132, %v6232
        %v6237 = vpack.c.bf16 %v6234, %v6233
        %v6238 = vpack.c.bf16 %v6236, %v6235
        %s6239 = scalar_lea.vmem %s386, 320 [#allocation4]
        %v6240 = vld [vmem:[%s6239] sm:$0xf]
        %v6241 = vld [vmem:[%s6239 + $0x4] sm:$0xf]
        %v6242 = vld [vmem:[%s6239 + $0x8] sm:$0xf]
        %v6243 = vld [vmem:[%s6239 + $0xc] sm:$0xf]
        %v6244 = vlaneseq
        %v6245 = vshrl.u32 %v6244, 7
        %v6246 = vsub.s32 6, %v6245
        %v6247 = vrot.slane %v703, %v6246
        %v6252 = vunpack.c.l.b16 %v6240
        %v6253 = vunpack.c.l.b16 %v6241
        %v6254 = vunpack.c.l.b16 %v6242
        %v6255 = vunpack.c.l.b16 %v6243
        %v6256 = vpack.c.b16 %v6253, %v6252
        %v6257 = vpack.c.b16 %v6255, %v6254
        %v6261 = vsel %vm704, %v6237, 0
        %v6264 = vsel %vm704, %v6238, 0
        %6266 = vmatprep.subr.bf16.mxu0 0
        %6267 = vmatpush1.bf16.msra.mxu0 %v6256
        %6268 = vmatprep.subr.bf16.mxu0 0
        %6269 = vmatpush1.bf16.msra.mxu0 %v6257
        %6270 = vmatprep.subr.bf16.mxu0 0
        %6271 = vmatpush1.bf16.msra.mxu0 0
        %6272 = vmatprep.subr.bf16.mxu0 0
        %6273 = vmatpush1.bf16.msra.mxu0 0
        %6274 = vmatprep.subr.bf16.mxu0 0
        %6275 = vmatpush1.bf16.msra.mxu0 0
        %6276 = vmatprep.subr.bf16.mxu0 0
        %6277 = vmatpush1.bf16.msra.mxu0 0
        %6278 = vmatprep.subr.bf16.mxu0 0
        %6279 = vmatpush1.bf16.msra.mxu0 0
        %6280 = vmatprep.subr.bf16.mxu0 0
        %6281 = vmatpush1.bf16.msra.mxu0 0
        %6282 = vmatprep.subr.bf16.mxu0 0
        %6283 = vmatpush1.bf16.msra.mxu0 0
        %6284 = vmatprep.subr.bf16.mxu0 0
        %6285 = vmatpush1.bf16.msra.mxu0 0
        %6286 = vmatprep.subr.bf16.mxu0 0
        %6287 = vmatpush1.bf16.msra.mxu0 0
        %6288 = vmatprep.subr.bf16.mxu0 0
        %6289 = vmatpush1.bf16.msra.mxu0 0
        %6290 = vmatprep.subr.bf16.mxu0 0
        %6291 = vmatpush1.bf16.msra.mxu0 0
        %6292 = vmatprep.subr.bf16.mxu0 0
        %6293 = vmatpush1.bf16.msra.mxu0 0
        %6294 = vmatprep.subr.bf16.mxu0 0
        %6295 = vmatpush1.bf16.msra.mxu0 0
        %6296 = vmatprep.subr.bf16.mxu0 0
        %6297 = vmatpush1.bf16.msra.mxu0 0
        %6298 = vmatprep.mubr.bf16.mxu0 0
        %6299 = vmatmul.mubr.bf16.gmra.mrb[0].mxu0 %v6261
        %v6300 = vpop.f32.mrb[0].mxu0
        %v6301 = vadd.f32 %v6247, %v6300
        %v6302 = vpop.f32.mrb[0].mxu0
        %v6303 = vpop.f32.mrb[0].mxu0
        %v6304 = vadd.f32 %v6247, %v6303
        %v6305 = vpop.f32.mrb[0].mxu0
        %6306 = vmatprep.mubr.bf16.mxu0 0
        %6307 = vmatmul.mubr.bf16.gmra.mrb[0].mxu0 %v6264
        %v6308 = vpop.f32.mrb[0].mxu0
        %v6309 = vadd.f32 %v6247, %v6308
        %v6310 = vpop.f32.mrb[0].mxu0
        %v6311 = vpop.f32.mrb[0].mxu0
        %v6312 = vadd.f32 %v6247, %v6311
        %v6313 = vpop.f32.mrb[0].mxu0
        %6314 = vdwg.mxu0
        %v6315 = vadd.f32 %v6301, %v4243
        %v6316 = vadd.f32 %v6304, %v4244
        %v6317 = vadd.f32 %v6309, %v4245
        %v6318 = vadd.f32 %v6312, %v4246
        %6319 = vst.msk [vmem:[#allocation3] sm:$0xff] %vm704, %v6315
        %6320 = vst.msk [vmem:[#allocation3 + $0x8] sm:$0xff] %vm704, %v6316
        %6321 = vst.msk [vmem:[#allocation3 + $0x10] sm:$0xff] %vm704, %v6317
        %6322 = vst.msk [vmem:[#allocation3 + $0x18] sm:$0xff] %vm704, %v6318
        %p6323 = scmp.eq.s32.totalorder %s30, 1
        // Predicated region
        $region69: #{forward.1} parent=59 // pred_check
          %p6324 = pneg %p6323
        $region70: #{forward.1} parent=59 // pred_check_branch
          %6326 = sbr.rel (%p6324) target = $region72
        $region71: #{forward.1} parent=59 // pred_region
          %v6327 = vsel %vm704, %v6315, 0.0
          %v6328 = vsel %vm704, %v6316, 0.0
          %v6329 = vadd.f32 %v6327, %v6328
          %v6330 = vrot.slane %v6329, 4
          %v6331 = vadd.f32 %v6329, %v6330
          %v6332 = vrot.slane %v6331, 2
          %v6333 = vadd.f32 %v6331, %v6332
          %v6334 = vrot.slane %v6333, 1
          %v6335 = vadd.f32 %v6333, %v6334
          %v6336 = vrcp.pop 16.0
          %v6337 = vmul.f32 %v6335, %v6336
          %v6338 = vsel %vm704, %v6317, 0.0
          %v6339 = vsel %vm704, %v6318, 0.0
          %v6340 = vadd.f32 %v6338, %v6339
          %v6341 = vrot.slane %v6340, 4
          %v6342 = vadd.f32 %v6340, %v6341
          %v6343 = vrot.slane %v6342, 2
          %v6344 = vadd.f32 %v6342, %v6343
          %v6345 = vrot.slane %v6344, 1
          %v6346 = vadd.f32 %v6344, %v6345
          %v6347 = vmul.f32 %v6346, %v6336
          %vm6348 = vcmask 1040384
          %v6349 = vsel %vm6348, %v6337, %v6347
          %v6350 = vpack.c.bf16 %v6349, %v6349
          %v6351 = vld [vmem:[%s6] sm:$0xf]
          %v6352 = vld [vmem:[%s6 + $0x4] sm:$0xf]
          %v6353 = vld [vmem:[%s6 + $0x8] sm:$0xf]
          %v6354 = vld [vmem:[%s6 + $0xc] sm:$0xf]
          %v6355 = vld [vmem:[%s7] sm:$0x1]
          %v6357 = vlaneseq
          %v6358 = vshrl.u32 %v6357, 7
          %v6359 = vsub.s32 0, %v6358
          %v6360 = vrot.slane %v6355, %v6359
          %v6366 = vunpack.c.l.b16 %v6351
          %v6367 = vunpack.c.l.b16 %v6352
          %v6368 = vunpack.c.l.b16 %v6353
          %v6369 = vunpack.c.l.b16 %v6354
          %v6370 = vpack.c.b16 %v6367, %v6366
          %v6371 = vpack.c.b16 %v6369, %v6368
          %v6375 = vsel %vm704, %v6350, 0
          %6377 = vmatprep.subr.bf16.mxu0 0
          %6378 = vmatpush1.bf16.msra.mxu0 %v6370
          %6379 = vmatprep.subr.bf16.mxu0 0
          %6380 = vmatpush1.bf16.msra.mxu0 %v6371
          %6381 = vmatprep.subr.bf16.mxu0 0
          %6382 = vmatpush1.bf16.msra.mxu0 0
          %6383 = vmatprep.subr.bf16.mxu0 0
          %6384 = vmatpush1.bf16.msra.mxu0 0
          %6385 = vmatprep.subr.bf16.mxu0 0
          %6386 = vmatpush1.bf16.msra.mxu0 0
          %6387 = vmatprep.subr.bf16.mxu0 0
          %6388 = vmatpush1.bf16.msra.mxu0 0
          %6389 = vmatprep.subr.bf16.mxu0 0
          %6390 = vmatpush1.bf16.msra.mxu0 0
          %6391 = vmatprep.subr.bf16.mxu0 0
          %6392 = vmatpush1.bf16.msra.mxu0 0
          %6393 = vmatprep.subr.bf16.mxu0 0
          %6394 = vmatpush1.bf16.msra.mxu0 0
          %6395 = vmatprep.subr.bf16.mxu0 0
          %6396 = vmatpush1.bf16.msra.mxu0 0
          %6397 = vmatprep.subr.bf16.mxu0 0
          %6398 = vmatpush1.bf16.msra.mxu0 0
          %6399 = vmatprep.subr.bf16.mxu0 0
          %6400 = vmatpush1.bf16.msra.mxu0 0
          %6401 = vmatprep.subr.bf16.mxu0 0
          %6402 = vmatpush1.bf16.msra.mxu0 0
          %6403 = vmatprep.subr.bf16.mxu0 0
          %6404 = vmatpush1.bf16.msra.mxu0 0
          %6405 = vmatprep.subr.bf16.mxu0 0
          %6406 = vmatpush1.bf16.msra.mxu0 0
          %6407 = vmatprep.subr.bf16.mxu0 0
          %6408 = vmatpush1.bf16.msra.mxu0 0
          %6409 = vmatprep.mubr.bf16.mxu0 0
          %6410 = vmatmul.mubr.bf16.gmra.mrb[0].mxu0 %v6375
          %v6411 = vpop.f32.mrb[0].mxu0
          %v6412 = vadd.f32 %v6360, %v6411
          %v6413 = vpop.f32.mrb[0].mxu0
          %v6414 = vpop.f32.mrb[0].mxu0
          %v6415 = vpop.f32.mrb[0].mxu0
          %6416 = vdwg.mxu0
          %v6417 = vpack.c.bf16 %v6412, %v6412
          %v6418 = vld [vmem:[%s8] sm:$0xf]
          %v6419 = vld [vmem:[%s8 + $0x4] sm:$0xf]
          %v6420 = vld [vmem:[%s8 + $0x8] sm:$0xf]
          %v6421 = vld [vmem:[%s8 + $0xc] sm:$0xf]
          %v6422 = vld [vmem:[%s9] sm:$0x1]
          %v6424 = vlaneseq
          %v6425 = vshrl.u32 %v6424, 7
          %v6426 = vsub.s32 0, %v6425
          %v6427 = vrot.slane %v6422, %v6426
          %v6433 = vunpack.c.l.b16 %v6418
          %v6434 = vunpack.c.l.b16 %v6419
          %v6435 = vunpack.c.l.b16 %v6420
          %v6436 = vunpack.c.l.b16 %v6421
          %v6437 = vpack.c.b16 %v6434, %v6433
          %v6438 = vpack.c.b16 %v6436, %v6435
          %v6442 = vsel %vm704, %v6417, 0
          %6444 = vmatprep.subr.bf16.mxu0 0
          %6445 = vmatpush1.bf16.msra.mxu0 %v6437
          %6446 = vmatprep.subr.bf16.mxu0 0
          %6447 = vmatpush1.bf16.msra.mxu0 %v6438
          %6448 = vmatprep.subr.bf16.mxu0 0
          %6449 = vmatpush1.bf16.msra.mxu0 0
          %6450 = vmatprep.subr.bf16.mxu0 0
          %6451 = vmatpush1.bf16.msra.mxu0 0
          %6452 = vmatprep.subr.bf16.mxu0 0
          %6453 = vmatpush1.bf16.msra.mxu0 0
          %6454 = vmatprep.subr.bf16.mxu0 0
          %6455 = vmatpush1.bf16.msra.mxu0 0
          %6456 = vmatprep.subr.bf16.mxu0 0
          %6457 = vmatpush1.bf16.msra.mxu0 0
          %6458 = vmatprep.subr.bf16.mxu0 0
          %6459 = vmatpush1.bf16.msra.mxu0 0
          %6460 = vmatprep.subr.bf16.mxu0 0
          %6461 = vmatpush1.bf16.msra.mxu0 0
          %6462 = vmatprep.subr.bf16.mxu0 0
          %6463 = vmatpush1.bf16.msra.mxu0 0
          %6464 = vmatprep.subr.bf16.mxu0 0
          %6465 = vmatpush1.bf16.msra.mxu0 0
          %6466 = vmatprep.subr.bf16.mxu0 0
          %6467 = vmatpush1.bf16.msra.mxu0 0
          %6468 = vmatprep.subr.bf16.mxu0 0
          %6469 = vmatpush1.bf16.msra.mxu0 0
          %6470 = vmatprep.subr.bf16.mxu0 0
          %6471 = vmatpush1.bf16.msra.mxu0 0
          %6472 = vmatprep.subr.bf16.mxu0 0
          %6473 = vmatpush1.bf16.msra.mxu0 0
          %6474 = vmatprep.subr.bf16.mxu0 0
          %6475 = vmatpush1.bf16.msra.mxu0 0
          %6476 = vmatprep.mubr.bf16.mxu0 0
          %6477 = vmatmul.mubr.bf16.gmra.mrb[0].mxu0 %v6442
          %v6478 = vpop.f32.mrb[0].mxu0
          %v6479 = vadd.f32 %v6427, %v6478
          %v6480 = vpop.f32.mrb[0].mxu0
          %v6481 = vpop.f32.mrb[0].mxu0
          %v6482 = vpop.f32.mrb[0].mxu0
          %6483 = vdwg.mxu0
          %vm6484 = vcmask 1041408
          %v6485 = vsel %vm6484, %v6479, -inf
          %6486 = vmax.xlane.f32.xlu0 %v6485
          %v6487 = vpop.xlane.xlu0 %6486
          %v6488 = vsub.f32 %v6479, %v6487
          %v6489 = vmul.f32 %v6488, 1.442695
          %v6490 = vpow.pop %v6489
          %v6491 = vsel %vm6484, %v6490, 0.0
          %6492 = vadd.xlane.f32.xlu0 %v6491
          %v6493 = vpop.xlane.xlu0 %6492
          %v6494 = vlog2.pop %v6493
          %v6495 = vmul.f32 %v6494, 0.6931472
          %v6496 = vsub.f32 %v6488, %v6495
          %6497 = vst [vmem:[#allocation7] sm:$0x3] %v6496
        $region72: #{forward.1} parent=59 // pred_fallthru
          _
        // Predicated region
        $region73: #{forward.1} parent=59 // pred_check
          %p6498 = pneg %p288
        $region74: #{forward.1} parent=59 // pred_check_branch
          %6500 = sbr.rel (%p6498) target = $region76
        $region75: #{forward.1} parent=59 // pred_region
          %s6502 = ssub.s32 32, 32
          %6503 = vsyncadd [#allocation6], %s6502
          %s6504 = smul.addr %s29, 32
          %s6505 = scalar_lea.hbm %s10, %s6504
          %s6507 = sshll.u32 [#allocation7], 4
          %s6508 = int_to_ptr.vmem [resolvable:$true] %s6507
          %6510 = dma.vmem_to_hbm [thread:$0]  %s6508, 32, %s6505, [#allocation6]
        $region76: #{forward.1} parent=59 // pred_fallthru
          _
        // Predicated region
        $region77: #{forward.1} parent=59 // pred_check
          %p6511 = pneg %p288
        $region78: #{forward.1} parent=59 // pred_check_branch
          %6513 = sbr.rel (%p6511) target = $region80
        $region79: #{forward.1} parent=59 // pred_region
          %6514 = dma.done [#allocation6], 32
        $region80: #{forward.1} parent=59 // pred_fallthru
          _
      $region60: #{forward.1} parent=5 // pred_fallthru
        _
      %p6515 = scmp.le.s32.totalorder 2, %s20
      // Predicated region
      $region81: #{forward.1} parent=5 // pred_check
        %p6516 = pneg %p6515
      $region82: #{forward.1} parent=5 // pred_check_branch
        %6518 = sbr.rel (%p6516) target = $region84
      $region83: #{forward.1} parent=5 // pred_region
        %s6519 = ssub.s32 %s20, 2
      $region84: #{forward.1} parent=5 // pred_fallthru
        _
    $region6: #{forward.1} parent=1 // loop_footer
      %s24 = sadd.s32 1, %s20
    $region7: #{forward.1} parent=1 // loop_footer_branch
      %19 = sbr.rel target = $region3
    $region8: #{forward.1} parent=1 // loop_exit
      _
    %6520 = vsyncpa [#allocation5], 1
    %s6521 = scalar_lea.sflag [#allocation5], 1
    %6522 = vsyncpa %s6521, 1
    %6523 = vsyncpa [#allocation6], 1
    %s6524 = scalar_lea.sflag [#allocation6], 1
    %6525 = vsyncpa %s6524, 1

</llo_original>
